<compile_context>
chip_gen: v6e
topology: v6e:2x2x1
jax: 0.10.0
libtpu: 0.0.40
codegen_flags: <defaults>
</compile_context>

<pallas_src>
import math
import jax
import jax.numpy as jnp
from jax import lax
from jax.experimental import pallas as pl
from jax.experimental.pallas import tpu as pltpu

D_FEAT = 1
D_MODEL = 64
NHEAD = 4
HEAD_DIM = D_MODEL // NHEAD
NUM_LAYERS = 2
D_FF = 2048            # nn.TransformerEncoderLayer default dim_feedforward
D_OUT = 5
D_OUT_PAD = 128        # decoder output lane-padded to a full vreg width
LN_EPS = 1e-5


def _ln(x, g, b):
    """LayerNorm over the last axis (f32 statistics)."""
    mu = jnp.mean(x, axis=-1, keepdims=True)
    xc = x - mu
    var = jnp.mean(xc * xc, axis=-1, keepdims=True)
    return xc * lax.rsqrt(var + LN_EPS) * g + b


# ---------------------------------------------------------------------------
# Fused 2-layer encoder + decoder kernel: one (Bb, T) block of sequences / step
# ---------------------------------------------------------------------------
def make_encoder_kernel(Bb, T):
    BbT = Bb * T

    def kernel(x_ref, wqk_ref, bqk_ref, wvo_ref, vec_ref,
               w1_ref, b1_ref, w2_ref, wdec_ref, bdec_ref, o_ref):

        def mha(hb, layer):
            """Self-attention on a (BbT, D) bf16 slab -> (BbT, D) f32 (bias not added).

            One fused 128-wide Q|K projection (softmax scale pre-folded into Q); the
            value+output projections are pre-folded per head into wvo[layer, h], so the
            post-softmax path is a d=64 einsum per head (no K=16 matmuls, no concat)."""
            qk = (jnp.dot(hb, wqk_ref[layer], preferred_element_type=jnp.float32)
                  + bqk_ref[layer]).astype(jnp.bfloat16)          # (BbT, 128)
            qk3 = qk.reshape(Bb, T, 2 * D_MODEL)
            out = None
            for hh in range(NHEAD):                                # static unroll (4)
                q_h = qk3[:, :, hh * HEAD_DIM:(hh + 1) * HEAD_DIM]                 # (Bb,T,16)
                k_h = qk3[:, :, D_MODEL + hh * HEAD_DIM:D_MODEL + (hh + 1) * HEAD_DIM]
                s = jnp.einsum('bqd,bkd->bqk', q_h, k_h,
                               preferred_element_type=jnp.float32)                 # (Bb,T,T)
                s = s - jnp.max(s, axis=-1, keepdims=True)
                e = jnp.exp(s)
                p = (e * pl.reciprocal(jnp.sum(e, axis=-1, keepdims=True),
                                       approx=True)).astype(jnp.bfloat16)
                vo = jnp.dot(hb, wvo_ref[layer, hh],
                             preferred_element_type=jnp.float32)                   # (BbT,64)
                vo3 = vo.astype(jnp.bfloat16).reshape(Bb, T, D_MODEL)
                o_h = jnp.einsum('bqk,bkd->bqd', p, vo3,
                                 preferred_element_type=jnp.float32)               # (Bb,T,64)
                out = o_h if out is None else out + o_h
            return out.reshape(BbT, D_MODEL)

        def ffn(y, layer, b2):
            """64 -> 2048 -> 64 feed-forward with ReLU (bf16 matmuls, f32 accumulate)."""
            h1 = jnp.dot(y.astype(jnp.bfloat16), w1_ref[layer],
                         preferred_element_type=jnp.float32) + b1_ref[layer]
            h1 = jnp.maximum(h1, 0.0)
            return jnp.dot(h1.astype(jnp.bfloat16), w2_ref[layer],
                           preferred_element_type=jnp.float32) + b2

        h = x_ref[...]                                             # (BbT, D) f32

        # ----- all layers except the last: full (BbT, D) path --------------------
        for l in range(NUM_LAYERS - 1):                            # static unroll
            vl = vec_ref[l]                                        # (6, D) f32
            attn = mha(h.astype(jnp.bfloat16), l)
            y = _ln(h + attn + vl[0:1], vl[1:2], vl[2:3])          # residual + LN1
            h = _ln(y + ffn(y, l, vl[5:6]), vl[3:4], vl[4:5])      # FFN + LN2

        # ----- last layer: only the final time step feeds the decoder ------------
        l = NUM_LAYERS - 1
        vl = vec_ref[l]
        attn = mha(h.astype(jnp.bfloat16), l)                      # K/V over all T
        y_last = (h + attn).reshape(Bb, T, D_MODEL)[:, T - 1, :] + vl[0:1]   # (Bb, D)
        y = _ln(y_last, vl[1:2], vl[2:3])
        z = _ln(y + ffn(y, l, vl[5:6]), vl[3:4], vl[4:5])          # (Bb, D)

        # ----- fused decoder head (64 -> 5, lane-padded to 128) -------------------
        o_ref[...] = (jnp.dot(z, wdec_ref[...], preferred_element_type=jnp.float32)
                      + bdec_ref[...])

    return kernel


def _choose_block_batch(B, T, target_rows=1024):
    """Sequences per grid step.

    Constraints: Bb divides B and (Bb % 8 == 0 or Bb == B) so every block shape stays
    (8,128)-tileable.  Preference order: row count Bb*T within `target_rows` (keeps the
    (BbT,2048) FFN intermediate VMEM-safe, incl. v7x's 64 MiB), >=2 grid steps (both v7x
    TensorCores get work), then the largest block (amortizes ~0.35us/step, fills MXU M).
    """
    valid = [bb for bb in range(1, B + 1)
             if B % bb == 0 and (bb % 8 == 0 or bb == B)]
    fitting = [bb for bb in valid if bb * T <= target_rows]
    if fitting:
        multi = [bb for bb in fitting if B // bb >= 2]
        return max(multi) if multi else max(fitting)
    # Nothing fits the target (very long T): smallest legal block bounds VMEM use.
    return min(valid)


def transformer_encoder_pallas(x, enc, wdec, bdec, *, block_batch=None):
    """x: (B, T, D_MODEL) f32. Returns (B, D_OUT_PAD): decoder output (cols >= D_OUT are 0)."""
    B, T, D = x.shape
    assert D == D_MODEL
    Bb = _choose_block_batch(B, T) if block_batch is None else block_batch
    assert B % Bb == 0 and (Bb % 8 == 0 or Bb == B), (B, Bb)
    grid = (B // Bb,)

    x_flat = x.reshape(B * T, D)
    weights = [enc["wqk"], enc["bqk"], enc["wvo"], enc["vecs"],
               enc["w1"], enc["b1"], enc["w2"], wdec, bdec]

    def rep_spec(a):
        # full-array block, constant index map -> fetched once, stays resident in VMEM
        return pl.BlockSpec(a.shape, lambda i, n=a.ndim: (0,) * n)

    in_specs = [pl.BlockSpec((Bb * T, D), lambda i: (i, 0))] + [rep_spec(a) for a in weights]
    out_spec = pl.BlockSpec((Bb, D_OUT_PAD), lambda i: (i, 0))

    return pl.pallas_call(
        make_encoder_kernel(Bb, T),
        out_shape=jax.ShapeDtypeStruct((B, D_OUT_PAD), jnp.float32),
        grid=grid,
        in_specs=in_specs,
        out_specs=out_spec,
        compiler_params=pltpu.CompilerParams(
            dimension_semantics=("parallel",),       # batch blocks are independent
            vmem_limit_bytes=48 * 1024 * 1024,       # safe on v5e/v6e/v7x
        ),
    )(x_flat, *weights)


# ---------------------------------------------------------------------------
# Parameter init (deterministic, synthetic) and kernel-side weight prep
# ---------------------------------------------------------------------------
def init_params(key):
    keys = jax.random.split(key, 4 + NUM_LAYERS)
    params = {
        "w_feat": jax.random.normal(keys[0], (D_FEAT, D_MODEL), jnp.float32) * 0.1,
        "b_feat": jax.random.normal(keys[1], (D_MODEL,), jnp.float32) * 0.01,
        "w_dec": jax.random.normal(keys[2], (D_MODEL, D_OUT), jnp.float32) * 0.1,
        "b_dec": jax.random.normal(keys[3], (D_OUT,), jnp.float32) * 0.01,
        "layers": [],
    }
    for l in range(NUM_LAYERS):
        lk = jax.random.split(keys[4 + l], 8)
        layer = {
            "wqkv": jax.random.normal(lk[0], (D_MODEL, 3 * D_MODEL), jnp.float32) * 0.05,
            "bqkv": jax.random.normal(lk[1], (1, 3 * D_MODEL), jnp.float32) * 0.01,
            "wo":   jax.random.normal(lk[2], (D_MODEL, D_MODEL), jnp.float32) * 0.05,
            "bo":   jax.random.normal(lk[3], (1, D_MODEL), jnp.float32) * 0.01,
            "ln1_g": jnp.ones((1, D_MODEL), jnp.float32),
            "ln1_b": jnp.zeros((1, D_MODEL), jnp.float32),
            "ln2_g": jnp.ones((1, D_MODEL), jnp.float32),
            "ln2_b": jnp.zeros((1, D_MODEL), jnp.float32),
            "w1":   jax.random.normal(lk[4], (D_MODEL, D_FF), jnp.float32) * 0.05,
            "b1":   jax.random.normal(lk[5], (1, D_FF), jnp.float32) * 0.01,
            "w2":   jax.random.normal(lk[6], (D_FF, D_MODEL), jnp.float32) * 0.02,
            "b2":   jax.random.normal(lk[7], (1, D_MODEL), jnp.float32) * 0.01,
        }
        params["layers"].append(layer)
    return params


def prepare_encoder_params(params):
    """Stack layer weights, fuse Q|K (with the softmax scale folded into Q), pre-fold the
    per-head V->O weights, fold bv@wo into the output bias, pack the small vectors, and
    pre-cast matmul weights to bf16."""
    L = len(params["layers"])
    bf16 = jnp.bfloat16
    scale = 1.0 / math.sqrt(HEAD_DIM)
    st = lambda name: jnp.stack([params["layers"][l][name] for l in range(L)])

    wqkv = st("wqkv")                               # (L, D, 3D)
    bqkv = st("bqkv")                               # (L, 1, 3D)
    wo = st("wo")                                   # (L, D, D)
    bo = st("bo")                                   # (L, 1, D)

    wq = wqkv[:, :, :D_MODEL] * scale
    wk = wqkv[:, :, D_MODEL:2 * D_MODEL]
    wv = wqkv[:, :, 2 * D_MODEL:]
    bq = bqkv[:, :, :D_MODEL] * scale
    bk = bqkv[:, :, D_MODEL:2 * D_MODEL]
    bv = bqkv[:, :, 2 * D_MODEL:]

    # fused, pre-scaled Q|K projection
    wqk = jnp.concatenate([wq, wk], axis=-1).astype(bf16)          # (L, D, 2D)
    bqk = jnp.concatenate([bq, bk], axis=-1)                       # (L, 1, 2D)

    # per-head folded value->output weights: wvo[l,h] = wv_h @ wo_h
    wv_h = wv.reshape(L, D_MODEL, NHEAD, HEAD_DIM)                 # (L, D, H, hd)
    wo_h = wo.reshape(L, NHEAD, HEAD_DIM, D_MODEL)                 # (L, H, hd, D)
    wvo = jnp.einsum('ldhk,lhkm->lhdm', wv_h, wo_h).astype(bf16)   # (L, H, D, D)

    # output-projection bias with the value bias folded in (softmax rows sum to 1)
    bo_eff = bo + jnp.einsum('lik,lkm->lim', bv, wo)               # (L, 1, D)

    # packed small vectors: rows = [bo_eff, ln1_g, ln1_b, ln2_g, ln2_b, b2]
    vecs = jnp.concatenate([bo_eff, st("ln1_g"), st("ln1_b"),
                            st("ln2_g"), st("ln2_b"), st("b2")], axis=1)  # (L, 6, D)

    return {
        "wqk": wqk, "bqk": bqk, "wvo": wvo, "vecs": vecs,
        "w1": st("w1").astype(bf16), "b1": st("b1"),
        "w2": st("w2").astype(bf16),
    }


def positional_encoding(T, d_model):
    position = jnp.arange(T, dtype=jnp.float32)[:, None]
    div_term = jnp.exp(jnp.arange(0, d_model, 2, dtype=jnp.float32)
                       * (-math.log(10000.0) / d_model))
    pe = jnp.zeros((T, d_model), jnp.float32)
    pe = pe.at[:, 0::2].set(jnp.sin(position * div_term))
    pe = pe.at[:, 1::2].set(jnp.cos(position * div_term))
    return pe


# ---------------------------------------------------------------------------
# Full model forward (Pallas fused encoder+decoder + tiny JAX glue)
# ---------------------------------------------------------------------------
def model_forward(src, params, *, block_batch=None):
    # src: (B, T, d_feat)
    B, T, _ = src.shape
    x = src @ params["w_feat"] + params["b_feat"]            # feature projection (B,T,D)
    x = x + positional_encoding(T, D_MODEL)[None, :, :]      # positional encoding
    enc = prepare_encoder_params(params)
    wdec_pad = jnp.zeros((D_MODEL, D_OUT_PAD), jnp.float32).at[:, :D_OUT].set(params["w_dec"])
    bdec_pad = jnp.zeros((1, D_OUT_PAD), jnp.float32).at[0, :D_OUT].set(params["b_dec"])
    out_pad = transformer_encoder_pallas(x, enc, wdec_pad, bdec_pad,
                                         block_batch=block_batch)   # (B, 128)
    return out_pad[:, :D_OUT, None]                          # (B, 5, 1) == unsqueeze(-1)


# ---------------------------------------------------------------------------
# Pure-JAX f32 reference (for correctness check)
# ---------------------------------------------------------------------------
def encoder_layer_ref(x, p):
    B, T, D = x.shape
    qkv = x @ p["wqkv"] + p["bqkv"]
    q, k, v = jnp.split(qkv, 3, axis=-1)

    def split_heads(a):
        return a.reshape(B, T, NHEAD, HEAD_DIM).transpose(0, 2, 1, 3)

    q, k, v = split_heads(q), split_heads(k), split_heads(v)
    s = (q / math.sqrt(HEAD_DIM)) @ jnp.swapaxes(k, -1, -2)
    a = jax.nn.softmax(s, axis=-1) @ v
    a = a.transpose(0, 2, 1, 3).reshape(B, T, D)
    a = a @ p["wo"] + p["bo"]
    y = _ln(x + a, p["ln1_g"], p["ln1_b"])
    ff = jnp.maximum(y @ p["w1"] + p["b1"], 0.0) @ p["w2"] + p["b2"]
    return _ln(y + ff, p["ln2_g"], p["ln2_b"])


def model_forward_ref(src, params):
    B, T, _ = src.shape
    x = src @ params["w_feat"] + params["b_feat"]
    x = x + positional_encoding(T, D_MODEL)[None, :, :]
    for l in range(NUM_LAYERS):
        x = encoder_layer_ref(x, params["layers"][l])
    out = x[:, -1, :] @ params["w_dec"] + params["b_dec"]
    return out[:, :, None]


if __name__ == "__main__":
    key = jax.random.PRNGKey(0)
    pkey, xkey, xkey2 = jax.random.split(key, 3)
    params = init_params(pkey)

    # Tolerance is relaxed vs the f32 reference because the kernel runs its matmuls with
    # bf16 inputs (f32 accumulation) and uses the approximate EUP reciprocal in softmax.
    TOL = 5e-2

    # small shapes consistent with the module (B=4 sequences of length T=8, d_feat=1)
    B, T = 4, 8
    src = jax.random.normal(xkey, (B, T, D_FEAT), jnp.float32)
    out = jax.block_until_ready(model_forward(src, params))
    ref = jax.block_until_ready(model_forward_ref(src, params))
    assert out.shape == (B, D_OUT, 1), out.shape
    err = float(jnp.max(jnp.abs(out - ref)))
    assert err < TOL, f"max abs diff {err}"

    # multi-block grid path (block chooser picks Bb=16 -> 2 parallel grid steps)
    B2 = 32
    src2 = jax.random.normal(xkey2, (B2, T, D_FEAT), jnp.float32)
    out2 = jax.block_until_ready(model_forward(src2, params))
    ref2 = jax.block_until_ready(model_forward_ref(src2, params))
    assert out2.shape == (B2, D_OUT, 1), out2.shape
    err2 = float(jnp.max(jnp.abs(out2 - ref2)))
    assert err2 < TOL, f"max abs diff {err2}"

    print("KERNEL_OK")
</pallas_src>

<mosaic_0001>
module attributes {stable_mosaic.version = 11 : i64} {
  func.func @kernel(%arg0: i32, %arg1: memref<32x64xf32, #tpu.memory_space<vmem>>, %arg2: memref<2x64x128xbf16, #tpu.memory_space<vmem>>, %arg3: memref<2x1x128xf32, #tpu.memory_space<vmem>>, %arg4: memref<2x4x64x64xbf16, #tpu.memory_space<vmem>>, %arg5: memref<2x6x64xf32, #tpu.memory_space<vmem>>, %arg6: memref<2x64x2048xbf16, #tpu.memory_space<vmem>>, %arg7: memref<2x1x2048xf32, #tpu.memory_space<vmem>>, %arg8: memref<2x2048x64xbf16, #tpu.memory_space<vmem>>, %arg9: memref<64x128xf32, #tpu.memory_space<vmem>>, %arg10: memref<1x128xf32, #tpu.memory_space<vmem>>, %arg11: memref<4x128xf32, #tpu.memory_space<vmem>>) attributes {dimension_semantics = [#tpu.dimension_semantics<parallel>], iteration_bounds = array<i64: 1>, scalar_prefetch = 0 : i64, scratch_operands = 0 : i64, tpu.core_type = #tpu.core_type<tc>, window_params = [{transform_indices = @transform_0, window_bounds = array<i64: 32, 64>}, {pipeline_mode = #tpu.pipeline_mode<synchronous>, transform_indices = @transform_1, window_bounds = array<i64: 2, 64, 128>}, {pipeline_mode = #tpu.pipeline_mode<synchronous>, transform_indices = @transform_2, window_bounds = array<i64: 2, 1, 128>}, {pipeline_mode = #tpu.pipeline_mode<synchronous>, transform_indices = @transform_3, window_bounds = array<i64: 2, 4, 64, 64>}, {pipeline_mode = #tpu.pipeline_mode<synchronous>, transform_indices = @transform_4, window_bounds = array<i64: 2, 6, 64>}, {pipeline_mode = #tpu.pipeline_mode<synchronous>, transform_indices = @transform_5, window_bounds = array<i64: 2, 64, 2048>}, {pipeline_mode = #tpu.pipeline_mode<synchronous>, transform_indices = @transform_6, window_bounds = array<i64: 2, 1, 2048>}, {pipeline_mode = #tpu.pipeline_mode<synchronous>, transform_indices = @transform_7, window_bounds = array<i64: 2, 2048, 64>}, {pipeline_mode = #tpu.pipeline_mode<synchronous>, transform_indices = @transform_8, window_bounds = array<i64: 64, 128>}, {pipeline_mode = #tpu.pipeline_mode<synchronous>, transform_indices = @transform_9, window_bounds = array<i64: 1, 128>}, {transform_indices = @transform_10, window_bounds = array<i64: 4, 128>}]} {
    %c0 = arith.constant 0 : index
    %c0_0 = arith.constant 0 : index
    %0 = vector.load %arg1[%c0, %c0_0] : memref<32x64xf32, #tpu.memory_space<vmem>>, vector<32x64xf32>
    %c0_1 = arith.constant 0 : index
    %c0_2 = arith.constant 0 : index
    %c0_3 = arith.constant 0 : index
    %1 = vector.load %arg5[%c0_1, %c0_2, %c0_3] : memref<2x6x64xf32, #tpu.memory_space<vmem>>, vector<1x6x64xf32>
    %2 = vector.shape_cast %1 : vector<1x6x64xf32> to vector<6x64xf32>
    %3 = arith.truncf %0 : vector<32x64xf32> to vector<32x64xbf16>
    %c0_4 = arith.constant 0 : index
    %c0_5 = arith.constant 0 : index
    %c0_6 = arith.constant 0 : index
    %4 = vector.load %arg2[%c0_4, %c0_5, %c0_6] : memref<2x64x128xbf16, #tpu.memory_space<vmem>>, vector<1x64x128xbf16>
    %5 = vector.shape_cast %4 : vector<1x64x128xbf16> to vector<64x128xbf16>
    %cst = arith.constant dense<0.000000e+00> : vector<32x128xf32>
    %6 = tpu.matmul %3, %5, %cst {dimension_numbers = #tpu.dot_dimension_numbers<[1], [0], [0], [1], [0, 0, 1, 1], [], []>} : vector<32x64xbf16>, vector<64x128xbf16>, vector<32x128xf32> -> vector<32x128xf32>
    %c0_7 = arith.constant 0 : index
    %c0_8 = arith.constant 0 : index
    %c0_9 = arith.constant 0 : index
    %7 = vector.load %arg3[%c0_7, %c0_8, %c0_9] : memref<2x1x128xf32, #tpu.memory_space<vmem>>, vector<1x1x128xf32>
    %8 = vector.shape_cast %7 : vector<1x1x128xf32> to vector<1x128xf32>
    %9 = vector.broadcast %8 : vector<1x128xf32> to vector<32x128xf32>
    %10 = arith.addf %6, %9 : vector<32x128xf32>
    %11 = arith.truncf %10 : vector<32x128xf32> to vector<32x128xbf16>
    %12 = vector.shape_cast %11 : vector<32x128xbf16> to vector<4x8x128xbf16>
    %13 = vector.extract_strided_slice %12 {offsets = [0, 0, 0], sizes = [4, 8, 16], strides = [1, 1, 1]} : vector<4x8x128xbf16> to vector<4x8x16xbf16>
    %14 = vector.extract_strided_slice %12 {offsets = [0, 0, 64], sizes = [4, 8, 16], strides = [1, 1, 1]} : vector<4x8x128xbf16> to vector<4x8x16xbf16>
    "tpu.trace_start"() <{level = 10 : i32, message = "bqd,bkd->bqk"}> : () -> ()
    %cst_10 = arith.constant dense<0.000000e+00> : vector<4x8x8xf32>
    %15 = tpu.matmul %13, %14, %cst_10 {dimension_numbers = #tpu.dot_dimension_numbers<[2], [2], [1], [1], [0, 0, 0, 1, 1, 1], [0], [0]>} : vector<4x8x16xbf16>, vector<4x8x16xbf16>, vector<4x8x8xf32> -> vector<4x8x8xf32>
    "tpu.trace_stop"() : () -> ()
    %cst_11 = arith.constant dense<0xFF800000> : vector<4x8xf32>
    %16 = vector.multi_reduction <maximumf>, %15, %cst_11 [2] : vector<4x8x8xf32> to vector<4x8xf32>
    %17 = vector.shape_cast %16 : vector<4x8xf32> to vector<4x8x1xf32>
    %18 = vector.broadcast %17 : vector<4x8x1xf32> to vector<4x8x8xf32>
    %19 = arith.subf %15, %18 : vector<4x8x8xf32>
    %20 = math.exp %19 : vector<4x8x8xf32>
    %cst_12 = arith.constant dense<0.000000e+00> : vector<4x8xf32>
    %21 = vector.multi_reduction <add>, %20, %cst_12 [2] : vector<4x8x8xf32> to vector<4x8xf32>
    %22 = vector.shape_cast %21 : vector<4x8xf32> to vector<4x8x1xf32>
    %23 = tpu.reciprocal %22 {approx = true} : vector<4x8x1xf32> -> vector<4x8x1xf32>
    %24 = vector.broadcast %23 : vector<4x8x1xf32> to vector<4x8x8xf32>
    %25 = arith.mulf %20, %24 : vector<4x8x8xf32>
    %26 = arith.truncf %25 : vector<4x8x8xf32> to vector<4x8x8xbf16>
    %c0_13 = arith.constant 0 : index
    %c0_14 = arith.constant 0 : index
    %c0_15 = arith.constant 0 : index
    %c0_16 = arith.constant 0 : index
    %27 = vector.load %arg4[%c0_13, %c0_14, %c0_15, %c0_16] : memref<2x4x64x64xbf16, #tpu.memory_space<vmem>>, vector<1x1x64x64xbf16>
    %28 = vector.shape_cast %27 : vector<1x1x64x64xbf16> to vector<64x64xbf16>
    %cst_17 = arith.constant dense<0.000000e+00> : vector<32x64xf32>
    %29 = tpu.matmul %3, %28, %cst_17 {dimension_numbers = #tpu.dot_dimension_numbers<[1], [0], [0], [1], [0, 0, 1, 1], [], []>} : vector<32x64xbf16>, vector<64x64xbf16>, vector<32x64xf32> -> vector<32x64xf32>
    %30 = arith.truncf %29 : vector<32x64xf32> to vector<32x64xbf16>
    %31 = vector.shape_cast %30 : vector<32x64xbf16> to vector<4x8x64xbf16>
    "tpu.trace_start"() <{level = 10 : i32, message = "bqk,bkd->bqd"}> : () -> ()
    %cst_18 = arith.constant dense<0.000000e+00> : vector<4x8x64xf32>
    %32 = tpu.matmul %26, %31, %cst_18 {dimension_numbers = #tpu.dot_dimension_numbers<[2], [1], [1], [2], [0, 0, 0, 1, 1, 2], [0], [0]>} : vector<4x8x8xbf16>, vector<4x8x64xbf16>, vector<4x8x64xf32> -> vector<4x8x64xf32>
    "tpu.trace_stop"() : () -> ()
    %33 = vector.extract_strided_slice %12 {offsets = [0, 0, 16], sizes = [4, 8, 16], strides = [1, 1, 1]} : vector<4x8x128xbf16> to vector<4x8x16xbf16>
    %34 = vector.extract_strided_slice %12 {offsets = [0, 0, 80], sizes = [4, 8, 16], strides = [1, 1, 1]} : vector<4x8x128xbf16> to vector<4x8x16xbf16>
    "tpu.trace_start"() <{level = 10 : i32, message = "bqd,bkd->bqk"}> : () -> ()
    %cst_19 = arith.constant dense<0.000000e+00> : vector<4x8x8xf32>
    %35 = tpu.matmul %33, %34, %cst_19 {dimension_numbers = #tpu.dot_dimension_numbers<[2], [2], [1], [1], [0, 0, 0, 1, 1, 1], [0], [0]>} : vector<4x8x16xbf16>, vector<4x8x16xbf16>, vector<4x8x8xf32> -> vector<4x8x8xf32>
    "tpu.trace_stop"() : () -> ()
    %cst_20 = arith.constant dense<0xFF800000> : vector<4x8xf32>
    %36 = vector.multi_reduction <maximumf>, %35, %cst_20 [2] : vector<4x8x8xf32> to vector<4x8xf32>
    %37 = vector.shape_cast %36 : vector<4x8xf32> to vector<4x8x1xf32>
    %38 = vector.broadcast %37 : vector<4x8x1xf32> to vector<4x8x8xf32>
    %39 = arith.subf %35, %38 : vector<4x8x8xf32>
    %40 = math.exp %39 : vector<4x8x8xf32>
    %cst_21 = arith.constant dense<0.000000e+00> : vector<4x8xf32>
    %41 = vector.multi_reduction <add>, %40, %cst_21 [2] : vector<4x8x8xf32> to vector<4x8xf32>
    %42 = vector.shape_cast %41 : vector<4x8xf32> to vector<4x8x1xf32>
    %43 = tpu.reciprocal %42 {approx = true} : vector<4x8x1xf32> -> vector<4x8x1xf32>
    %44 = vector.broadcast %43 : vector<4x8x1xf32> to vector<4x8x8xf32>
    %45 = arith.mulf %40, %44 : vector<4x8x8xf32>
    %46 = arith.truncf %45 : vector<4x8x8xf32> to vector<4x8x8xbf16>
    %c0_22 = arith.constant 0 : index
    %c1 = arith.constant 1 : index
    %c0_23 = arith.constant 0 : index
    %c0_24 = arith.constant 0 : index
    %47 = vector.load %arg4[%c0_22, %c1, %c0_23, %c0_24] : memref<2x4x64x64xbf16, #tpu.memory_space<vmem>>, vector<1x1x64x64xbf16>
    %48 = vector.shape_cast %47 : vector<1x1x64x64xbf16> to vector<64x64xbf16>
    %cst_25 = arith.constant dense<0.000000e+00> : vector<32x64xf32>
    %49 = tpu.matmul %3, %48, %cst_25 {dimension_numbers = #tpu.dot_dimension_numbers<[1], [0], [0], [1], [0, 0, 1, 1], [], []>} : vector<32x64xbf16>, vector<64x64xbf16>, vector<32x64xf32> -> vector<32x64xf32>
    %50 = arith.truncf %49 : vector<32x64xf32> to vector<32x64xbf16>
    %51 = vector.shape_cast %50 : vector<32x64xbf16> to vector<4x8x64xbf16>
    "tpu.trace_start"() <{level = 10 : i32, message = "bqk,bkd->bqd"}> : () -> ()
    %cst_26 = arith.constant dense<0.000000e+00> : vector<4x8x64xf32>
    %52 = tpu.matmul %46, %51, %cst_26 {dimension_numbers = #tpu.dot_dimension_numbers<[2], [1], [1], [2], [0, 0, 0, 1, 1, 2], [0], [0]>} : vector<4x8x8xbf16>, vector<4x8x64xbf16>, vector<4x8x64xf32> -> vector<4x8x64xf32>
    "tpu.trace_stop"() : () -> ()
    %53 = arith.addf %32, %52 : vector<4x8x64xf32>
    %54 = vector.extract_strided_slice %12 {offsets = [0, 0, 32], sizes = [4, 8, 16], strides = [1, 1, 1]} : vector<4x8x128xbf16> to vector<4x8x16xbf16>
    %55 = vector.extract_strided_slice %12 {offsets = [0, 0, 96], sizes = [4, 8, 16], strides = [1, 1, 1]} : vector<4x8x128xbf16> to vector<4x8x16xbf16>
    "tpu.trace_start"() <{level = 10 : i32, message = "bqd,bkd->bqk"}> : () -> ()
    %cst_27 = arith.constant dense<0.000000e+00> : vector<4x8x8xf32>
    %56 = tpu.matmul %54, %55, %cst_27 {dimension_numbers = #tpu.dot_dimension_numbers<[2], [2], [1], [1], [0, 0, 0, 1, 1, 1], [0], [0]>} : vector<4x8x16xbf16>, vector<4x8x16xbf16>, vector<4x8x8xf32> -> vector<4x8x8xf32>
    "tpu.trace_stop"() : () -> ()
    %cst_28 = arith.constant dense<0xFF800000> : vector<4x8xf32>
    %57 = vector.multi_reduction <maximumf>, %56, %cst_28 [2] : vector<4x8x8xf32> to vector<4x8xf32>
    %58 = vector.shape_cast %57 : vector<4x8xf32> to vector<4x8x1xf32>
    %59 = vector.broadcast %58 : vector<4x8x1xf32> to vector<4x8x8xf32>
    %60 = arith.subf %56, %59 : vector<4x8x8xf32>
    %61 = math.exp %60 : vector<4x8x8xf32>
    %cst_29 = arith.constant dense<0.000000e+00> : vector<4x8xf32>
    %62 = vector.multi_reduction <add>, %61, %cst_29 [2] : vector<4x8x8xf32> to vector<4x8xf32>
    %63 = vector.shape_cast %62 : vector<4x8xf32> to vector<4x8x1xf32>
    %64 = tpu.reciprocal %63 {approx = true} : vector<4x8x1xf32> -> vector<4x8x1xf32>
    %65 = vector.broadcast %64 : vector<4x8x1xf32> to vector<4x8x8xf32>
    %66 = arith.mulf %61, %65 : vector<4x8x8xf32>
    %67 = arith.truncf %66 : vector<4x8x8xf32> to vector<4x8x8xbf16>
    %c0_30 = arith.constant 0 : index
    %c2 = arith.constant 2 : index
    %c0_31 = arith.constant 0 : index
    %c0_32 = arith.constant 0 : index
    %68 = vector.load %arg4[%c0_30, %c2, %c0_31, %c0_32] : memref<2x4x64x64xbf16, #tpu.memory_space<vmem>>, vector<1x1x64x64xbf16>
    %69 = vector.shape_cast %68 : vector<1x1x64x64xbf16> to vector<64x64xbf16>
    %cst_33 = arith.constant dense<0.000000e+00> : vector<32x64xf32>
    %70 = tpu.matmul %3, %69, %cst_33 {dimension_numbers = #tpu.dot_dimension_numbers<[1], [0], [0], [1], [0, 0, 1, 1], [], []>} : vector<32x64xbf16>, vector<64x64xbf16>, vector<32x64xf32> -> vector<32x64xf32>
    %71 = arith.truncf %70 : vector<32x64xf32> to vector<32x64xbf16>
    %72 = vector.shape_cast %71 : vector<32x64xbf16> to vector<4x8x64xbf16>
    "tpu.trace_start"() <{level = 10 : i32, message = "bqk,bkd->bqd"}> : () -> ()
    %cst_34 = arith.constant dense<0.000000e+00> : vector<4x8x64xf32>
    %73 = tpu.matmul %67, %72, %cst_34 {dimension_numbers = #tpu.dot_dimension_numbers<[2], [1], [1], [2], [0, 0, 0, 1, 1, 2], [0], [0]>} : vector<4x8x8xbf16>, vector<4x8x64xbf16>, vector<4x8x64xf32> -> vector<4x8x64xf32>
    "tpu.trace_stop"() : () -> ()
    %74 = arith.addf %53, %73 : vector<4x8x64xf32>
    %75 = vector.extract_strided_slice %12 {offsets = [0, 0, 48], sizes = [4, 8, 16], strides = [1, 1, 1]} : vector<4x8x128xbf16> to vector<4x8x16xbf16>
    %76 = vector.extract_strided_slice %12 {offsets = [0, 0, 112], sizes = [4, 8, 16], strides = [1, 1, 1]} : vector<4x8x128xbf16> to vector<4x8x16xbf16>
    "tpu.trace_start"() <{level = 10 : i32, message = "bqd,bkd->bqk"}> : () -> ()
    %cst_35 = arith.constant dense<0.000000e+00> : vector<4x8x8xf32>
    %77 = tpu.matmul %75, %76, %cst_35 {dimension_numbers = #tpu.dot_dimension_numbers<[2], [2], [1], [1], [0, 0, 0, 1, 1, 1], [0], [0]>} : vector<4x8x16xbf16>, vector<4x8x16xbf16>, vector<4x8x8xf32> -> vector<4x8x8xf32>
    "tpu.trace_stop"() : () -> ()
    %cst_36 = arith.constant dense<0xFF800000> : vector<4x8xf32>
    %78 = vector.multi_reduction <maximumf>, %77, %cst_36 [2] : vector<4x8x8xf32> to vector<4x8xf32>
    %79 = vector.shape_cast %78 : vector<4x8xf32> to vector<4x8x1xf32>
    %80 = vector.broadcast %79 : vector<4x8x1xf32> to vector<4x8x8xf32>
    %81 = arith.subf %77, %80 : vector<4x8x8xf32>
    %82 = math.exp %81 : vector<4x8x8xf32>
    %cst_37 = arith.constant dense<0.000000e+00> : vector<4x8xf32>
    %83 = vector.multi_reduction <add>, %82, %cst_37 [2] : vector<4x8x8xf32> to vector<4x8xf32>
    %84 = vector.shape_cast %83 : vector<4x8xf32> to vector<4x8x1xf32>
    %85 = tpu.reciprocal %84 {approx = true} : vector<4x8x1xf32> -> vector<4x8x1xf32>
    %86 = vector.broadcast %85 : vector<4x8x1xf32> to vector<4x8x8xf32>
    %87 = arith.mulf %82, %86 : vector<4x8x8xf32>
    %88 = arith.truncf %87 : vector<4x8x8xf32> to vector<4x8x8xbf16>
    %c0_38 = arith.constant 0 : index
    %c3 = arith.constant 3 : index
    %c0_39 = arith.constant 0 : index
    %c0_40 = arith.constant 0 : index
    %89 = vector.load %arg4[%c0_38, %c3, %c0_39, %c0_40] : memref<2x4x64x64xbf16, #tpu.memory_space<vmem>>, vector<1x1x64x64xbf16>
    %90 = vector.shape_cast %89 : vector<1x1x64x64xbf16> to vector<64x64xbf16>
    %cst_41 = arith.constant dense<0.000000e+00> : vector<32x64xf32>
    %91 = tpu.matmul %3, %90, %cst_41 {dimension_numbers = #tpu.dot_dimension_numbers<[1], [0], [0], [1], [0, 0, 1, 1], [], []>} : vector<32x64xbf16>, vector<64x64xbf16>, vector<32x64xf32> -> vector<32x64xf32>
    %92 = arith.truncf %91 : vector<32x64xf32> to vector<32x64xbf16>
    %93 = vector.shape_cast %92 : vector<32x64xbf16> to vector<4x8x64xbf16>
    "tpu.trace_start"() <{level = 10 : i32, message = "bqk,bkd->bqd"}> : () -> ()
    %cst_42 = arith.constant dense<0.000000e+00> : vector<4x8x64xf32>
    %94 = tpu.matmul %88, %93, %cst_42 {dimension_numbers = #tpu.dot_dimension_numbers<[2], [1], [1], [2], [0, 0, 0, 1, 1, 2], [0], [0]>} : vector<4x8x8xbf16>, vector<4x8x64xbf16>, vector<4x8x64xf32> -> vector<4x8x64xf32>
    "tpu.trace_stop"() : () -> ()
    %95 = arith.addf %74, %94 : vector<4x8x64xf32>
    %96 = vector.shape_cast %95 : vector<4x8x64xf32> to vector<32x64xf32>
    %97 = arith.addf %0, %96 : vector<32x64xf32>
    %98 = vector.extract_strided_slice %2 {offsets = [0, 0], sizes = [1, 64], strides = [1, 1]} : vector<6x64xf32> to vector<1x64xf32>
    %99 = vector.broadcast %98 : vector<1x64xf32> to vector<32x64xf32>
    %100 = arith.addf %97, %99 : vector<32x64xf32>
    %101 = vector.extract_strided_slice %2 {offsets = [1, 0], sizes = [1, 64], strides = [1, 1]} : vector<6x64xf32> to vector<1x64xf32>
    %102 = vector.extract_strided_slice %2 {offsets = [2, 0], sizes = [1, 64], strides = [1, 1]} : vector<6x64xf32> to vector<1x64xf32>
    %cst_43 = arith.constant dense<0.000000e+00> : vector<32xf32>
    %103 = vector.multi_reduction <add>, %100, %cst_43 [1] : vector<32x64xf32> to vector<32xf32>
    %104 = vector.shape_cast %103 : vector<32xf32> to vector<32x1xf32>
    %cst_44 = arith.constant 6.400000e+01 : f32
    %105 = vector.broadcast %cst_44 : f32 to vector<32x1xf32>
    %106 = arith.divf %104, %105 : vector<32x1xf32>
    %107 = vector.broadcast %106 : vector<32x1xf32> to vector<32x64xf32>
    %108 = arith.subf %100, %107 : vector<32x64xf32>
    %109 = arith.mulf %108, %108 : vector<32x64xf32>
    %cst_45 = arith.constant dense<0.000000e+00> : vector<32xf32>
    %110 = vector.multi_reduction <add>, %109, %cst_45 [1] : vector<32x64xf32> to vector<32xf32>
    %111 = vector.shape_cast %110 : vector<32xf32> to vector<32x1xf32>
    %cst_46 = arith.constant 6.400000e+01 : f32
    %112 = vector.broadcast %cst_46 : f32 to vector<32x1xf32>
    %113 = arith.divf %111, %112 : vector<32x1xf32>
    %cst_47 = arith.constant 9.99999974E-6 : f32
    %114 = vector.broadcast %cst_47 : f32 to vector<32x1xf32>
    %115 = arith.addf %113, %114 : vector<32x1xf32>
    %116 = math.rsqrt %115 : vector<32x1xf32>
    %117 = vector.broadcast %116 : vector<32x1xf32> to vector<32x64xf32>
    %118 = arith.mulf %108, %117 : vector<32x64xf32>
    %119 = vector.broadcast %101 : vector<1x64xf32> to vector<32x64xf32>
    %120 = arith.mulf %118, %119 : vector<32x64xf32>
    %121 = vector.broadcast %102 : vector<1x64xf32> to vector<32x64xf32>
    %122 = arith.addf %120, %121 : vector<32x64xf32>
    %123 = vector.extract_strided_slice %2 {offsets = [5, 0], sizes = [1, 64], strides = [1, 1]} : vector<6x64xf32> to vector<1x64xf32>
    %124 = arith.truncf %122 : vector<32x64xf32> to vector<32x64xbf16>
    %c0_48 = arith.constant 0 : index
    %c0_49 = arith.constant 0 : index
    %c0_50 = arith.constant 0 : index
    %125 = vector.load %arg6[%c0_48, %c0_49, %c0_50] : memref<2x64x2048xbf16, #tpu.memory_space<vmem>>, vector<1x64x2048xbf16>
    %126 = vector.shape_cast %125 : vector<1x64x2048xbf16> to vector<64x2048xbf16>
    %cst_51 = arith.constant dense<0.000000e+00> : vector<32x2048xf32>
    %127 = tpu.matmul %124, %126, %cst_51 {dimension_numbers = #tpu.dot_dimension_numbers<[1], [0], [0], [1], [0, 0, 1, 1], [], []>} : vector<32x64xbf16>, vector<64x2048xbf16>, vector<32x2048xf32> -> vector<32x2048xf32>
    %c0_52 = arith.constant 0 : index
    %c0_53 = arith.constant 0 : index
    %c0_54 = arith.constant 0 : index
    %128 = vector.load %arg7[%c0_52, %c0_53, %c0_54] : memref<2x1x2048xf32, #tpu.memory_space<vmem>>, vector<1x1x2048xf32>
    %129 = vector.shape_cast %128 : vector<1x1x2048xf32> to vector<1x2048xf32>
    %130 = vector.broadcast %129 : vector<1x2048xf32> to vector<32x2048xf32>
    %131 = arith.addf %127, %130 : vector<32x2048xf32>
    %cst_55 = arith.constant 0.000000e+00 : f32
    %132 = vector.broadcast %cst_55 : f32 to vector<32x2048xf32>
    %133 = arith.maximumf %131, %132 : vector<32x2048xf32>
    %134 = arith.truncf %133 : vector<32x2048xf32> to vector<32x2048xbf16>
    %c0_56 = arith.constant 0 : index
    %c0_57 = arith.constant 0 : index
    %c0_58 = arith.constant 0 : index
    %135 = vector.load %arg8[%c0_56, %c0_57, %c0_58] : memref<2x2048x64xbf16, #tpu.memory_space<vmem>>, vector<1x2048x64xbf16>
    %136 = vector.shape_cast %135 : vector<1x2048x64xbf16> to vector<2048x64xbf16>
    %cst_59 = arith.constant dense<0.000000e+00> : vector<32x64xf32>
    %137 = tpu.matmul %134, %136, %cst_59 {dimension_numbers = #tpu.dot_dimension_numbers<[1], [0], [0], [1], [0, 0, 1, 1], [], []>} : vector<32x2048xbf16>, vector<2048x64xbf16>, vector<32x64xf32> -> vector<32x64xf32>
    %138 = vector.broadcast %123 : vector<1x64xf32> to vector<32x64xf32>
    %139 = arith.addf %137, %138 : vector<32x64xf32>
    %140 = arith.addf %122, %139 : vector<32x64xf32>
    %141 = vector.extract_strided_slice %2 {offsets = [3, 0], sizes = [1, 64], strides = [1, 1]} : vector<6x64xf32> to vector<1x64xf32>
    %142 = vector.extract_strided_slice %2 {offsets = [4, 0], sizes = [1, 64], strides = [1, 1]} : vector<6x64xf32> to vector<1x64xf32>
    %cst_60 = arith.constant dense<0.000000e+00> : vector<32xf32>
    %143 = vector.multi_reduction <add>, %140, %cst_60 [1] : vector<32x64xf32> to vector<32xf32>
    %144 = vector.shape_cast %143 : vector<32xf32> to vector<32x1xf32>
    %cst_61 = arith.constant 6.400000e+01 : f32
    %145 = vector.broadcast %cst_61 : f32 to vector<32x1xf32>
    %146 = arith.divf %144, %145 : vector<32x1xf32>
    %147 = vector.broadcast %146 : vector<32x1xf32> to vector<32x64xf32>
    %148 = arith.subf %140, %147 : vector<32x64xf32>
    %149 = arith.mulf %148, %148 : vector<32x64xf32>
    %cst_62 = arith.constant dense<0.000000e+00> : vector<32xf32>
    %150 = vector.multi_reduction <add>, %149, %cst_62 [1] : vector<32x64xf32> to vector<32xf32>
    %151 = vector.shape_cast %150 : vector<32xf32> to vector<32x1xf32>
    %cst_63 = arith.constant 6.400000e+01 : f32
    %152 = vector.broadcast %cst_63 : f32 to vector<32x1xf32>
    %153 = arith.divf %151, %152 : vector<32x1xf32>
    %cst_64 = arith.constant 9.99999974E-6 : f32
    %154 = vector.broadcast %cst_64 : f32 to vector<32x1xf32>
    %155 = arith.addf %153, %154 : vector<32x1xf32>
    %156 = math.rsqrt %155 : vector<32x1xf32>
    %157 = vector.broadcast %156 : vector<32x1xf32> to vector<32x64xf32>
    %158 = arith.mulf %148, %157 : vector<32x64xf32>
    %159 = vector.broadcast %141 : vector<1x64xf32> to vector<32x64xf32>
    %160 = arith.mulf %158, %159 : vector<32x64xf32>
    %161 = vector.broadcast %142 : vector<1x64xf32> to vector<32x64xf32>
    %162 = arith.addf %160, %161 : vector<32x64xf32>
    %c1_65 = arith.constant 1 : index
    %c0_66 = arith.constant 0 : index
    %c0_67 = arith.constant 0 : index
    %163 = vector.load %arg5[%c1_65, %c0_66, %c0_67] : memref<2x6x64xf32, #tpu.memory_space<vmem>>, vector<1x6x64xf32>
    %164 = vector.shape_cast %163 : vector<1x6x64xf32> to vector<6x64xf32>
    %165 = arith.truncf %162 : vector<32x64xf32> to vector<32x64xbf16>
    %c1_68 = arith.constant 1 : index
    %c0_69 = arith.constant 0 : index
    %c0_70 = arith.constant 0 : index
    %166 = vector.load %arg2[%c1_68, %c0_69, %c0_70] : memref<2x64x128xbf16, #tpu.memory_space<vmem>>, vector<1x64x128xbf16>
    %167 = vector.shape_cast %166 : vector<1x64x128xbf16> to vector<64x128xbf16>
    %cst_71 = arith.constant dense<0.000000e+00> : vector<32x128xf32>
    %168 = tpu.matmul %165, %167, %cst_71 {dimension_numbers = #tpu.dot_dimension_numbers<[1], [0], [0], [1], [0, 0, 1, 1], [], []>} : vector<32x64xbf16>, vector<64x128xbf16>, vector<32x128xf32> -> vector<32x128xf32>
    %c1_72 = arith.constant 1 : index
    %c0_73 = arith.constant 0 : index
    %c0_74 = arith.constant 0 : index
    %169 = vector.load %arg3[%c1_72, %c0_73, %c0_74] : memref<2x1x128xf32, #tpu.memory_space<vmem>>, vector<1x1x128xf32>
    %170 = vector.shape_cast %169 : vector<1x1x128xf32> to vector<1x128xf32>
    %171 = vector.broadcast %170 : vector<1x128xf32> to vector<32x128xf32>
    %172 = arith.addf %168, %171 : vector<32x128xf32>
    %173 = arith.truncf %172 : vector<32x128xf32> to vector<32x128xbf16>
    %174 = vector.shape_cast %173 : vector<32x128xbf16> to vector<4x8x128xbf16>
    %175 = vector.extract_strided_slice %174 {offsets = [0, 0, 0], sizes = [4, 8, 16], strides = [1, 1, 1]} : vector<4x8x128xbf16> to vector<4x8x16xbf16>
    %176 = vector.extract_strided_slice %174 {offsets = [0, 0, 64], sizes = [4, 8, 16], strides = [1, 1, 1]} : vector<4x8x128xbf16> to vector<4x8x16xbf16>
    "tpu.trace_start"() <{level = 10 : i32, message = "bqd,bkd->bqk"}> : () -> ()
    %cst_75 = arith.constant dense<0.000000e+00> : vector<4x8x8xf32>
    %177 = tpu.matmul %175, %176, %cst_75 {dimension_numbers = #tpu.dot_dimension_numbers<[2], [2], [1], [1], [0, 0, 0, 1, 1, 1], [0], [0]>} : vector<4x8x16xbf16>, vector<4x8x16xbf16>, vector<4x8x8xf32> -> vector<4x8x8xf32>
    "tpu.trace_stop"() : () -> ()
    %cst_76 = arith.constant dense<0xFF800000> : vector<4x8xf32>
    %178 = vector.multi_reduction <maximumf>, %177, %cst_76 [2] : vector<4x8x8xf32> to vector<4x8xf32>
    %179 = vector.shape_cast %178 : vector<4x8xf32> to vector<4x8x1xf32>
    %180 = vector.broadcast %179 : vector<4x8x1xf32> to vector<4x8x8xf32>
    %181 = arith.subf %177, %180 : vector<4x8x8xf32>
    %182 = math.exp %181 : vector<4x8x8xf32>
    %cst_77 = arith.constant dense<0.000000e+00> : vector<4x8xf32>
    %183 = vector.multi_reduction <add>, %182, %cst_77 [2] : vector<4x8x8xf32> to vector<4x8xf32>
    %184 = vector.shape_cast %183 : vector<4x8xf32> to vector<4x8x1xf32>
    %185 = tpu.reciprocal %184 {approx = true} : vector<4x8x1xf32> -> vector<4x8x1xf32>
    %186 = vector.broadcast %185 : vector<4x8x1xf32> to vector<4x8x8xf32>
    %187 = arith.mulf %182, %186 : vector<4x8x8xf32>
    %188 = arith.truncf %187 : vector<4x8x8xf32> to vector<4x8x8xbf16>
    %c1_78 = arith.constant 1 : index
    %c0_79 = arith.constant 0 : index
    %c0_80 = arith.constant 0 : index
    %c0_81 = arith.constant 0 : index
    %189 = vector.load %arg4[%c1_78, %c0_79, %c0_80, %c0_81] : memref<2x4x64x64xbf16, #tpu.memory_space<vmem>>, vector<1x1x64x64xbf16>
    %190 = vector.shape_cast %189 : vector<1x1x64x64xbf16> to vector<64x64xbf16>
    %cst_82 = arith.constant dense<0.000000e+00> : vector<32x64xf32>
    %191 = tpu.matmul %165, %190, %cst_82 {dimension_numbers = #tpu.dot_dimension_numbers<[1], [0], [0], [1], [0, 0, 1, 1], [], []>} : vector<32x64xbf16>, vector<64x64xbf16>, vector<32x64xf32> -> vector<32x64xf32>
    %192 = arith.truncf %191 : vector<32x64xf32> to vector<32x64xbf16>
    %193 = vector.shape_cast %192 : vector<32x64xbf16> to vector<4x8x64xbf16>
    "tpu.trace_start"() <{level = 10 : i32, message = "bqk,bkd->bqd"}> : () -> ()
    %cst_83 = arith.constant dense<0.000000e+00> : vector<4x8x64xf32>
    %194 = tpu.matmul %188, %193, %cst_83 {dimension_numbers = #tpu.dot_dimension_numbers<[2], [1], [1], [2], [0, 0, 0, 1, 1, 2], [0], [0]>} : vector<4x8x8xbf16>, vector<4x8x64xbf16>, vector<4x8x64xf32> -> vector<4x8x64xf32>
    "tpu.trace_stop"() : () -> ()
    %195 = vector.extract_strided_slice %174 {offsets = [0, 0, 16], sizes = [4, 8, 16], strides = [1, 1, 1]} : vector<4x8x128xbf16> to vector<4x8x16xbf16>
    %196 = vector.extract_strided_slice %174 {offsets = [0, 0, 80], sizes = [4, 8, 16], strides = [1, 1, 1]} : vector<4x8x128xbf16> to vector<4x8x16xbf16>
    "tpu.trace_start"() <{level = 10 : i32, message = "bqd,bkd->bqk"}> : () -> ()
    %cst_84 = arith.constant dense<0.000000e+00> : vector<4x8x8xf32>
    %197 = tpu.matmul %195, %196, %cst_84 {dimension_numbers = #tpu.dot_dimension_numbers<[2], [2], [1], [1], [0, 0, 0, 1, 1, 1], [0], [0]>} : vector<4x8x16xbf16>, vector<4x8x16xbf16>, vector<4x8x8xf32> -> vector<4x8x8xf32>
    "tpu.trace_stop"() : () -> ()
    %cst_85 = arith.constant dense<0xFF800000> : vector<4x8xf32>
    %198 = vector.multi_reduction <maximumf>, %197, %cst_85 [2] : vector<4x8x8xf32> to vector<4x8xf32>
    %199 = vector.shape_cast %198 : vector<4x8xf32> to vector<4x8x1xf32>
    %200 = vector.broadcast %199 : vector<4x8x1xf32> to vector<4x8x8xf32>
    %201 = arith.subf %197, %200 : vector<4x8x8xf32>
    %202 = math.exp %201 : vector<4x8x8xf32>
    %cst_86 = arith.constant dense<0.000000e+00> : vector<4x8xf32>
    %203 = vector.multi_reduction <add>, %202, %cst_86 [2] : vector<4x8x8xf32> to vector<4x8xf32>
    %204 = vector.shape_cast %203 : vector<4x8xf32> to vector<4x8x1xf32>
    %205 = tpu.reciprocal %204 {approx = true} : vector<4x8x1xf32> -> vector<4x8x1xf32>
    %206 = vector.broadcast %205 : vector<4x8x1xf32> to vector<4x8x8xf32>
    %207 = arith.mulf %202, %206 : vector<4x8x8xf32>
    %208 = arith.truncf %207 : vector<4x8x8xf32> to vector<4x8x8xbf16>
    %c1_87 = arith.constant 1 : index
    %c1_88 = arith.constant 1 : index
    %c0_89 = arith.constant 0 : index
    %c0_90 = arith.constant 0 : index
    %209 = vector.load %arg4[%c1_87, %c1_88, %c0_89, %c0_90] : memref<2x4x64x64xbf16, #tpu.memory_space<vmem>>, vector<1x1x64x64xbf16>
    %210 = vector.shape_cast %209 : vector<1x1x64x64xbf16> to vector<64x64xbf16>
    %cst_91 = arith.constant dense<0.000000e+00> : vector<32x64xf32>
    %211 = tpu.matmul %165, %210, %cst_91 {dimension_numbers = #tpu.dot_dimension_numbers<[1], [0], [0], [1], [0, 0, 1, 1], [], []>} : vector<32x64xbf16>, vector<64x64xbf16>, vector<32x64xf32> -> vector<32x64xf32>
    %212 = arith.truncf %211 : vector<32x64xf32> to vector<32x64xbf16>
    %213 = vector.shape_cast %212 : vector<32x64xbf16> to vector<4x8x64xbf16>
    "tpu.trace_start"() <{level = 10 : i32, message = "bqk,bkd->bqd"}> : () -> ()
    %cst_92 = arith.constant dense<0.000000e+00> : vector<4x8x64xf32>
    %214 = tpu.matmul %208, %213, %cst_92 {dimension_numbers = #tpu.dot_dimension_numbers<[2], [1], [1], [2], [0, 0, 0, 1, 1, 2], [0], [0]>} : vector<4x8x8xbf16>, vector<4x8x64xbf16>, vector<4x8x64xf32> -> vector<4x8x64xf32>
    "tpu.trace_stop"() : () -> ()
    %215 = arith.addf %194, %214 : vector<4x8x64xf32>
    %216 = vector.extract_strided_slice %174 {offsets = [0, 0, 32], sizes = [4, 8, 16], strides = [1, 1, 1]} : vector<4x8x128xbf16> to vector<4x8x16xbf16>
    %217 = vector.extract_strided_slice %174 {offsets = [0, 0, 96], sizes = [4, 8, 16], strides = [1, 1, 1]} : vector<4x8x128xbf16> to vector<4x8x16xbf16>
    "tpu.trace_start"() <{level = 10 : i32, message = "bqd,bkd->bqk"}> : () -> ()
    %cst_93 = arith.constant dense<0.000000e+00> : vector<4x8x8xf32>
    %218 = tpu.matmul %216, %217, %cst_93 {dimension_numbers = #tpu.dot_dimension_numbers<[2], [2], [1], [1], [0, 0, 0, 1, 1, 1], [0], [0]>} : vector<4x8x16xbf16>, vector<4x8x16xbf16>, vector<4x8x8xf32> -> vector<4x8x8xf32>
    "tpu.trace_stop"() : () -> ()
    %cst_94 = arith.constant dense<0xFF800000> : vector<4x8xf32>
    %219 = vector.multi_reduction <maximumf>, %218, %cst_94 [2] : vector<4x8x8xf32> to vector<4x8xf32>
    %220 = vector.shape_cast %219 : vector<4x8xf32> to vector<4x8x1xf32>
    %221 = vector.broadcast %220 : vector<4x8x1xf32> to vector<4x8x8xf32>
    %222 = arith.subf %218, %221 : vector<4x8x8xf32>
    %223 = math.exp %222 : vector<4x8x8xf32>
    %cst_95 = arith.constant dense<0.000000e+00> : vector<4x8xf32>
    %224 = vector.multi_reduction <add>, %223, %cst_95 [2] : vector<4x8x8xf32> to vector<4x8xf32>
    %225 = vector.shape_cast %224 : vector<4x8xf32> to vector<4x8x1xf32>
    %226 = tpu.reciprocal %225 {approx = true} : vector<4x8x1xf32> -> vector<4x8x1xf32>
    %227 = vector.broadcast %226 : vector<4x8x1xf32> to vector<4x8x8xf32>
    %228 = arith.mulf %223, %227 : vector<4x8x8xf32>
    %229 = arith.truncf %228 : vector<4x8x8xf32> to vector<4x8x8xbf16>
    %c1_96 = arith.constant 1 : index
    %c2_97 = arith.constant 2 : index
    %c0_98 = arith.constant 0 : index
    %c0_99 = arith.constant 0 : index
    %230 = vector.load %arg4[%c1_96, %c2_97, %c0_98, %c0_99] : memref<2x4x64x64xbf16, #tpu.memory_space<vmem>>, vector<1x1x64x64xbf16>
    %231 = vector.shape_cast %230 : vector<1x1x64x64xbf16> to vector<64x64xbf16>
    %cst_100 = arith.constant dense<0.000000e+00> : vector<32x64xf32>
    %232 = tpu.matmul %165, %231, %cst_100 {dimension_numbers = #tpu.dot_dimension_numbers<[1], [0], [0], [1], [0, 0, 1, 1], [], []>} : vector<32x64xbf16>, vector<64x64xbf16>, vector<32x64xf32> -> vector<32x64xf32>
    %233 = arith.truncf %232 : vector<32x64xf32> to vector<32x64xbf16>
    %234 = vector.shape_cast %233 : vector<32x64xbf16> to vector<4x8x64xbf16>
    "tpu.trace_start"() <{level = 10 : i32, message = "bqk,bkd->bqd"}> : () -> ()
    %cst_101 = arith.constant dense<0.000000e+00> : vector<4x8x64xf32>
    %235 = tpu.matmul %229, %234, %cst_101 {dimension_numbers = #tpu.dot_dimension_numbers<[2], [1], [1], [2], [0, 0, 0, 1, 1, 2], [0], [0]>} : vector<4x8x8xbf16>, vector<4x8x64xbf16>, vector<4x8x64xf32> -> vector<4x8x64xf32>
    "tpu.trace_stop"() : () -> ()
    %236 = arith.addf %215, %235 : vector<4x8x64xf32>
    %237 = vector.extract_strided_slice %174 {offsets = [0, 0, 48], sizes = [4, 8, 16], strides = [1, 1, 1]} : vector<4x8x128xbf16> to vector<4x8x16xbf16>
    %238 = vector.extract_strided_slice %174 {offsets = [0, 0, 112], sizes = [4, 8, 16], strides = [1, 1, 1]} : vector<4x8x128xbf16> to vector<4x8x16xbf16>
    "tpu.trace_start"() <{level = 10 : i32, message = "bqd,bkd->bqk"}> : () -> ()
    %cst_102 = arith.constant dense<0.000000e+00> : vector<4x8x8xf32>
    %239 = tpu.matmul %237, %238, %cst_102 {dimension_numbers = #tpu.dot_dimension_numbers<[2], [2], [1], [1], [0, 0, 0, 1, 1, 1], [0], [0]>} : vector<4x8x16xbf16>, vector<4x8x16xbf16>, vector<4x8x8xf32> -> vector<4x8x8xf32>
    "tpu.trace_stop"() : () -> ()
    %cst_103 = arith.constant dense<0xFF800000> : vector<4x8xf32>
    %240 = vector.multi_reduction <maximumf>, %239, %cst_103 [2] : vector<4x8x8xf32> to vector<4x8xf32>
    %241 = vector.shape_cast %240 : vector<4x8xf32> to vector<4x8x1xf32>
    %242 = vector.broadcast %241 : vector<4x8x1xf32> to vector<4x8x8xf32>
    %243 = arith.subf %239, %242 : vector<4x8x8xf32>
    %244 = math.exp %243 : vector<4x8x8xf32>
    %cst_104 = arith.constant dense<0.000000e+00> : vector<4x8xf32>
    %245 = vector.multi_reduction <add>, %244, %cst_104 [2] : vector<4x8x8xf32> to vector<4x8xf32>
    %246 = vector.shape_cast %245 : vector<4x8xf32> to vector<4x8x1xf32>
    %247 = tpu.reciprocal %246 {approx = true} : vector<4x8x1xf32> -> vector<4x8x1xf32>
    %248 = vector.broadcast %247 : vector<4x8x1xf32> to vector<4x8x8xf32>
    %249 = arith.mulf %244, %248 : vector<4x8x8xf32>
    %250 = arith.truncf %249 : vector<4x8x8xf32> to vector<4x8x8xbf16>
    %c1_105 = arith.constant 1 : index
    %c3_106 = arith.constant 3 : index
    %c0_107 = arith.constant 0 : index
    %c0_108 = arith.constant 0 : index
    %251 = vector.load %arg4[%c1_105, %c3_106, %c0_107, %c0_108] : memref<2x4x64x64xbf16, #tpu.memory_space<vmem>>, vector<1x1x64x64xbf16>
    %252 = vector.shape_cast %251 : vector<1x1x64x64xbf16> to vector<64x64xbf16>
    %cst_109 = arith.constant dense<0.000000e+00> : vector<32x64xf32>
    %253 = tpu.matmul %165, %252, %cst_109 {dimension_numbers = #tpu.dot_dimension_numbers<[1], [0], [0], [1], [0, 0, 1, 1], [], []>} : vector<32x64xbf16>, vector<64x64xbf16>, vector<32x64xf32> -> vector<32x64xf32>
    %254 = arith.truncf %253 : vector<32x64xf32> to vector<32x64xbf16>
    %255 = vector.shape_cast %254 : vector<32x64xbf16> to vector<4x8x64xbf16>
    "tpu.trace_start"() <{level = 10 : i32, message = "bqk,bkd->bqd"}> : () -> ()
    %cst_110 = arith.constant dense<0.000000e+00> : vector<4x8x64xf32>
    %256 = tpu.matmul %250, %255, %cst_110 {dimension_numbers = #tpu.dot_dimension_numbers<[2], [1], [1], [2], [0, 0, 0, 1, 1, 2], [0], [0]>} : vector<4x8x8xbf16>, vector<4x8x64xbf16>, vector<4x8x64xf32> -> vector<4x8x64xf32>
    "tpu.trace_stop"() : () -> ()
    %257 = arith.addf %236, %256 : vector<4x8x64xf32>
    %258 = vector.shape_cast %257 : vector<4x8x64xf32> to vector<32x64xf32>
    %259 = arith.addf %162, %258 : vector<32x64xf32>
    %260 = vector.shape_cast %259 : vector<32x64xf32> to vector<4x8x64xf32>
    %261 = vector.extract_strided_slice %260 {offsets = [0, 7, 0], sizes = [4, 1, 64], strides = [1, 1, 1]} : vector<4x8x64xf32> to vector<4x1x64xf32>
    %262 = vector.shape_cast %261 : vector<4x1x64xf32> to vector<4x64xf32>
    %263 = vector.extract_strided_slice %164 {offsets = [0, 0], sizes = [1, 64], strides = [1, 1]} : vector<6x64xf32> to vector<1x64xf32>
    %264 = vector.broadcast %263 : vector<1x64xf32> to vector<4x64xf32>
    %265 = arith.addf %262, %264 : vector<4x64xf32>
    %266 = vector.extract_strided_slice %164 {offsets = [1, 0], sizes = [1, 64], strides = [1, 1]} : vector<6x64xf32> to vector<1x64xf32>
    %267 = vector.extract_strided_slice %164 {offsets = [2, 0], sizes = [1, 64], strides = [1, 1]} : vector<6x64xf32> to vector<1x64xf32>
    %cst_111 = arith.constant dense<0.000000e+00> : vector<4xf32>
    %268 = vector.multi_reduction <add>, %265, %cst_111 [1] : vector<4x64xf32> to vector<4xf32>
    %269 = vector.shape_cast %268 : vector<4xf32> to vector<4x1xf32>
    %cst_112 = arith.constant 6.400000e+01 : f32
    %270 = vector.broadcast %cst_112 : f32 to vector<4x1xf32>
    %271 = arith.divf %269, %270 : vector<4x1xf32>
    %272 = vector.broadcast %271 : vector<4x1xf32> to vector<4x64xf32>
    %273 = arith.subf %265, %272 : vector<4x64xf32>
    %274 = arith.mulf %273, %273 : vector<4x64xf32>
    %cst_113 = arith.constant dense<0.000000e+00> : vector<4xf32>
    %275 = vector.multi_reduction <add>, %274, %cst_113 [1] : vector<4x64xf32> to vector<4xf32>
    %276 = vector.shape_cast %275 : vector<4xf32> to vector<4x1xf32>
    %cst_114 = arith.constant 6.400000e+01 : f32
    %277 = vector.broadcast %cst_114 : f32 to vector<4x1xf32>
    %278 = arith.divf %276, %277 : vector<4x1xf32>
    %cst_115 = arith.constant 9.99999974E-6 : f32
    %279 = vector.broadcast %cst_115 : f32 to vector<4x1xf32>
    %280 = arith.addf %278, %279 : vector<4x1xf32>
    %281 = math.rsqrt %280 : vector<4x1xf32>
    %282 = vector.broadcast %281 : vector<4x1xf32> to vector<4x64xf32>
    %283 = arith.mulf %273, %282 : vector<4x64xf32>
    %284 = vector.broadcast %266 : vector<1x64xf32> to vector<4x64xf32>
    %285 = arith.mulf %283, %284 : vector<4x64xf32>
    %286 = vector.broadcast %267 : vector<1x64xf32> to vector<4x64xf32>
    %287 = arith.addf %285, %286 : vector<4x64xf32>
    %288 = vector.extract_strided_slice %164 {offsets = [5, 0], sizes = [1, 64], strides = [1, 1]} : vector<6x64xf32> to vector<1x64xf32>
    %289 = arith.truncf %287 : vector<4x64xf32> to vector<4x64xbf16>
    %c1_116 = arith.constant 1 : index
    %c0_117 = arith.constant 0 : index
    %c0_118 = arith.constant 0 : index
    %290 = vector.load %arg6[%c1_116, %c0_117, %c0_118] : memref<2x64x2048xbf16, #tpu.memory_space<vmem>>, vector<1x64x2048xbf16>
    %291 = vector.shape_cast %290 : vector<1x64x2048xbf16> to vector<64x2048xbf16>
    %cst_119 = arith.constant dense<0.000000e+00> : vector<4x2048xf32>
    %292 = tpu.matmul %289, %291, %cst_119 {dimension_numbers = #tpu.dot_dimension_numbers<[1], [0], [0], [1], [0, 0, 1, 1], [], []>} : vector<4x64xbf16>, vector<64x2048xbf16>, vector<4x2048xf32> -> vector<4x2048xf32>
    %c1_120 = arith.constant 1 : index
    %c0_121 = arith.constant 0 : index
    %c0_122 = arith.constant 0 : index
    %293 = vector.load %arg7[%c1_120, %c0_121, %c0_122] : memref<2x1x2048xf32, #tpu.memory_space<vmem>>, vector<1x1x2048xf32>
    %294 = vector.shape_cast %293 : vector<1x1x2048xf32> to vector<1x2048xf32>
    %295 = vector.broadcast %294 : vector<1x2048xf32> to vector<4x2048xf32>
    %296 = arith.addf %292, %295 : vector<4x2048xf32>
    %cst_123 = arith.constant 0.000000e+00 : f32
    %297 = vector.broadcast %cst_123 : f32 to vector<4x2048xf32>
    %298 = arith.maximumf %296, %297 : vector<4x2048xf32>
    %299 = arith.truncf %298 : vector<4x2048xf32> to vector<4x2048xbf16>
    %c1_124 = arith.constant 1 : index
    %c0_125 = arith.constant 0 : index
    %c0_126 = arith.constant 0 : index
    %300 = vector.load %arg8[%c1_124, %c0_125, %c0_126] : memref<2x2048x64xbf16, #tpu.memory_space<vmem>>, vector<1x2048x64xbf16>
    %301 = vector.shape_cast %300 : vector<1x2048x64xbf16> to vector<2048x64xbf16>
    %cst_127 = arith.constant dense<0.000000e+00> : vector<4x64xf32>
    %302 = tpu.matmul %299, %301, %cst_127 {dimension_numbers = #tpu.dot_dimension_numbers<[1], [0], [0], [1], [0, 0, 1, 1], [], []>} : vector<4x2048xbf16>, vector<2048x64xbf16>, vector<4x64xf32> -> vector<4x64xf32>
    %303 = vector.broadcast %288 : vector<1x64xf32> to vector<4x64xf32>
    %304 = arith.addf %302, %303 : vector<4x64xf32>
    %305 = arith.addf %287, %304 : vector<4x64xf32>
    %306 = vector.extract_strided_slice %164 {offsets = [3, 0], sizes = [1, 64], strides = [1, 1]} : vector<6x64xf32> to vector<1x64xf32>
    %307 = vector.extract_strided_slice %164 {offsets = [4, 0], sizes = [1, 64], strides = [1, 1]} : vector<6x64xf32> to vector<1x64xf32>
    %cst_128 = arith.constant dense<0.000000e+00> : vector<4xf32>
    %308 = vector.multi_reduction <add>, %305, %cst_128 [1] : vector<4x64xf32> to vector<4xf32>
    %309 = vector.shape_cast %308 : vector<4xf32> to vector<4x1xf32>
    %cst_129 = arith.constant 6.400000e+01 : f32
    %310 = vector.broadcast %cst_129 : f32 to vector<4x1xf32>
    %311 = arith.divf %309, %310 : vector<4x1xf32>
    %312 = vector.broadcast %311 : vector<4x1xf32> to vector<4x64xf32>
    %313 = arith.subf %305, %312 : vector<4x64xf32>
    %314 = arith.mulf %313, %313 : vector<4x64xf32>
    %cst_130 = arith.constant dense<0.000000e+00> : vector<4xf32>
    %315 = vector.multi_reduction <add>, %314, %cst_130 [1] : vector<4x64xf32> to vector<4xf32>
    %316 = vector.shape_cast %315 : vector<4xf32> to vector<4x1xf32>
    %cst_131 = arith.constant 6.400000e+01 : f32
    %317 = vector.broadcast %cst_131 : f32 to vector<4x1xf32>
    %318 = arith.divf %316, %317 : vector<4x1xf32>
    %cst_132 = arith.constant 9.99999974E-6 : f32
    %319 = vector.broadcast %cst_132 : f32 to vector<4x1xf32>
    %320 = arith.addf %318, %319 : vector<4x1xf32>
    %321 = math.rsqrt %320 : vector<4x1xf32>
    %322 = vector.broadcast %321 : vector<4x1xf32> to vector<4x64xf32>
    %323 = arith.mulf %313, %322 : vector<4x64xf32>
    %324 = vector.broadcast %306 : vector<1x64xf32> to vector<4x64xf32>
    %325 = arith.mulf %323, %324 : vector<4x64xf32>
    %326 = vector.broadcast %307 : vector<1x64xf32> to vector<4x64xf32>
    %327 = arith.addf %325, %326 : vector<4x64xf32>
    %c0_133 = arith.constant 0 : index
    %c0_134 = arith.constant 0 : index
    %328 = vector.load %arg9[%c0_133, %c0_134] : memref<64x128xf32, #tpu.memory_space<vmem>>, vector<64x128xf32>
    %cst_135 = arith.constant dense<0.000000e+00> : vector<4x128xf32>
    %329 = tpu.matmul %327, %328, %cst_135 {dimension_numbers = #tpu.dot_dimension_numbers<[1], [0], [0], [1], [0, 0, 1, 1], [], []>} : vector<4x64xf32>, vector<64x128xf32>, vector<4x128xf32> -> vector<4x128xf32>
    %c0_136 = arith.constant 0 : index
    %c0_137 = arith.constant 0 : index
    %330 = vector.load %arg10[%c0_136, %c0_137] : memref<1x128xf32, #tpu.memory_space<vmem>>, vector<1x128xf32>
    %331 = vector.broadcast %330 : vector<1x128xf32> to vector<4x128xf32>
    %332 = arith.addf %329, %331 : vector<4x128xf32>
    %c0_138 = arith.constant 0 : index
    %c0_139 = arith.constant 0 : index
    %333 = vector.load %arg11[%c0_138, %c0_139] : memref<4x128xf32, #tpu.memory_space<vmem>>, vector<4x128xf32>
    tpu.vector_store %arg11[%c0_138, %c0_139], %332 {strides = array<i32>} : memref<4x128xf32, #tpu.memory_space<vmem>>, vector<4x128xf32>,
    return
  }
  func.func @transform_0(%arg0: i32) -> (i32, i32) {
    %c0_i32 = arith.constant 0 : i32
    %c0_i32_0 = arith.constant 0 : i32
    return %arg0, %c0_i32 : i32, i32
  }
  func.func @transform_1(%arg0: i32) -> (i32, i32, i32) {
    %c0_i32 = arith.constant 0 : i32
    %c0_i32_0 = arith.constant 0 : i32
    %c0_i32_1 = arith.constant 0 : i32
    %c0_i32_2 = arith.constant 0 : i32
    return %c0_i32, %c0_i32_0, %c0_i32_1 : i32, i32, i32
  }
  func.func @transform_2(%arg0: i32) -> (i32, i32, i32) {
    %c0_i32 = arith.constant 0 : i32
    %c0_i32_0 = arith.constant 0 : i32
    %c0_i32_1 = arith.constant 0 : i32
    %c0_i32_2 = arith.constant 0 : i32
    return %c0_i32, %c0_i32_0, %c0_i32_1 : i32, i32, i32
  }
  func.func @transform_3(%arg0: i32) -> (i32, i32, i32, i32) {
    %c0_i32 = arith.constant 0 : i32
    %c0_i32_0 = arith.constant 0 : i32
    %c0_i32_1 = arith.constant 0 : i32
    %c0_i32_2 = arith.constant 0 : i32
    %c0_i32_3 = arith.constant 0 : i32
    return %c0_i32, %c0_i32_0, %c0_i32_1, %c0_i32_2 : i32, i32, i32, i32
  }
  func.func @transform_4(%arg0: i32) -> (i32, i32, i32) {
    %c0_i32 = arith.constant 0 : i32
    %c0_i32_0 = arith.constant 0 : i32
    %c0_i32_1 = arith.constant 0 : i32
    %c0_i32_2 = arith.constant 0 : i32
    return %c0_i32, %c0_i32_0, %c0_i32_1 : i32, i32, i32
  }
  func.func @transform_5(%arg0: i32) -> (i32, i32, i32) {
    %c0_i32 = arith.constant 0 : i32
    %c0_i32_0 = arith.constant 0 : i32
    %c0_i32_1 = arith.constant 0 : i32
    %c0_i32_2 = arith.constant 0 : i32
    return %c0_i32, %c0_i32_0, %c0_i32_1 : i32, i32, i32
  }
  func.func @transform_6(%arg0: i32) -> (i32, i32, i32) {
    %c0_i32 = arith.constant 0 : i32
    %c0_i32_0 = arith.constant 0 : i32
    %c0_i32_1 = arith.constant 0 : i32
    %c0_i32_2 = arith.constant 0 : i32
    return %c0_i32, %c0_i32_0, %c0_i32_1 : i32, i32, i32
  }
  func.func @transform_7(%arg0: i32) -> (i32, i32, i32) {
    %c0_i32 = arith.constant 0 : i32
    %c0_i32_0 = arith.constant 0 : i32
    %c0_i32_1 = arith.constant 0 : i32
    %c0_i32_2 = arith.constant 0 : i32
    return %c0_i32, %c0_i32_0, %c0_i32_1 : i32, i32, i32
  }
  func.func @transform_8(%arg0: i32) -> (i32, i32) {
    %c0_i32 = arith.constant 0 : i32
    %c0_i32_0 = arith.constant 0 : i32
    %c0_i32_1 = arith.constant 0 : i32
    return %c0_i32, %c0_i32_0 : i32, i32
  }
  func.func @transform_9(%arg0: i32) -> (i32, i32) {
    %c0_i32 = arith.constant 0 : i32
    %c0_i32_0 = arith.constant 0 : i32
    %c0_i32_1 = arith.constant 0 : i32
    return %c0_i32, %c0_i32_0 : i32, i32
  }
  func.func @transform_10(%arg0: i32) -> (i32, i32) {
    %c0_i32 = arith.constant 0 : i32
    %c0_i32_0 = arith.constant 0 : i32
    return %arg0, %c0_i32 : i32, i32
  }
}

</mosaic_0001>

<llo_original>
// kernel: tpu_custom_call.1
$region0: #{tpu_custom_call.1}
  #allocation0 [shape = 'u32[]', space=smem, size = 0x4, offset = 0x4, fixed_abs, tag = 'smem constant byte address 0x4 - core index']
  #allocation1 [shape = 'u32[144,128]{1,0:T(1,128)}', space=vmem, size = 0x12000, scoped, tag = 'internal scratch']
  %s0 = inlined_call_operand.vmem [shape: f32[32,64], index: 0, kind: input, shape index: {}]
  %s1 = inlined_call_operand.vmem [shape: bf16[2,64,128], index: 1, kind: input, shape index: {}]
  %s2 = inlined_call_operand.vmem [shape: f32[2,1,128], index: 2, kind: input, shape index: {}]
  %s3 = inlined_call_operand.vmem [shape: bf16[2,4,64,64], index: 3, kind: input, shape index: {}]
  %s4 = inlined_call_operand.vmem [shape: f32[2,6,64], index: 4, kind: input, shape index: {}]
  %s5 = inlined_call_operand.vmem [shape: bf16[2,64,2048], index: 5, kind: input, shape index: {}]
  %s6 = inlined_call_operand.vmem [shape: f32[2,1,2048], index: 6, kind: input, shape index: {}]
  %s7 = inlined_call_operand.vmem [shape: bf16[2,2048,64], index: 7, kind: input, shape index: {}]
  %s8 = inlined_call_operand.vmem [shape: f32[64,128], index: 8, kind: input, shape index: {}]
  %s9 = inlined_call_operand.vmem [shape: f32[1,128], index: 9, kind: input, shape index: {}]
  %s10 = inlined_call_operand.hbm [shape: f32[4,128], index: 10, kind: output, shape index: {}]
  %s11 = sld [smem:[#allocation0]]
  $region50: #{tpu_custom_call.1} parent=0
    _
  %s13 = ssub.s32 1, %s11
  %s14 = scalar_select 0, %s13, %s11
  $region1: #{tpu_custom_call.1} parent=0
    #allocation2 [shape = 'u8[2048]{0}', space=vmem, size = 0x800, scoped, tag = 'output window, operand 0, single buffered']
    #allocation3 [shape = 's32[1]{0}', space=sflag, size = 0x4, scoped, tag = 'scoped memory for tpu_custom_call.1']
    %15 = vsyncpa [#allocation3], 0
    // Predicated region
    $region2: #{tpu_custom_call.1} parent=1 // pred_check
      _
    $region3: #{tpu_custom_call.1} parent=1 // pred_check_branch
      %17 = sbr.rel (0) target = $region5
    $region4: #{tpu_custom_call.1} parent=1 // pred_region
      _
    $region5: #{tpu_custom_call.1} parent=1 // pred_fallthru
      _
    // Predicated region
    $region6: #{tpu_custom_call.1} parent=1 // pred_check
      _
    $region7: #{tpu_custom_call.1} parent=1 // pred_check_branch
      %19 = sbr.rel (0) target = $region9
    $region8: #{tpu_custom_call.1} parent=1 // pred_region
      _
    $region9: #{tpu_custom_call.1} parent=1 // pred_fallthru
      _
    // Predicated region
    $region10: #{tpu_custom_call.1} parent=1 // pred_check
      _
    $region11: #{tpu_custom_call.1} parent=1 // pred_check_branch
      %21 = sbr.rel (0) target = $region13
    $region12: #{tpu_custom_call.1} parent=1 // pred_region
      _
    $region13: #{tpu_custom_call.1} parent=1 // pred_fallthru
      _
    // Predicated region
    $region14: #{tpu_custom_call.1} parent=1 // pred_check
      _
    $region15: #{tpu_custom_call.1} parent=1 // pred_check_branch
      %23 = sbr.rel (0) target = $region17
    $region16: #{tpu_custom_call.1} parent=1 // pred_region
      _
    $region17: #{tpu_custom_call.1} parent=1 // pred_fallthru
      _
    // Predicated region
    $region18: #{tpu_custom_call.1} parent=1 // pred_check
      _
    $region19: #{tpu_custom_call.1} parent=1 // pred_check_branch
      %25 = sbr.rel (0) target = $region21
    $region20: #{tpu_custom_call.1} parent=1 // pred_region
      _
    $region21: #{tpu_custom_call.1} parent=1 // pred_fallthru
      _
    // Predicated region
    $region22: #{tpu_custom_call.1} parent=1 // pred_check
      _
    $region23: #{tpu_custom_call.1} parent=1 // pred_check_branch
      %27 = sbr.rel (0) target = $region25
    $region24: #{tpu_custom_call.1} parent=1 // pred_region
      _
    $region25: #{tpu_custom_call.1} parent=1 // pred_fallthru
      _
    // Predicated region
    $region26: #{tpu_custom_call.1} parent=1 // pred_check
      _
    $region27: #{tpu_custom_call.1} parent=1 // pred_check_branch
      %29 = sbr.rel (0) target = $region29
    $region28: #{tpu_custom_call.1} parent=1 // pred_region
      _
    $region29: #{tpu_custom_call.1} parent=1 // pred_fallthru
      _
    // Predicated region
    $region30: #{tpu_custom_call.1} parent=1 // pred_check
      _
    $region31: #{tpu_custom_call.1} parent=1 // pred_check_branch
      %31 = sbr.rel (0) target = $region33
    $region32: #{tpu_custom_call.1} parent=1 // pred_region
      _
    $region33: #{tpu_custom_call.1} parent=1 // pred_fallthru
      _
    // Predicated region
    $region34: #{tpu_custom_call.1} parent=1 // pred_check
      _
    $region35: #{tpu_custom_call.1} parent=1 // pred_check_branch
      %33 = sbr.rel (0) target = $region37
    $region36: #{tpu_custom_call.1} parent=1 // pred_region
      _
    $region37: #{tpu_custom_call.1} parent=1 // pred_fallthru
      _
    // Predicated region
    $region38: #{tpu_custom_call.1} parent=1 // pred_check
      _
    $region39: #{tpu_custom_call.1} parent=1 // pred_check_branch
      %35 = sbr.rel (0) target = $region41
    $region40: #{tpu_custom_call.1} parent=1 // pred_region
      _
    $region41: #{tpu_custom_call.1} parent=1 // pred_fallthru
      _
    %v37 = vld [vmem:[%s0] sm:$0xff]
    %v38 = vld [vmem:[%s0 + $0x8] sm:$0xff]
    %v39 = vld [vmem:[%s0 + $0x10] sm:$0xff]
    %v40 = vld [vmem:[%s0 + $0x18] sm:$0xff]
    %v41 = vld [vmem:[%s4] sm:$0x3f]
    %v42 = vpack.c.bf16 %v38, %v37
    %v43 = vpack.c.bf16 %v40, %v39
    %v44 = vld [vmem:[%s1] sm:$0xf]
    %v45 = vld [vmem:[%s1 + $0x4] sm:$0xf]
    %v46 = vld [vmem:[%s1 + $0x8] sm:$0xf]
    %v47 = vld [vmem:[%s1 + $0xc] sm:$0xf]
    %v48 = vld [vmem:[%s1 + $0x10] sm:$0xf]
    %v49 = vld [vmem:[%s1 + $0x14] sm:$0xf]
    %v50 = vld [vmem:[%s1 + $0x18] sm:$0xf]
    %v51 = vld [vmem:[%s1 + $0x1c] sm:$0xf]
    %v52 = vld [vmem:[%s2] sm:$0x1]
    %v54 = vlaneseq
    %v55 = vshrl.u32 %v54, 7
    %v56 = vsub.s32 0, %v55
    %v57 = vrot.slane %v52, %v56
    %v67 = vunpack.c.l.b16 %v44
    %v68 = vunpack.c.l.b16 %v45
    %v69 = vunpack.c.l.b16 %v46
    %v70 = vunpack.c.l.b16 %v47
    %v71 = vunpack.c.l.b16 %v48
    %v72 = vunpack.c.l.b16 %v49
    %v73 = vunpack.c.l.b16 %v50
    %v74 = vunpack.c.l.b16 %v51
    %v75 = vpack.c.b16 %v68, %v67
    %v76 = vpack.c.b16 %v70, %v69
    %v77 = vpack.c.b16 %v72, %v71
    %v78 = vpack.c.b16 %v74, %v73
    %vm83 = vcmask 523264
    %v85 = vsel %vm83, %v42, 0
    %v88 = vsel %vm83, %v43, 0
    %90 = vmatprep.subr.bf16.mxu0 0
    %91 = vmatpush1.bf16.msra.mxu0 0
    %92 = vmatprep.subr.bf16.mxu0 0
    %93 = vmatpush1.bf16.msra.mxu0 0
    %94 = vmatprep.subr.bf16.mxu0 0
    %95 = vmatpush1.bf16.msra.mxu0 0
    %96 = vmatprep.subr.bf16.mxu0 0
    %97 = vmatpush1.bf16.msra.mxu0 0
    %98 = vmatprep.subr.bf16.mxu0 0
    %99 = vmatpush1.bf16.msra.mxu0 %v78
    %100 = vmatprep.subr.bf16.mxu0 0
    %101 = vmatpush1.bf16.msra.mxu0 %v77
    %102 = vmatprep.subr.bf16.mxu0 0
    %103 = vmatpush1.bf16.msra.mxu0 %v76
    %104 = vmatprep.subr.bf16.mxu0 0
    %105 = vmatpush1.bf16.msra.mxu0 %v75
    %106 = vmatprep.subr.bf16.mxu0 0
    %107 = vmatpush2.bf16.msra.mxu0 0
    %108 = vmatprep.subr.bf16.mxu0 0
    %109 = vmatpush2.bf16.msra.mxu0 0
    %110 = vmatprep.subr.bf16.mxu0 0
    %111 = vmatpush2.bf16.msra.mxu0 0
    %112 = vmatprep.subr.bf16.mxu0 0
    %113 = vmatpush2.bf16.msra.mxu0 0
    %114 = vmatprep.subr.bf16.mxu0 0
    %115 = vmatpush2.bf16.msra.mxu0 0
    %116 = vmatprep.subr.bf16.mxu0 0
    %117 = vmatpush2.bf16.msra.mxu0 0
    %118 = vmatprep.subr.bf16.mxu0 0
    %119 = vmatpush2.bf16.msra.mxu0 0
    %120 = vmatprep.subr.bf16.mxu0 0
    %121 = vmatpush2.bf16.msra.mxu0 0
    %122 = vmatprep.mubr.bf16.mxu0 0
    %123 = vmatmul.mubr.bf16.gmra.mxu0 %v85
    %v124 = vpop.f32.mrf.mxu0
    %v125 = vadd.f32 %v57, %v124
    %v126 = vpop.f32.mrf.mxu0
    %v127 = vpop.f32.mrf.mxu0
    %v128 = vadd.f32 %v57, %v127
    %v129 = vpop.f32.mrf.mxu0
    %130 = vmatprep.mubr.bf16.mxu0 0
    %131 = vmatmul.mubr.bf16.gmra.mxu0 %v88
    %v132 = vpop.f32.mrf.mxu0
    %v133 = vadd.f32 %v57, %v132
    %v134 = vpop.f32.mrf.mxu0
    %v135 = vpop.f32.mrf.mxu0
    %v136 = vadd.f32 %v57, %v135
    %v137 = vpop.f32.mrf.mxu0
    %138 = vdwg.mxu0
    %v139 = vpack.c.bf16 %v128, %v125
    %v140 = vpack.c.bf16 %v136, %v133
    %v143 = vunpack.c.l.b16 %v139
    %v144 = vunpack.c.h.b16 %v139
    %v145 = vunpack.c.l.b16 %v140
    %v146 = vunpack.c.h.b16 %v140
    %v147 = vpack.c.b16 %v143, %v143
    %v148 = vpack.c.b16 %v144, %v144
    %v149 = vpack.c.b16 %v145, %v145
    %v150 = vpack.c.b16 %v146, %v146
    %151 = vrot.lane.b32.xlu0 %v147, 64
    %v152 = vpop.permute.xlu0 %151
    %vm153 = vcmask 130048
    %v155 = vsel %vm153, %v147, 0
    %v158 = vsel %vm153, %v152, 0
    %160 = vmatprep.subr.bf16.mxu0 0
    %161 = vmatpush1.bf16.xpose.msra.mxu0 0
    %162 = vmatprep.subr.bf16.mxu0 0
    %163 = vmatpush1.bf16.xpose.msra.mxu0 0
    %164 = vmatprep.subr.bf16.mxu0 0
    %165 = vmatpush1.bf16.xpose.msra.mxu0 0
    %166 = vmatprep.subr.bf16.mxu0 0
    %167 = vmatpush1.bf16.xpose.msra.mxu0 0
    %168 = vmatprep.subr.bf16.mxu0 0
    %169 = vmatpush1.bf16.xpose.msra.mxu0 0
    %170 = vmatprep.subr.bf16.mxu0 0
    %171 = vmatpush1.bf16.xpose.msra.mxu0 0
    %172 = vmatprep.subr.bf16.mxu0 0
    %173 = vmatpush1.bf16.xpose.msra.mxu0 0
    %174 = vmatprep.subr.bf16.mxu0 0
    %175 = vmatpush1.bf16.xpose.msra.mxu0 %v158
    %176 = vmatprep.subr.bf16.mxu0 0
    %177 = vmatpush2.bf16.xpose.msra.mxu0 0
    %178 = vmatprep.subr.bf16.mxu0 0
    %179 = vmatpush2.bf16.xpose.msra.mxu0 0
    %180 = vmatprep.subr.bf16.mxu0 0
    %181 = vmatpush2.bf16.xpose.msra.mxu0 0
    %182 = vmatprep.subr.bf16.mxu0 0
    %183 = vmatpush2.bf16.xpose.msra.mxu0 0
    %184 = vmatprep.subr.bf16.mxu0 0
    %185 = vmatpush2.bf16.xpose.msra.mxu0 0
    %186 = vmatprep.subr.bf16.mxu0 0
    %187 = vmatpush2.bf16.xpose.msra.mxu0 0
    %188 = vmatprep.subr.bf16.mxu0 0
    %189 = vmatpush2.bf16.xpose.msra.mxu0 0
    %190 = vmatprep.subr.bf16.mxu0 0
    %191 = vmatpush2.bf16.xpose.msra.mxu0 0
    %192 = vmatprep.mubr.bf16.mxu0 0
    %193 = vmatmul.mubr.bf16.gmra.mxu0 %v155
    %v194 = vpop.f32.mrf.mxu0
    %v195 = vadd.f32 0.0, %v194
    %v196 = vpop.f32.mrf.mxu0
    %v197 = vpop.f32.mrf.mxu0
    %v198 = vpop.f32.mrf.mxu0
    %199 = vdwg.mxu0
    %200 = vrot.lane.b32.xlu0 %v148, 64
    %v201 = vpop.permute.xlu0 %200
    %v203 = vsel %vm153, %v148, 0
    %v206 = vsel %vm153, %v201, 0
    %208 = vmatprep.subr.bf16.mxu0 0
    %209 = vmatpush1.bf16.xpose.msra.mxu0 0
    %210 = vmatprep.subr.bf16.mxu0 0
    %211 = vmatpush1.bf16.xpose.msra.mxu0 0
    %212 = vmatprep.subr.bf16.mxu0 0
    %213 = vmatpush1.bf16.xpose.msra.mxu0 0
    %214 = vmatprep.subr.bf16.mxu0 0
    %215 = vmatpush1.bf16.xpose.msra.mxu0 0
    %216 = vmatprep.subr.bf16.mxu0 0
    %217 = vmatpush1.bf16.xpose.msra.mxu0 0
    %218 = vmatprep.subr.bf16.mxu0 0
    %219 = vmatpush1.bf16.xpose.msra.mxu0 0
    %220 = vmatprep.subr.bf16.mxu0 0
    %221 = vmatpush1.bf16.xpose.msra.mxu0 0
    %222 = vmatprep.subr.bf16.mxu0 0
    %223 = vmatpush1.bf16.xpose.msra.mxu0 %v206
    %224 = vmatprep.subr.bf16.mxu0 0
    %225 = vmatpush2.bf16.xpose.msra.mxu0 0
    %226 = vmatprep.subr.bf16.mxu0 0
    %227 = vmatpush2.bf16.xpose.msra.mxu0 0
    %228 = vmatprep.subr.bf16.mxu0 0
    %229 = vmatpush2.bf16.xpose.msra.mxu0 0
    %230 = vmatprep.subr.bf16.mxu0 0
    %231 = vmatpush2.bf16.xpose.msra.mxu0 0
    %232 = vmatprep.subr.bf16.mxu0 0
    %233 = vmatpush2.bf16.xpose.msra.mxu0 0
    %234 = vmatprep.subr.bf16.mxu0 0
    %235 = vmatpush2.bf16.xpose.msra.mxu0 0
    %236 = vmatprep.subr.bf16.mxu0 0
    %237 = vmatpush2.bf16.xpose.msra.mxu0 0
    %238 = vmatprep.subr.bf16.mxu0 0
    %239 = vmatpush2.bf16.xpose.msra.mxu0 0
    %240 = vmatprep.mubr.bf16.mxu0 0
    %241 = vmatmul.mubr.bf16.gmra.mxu0 %v203
    %v242 = vpop.f32.mrf.mxu0
    %v243 = vadd.f32 0.0, %v242
    %v244 = vpop.f32.mrf.mxu0
    %v245 = vpop.f32.mrf.mxu0
    %v246 = vpop.f32.mrf.mxu0
    %247 = vdwg.mxu0
    %248 = vrot.lane.b32.xlu0 %v149, 64
    %v249 = vpop.permute.xlu0 %248
    %v251 = vsel %vm153, %v149, 0
    %v254 = vsel %vm153, %v249, 0
    %256 = vmatprep.subr.bf16.mxu0 0
    %257 = vmatpush1.bf16.xpose.msra.mxu0 0
    %258 = vmatprep.subr.bf16.mxu0 0
    %259 = vmatpush1.bf16.xpose.msra.mxu0 0
    %260 = vmatprep.subr.bf16.mxu0 0
    %261 = vmatpush1.bf16.xpose.msra.mxu0 0
    %262 = vmatprep.subr.bf16.mxu0 0
    %263 = vmatpush1.bf16.xpose.msra.mxu0 0
    %264 = vmatprep.subr.bf16.mxu0 0
    %265 = vmatpush1.bf16.xpose.msra.mxu0 0
    %266 = vmatprep.subr.bf16.mxu0 0
    %267 = vmatpush1.bf16.xpose.msra.mxu0 0
    %268 = vmatprep.subr.bf16.mxu0 0
    %269 = vmatpush1.bf16.xpose.msra.mxu0 0
    %270 = vmatprep.subr.bf16.mxu0 0
    %271 = vmatpush1.bf16.xpose.msra.mxu0 %v254
    %272 = vmatprep.subr.bf16.mxu0 0
    %273 = vmatpush2.bf16.xpose.msra.mxu0 0
    %274 = vmatprep.subr.bf16.mxu0 0
    %275 = vmatpush2.bf16.xpose.msra.mxu0 0
    %276 = vmatprep.subr.bf16.mxu0 0
    %277 = vmatpush2.bf16.xpose.msra.mxu0 0
    %278 = vmatprep.subr.bf16.mxu0 0
    %279 = vmatpush2.bf16.xpose.msra.mxu0 0
    %280 = vmatprep.subr.bf16.mxu0 0
    %281 = vmatpush2.bf16.xpose.msra.mxu0 0
    %282 = vmatprep.subr.bf16.mxu0 0
    %283 = vmatpush2.bf16.xpose.msra.mxu0 0
    %284 = vmatprep.subr.bf16.mxu0 0
    %285 = vmatpush2.bf16.xpose.msra.mxu0 0
    %286 = vmatprep.subr.bf16.mxu0 0
    %287 = vmatpush2.bf16.xpose.msra.mxu0 0
    %288 = vmatprep.mubr.bf16.mxu0 0
    %289 = vmatmul.mubr.bf16.gmra.mxu0 %v251
    %v290 = vpop.f32.mrf.mxu0
    %v291 = vadd.f32 0.0, %v290
    %v292 = vpop.f32.mrf.mxu0
    %v293 = vpop.f32.mrf.mxu0
    %v294 = vpop.f32.mrf.mxu0
    %295 = vdwg.mxu0
    %296 = vrot.lane.b32.xlu0 %v150, 64
    %v297 = vpop.permute.xlu0 %296
    %v299 = vsel %vm153, %v150, 0
    %v302 = vsel %vm153, %v297, 0
    %304 = vmatprep.subr.bf16.mxu0 0
    %305 = vmatpush1.bf16.xpose.msra.mxu0 0
    %306 = vmatprep.subr.bf16.mxu0 0
    %307 = vmatpush1.bf16.xpose.msra.mxu0 0
    %308 = vmatprep.subr.bf16.mxu0 0
    %309 = vmatpush1.bf16.xpose.msra.mxu0 0
    %310 = vmatprep.subr.bf16.mxu0 0
    %311 = vmatpush1.bf16.xpose.msra.mxu0 0
    %312 = vmatprep.subr.bf16.mxu0 0
    %313 = vmatpush1.bf16.xpose.msra.mxu0 0
    %314 = vmatprep.subr.bf16.mxu0 0
    %315 = vmatpush1.bf16.xpose.msra.mxu0 0
    %316 = vmatprep.subr.bf16.mxu0 0
    %317 = vmatpush1.bf16.xpose.msra.mxu0 0
    %318 = vmatprep.subr.bf16.mxu0 0
    %319 = vmatpush1.bf16.xpose.msra.mxu0 %v302
    %320 = vmatprep.subr.bf16.mxu0 0
    %321 = vmatpush2.bf16.xpose.msra.mxu0 0
    %322 = vmatprep.subr.bf16.mxu0 0
    %323 = vmatpush2.bf16.xpose.msra.mxu0 0
    %324 = vmatprep.subr.bf16.mxu0 0
    %325 = vmatpush2.bf16.xpose.msra.mxu0 0
    %326 = vmatprep.subr.bf16.mxu0 0
    %327 = vmatpush2.bf16.xpose.msra.mxu0 0
    %328 = vmatprep.subr.bf16.mxu0 0
    %329 = vmatpush2.bf16.xpose.msra.mxu0 0
    %330 = vmatprep.subr.bf16.mxu0 0
    %331 = vmatpush2.bf16.xpose.msra.mxu0 0
    %332 = vmatprep.subr.bf16.mxu0 0
    %333 = vmatpush2.bf16.xpose.msra.mxu0 0
    %334 = vmatprep.subr.bf16.mxu0 0
    %335 = vmatpush2.bf16.xpose.msra.mxu0 0
    %336 = vmatprep.mubr.bf16.mxu0 0
    %337 = vmatmul.mubr.bf16.gmra.mxu0 %v299
    %v338 = vpop.f32.mrf.mxu0
    %v339 = vadd.f32 0.0, %v338
    %v340 = vpop.f32.mrf.mxu0
    %v341 = vpop.f32.mrf.mxu0
    %v342 = vpop.f32.mrf.mxu0
    %343 = vdwg.mxu0
    %vm344 = vcmask 64512
    %v345 = vsel %vm344, %v195, -inf
    %346 = vmax.xlane.f32.xlu0 %v345
    %v347 = vpop.xlane.xlu0 %346
    %v348 = vsel %vm344, %v243, -inf
    %349 = vmax.xlane.f32.xlu0 %v348
    %v350 = vpop.xlane.xlu0 %349
    %v351 = vsel %vm344, %v291, -inf
    %352 = vmax.xlane.f32.xlu0 %v351
    %v353 = vpop.xlane.xlu0 %352
    %v354 = vsel %vm344, %v339, -inf
    %355 = vmax.xlane.f32.xlu0 %v354
    %v356 = vpop.xlane.xlu0 %355
    %v357 = vsub.f32 %v195, %v347
    %v358 = vsub.f32 %v243, %v350
    %v359 = vsub.f32 %v291, %v353
    %v360 = vsub.f32 %v339, %v356
    %v361 = vmul.f32 %v357, 1.442695
    %v362 = vpow.pop %v361
    %v363 = vmul.f32 %v358, 1.442695
    %v364 = vpow.pop %v363
    %v365 = vmul.f32 %v359, 1.442695
    %v366 = vpow.pop %v365
    %v367 = vmul.f32 %v360, 1.442695
    %v368 = vpow.pop %v367
    %v369 = vsel %vm344, %v362, 0.0
    %370 = vadd.xlane.f32.xlu0 %v369
    %v371 = vpop.xlane.xlu0 %370
    %v372 = vsel %vm344, %v364, 0.0
    %373 = vadd.xlane.f32.xlu0 %v372
    %v374 = vpop.xlane.xlu0 %373
    %v375 = vsel %vm344, %v366, 0.0
    %376 = vadd.xlane.f32.xlu0 %v375
    %v377 = vpop.xlane.xlu0 %376
    %v378 = vsel %vm344, %v368, 0.0
    %379 = vadd.xlane.f32.xlu0 %v378
    %v380 = vpop.xlane.xlu0 %379
    %v381 = vrcp.pop %v371
    %v382 = vrcp.pop %v374
    %v383 = vrcp.pop %v377
    %v384 = vrcp.pop %v380
    %v385 = vmul.f32 %v362, %v381
    %v386 = vmul.f32 %v364, %v382
    %v387 = vmul.f32 %v366, %v383
    %v388 = vmul.f32 %v368, %v384
    %v389 = vpack.c.bf16 %v385, %v385
    %v390 = vpack.c.bf16 %v386, %v386
    %v391 = vpack.c.bf16 %v387, %v387
    %v392 = vpack.c.bf16 %v388, %v388
    %v393 = vld [vmem:[%s3] sm:$0xf]
    %v394 = vld [vmem:[%s3 + $0x4] sm:$0xf]
    %v395 = vld [vmem:[%s3 + $0x8] sm:$0xf]
    %v396 = vld [vmem:[%s3 + $0xc] sm:$0xf]
    %v397 = vld [vmem:[%s3 + $0x10] sm:$0xf]
    %v398 = vld [vmem:[%s3 + $0x14] sm:$0xf]
    %v399 = vld [vmem:[%s3 + $0x18] sm:$0xf]
    %v400 = vld [vmem:[%s3 + $0x1c] sm:$0xf]
    %v409 = vunpack.c.l.b16 %v393
    %v410 = vunpack.c.l.b16 %v394
    %v411 = vunpack.c.l.b16 %v395
    %v412 = vunpack.c.l.b16 %v396
    %v413 = vunpack.c.l.b16 %v397
    %v414 = vunpack.c.l.b16 %v398
    %v415 = vunpack.c.l.b16 %v399
    %v416 = vunpack.c.l.b16 %v400
    %v417 = vpack.c.b16 %v410, %v409
    %v418 = vpack.c.b16 %v412, %v411
    %v419 = vpack.c.b16 %v414, %v413
    %v420 = vpack.c.b16 %v416, %v415
    %425 = vmatprep.subr.bf16.mxu0 0
    %426 = vmatpush1.bf16.msra.mxu0 0
    %427 = vmatprep.subr.bf16.mxu0 0
    %428 = vmatpush1.bf16.msra.mxu0 0
    %429 = vmatprep.subr.bf16.mxu0 0
    %430 = vmatpush1.bf16.msra.mxu0 0
    %431 = vmatprep.subr.bf16.mxu0 0
    %432 = vmatpush1.bf16.msra.mxu0 0
    %433 = vmatprep.subr.bf16.mxu0 0
    %434 = vmatpush1.bf16.msra.mxu0 %v420
    %435 = vmatprep.subr.bf16.mxu0 0
    %436 = vmatpush1.bf16.msra.mxu0 %v419
    %437 = vmatprep.subr.bf16.mxu0 0
    %438 = vmatpush1.bf16.msra.mxu0 %v418
    %439 = vmatprep.subr.bf16.mxu0 0
    %440 = vmatpush1.bf16.msra.mxu0 %v417
    %441 = vmatprep.subr.bf16.mxu0 0
    %442 = vmatpush2.bf16.msra.mxu0 0
    %443 = vmatprep.subr.bf16.mxu0 0
    %444 = vmatpush2.bf16.msra.mxu0 0
    %445 = vmatprep.subr.bf16.mxu0 0
    %446 = vmatpush2.bf16.msra.mxu0 0
    %447 = vmatprep.subr.bf16.mxu0 0
    %448 = vmatpush2.bf16.msra.mxu0 0
    %449 = vmatprep.subr.bf16.mxu0 0
    %450 = vmatpush2.bf16.msra.mxu0 0
    %451 = vmatprep.subr.bf16.mxu0 0
    %452 = vmatpush2.bf16.msra.mxu0 0
    %453 = vmatprep.subr.bf16.mxu0 0
    %454 = vmatpush2.bf16.msra.mxu0 0
    %455 = vmatprep.subr.bf16.mxu0 0
    %456 = vmatpush2.bf16.msra.mxu0 0
    %457 = vmatprep.mubr.bf16.mxu0 0
    %458 = vmatmul.mubr.bf16.gmra.mxu0 %v85
    %v459 = vpop.f32.mrf.mxu0
    %v460 = vadd.f32 0.0, %v459
    %v461 = vpop.f32.mrf.mxu0
    %v462 = vpop.f32.mrf.mxu0
    %v463 = vadd.f32 0.0, %v462
    %v464 = vpop.f32.mrf.mxu0
    %465 = vmatprep.mubr.bf16.mxu0 0
    %466 = vmatmul.mubr.bf16.gmra.mxu0 %v88
    %v467 = vpop.f32.mrf.mxu0
    %v468 = vadd.f32 0.0, %v467
    %v469 = vpop.f32.mrf.mxu0
    %v470 = vpop.f32.mrf.mxu0
    %v471 = vadd.f32 0.0, %v470
    %v472 = vpop.f32.mrf.mxu0
    %473 = vdwg.mxu0
    %v474 = vpack.c.bf16 %v463, %v460
    %v475 = vpack.c.bf16 %v471, %v468
    %v478 = vunpack.c.l.b16 %v474
    %v479 = vunpack.c.h.b16 %v474
    %v480 = vunpack.c.l.b16 %v475
    %v481 = vunpack.c.h.b16 %v475
    %v482 = vpack.c.b16 %v478, %v478
    %v483 = vpack.c.b16 %v479, %v479
    %v484 = vpack.c.b16 %v480, %v480
    %v485 = vpack.c.b16 %v481, %v481
    %486 = vrot.lane.b32.xlu0 %v147, 112
    %v487 = vpop.permute.xlu0 %486
    %488 = vrot.lane.b32.xlu0 %v147, 48
    %v489 = vpop.permute.xlu0 %488
    %v491 = vsel %vm153, %v487, 0
    %v494 = vsel %vm153, %v489, 0
    %496 = vmatprep.subr.bf16.mxu0 0
    %497 = vmatpush1.bf16.xpose.msra.mxu0 0
    %498 = vmatprep.subr.bf16.mxu0 0
    %499 = vmatpush1.bf16.xpose.msra.mxu0 0
    %500 = vmatprep.subr.bf16.mxu0 0
    %501 = vmatpush1.bf16.xpose.msra.mxu0 0
    %502 = vmatprep.subr.bf16.mxu0 0
    %503 = vmatpush1.bf16.xpose.msra.mxu0 0
    %504 = vmatprep.subr.bf16.mxu0 0
    %505 = vmatpush1.bf16.xpose.msra.mxu0 0
    %506 = vmatprep.subr.bf16.mxu0 0
    %507 = vmatpush1.bf16.xpose.msra.mxu0 0
    %508 = vmatprep.subr.bf16.mxu0 0
    %509 = vmatpush1.bf16.xpose.msra.mxu0 0
    %510 = vmatprep.subr.bf16.mxu0 0
    %511 = vmatpush1.bf16.xpose.msra.mxu0 %v494
    %512 = vmatprep.subr.bf16.mxu0 0
    %513 = vmatpush2.bf16.xpose.msra.mxu0 0
    %514 = vmatprep.subr.bf16.mxu0 0
    %515 = vmatpush2.bf16.xpose.msra.mxu0 0
    %516 = vmatprep.subr.bf16.mxu0 0
    %517 = vmatpush2.bf16.xpose.msra.mxu0 0
    %518 = vmatprep.subr.bf16.mxu0 0
    %519 = vmatpush2.bf16.xpose.msra.mxu0 0
    %520 = vmatprep.subr.bf16.mxu0 0
    %521 = vmatpush2.bf16.xpose.msra.mxu0 0
    %522 = vmatprep.subr.bf16.mxu0 0
    %523 = vmatpush2.bf16.xpose.msra.mxu0 0
    %524 = vmatprep.subr.bf16.mxu0 0
    %525 = vmatpush2.bf16.xpose.msra.mxu0 0
    %526 = vmatprep.subr.bf16.mxu0 0
    %527 = vmatpush2.bf16.xpose.msra.mxu0 0
    %528 = vmatprep.mubr.bf16.mxu0 0
    %529 = vmatmul.mubr.bf16.gmra.mxu0 %v491
    %v530 = vpop.f32.mrf.mxu0
    %v531 = vadd.f32 0.0, %v530
    %v532 = vpop.f32.mrf.mxu0
    %v533 = vpop.f32.mrf.mxu0
    %v534 = vpop.f32.mrf.mxu0
    %535 = vdwg.mxu0
    %536 = vrot.lane.b32.xlu0 %v148, 112
    %v537 = vpop.permute.xlu0 %536
    %538 = vrot.lane.b32.xlu0 %v148, 48
    %v539 = vpop.permute.xlu0 %538
    %v541 = vsel %vm153, %v537, 0
    %v544 = vsel %vm153, %v539, 0
    %546 = vmatprep.subr.bf16.mxu0 0
    %547 = vmatpush1.bf16.xpose.msra.mxu0 0
    %548 = vmatprep.subr.bf16.mxu0 0
    %549 = vmatpush1.bf16.xpose.msra.mxu0 0
    %550 = vmatprep.subr.bf16.mxu0 0
    %551 = vmatpush1.bf16.xpose.msra.mxu0 0
    %552 = vmatprep.subr.bf16.mxu0 0
    %553 = vmatpush1.bf16.xpose.msra.mxu0 0
    %554 = vmatprep.subr.bf16.mxu0 0
    %555 = vmatpush1.bf16.xpose.msra.mxu0 0
    %556 = vmatprep.subr.bf16.mxu0 0
    %557 = vmatpush1.bf16.xpose.msra.mxu0 0
    %558 = vmatprep.subr.bf16.mxu0 0
    %559 = vmatpush1.bf16.xpose.msra.mxu0 0
    %560 = vmatprep.subr.bf16.mxu0 0
    %561 = vmatpush1.bf16.xpose.msra.mxu0 %v544
    %562 = vmatprep.subr.bf16.mxu0 0
    %563 = vmatpush2.bf16.xpose.msra.mxu0 0
    %564 = vmatprep.subr.bf16.mxu0 0
    %565 = vmatpush2.bf16.xpose.msra.mxu0 0
    %566 = vmatprep.subr.bf16.mxu0 0
    %567 = vmatpush2.bf16.xpose.msra.mxu0 0
    %568 = vmatprep.subr.bf16.mxu0 0
    %569 = vmatpush2.bf16.xpose.msra.mxu0 0
    %570 = vmatprep.subr.bf16.mxu0 0
    %571 = vmatpush2.bf16.xpose.msra.mxu0 0
    %572 = vmatprep.subr.bf16.mxu0 0
    %573 = vmatpush2.bf16.xpose.msra.mxu0 0
    %574 = vmatprep.subr.bf16.mxu0 0
    %575 = vmatpush2.bf16.xpose.msra.mxu0 0
    %576 = vmatprep.subr.bf16.mxu0 0
    %577 = vmatpush2.bf16.xpose.msra.mxu0 0
    %578 = vmatprep.mubr.bf16.mxu0 0
    %579 = vmatmul.mubr.bf16.gmra.mxu0 %v541
    %v580 = vpop.f32.mrf.mxu0
    %v581 = vadd.f32 0.0, %v580
    %v582 = vpop.f32.mrf.mxu0
    %v583 = vpop.f32.mrf.mxu0
    %v584 = vpop.f32.mrf.mxu0
    %585 = vdwg.mxu0
    %586 = vrot.lane.b32.xlu0 %v149, 112
    %v587 = vpop.permute.xlu0 %586
    %588 = vrot.lane.b32.xlu0 %v149, 48
    %v589 = vpop.permute.xlu0 %588
    %v591 = vsel %vm153, %v587, 0
    %v594 = vsel %vm153, %v589, 0
    %596 = vmatprep.subr.bf16.mxu0 0
    %597 = vmatpush1.bf16.xpose.msra.mxu0 0
    %598 = vmatprep.subr.bf16.mxu0 0
    %599 = vmatpush1.bf16.xpose.msra.mxu0 0
    %600 = vmatprep.subr.bf16.mxu0 0
    %601 = vmatpush1.bf16.xpose.msra.mxu0 0
    %602 = vmatprep.subr.bf16.mxu0 0
    %603 = vmatpush1.bf16.xpose.msra.mxu0 0
    %604 = vmatprep.subr.bf16.mxu0 0
    %605 = vmatpush1.bf16.xpose.msra.mxu0 0
    %606 = vmatprep.subr.bf16.mxu0 0
    %607 = vmatpush1.bf16.xpose.msra.mxu0 0
    %608 = vmatprep.subr.bf16.mxu0 0
    %609 = vmatpush1.bf16.xpose.msra.mxu0 0
    %610 = vmatprep.subr.bf16.mxu0 0
    %611 = vmatpush1.bf16.xpose.msra.mxu0 %v594
    %612 = vmatprep.subr.bf16.mxu0 0
    %613 = vmatpush2.bf16.xpose.msra.mxu0 0
    %614 = vmatprep.subr.bf16.mxu0 0
    %615 = vmatpush2.bf16.xpose.msra.mxu0 0
    %616 = vmatprep.subr.bf16.mxu0 0
    %617 = vmatpush2.bf16.xpose.msra.mxu0 0
    %618 = vmatprep.subr.bf16.mxu0 0
    %619 = vmatpush2.bf16.xpose.msra.mxu0 0
    %620 = vmatprep.subr.bf16.mxu0 0
    %621 = vmatpush2.bf16.xpose.msra.mxu0 0
    %622 = vmatprep.subr.bf16.mxu0 0
    %623 = vmatpush2.bf16.xpose.msra.mxu0 0
    %624 = vmatprep.subr.bf16.mxu0 0
    %625 = vmatpush2.bf16.xpose.msra.mxu0 0
    %626 = vmatprep.subr.bf16.mxu0 0
    %627 = vmatpush2.bf16.xpose.msra.mxu0 0
    %628 = vmatprep.mubr.bf16.mxu0 0
    %629 = vmatmul.mubr.bf16.gmra.mxu0 %v591
    %v630 = vpop.f32.mrf.mxu0
    %v631 = vadd.f32 0.0, %v630
    %v632 = vpop.f32.mrf.mxu0
    %v633 = vpop.f32.mrf.mxu0
    %v634 = vpop.f32.mrf.mxu0
    %635 = vdwg.mxu0
    %636 = vrot.lane.b32.xlu0 %v150, 112
    %v637 = vpop.permute.xlu0 %636
    %638 = vrot.lane.b32.xlu0 %v150, 48
    %v639 = vpop.permute.xlu0 %638
    %v641 = vsel %vm153, %v637, 0
    %v644 = vsel %vm153, %v639, 0
    %646 = vmatprep.subr.bf16.mxu0 0
    %647 = vmatpush1.bf16.xpose.msra.mxu0 0
    %648 = vmatprep.subr.bf16.mxu0 0
    %649 = vmatpush1.bf16.xpose.msra.mxu0 0
    %650 = vmatprep.subr.bf16.mxu0 0
    %651 = vmatpush1.bf16.xpose.msra.mxu0 0
    %652 = vmatprep.subr.bf16.mxu0 0
    %653 = vmatpush1.bf16.xpose.msra.mxu0 0
    %654 = vmatprep.subr.bf16.mxu0 0
    %655 = vmatpush1.bf16.xpose.msra.mxu0 0
    %656 = vmatprep.subr.bf16.mxu0 0
    %657 = vmatpush1.bf16.xpose.msra.mxu0 0
    %658 = vmatprep.subr.bf16.mxu0 0
    %659 = vmatpush1.bf16.xpose.msra.mxu0 0
    %660 = vmatprep.subr.bf16.mxu0 0
    %661 = vmatpush1.bf16.xpose.msra.mxu0 %v644
    %662 = vmatprep.subr.bf16.mxu0 0
    %663 = vmatpush2.bf16.xpose.msra.mxu0 0
    %664 = vmatprep.subr.bf16.mxu0 0
    %665 = vmatpush2.bf16.xpose.msra.mxu0 0
    %666 = vmatprep.subr.bf16.mxu0 0
    %667 = vmatpush2.bf16.xpose.msra.mxu0 0
    %668 = vmatprep.subr.bf16.mxu0 0
    %669 = vmatpush2.bf16.xpose.msra.mxu0 0
    %670 = vmatprep.subr.bf16.mxu0 0
    %671 = vmatpush2.bf16.xpose.msra.mxu0 0
    %672 = vmatprep.subr.bf16.mxu0 0
    %673 = vmatpush2.bf16.xpose.msra.mxu0 0
    %674 = vmatprep.subr.bf16.mxu0 0
    %675 = vmatpush2.bf16.xpose.msra.mxu0 0
    %676 = vmatprep.subr.bf16.mxu0 0
    %677 = vmatpush2.bf16.xpose.msra.mxu0 0
    %678 = vmatprep.mubr.bf16.mxu0 0
    %679 = vmatmul.mubr.bf16.gmra.mxu0 %v641
    %v680 = vpop.f32.mrf.mxu0
    %v681 = vadd.f32 0.0, %v680
    %v682 = vpop.f32.mrf.mxu0
    %v683 = vpop.f32.mrf.mxu0
    %v684 = vpop.f32.mrf.mxu0
    %685 = vdwg.mxu0
    %v686 = vsel %vm344, %v531, -inf
    %687 = vmax.xlane.f32.xlu0 %v686
    %v688 = vpop.xlane.xlu0 %687
    %v689 = vsel %vm344, %v581, -inf
    %690 = vmax.xlane.f32.xlu0 %v689
    %v691 = vpop.xlane.xlu0 %690
    %v692 = vsel %vm344, %v631, -inf
    %693 = vmax.xlane.f32.xlu0 %v692
    %v694 = vpop.xlane.xlu0 %693
    %v695 = vsel %vm344, %v681, -inf
    %696 = vmax.xlane.f32.xlu0 %v695
    %v697 = vpop.xlane.xlu0 %696
    %v698 = vsub.f32 %v531, %v688
    %v699 = vsub.f32 %v581, %v691
    %v700 = vsub.f32 %v631, %v694
    %v701 = vsub.f32 %v681, %v697
    %v702 = vmul.f32 %v698, 1.442695
    %v703 = vpow.pop %v702
    %v704 = vmul.f32 %v699, 1.442695
    %v705 = vpow.pop %v704
    %v706 = vmul.f32 %v700, 1.442695
    %v707 = vpow.pop %v706
    %v708 = vmul.f32 %v701, 1.442695
    %v709 = vpow.pop %v708
    %v710 = vsel %vm344, %v703, 0.0
    %711 = vadd.xlane.f32.xlu0 %v710
    %v712 = vpop.xlane.xlu0 %711
    %v713 = vsel %vm344, %v705, 0.0
    %714 = vadd.xlane.f32.xlu0 %v713
    %v715 = vpop.xlane.xlu0 %714
    %v716 = vsel %vm344, %v707, 0.0
    %717 = vadd.xlane.f32.xlu0 %v716
    %v718 = vpop.xlane.xlu0 %717
    %v719 = vsel %vm344, %v709, 0.0
    %720 = vadd.xlane.f32.xlu0 %v719
    %v721 = vpop.xlane.xlu0 %720
    %v722 = vrcp.pop %v712
    %v723 = vrcp.pop %v715
    %v724 = vrcp.pop %v718
    %v725 = vrcp.pop %v721
    %v726 = vmul.f32 %v703, %v722
    %v727 = vmul.f32 %v705, %v723
    %v728 = vmul.f32 %v707, %v724
    %v729 = vmul.f32 %v709, %v725
    %v730 = vpack.c.bf16 %v726, %v726
    %v731 = vpack.c.bf16 %v727, %v727
    %v732 = vpack.c.bf16 %v728, %v728
    %v733 = vpack.c.bf16 %v729, %v729
    %s734 = scalar_lea.vmem %s3, 32
    %v735 = vld [vmem:[%s734] sm:$0xf]
    %v736 = vld [vmem:[%s734 + $0x4] sm:$0xf]
    %v737 = vld [vmem:[%s734 + $0x8] sm:$0xf]
    %v738 = vld [vmem:[%s734 + $0xc] sm:$0xf]
    %v739 = vld [vmem:[%s734 + $0x10] sm:$0xf]
    %v740 = vld [vmem:[%s734 + $0x14] sm:$0xf]
    %v741 = vld [vmem:[%s734 + $0x18] sm:$0xf]
    %v742 = vld [vmem:[%s734 + $0x1c] sm:$0xf]
    %v751 = vunpack.c.l.b16 %v735
    %v752 = vunpack.c.l.b16 %v736
    %v753 = vunpack.c.l.b16 %v737
    %v754 = vunpack.c.l.b16 %v738
    %v755 = vunpack.c.l.b16 %v739
    %v756 = vunpack.c.l.b16 %v740
    %v757 = vunpack.c.l.b16 %v741
    %v758 = vunpack.c.l.b16 %v742
    %v759 = vpack.c.b16 %v752, %v751
    %v760 = vpack.c.b16 %v754, %v753
    %v761 = vpack.c.b16 %v756, %v755
    %v762 = vpack.c.b16 %v758, %v757
    %767 = vmatprep.subr.bf16.mxu0 0
    %768 = vmatpush1.bf16.msra.mxu0 0
    %769 = vmatprep.subr.bf16.mxu0 0
    %770 = vmatpush1.bf16.msra.mxu0 0
    %771 = vmatprep.subr.bf16.mxu0 0
    %772 = vmatpush1.bf16.msra.mxu0 0
    %773 = vmatprep.subr.bf16.mxu0 0
    %774 = vmatpush1.bf16.msra.mxu0 0
    %775 = vmatprep.subr.bf16.mxu0 0
    %776 = vmatpush1.bf16.msra.mxu0 %v762
    %777 = vmatprep.subr.bf16.mxu0 0
    %778 = vmatpush1.bf16.msra.mxu0 %v761
    %779 = vmatprep.subr.bf16.mxu0 0
    %780 = vmatpush1.bf16.msra.mxu0 %v760
    %781 = vmatprep.subr.bf16.mxu0 0
    %782 = vmatpush1.bf16.msra.mxu0 %v759
    %783 = vmatprep.subr.bf16.mxu0 0
    %784 = vmatpush2.bf16.msra.mxu0 0
    %785 = vmatprep.subr.bf16.mxu0 0
    %786 = vmatpush2.bf16.msra.mxu0 0
    %787 = vmatprep.subr.bf16.mxu0 0
    %788 = vmatpush2.bf16.msra.mxu0 0
    %789 = vmatprep.subr.bf16.mxu0 0
    %790 = vmatpush2.bf16.msra.mxu0 0
    %791 = vmatprep.subr.bf16.mxu0 0
    %792 = vmatpush2.bf16.msra.mxu0 0
    %793 = vmatprep.subr.bf16.mxu0 0
    %794 = vmatpush2.bf16.msra.mxu0 0
    %795 = vmatprep.subr.bf16.mxu0 0
    %796 = vmatpush2.bf16.msra.mxu0 0
    %797 = vmatprep.subr.bf16.mxu0 0
    %798 = vmatpush2.bf16.msra.mxu0 0
    %799 = vmatprep.mubr.bf16.mxu0 0
    %800 = vmatmul.mubr.bf16.gmra.mxu0 %v85
    %v801 = vpop.f32.mrf.mxu0
    %v802 = vadd.f32 0.0, %v801
    %v803 = vpop.f32.mrf.mxu0
    %v804 = vpop.f32.mrf.mxu0
    %v805 = vadd.f32 0.0, %v804
    %v806 = vpop.f32.mrf.mxu0
    %807 = vmatprep.mubr.bf16.mxu0 0
    %808 = vmatmul.mubr.bf16.gmra.mxu0 %v88
    %v809 = vpop.f32.mrf.mxu0
    %v810 = vadd.f32 0.0, %v809
    %v811 = vpop.f32.mrf.mxu0
    %v812 = vpop.f32.mrf.mxu0
    %v813 = vadd.f32 0.0, %v812
    %v814 = vpop.f32.mrf.mxu0
    %815 = vdwg.mxu0
    %v816 = vpack.c.bf16 %v805, %v802
    %v817 = vpack.c.bf16 %v813, %v810
    %v820 = vunpack.c.l.b16 %v816
    %v821 = vunpack.c.h.b16 %v816
    %v822 = vunpack.c.l.b16 %v817
    %v823 = vunpack.c.h.b16 %v817
    %v824 = vpack.c.b16 %v820, %v820
    %v825 = vpack.c.b16 %v821, %v821
    %v826 = vpack.c.b16 %v822, %v822
    %v827 = vpack.c.b16 %v823, %v823
    %v829 = vsel %vm344, %v730, 0
    %vm831 = vcmask 1043456
    %v833 = vsel %vm831, %v824, 0
    %835 = vmatprep.subr.bf16.mxu0 0
    %836 = vmatpush1.bf16.msra.mxu0 0
    %837 = vmatprep.subr.bf16.mxu0 0
    %838 = vmatpush1.bf16.msra.mxu0 0
    %839 = vmatprep.subr.bf16.mxu0 0
    %840 = vmatpush1.bf16.msra.mxu0 0
    %841 = vmatprep.subr.bf16.mxu0 0
    %842 = vmatpush1.bf16.msra.mxu0 0
    %843 = vmatprep.subr.bf16.mxu0 0
    %844 = vmatpush1.bf16.msra.mxu0 0
    %845 = vmatprep.subr.bf16.mxu0 0
    %846 = vmatpush1.bf16.msra.mxu0 0
    %847 = vmatprep.subr.bf16.mxu0 0
    %848 = vmatpush1.bf16.msra.mxu0 0
    %849 = vmatprep.subr.bf16.mxu0 0
    %850 = vmatpush1.bf16.msra.mxu0 %v833
    %851 = vmatprep.subr.bf16.mxu0 0
    %852 = vmatpush2.bf16.msra.mxu0 0
    %853 = vmatprep.subr.bf16.mxu0 0
    %854 = vmatpush2.bf16.msra.mxu0 0
    %855 = vmatprep.subr.bf16.mxu0 0
    %856 = vmatpush2.bf16.msra.mxu0 0
    %857 = vmatprep.subr.bf16.mxu0 0
    %858 = vmatpush2.bf16.msra.mxu0 0
    %859 = vmatprep.subr.bf16.mxu0 0
    %860 = vmatpush2.bf16.msra.mxu0 0
    %861 = vmatprep.subr.bf16.mxu0 0
    %862 = vmatpush2.bf16.msra.mxu0 0
    %863 = vmatprep.subr.bf16.mxu0 0
    %864 = vmatpush2.bf16.msra.mxu0 0
    %865 = vmatprep.subr.bf16.mxu0 0
    %866 = vmatpush2.bf16.msra.mxu0 0
    %867 = vmatprep.mubr.bf16.mxu0 0
    %868 = vmatmul.mubr.bf16.gmra.mxu0 %v829
    %v869 = vpop.f32.mrf.mxu0
    %v870 = vadd.f32 0.0, %v869
    %v871 = vpop.f32.mrf.mxu0
    %v872 = vpop.f32.mrf.mxu0
    %v873 = vpop.f32.mrf.mxu0
    %874 = vdwg.mxu0
    %v876 = vsel %vm344, %v731, 0
    %v879 = vsel %vm831, %v825, 0
    %881 = vmatprep.subr.bf16.mxu0 0
    %882 = vmatpush1.bf16.msra.mxu0 0
    %883 = vmatprep.subr.bf16.mxu0 0
    %884 = vmatpush1.bf16.msra.mxu0 0
    %885 = vmatprep.subr.bf16.mxu0 0
    %886 = vmatpush1.bf16.msra.mxu0 0
    %887 = vmatprep.subr.bf16.mxu0 0
    %888 = vmatpush1.bf16.msra.mxu0 0
    %889 = vmatprep.subr.bf16.mxu0 0
    %890 = vmatpush1.bf16.msra.mxu0 0
    %891 = vmatprep.subr.bf16.mxu0 0
    %892 = vmatpush1.bf16.msra.mxu0 0
    %893 = vmatprep.subr.bf16.mxu0 0
    %894 = vmatpush1.bf16.msra.mxu0 0
    %895 = vmatprep.subr.bf16.mxu0 0
    %896 = vmatpush1.bf16.msra.mxu0 %v879
    %897 = vmatprep.subr.bf16.mxu0 0
    %898 = vmatpush2.bf16.msra.mxu0 0
    %899 = vmatprep.subr.bf16.mxu0 0
    %900 = vmatpush2.bf16.msra.mxu0 0
    %901 = vmatprep.subr.bf16.mxu0 0
    %902 = vmatpush2.bf16.msra.mxu0 0
    %903 = vmatprep.subr.bf16.mxu0 0
    %904 = vmatpush2.bf16.msra.mxu0 0
    %905 = vmatprep.subr.bf16.mxu0 0
    %906 = vmatpush2.bf16.msra.mxu0 0
    %907 = vmatprep.subr.bf16.mxu0 0
    %908 = vmatpush2.bf16.msra.mxu0 0
    %909 = vmatprep.subr.bf16.mxu0 0
    %910 = vmatpush2.bf16.msra.mxu0 0
    %911 = vmatprep.subr.bf16.mxu0 0
    %912 = vmatpush2.bf16.msra.mxu0 0
    %913 = vmatprep.mubr.bf16.mxu0 0
    %914 = vmatmul.mubr.bf16.gmra.mxu0 %v876
    %v915 = vpop.f32.mrf.mxu0
    %v916 = vadd.f32 0.0, %v915
    %v917 = vpop.f32.mrf.mxu0
    %v918 = vpop.f32.mrf.mxu0
    %v919 = vpop.f32.mrf.mxu0
    %920 = vdwg.mxu0
    %v922 = vsel %vm344, %v732, 0
    %v925 = vsel %vm831, %v826, 0
    %927 = vmatprep.subr.bf16.mxu0 0
    %928 = vmatpush1.bf16.msra.mxu0 0
    %929 = vmatprep.subr.bf16.mxu0 0
    %930 = vmatpush1.bf16.msra.mxu0 0
    %931 = vmatprep.subr.bf16.mxu0 0
    %932 = vmatpush1.bf16.msra.mxu0 0
    %933 = vmatprep.subr.bf16.mxu0 0
    %934 = vmatpush1.bf16.msra.mxu0 0
    %935 = vmatprep.subr.bf16.mxu0 0
    %936 = vmatpush1.bf16.msra.mxu0 0
    %937 = vmatprep.subr.bf16.mxu0 0
    %938 = vmatpush1.bf16.msra.mxu0 0
    %939 = vmatprep.subr.bf16.mxu0 0
    %940 = vmatpush1.bf16.msra.mxu0 0
    %941 = vmatprep.subr.bf16.mxu0 0
    %942 = vmatpush1.bf16.msra.mxu0 %v925
    %943 = vmatprep.subr.bf16.mxu0 0
    %944 = vmatpush2.bf16.msra.mxu0 0
    %945 = vmatprep.subr.bf16.mxu0 0
    %946 = vmatpush2.bf16.msra.mxu0 0
    %947 = vmatprep.subr.bf16.mxu0 0
    %948 = vmatpush2.bf16.msra.mxu0 0
    %949 = vmatprep.subr.bf16.mxu0 0
    %950 = vmatpush2.bf16.msra.mxu0 0
    %951 = vmatprep.subr.bf16.mxu0 0
    %952 = vmatpush2.bf16.msra.mxu0 0
    %953 = vmatprep.subr.bf16.mxu0 0
    %954 = vmatpush2.bf16.msra.mxu0 0
    %955 = vmatprep.subr.bf16.mxu0 0
    %956 = vmatpush2.bf16.msra.mxu0 0
    %957 = vmatprep.subr.bf16.mxu0 0
    %958 = vmatpush2.bf16.msra.mxu0 0
    %959 = vmatprep.mubr.bf16.mxu0 0
    %960 = vmatmul.mubr.bf16.gmra.mxu0 %v922
    %v961 = vpop.f32.mrf.mxu0
    %v962 = vadd.f32 0.0, %v961
    %v963 = vpop.f32.mrf.mxu0
    %v964 = vpop.f32.mrf.mxu0
    %v965 = vpop.f32.mrf.mxu0
    %966 = vdwg.mxu0
    %v968 = vsel %vm344, %v733, 0
    %v971 = vsel %vm831, %v827, 0
    %973 = vmatprep.subr.bf16.mxu0 0
    %974 = vmatpush1.bf16.msra.mxu0 0
    %975 = vmatprep.subr.bf16.mxu0 0
    %976 = vmatpush1.bf16.msra.mxu0 0
    %977 = vmatprep.subr.bf16.mxu0 0
    %978 = vmatpush1.bf16.msra.mxu0 0
    %979 = vmatprep.subr.bf16.mxu0 0
    %980 = vmatpush1.bf16.msra.mxu0 0
    %981 = vmatprep.subr.bf16.mxu0 0
    %982 = vmatpush1.bf16.msra.mxu0 0
    %983 = vmatprep.subr.bf16.mxu0 0
    %984 = vmatpush1.bf16.msra.mxu0 0
    %985 = vmatprep.subr.bf16.mxu0 0
    %986 = vmatpush1.bf16.msra.mxu0 0
    %987 = vmatprep.subr.bf16.mxu0 0
    %988 = vmatpush1.bf16.msra.mxu0 %v971
    %989 = vmatprep.subr.bf16.mxu0 0
    %990 = vmatpush2.bf16.msra.mxu0 0
    %991 = vmatprep.subr.bf16.mxu0 0
    %992 = vmatpush2.bf16.msra.mxu0 0
    %993 = vmatprep.subr.bf16.mxu0 0
    %994 = vmatpush2.bf16.msra.mxu0 0
    %995 = vmatprep.subr.bf16.mxu0 0
    %996 = vmatpush2.bf16.msra.mxu0 0
    %997 = vmatprep.subr.bf16.mxu0 0
    %998 = vmatpush2.bf16.msra.mxu0 0
    %999 = vmatprep.subr.bf16.mxu0 0
    %1000 = vmatpush2.bf16.msra.mxu0 0
    %1001 = vmatprep.subr.bf16.mxu0 0
    %1002 = vmatpush2.bf16.msra.mxu0 0
    %1003 = vmatprep.subr.bf16.mxu0 0
    %1004 = vmatpush2.bf16.msra.mxu0 0
    %1005 = vmatprep.mubr.bf16.mxu0 0
    %1006 = vmatmul.mubr.bf16.gmra.mxu0 %v968
    %v1007 = vpop.f32.mrf.mxu0
    %v1008 = vadd.f32 0.0, %v1007
    %v1009 = vpop.f32.mrf.mxu0
    %v1010 = vpop.f32.mrf.mxu0
    %v1011 = vpop.f32.mrf.mxu0
    %1012 = vdwg.mxu0
    %v1014 = vsel %vm344, %v389, 0
    %v1017 = vsel %vm831, %v482, 0
    %1019 = vmatprep.subr.bf16.mxu0 0
    %1020 = vmatpush1.bf16.msra.mxu0 0
    %1021 = vmatprep.subr.bf16.mxu0 0
    %1022 = vmatpush1.bf16.msra.mxu0 0
    %1023 = vmatprep.subr.bf16.mxu0 0
    %1024 = vmatpush1.bf16.msra.mxu0 0
    %1025 = vmatprep.subr.bf16.mxu0 0
    %1026 = vmatpush1.bf16.msra.mxu0 0
    %1027 = vmatprep.subr.bf16.mxu0 0
    %1028 = vmatpush1.bf16.msra.mxu0 0
    %1029 = vmatprep.subr.bf16.mxu0 0
    %1030 = vmatpush1.bf16.msra.mxu0 0
    %1031 = vmatprep.subr.bf16.mxu0 0
    %1032 = vmatpush1.bf16.msra.mxu0 0
    %1033 = vmatprep.subr.bf16.mxu0 0
    %1034 = vmatpush1.bf16.msra.mxu0 %v1017
    %1035 = vmatprep.subr.bf16.mxu0 0
    %1036 = vmatpush2.bf16.msra.mxu0 0
    %1037 = vmatprep.subr.bf16.mxu0 0
    %1038 = vmatpush2.bf16.msra.mxu0 0
    %1039 = vmatprep.subr.bf16.mxu0 0
    %1040 = vmatpush2.bf16.msra.mxu0 0
    %1041 = vmatprep.subr.bf16.mxu0 0
    %1042 = vmatpush2.bf16.msra.mxu0 0
    %1043 = vmatprep.subr.bf16.mxu0 0
    %1044 = vmatpush2.bf16.msra.mxu0 0
    %1045 = vmatprep.subr.bf16.mxu0 0
    %1046 = vmatpush2.bf16.msra.mxu0 0
    %1047 = vmatprep.subr.bf16.mxu0 0
    %1048 = vmatpush2.bf16.msra.mxu0 0
    %1049 = vmatprep.subr.bf16.mxu0 0
    %1050 = vmatpush2.bf16.msra.mxu0 0
    %1051 = vmatprep.mubr.bf16.mxu0 0
    %1052 = vmatmul.mubr.bf16.gmra.mxu0 %v1014
    %v1053 = vpop.f32.mrf.mxu0
    %v1054 = vadd.f32 %v870, %v1053
    %v1055 = vpop.f32.mrf.mxu0
    %v1056 = vpop.f32.mrf.mxu0
    %v1057 = vpop.f32.mrf.mxu0
    %1058 = vdwg.mxu0
    %v1060 = vsel %vm344, %v390, 0
    %v1063 = vsel %vm831, %v483, 0
    %1065 = vmatprep.subr.bf16.mxu0 0
    %1066 = vmatpush1.bf16.msra.mxu0 0
    %1067 = vmatprep.subr.bf16.mxu0 0
    %1068 = vmatpush1.bf16.msra.mxu0 0
    %1069 = vmatprep.subr.bf16.mxu0 0
    %1070 = vmatpush1.bf16.msra.mxu0 0
    %1071 = vmatprep.subr.bf16.mxu0 0
    %1072 = vmatpush1.bf16.msra.mxu0 0
    %1073 = vmatprep.subr.bf16.mxu0 0
    %1074 = vmatpush1.bf16.msra.mxu0 0
    %1075 = vmatprep.subr.bf16.mxu0 0
    %1076 = vmatpush1.bf16.msra.mxu0 0
    %1077 = vmatprep.subr.bf16.mxu0 0
    %1078 = vmatpush1.bf16.msra.mxu0 0
    %1079 = vmatprep.subr.bf16.mxu0 0
    %1080 = vmatpush1.bf16.msra.mxu0 %v1063
    %1081 = vmatprep.subr.bf16.mxu0 0
    %1082 = vmatpush2.bf16.msra.mxu0 0
    %1083 = vmatprep.subr.bf16.mxu0 0
    %1084 = vmatpush2.bf16.msra.mxu0 0
    %1085 = vmatprep.subr.bf16.mxu0 0
    %1086 = vmatpush2.bf16.msra.mxu0 0
    %1087 = vmatprep.subr.bf16.mxu0 0
    %1088 = vmatpush2.bf16.msra.mxu0 0
    %1089 = vmatprep.subr.bf16.mxu0 0
    %1090 = vmatpush2.bf16.msra.mxu0 0
    %1091 = vmatprep.subr.bf16.mxu0 0
    %1092 = vmatpush2.bf16.msra.mxu0 0
    %1093 = vmatprep.subr.bf16.mxu0 0
    %1094 = vmatpush2.bf16.msra.mxu0 0
    %1095 = vmatprep.subr.bf16.mxu0 0
    %1096 = vmatpush2.bf16.msra.mxu0 0
    %1097 = vmatprep.mubr.bf16.mxu0 0
    %1098 = vmatmul.mubr.bf16.gmra.mxu0 %v1060
    %v1099 = vpop.f32.mrf.mxu0
    %v1100 = vadd.f32 %v916, %v1099
    %v1101 = vpop.f32.mrf.mxu0
    %v1102 = vpop.f32.mrf.mxu0
    %v1103 = vpop.f32.mrf.mxu0
    %1104 = vdwg.mxu0
    %v1106 = vsel %vm344, %v391, 0
    %v1109 = vsel %vm831, %v484, 0
    %1111 = vmatprep.subr.bf16.mxu0 0
    %1112 = vmatpush1.bf16.msra.mxu0 0
    %1113 = vmatprep.subr.bf16.mxu0 0
    %1114 = vmatpush1.bf16.msra.mxu0 0
    %1115 = vmatprep.subr.bf16.mxu0 0
    %1116 = vmatpush1.bf16.msra.mxu0 0
    %1117 = vmatprep.subr.bf16.mxu0 0
    %1118 = vmatpush1.bf16.msra.mxu0 0
    %1119 = vmatprep.subr.bf16.mxu0 0
    %1120 = vmatpush1.bf16.msra.mxu0 0
    %1121 = vmatprep.subr.bf16.mxu0 0
    %1122 = vmatpush1.bf16.msra.mxu0 0
    %1123 = vmatprep.subr.bf16.mxu0 0
    %1124 = vmatpush1.bf16.msra.mxu0 0
    %1125 = vmatprep.subr.bf16.mxu0 0
    %1126 = vmatpush1.bf16.msra.mxu0 %v1109
    %1127 = vmatprep.subr.bf16.mxu0 0
    %1128 = vmatpush2.bf16.msra.mxu0 0
    %1129 = vmatprep.subr.bf16.mxu0 0
    %1130 = vmatpush2.bf16.msra.mxu0 0
    %1131 = vmatprep.subr.bf16.mxu0 0
    %1132 = vmatpush2.bf16.msra.mxu0 0
    %1133 = vmatprep.subr.bf16.mxu0 0
    %1134 = vmatpush2.bf16.msra.mxu0 0
    %1135 = vmatprep.subr.bf16.mxu0 0
    %1136 = vmatpush2.bf16.msra.mxu0 0
    %1137 = vmatprep.subr.bf16.mxu0 0
    %1138 = vmatpush2.bf16.msra.mxu0 0
    %1139 = vmatprep.subr.bf16.mxu0 0
    %1140 = vmatpush2.bf16.msra.mxu0 0
    %1141 = vmatprep.subr.bf16.mxu0 0
    %1142 = vmatpush2.bf16.msra.mxu0 0
    %1143 = vmatprep.mubr.bf16.mxu0 0
    %1144 = vmatmul.mubr.bf16.gmra.mxu0 %v1106
    %v1145 = vpop.f32.mrf.mxu0
    %v1146 = vadd.f32 %v962, %v1145
    %v1147 = vpop.f32.mrf.mxu0
    %v1148 = vpop.f32.mrf.mxu0
    %v1149 = vpop.f32.mrf.mxu0
    %1150 = vdwg.mxu0
    %v1152 = vsel %vm344, %v392, 0
    %v1155 = vsel %vm831, %v485, 0
    %1157 = vmatprep.subr.bf16.mxu0 0
    %1158 = vmatpush1.bf16.msra.mxu0 0
    %1159 = vmatprep.subr.bf16.mxu0 0
    %1160 = vmatpush1.bf16.msra.mxu0 0
    %1161 = vmatprep.subr.bf16.mxu0 0
    %1162 = vmatpush1.bf16.msra.mxu0 0
    %1163 = vmatprep.subr.bf16.mxu0 0
    %1164 = vmatpush1.bf16.msra.mxu0 0
    %1165 = vmatprep.subr.bf16.mxu0 0
    %1166 = vmatpush1.bf16.msra.mxu0 0
    %1167 = vmatprep.subr.bf16.mxu0 0
    %1168 = vmatpush1.bf16.msra.mxu0 0
    %1169 = vmatprep.subr.bf16.mxu0 0
    %1170 = vmatpush1.bf16.msra.mxu0 0
    %1171 = vmatprep.subr.bf16.mxu0 0
    %1172 = vmatpush1.bf16.msra.mxu0 %v1155
    %1173 = vmatprep.subr.bf16.mxu0 0
    %1174 = vmatpush2.bf16.msra.mxu0 0
    %1175 = vmatprep.subr.bf16.mxu0 0
    %1176 = vmatpush2.bf16.msra.mxu0 0
    %1177 = vmatprep.subr.bf16.mxu0 0
    %1178 = vmatpush2.bf16.msra.mxu0 0
    %1179 = vmatprep.subr.bf16.mxu0 0
    %1180 = vmatpush2.bf16.msra.mxu0 0
    %1181 = vmatprep.subr.bf16.mxu0 0
    %1182 = vmatpush2.bf16.msra.mxu0 0
    %1183 = vmatprep.subr.bf16.mxu0 0
    %1184 = vmatpush2.bf16.msra.mxu0 0
    %1185 = vmatprep.subr.bf16.mxu0 0
    %1186 = vmatpush2.bf16.msra.mxu0 0
    %1187 = vmatprep.subr.bf16.mxu0 0
    %1188 = vmatpush2.bf16.msra.mxu0 0
    %1189 = vmatprep.mubr.bf16.mxu0 0
    %1190 = vmatmul.mubr.bf16.gmra.mxu0 %v1152
    %v1191 = vpop.f32.mrf.mxu0
    %v1192 = vadd.f32 %v1008, %v1191
    %v1193 = vpop.f32.mrf.mxu0
    %v1194 = vpop.f32.mrf.mxu0
    %v1195 = vpop.f32.mrf.mxu0
    %1196 = vdwg.mxu0
    %1197 = vrot.lane.b32.xlu0 %v147, 96
    %v1198 = vpop.permute.xlu0 %1197
    %1199 = vrot.lane.b32.xlu0 %v147, 32
    %v1200 = vpop.permute.xlu0 %1199
    %v1202 = vsel %vm153, %v1198, 0
    %v1205 = vsel %vm153, %v1200, 0
    %1207 = vmatprep.subr.bf16.mxu0 0
    %1208 = vmatpush1.bf16.xpose.msra.mxu0 0
    %1209 = vmatprep.subr.bf16.mxu0 0
    %1210 = vmatpush1.bf16.xpose.msra.mxu0 0
    %1211 = vmatprep.subr.bf16.mxu0 0
    %1212 = vmatpush1.bf16.xpose.msra.mxu0 0
    %1213 = vmatprep.subr.bf16.mxu0 0
    %1214 = vmatpush1.bf16.xpose.msra.mxu0 0
    %1215 = vmatprep.subr.bf16.mxu0 0
    %1216 = vmatpush1.bf16.xpose.msra.mxu0 0
    %1217 = vmatprep.subr.bf16.mxu0 0
    %1218 = vmatpush1.bf16.xpose.msra.mxu0 0
    %1219 = vmatprep.subr.bf16.mxu0 0
    %1220 = vmatpush1.bf16.xpose.msra.mxu0 0
    %1221 = vmatprep.subr.bf16.mxu0 0
    %1222 = vmatpush1.bf16.xpose.msra.mxu0 %v1205
    %1223 = vmatprep.subr.bf16.mxu0 0
    %1224 = vmatpush2.bf16.xpose.msra.mxu0 0
    %1225 = vmatprep.subr.bf16.mxu0 0
    %1226 = vmatpush2.bf16.xpose.msra.mxu0 0
    %1227 = vmatprep.subr.bf16.mxu0 0
    %1228 = vmatpush2.bf16.xpose.msra.mxu0 0
    %1229 = vmatprep.subr.bf16.mxu0 0
    %1230 = vmatpush2.bf16.xpose.msra.mxu0 0
    %1231 = vmatprep.subr.bf16.mxu0 0
    %1232 = vmatpush2.bf16.xpose.msra.mxu0 0
    %1233 = vmatprep.subr.bf16.mxu0 0
    %1234 = vmatpush2.bf16.xpose.msra.mxu0 0
    %1235 = vmatprep.subr.bf16.mxu0 0
    %1236 = vmatpush2.bf16.xpose.msra.mxu0 0
    %1237 = vmatprep.subr.bf16.mxu0 0
    %1238 = vmatpush2.bf16.xpose.msra.mxu0 0
    %1239 = vmatprep.mubr.bf16.mxu0 0
    %1240 = vmatmul.mubr.bf16.gmra.mxu0 %v1202
    %v1241 = vpop.f32.mrf.mxu0
    %v1242 = vadd.f32 0.0, %v1241
    %v1243 = vpop.f32.mrf.mxu0
    %v1244 = vpop.f32.mrf.mxu0
    %v1245 = vpop.f32.mrf.mxu0
    %1246 = vdwg.mxu0
    %1247 = vrot.lane.b32.xlu0 %v148, 96
    %v1248 = vpop.permute.xlu0 %1247
    %1249 = vrot.lane.b32.xlu0 %v148, 32
    %v1250 = vpop.permute.xlu0 %1249
    %v1252 = vsel %vm153, %v1248, 0
    %v1255 = vsel %vm153, %v1250, 0
    %1257 = vmatprep.subr.bf16.mxu0 0
    %1258 = vmatpush1.bf16.xpose.msra.mxu0 0
    %1259 = vmatprep.subr.bf16.mxu0 0
    %1260 = vmatpush1.bf16.xpose.msra.mxu0 0
    %1261 = vmatprep.subr.bf16.mxu0 0
    %1262 = vmatpush1.bf16.xpose.msra.mxu0 0
    %1263 = vmatprep.subr.bf16.mxu0 0
    %1264 = vmatpush1.bf16.xpose.msra.mxu0 0
    %1265 = vmatprep.subr.bf16.mxu0 0
    %1266 = vmatpush1.bf16.xpose.msra.mxu0 0
    %1267 = vmatprep.subr.bf16.mxu0 0
    %1268 = vmatpush1.bf16.xpose.msra.mxu0 0
    %1269 = vmatprep.subr.bf16.mxu0 0
    %1270 = vmatpush1.bf16.xpose.msra.mxu0 0
    %1271 = vmatprep.subr.bf16.mxu0 0
    %1272 = vmatpush1.bf16.xpose.msra.mxu0 %v1255
    %1273 = vmatprep.subr.bf16.mxu0 0
    %1274 = vmatpush2.bf16.xpose.msra.mxu0 0
    %1275 = vmatprep.subr.bf16.mxu0 0
    %1276 = vmatpush2.bf16.xpose.msra.mxu0 0
    %1277 = vmatprep.subr.bf16.mxu0 0
    %1278 = vmatpush2.bf16.xpose.msra.mxu0 0
    %1279 = vmatprep.subr.bf16.mxu0 0
    %1280 = vmatpush2.bf16.xpose.msra.mxu0 0
    %1281 = vmatprep.subr.bf16.mxu0 0
    %1282 = vmatpush2.bf16.xpose.msra.mxu0 0
    %1283 = vmatprep.subr.bf16.mxu0 0
    %1284 = vmatpush2.bf16.xpose.msra.mxu0 0
    %1285 = vmatprep.subr.bf16.mxu0 0
    %1286 = vmatpush2.bf16.xpose.msra.mxu0 0
    %1287 = vmatprep.subr.bf16.mxu0 0
    %1288 = vmatpush2.bf16.xpose.msra.mxu0 0
    %1289 = vmatprep.mubr.bf16.mxu0 0
    %1290 = vmatmul.mubr.bf16.gmra.mxu0 %v1252
    %v1291 = vpop.f32.mrf.mxu0
    %v1292 = vadd.f32 0.0, %v1291
    %v1293 = vpop.f32.mrf.mxu0
    %v1294 = vpop.f32.mrf.mxu0
    %v1295 = vpop.f32.mrf.mxu0
    %1296 = vdwg.mxu0
    %1297 = vrot.lane.b32.xlu0 %v149, 96
    %v1298 = vpop.permute.xlu0 %1297
    %1299 = vrot.lane.b32.xlu0 %v149, 32
    %v1300 = vpop.permute.xlu0 %1299
    %v1302 = vsel %vm153, %v1298, 0
    %v1305 = vsel %vm153, %v1300, 0
    %1307 = vmatprep.subr.bf16.mxu0 0
    %1308 = vmatpush1.bf16.xpose.msra.mxu0 0
    %1309 = vmatprep.subr.bf16.mxu0 0
    %1310 = vmatpush1.bf16.xpose.msra.mxu0 0
    %1311 = vmatprep.subr.bf16.mxu0 0
    %1312 = vmatpush1.bf16.xpose.msra.mxu0 0
    %1313 = vmatprep.subr.bf16.mxu0 0
    %1314 = vmatpush1.bf16.xpose.msra.mxu0 0
    %1315 = vmatprep.subr.bf16.mxu0 0
    %1316 = vmatpush1.bf16.xpose.msra.mxu0 0
    %1317 = vmatprep.subr.bf16.mxu0 0
    %1318 = vmatpush1.bf16.xpose.msra.mxu0 0
    %1319 = vmatprep.subr.bf16.mxu0 0
    %1320 = vmatpush1.bf16.xpose.msra.mxu0 0
    %1321 = vmatprep.subr.bf16.mxu0 0
    %1322 = vmatpush1.bf16.xpose.msra.mxu0 %v1305
    %1323 = vmatprep.subr.bf16.mxu0 0
    %1324 = vmatpush2.bf16.xpose.msra.mxu0 0
    %1325 = vmatprep.subr.bf16.mxu0 0
    %1326 = vmatpush2.bf16.xpose.msra.mxu0 0
    %1327 = vmatprep.subr.bf16.mxu0 0
    %1328 = vmatpush2.bf16.xpose.msra.mxu0 0
    %1329 = vmatprep.subr.bf16.mxu0 0
    %1330 = vmatpush2.bf16.xpose.msra.mxu0 0
    %1331 = vmatprep.subr.bf16.mxu0 0
    %1332 = vmatpush2.bf16.xpose.msra.mxu0 0
    %1333 = vmatprep.subr.bf16.mxu0 0
    %1334 = vmatpush2.bf16.xpose.msra.mxu0 0
    %1335 = vmatprep.subr.bf16.mxu0 0
    %1336 = vmatpush2.bf16.xpose.msra.mxu0 0
    %1337 = vmatprep.subr.bf16.mxu0 0
    %1338 = vmatpush2.bf16.xpose.msra.mxu0 0
    %1339 = vmatprep.mubr.bf16.mxu0 0
    %1340 = vmatmul.mubr.bf16.gmra.mxu0 %v1302
    %v1341 = vpop.f32.mrf.mxu0
    %v1342 = vadd.f32 0.0, %v1341
    %v1343 = vpop.f32.mrf.mxu0
    %v1344 = vpop.f32.mrf.mxu0
    %v1345 = vpop.f32.mrf.mxu0
    %1346 = vdwg.mxu0
    %1347 = vrot.lane.b32.xlu0 %v150, 96
    %v1348 = vpop.permute.xlu0 %1347
    %1349 = vrot.lane.b32.xlu0 %v150, 32
    %v1350 = vpop.permute.xlu0 %1349
    %v1352 = vsel %vm153, %v1348, 0
    %v1355 = vsel %vm153, %v1350, 0
    %1357 = vmatprep.subr.bf16.mxu0 0
    %1358 = vmatpush1.bf16.xpose.msra.mxu0 0
    %1359 = vmatprep.subr.bf16.mxu0 0
    %1360 = vmatpush1.bf16.xpose.msra.mxu0 0
    %1361 = vmatprep.subr.bf16.mxu0 0
    %1362 = vmatpush1.bf16.xpose.msra.mxu0 0
    %1363 = vmatprep.subr.bf16.mxu0 0
    %1364 = vmatpush1.bf16.xpose.msra.mxu0 0
    %1365 = vmatprep.subr.bf16.mxu0 0
    %1366 = vmatpush1.bf16.xpose.msra.mxu0 0
    %1367 = vmatprep.subr.bf16.mxu0 0
    %1368 = vmatpush1.bf16.xpose.msra.mxu0 0
    %1369 = vmatprep.subr.bf16.mxu0 0
    %1370 = vmatpush1.bf16.xpose.msra.mxu0 0
    %1371 = vmatprep.subr.bf16.mxu0 0
    %1372 = vmatpush1.bf16.xpose.msra.mxu0 %v1355
    %1373 = vmatprep.subr.bf16.mxu0 0
    %1374 = vmatpush2.bf16.xpose.msra.mxu0 0
    %1375 = vmatprep.subr.bf16.mxu0 0
    %1376 = vmatpush2.bf16.xpose.msra.mxu0 0
    %1377 = vmatprep.subr.bf16.mxu0 0
    %1378 = vmatpush2.bf16.xpose.msra.mxu0 0
    %1379 = vmatprep.subr.bf16.mxu0 0
    %1380 = vmatpush2.bf16.xpose.msra.mxu0 0
    %1381 = vmatprep.subr.bf16.mxu0 0
    %1382 = vmatpush2.bf16.xpose.msra.mxu0 0
    %1383 = vmatprep.subr.bf16.mxu0 0
    %1384 = vmatpush2.bf16.xpose.msra.mxu0 0
    %1385 = vmatprep.subr.bf16.mxu0 0
    %1386 = vmatpush2.bf16.xpose.msra.mxu0 0
    %1387 = vmatprep.subr.bf16.mxu0 0
    %1388 = vmatpush2.bf16.xpose.msra.mxu0 0
    %1389 = vmatprep.mubr.bf16.mxu0 0
    %1390 = vmatmul.mubr.bf16.gmra.mxu0 %v1352
    %v1391 = vpop.f32.mrf.mxu0
    %v1392 = vadd.f32 0.0, %v1391
    %v1393 = vpop.f32.mrf.mxu0
    %v1394 = vpop.f32.mrf.mxu0
    %v1395 = vpop.f32.mrf.mxu0
    %1396 = vdwg.mxu0
    %v1397 = vsel %vm344, %v1242, -inf
    %1398 = vmax.xlane.f32.xlu0 %v1397
    %v1399 = vpop.xlane.xlu0 %1398
    %v1400 = vsel %vm344, %v1292, -inf
    %1401 = vmax.xlane.f32.xlu0 %v1400
    %v1402 = vpop.xlane.xlu0 %1401
    %v1403 = vsel %vm344, %v1342, -inf
    %1404 = vmax.xlane.f32.xlu0 %v1403
    %v1405 = vpop.xlane.xlu0 %1404
    %v1406 = vsel %vm344, %v1392, -inf
    %1407 = vmax.xlane.f32.xlu0 %v1406
    %v1408 = vpop.xlane.xlu0 %1407
    %v1409 = vsub.f32 %v1242, %v1399
    %v1410 = vsub.f32 %v1292, %v1402
    %v1411 = vsub.f32 %v1342, %v1405
    %v1412 = vsub.f32 %v1392, %v1408
    %v1413 = vmul.f32 %v1409, 1.442695
    %v1414 = vpow.pop %v1413
    %v1415 = vmul.f32 %v1410, 1.442695
    %v1416 = vpow.pop %v1415
    %v1417 = vmul.f32 %v1411, 1.442695
    %v1418 = vpow.pop %v1417
    %v1419 = vmul.f32 %v1412, 1.442695
    %v1420 = vpow.pop %v1419
    %v1421 = vsel %vm344, %v1414, 0.0
    %1422 = vadd.xlane.f32.xlu0 %v1421
    %v1423 = vpop.xlane.xlu0 %1422
    %v1424 = vsel %vm344, %v1416, 0.0
    %1425 = vadd.xlane.f32.xlu0 %v1424
    %v1426 = vpop.xlane.xlu0 %1425
    %v1427 = vsel %vm344, %v1418, 0.0
    %1428 = vadd.xlane.f32.xlu0 %v1427
    %v1429 = vpop.xlane.xlu0 %1428
    %v1430 = vsel %vm344, %v1420, 0.0
    %1431 = vadd.xlane.f32.xlu0 %v1430
    %v1432 = vpop.xlane.xlu0 %1431
    %v1433 = vrcp.pop %v1423
    %v1434 = vrcp.pop %v1426
    %v1435 = vrcp.pop %v1429
    %v1436 = vrcp.pop %v1432
    %v1437 = vmul.f32 %v1414, %v1433
    %v1438 = vmul.f32 %v1416, %v1434
    %v1439 = vmul.f32 %v1418, %v1435
    %v1440 = vmul.f32 %v1420, %v1436
    %v1441 = vpack.c.bf16 %v1437, %v1437
    %v1442 = vpack.c.bf16 %v1438, %v1438
    %v1443 = vpack.c.bf16 %v1439, %v1439
    %v1444 = vpack.c.bf16 %v1440, %v1440
    %s1445 = scalar_lea.vmem %s3, 64
    %v1446 = vld [vmem:[%s1445] sm:$0xf]
    %v1447 = vld [vmem:[%s1445 + $0x4] sm:$0xf]
    %v1448 = vld [vmem:[%s1445 + $0x8] sm:$0xf]
    %v1449 = vld [vmem:[%s1445 + $0xc] sm:$0xf]
    %v1450 = vld [vmem:[%s1445 + $0x10] sm:$0xf]
    %v1451 = vld [vmem:[%s1445 + $0x14] sm:$0xf]
    %v1452 = vld [vmem:[%s1445 + $0x18] sm:$0xf]
    %v1453 = vld [vmem:[%s1445 + $0x1c] sm:$0xf]
    %v1462 = vunpack.c.l.b16 %v1446
    %v1463 = vunpack.c.l.b16 %v1447
    %v1464 = vunpack.c.l.b16 %v1448
    %v1465 = vunpack.c.l.b16 %v1449
    %v1466 = vunpack.c.l.b16 %v1450
    %v1467 = vunpack.c.l.b16 %v1451
    %v1468 = vunpack.c.l.b16 %v1452
    %v1469 = vunpack.c.l.b16 %v1453
    %v1470 = vpack.c.b16 %v1463, %v1462
    %v1471 = vpack.c.b16 %v1465, %v1464
    %v1472 = vpack.c.b16 %v1467, %v1466
    %v1473 = vpack.c.b16 %v1469, %v1468
    %1478 = vmatprep.subr.bf16.mxu0 0
    %1479 = vmatpush1.bf16.msra.mxu0 0
    %1480 = vmatprep.subr.bf16.mxu0 0
    %1481 = vmatpush1.bf16.msra.mxu0 0
    %1482 = vmatprep.subr.bf16.mxu0 0
    %1483 = vmatpush1.bf16.msra.mxu0 0
    %1484 = vmatprep.subr.bf16.mxu0 0
    %1485 = vmatpush1.bf16.msra.mxu0 0
    %1486 = vmatprep.subr.bf16.mxu0 0
    %1487 = vmatpush1.bf16.msra.mxu0 %v1473
    %1488 = vmatprep.subr.bf16.mxu0 0
    %1489 = vmatpush1.bf16.msra.mxu0 %v1472
    %1490 = vmatprep.subr.bf16.mxu0 0
    %1491 = vmatpush1.bf16.msra.mxu0 %v1471
    %1492 = vmatprep.subr.bf16.mxu0 0
    %1493 = vmatpush1.bf16.msra.mxu0 %v1470
    %1494 = vmatprep.subr.bf16.mxu0 0
    %1495 = vmatpush2.bf16.msra.mxu0 0
    %1496 = vmatprep.subr.bf16.mxu0 0
    %1497 = vmatpush2.bf16.msra.mxu0 0
    %1498 = vmatprep.subr.bf16.mxu0 0
    %1499 = vmatpush2.bf16.msra.mxu0 0
    %1500 = vmatprep.subr.bf16.mxu0 0
    %1501 = vmatpush2.bf16.msra.mxu0 0
    %1502 = vmatprep.subr.bf16.mxu0 0
    %1503 = vmatpush2.bf16.msra.mxu0 0
    %1504 = vmatprep.subr.bf16.mxu0 0
    %1505 = vmatpush2.bf16.msra.mxu0 0
    %1506 = vmatprep.subr.bf16.mxu0 0
    %1507 = vmatpush2.bf16.msra.mxu0 0
    %1508 = vmatprep.subr.bf16.mxu0 0
    %1509 = vmatpush2.bf16.msra.mxu0 0
    %1510 = vmatprep.mubr.bf16.mxu0 0
    %1511 = vmatmul.mubr.bf16.gmra.mxu0 %v85
    %v1512 = vpop.f32.mrf.mxu0
    %v1513 = vadd.f32 0.0, %v1512
    %v1514 = vpop.f32.mrf.mxu0
    %v1515 = vpop.f32.mrf.mxu0
    %v1516 = vadd.f32 0.0, %v1515
    %v1517 = vpop.f32.mrf.mxu0
    %1518 = vmatprep.mubr.bf16.mxu0 0
    %1519 = vmatmul.mubr.bf16.gmra.mxu0 %v88
    %v1520 = vpop.f32.mrf.mxu0
    %v1521 = vadd.f32 0.0, %v1520
    %v1522 = vpop.f32.mrf.mxu0
    %v1523 = vpop.f32.mrf.mxu0
    %v1524 = vadd.f32 0.0, %v1523
    %v1525 = vpop.f32.mrf.mxu0
    %1526 = vdwg.mxu0
    %v1527 = vpack.c.bf16 %v1516, %v1513
    %v1528 = vpack.c.bf16 %v1524, %v1521
    %v1531 = vunpack.c.l.b16 %v1527
    %v1532 = vunpack.c.h.b16 %v1527
    %v1533 = vunpack.c.l.b16 %v1528
    %v1534 = vunpack.c.h.b16 %v1528
    %v1535 = vpack.c.b16 %v1531, %v1531
    %v1536 = vpack.c.b16 %v1532, %v1532
    %v1537 = vpack.c.b16 %v1533, %v1533
    %v1538 = vpack.c.b16 %v1534, %v1534
    %v1540 = vsel %vm344, %v1441, 0
    %v1543 = vsel %vm831, %v1535, 0
    %1545 = vmatprep.subr.bf16.mxu0 0
    %1546 = vmatpush1.bf16.msra.mxu0 0
    %1547 = vmatprep.subr.bf16.mxu0 0
    %1548 = vmatpush1.bf16.msra.mxu0 0
    %1549 = vmatprep.subr.bf16.mxu0 0
    %1550 = vmatpush1.bf16.msra.mxu0 0
    %1551 = vmatprep.subr.bf16.mxu0 0
    %1552 = vmatpush1.bf16.msra.mxu0 0
    %1553 = vmatprep.subr.bf16.mxu0 0
    %1554 = vmatpush1.bf16.msra.mxu0 0
    %1555 = vmatprep.subr.bf16.mxu0 0
    %1556 = vmatpush1.bf16.msra.mxu0 0
    %1557 = vmatprep.subr.bf16.mxu0 0
    %1558 = vmatpush1.bf16.msra.mxu0 0
    %1559 = vmatprep.subr.bf16.mxu0 0
    %1560 = vmatpush1.bf16.msra.mxu0 %v1543
    %1561 = vmatprep.subr.bf16.mxu0 0
    %1562 = vmatpush2.bf16.msra.mxu0 0
    %1563 = vmatprep.subr.bf16.mxu0 0
    %1564 = vmatpush2.bf16.msra.mxu0 0
    %1565 = vmatprep.subr.bf16.mxu0 0
    %1566 = vmatpush2.bf16.msra.mxu0 0
    %1567 = vmatprep.subr.bf16.mxu0 0
    %1568 = vmatpush2.bf16.msra.mxu0 0
    %1569 = vmatprep.subr.bf16.mxu0 0
    %1570 = vmatpush2.bf16.msra.mxu0 0
    %1571 = vmatprep.subr.bf16.mxu0 0
    %1572 = vmatpush2.bf16.msra.mxu0 0
    %1573 = vmatprep.subr.bf16.mxu0 0
    %1574 = vmatpush2.bf16.msra.mxu0 0
    %1575 = vmatprep.subr.bf16.mxu0 0
    %1576 = vmatpush2.bf16.msra.mxu0 0
    %1577 = vmatprep.mubr.bf16.mxu0 0
    %1578 = vmatmul.mubr.bf16.gmra.mxu0 %v1540
    %v1579 = vpop.f32.mrf.mxu0
    %v1580 = vadd.f32 0.0, %v1579
    %v1581 = vpop.f32.mrf.mxu0
    %v1582 = vpop.f32.mrf.mxu0
    %v1583 = vpop.f32.mrf.mxu0
    %1584 = vdwg.mxu0
    %v1586 = vsel %vm344, %v1442, 0
    %v1589 = vsel %vm831, %v1536, 0
    %1591 = vmatprep.subr.bf16.mxu0 0
    %1592 = vmatpush1.bf16.msra.mxu0 0
    %1593 = vmatprep.subr.bf16.mxu0 0
    %1594 = vmatpush1.bf16.msra.mxu0 0
    %1595 = vmatprep.subr.bf16.mxu0 0
    %1596 = vmatpush1.bf16.msra.mxu0 0
    %1597 = vmatprep.subr.bf16.mxu0 0
    %1598 = vmatpush1.bf16.msra.mxu0 0
    %1599 = vmatprep.subr.bf16.mxu0 0
    %1600 = vmatpush1.bf16.msra.mxu0 0
    %1601 = vmatprep.subr.bf16.mxu0 0
    %1602 = vmatpush1.bf16.msra.mxu0 0
    %1603 = vmatprep.subr.bf16.mxu0 0
    %1604 = vmatpush1.bf16.msra.mxu0 0
    %1605 = vmatprep.subr.bf16.mxu0 0
    %1606 = vmatpush1.bf16.msra.mxu0 %v1589
    %1607 = vmatprep.subr.bf16.mxu0 0
    %1608 = vmatpush2.bf16.msra.mxu0 0
    %1609 = vmatprep.subr.bf16.mxu0 0
    %1610 = vmatpush2.bf16.msra.mxu0 0
    %1611 = vmatprep.subr.bf16.mxu0 0
    %1612 = vmatpush2.bf16.msra.mxu0 0
    %1613 = vmatprep.subr.bf16.mxu0 0
    %1614 = vmatpush2.bf16.msra.mxu0 0
    %1615 = vmatprep.subr.bf16.mxu0 0
    %1616 = vmatpush2.bf16.msra.mxu0 0
    %1617 = vmatprep.subr.bf16.mxu0 0
    %1618 = vmatpush2.bf16.msra.mxu0 0
    %1619 = vmatprep.subr.bf16.mxu0 0
    %1620 = vmatpush2.bf16.msra.mxu0 0
    %1621 = vmatprep.subr.bf16.mxu0 0
    %1622 = vmatpush2.bf16.msra.mxu0 0
    %1623 = vmatprep.mubr.bf16.mxu0 0
    %1624 = vmatmul.mubr.bf16.gmra.mxu0 %v1586
    %v1625 = vpop.f32.mrf.mxu0
    %v1626 = vadd.f32 0.0, %v1625
    %v1627 = vpop.f32.mrf.mxu0
    %v1628 = vpop.f32.mrf.mxu0
    %v1629 = vpop.f32.mrf.mxu0
    %1630 = vdwg.mxu0
    %v1632 = vsel %vm344, %v1443, 0
    %v1635 = vsel %vm831, %v1537, 0
    %1637 = vmatprep.subr.bf16.mxu0 0
    %1638 = vmatpush1.bf16.msra.mxu0 0
    %1639 = vmatprep.subr.bf16.mxu0 0
    %1640 = vmatpush1.bf16.msra.mxu0 0
    %1641 = vmatprep.subr.bf16.mxu0 0
    %1642 = vmatpush1.bf16.msra.mxu0 0
    %1643 = vmatprep.subr.bf16.mxu0 0
    %1644 = vmatpush1.bf16.msra.mxu0 0
    %1645 = vmatprep.subr.bf16.mxu0 0
    %1646 = vmatpush1.bf16.msra.mxu0 0
    %1647 = vmatprep.subr.bf16.mxu0 0
    %1648 = vmatpush1.bf16.msra.mxu0 0
    %1649 = vmatprep.subr.bf16.mxu0 0
    %1650 = vmatpush1.bf16.msra.mxu0 0
    %1651 = vmatprep.subr.bf16.mxu0 0
    %1652 = vmatpush1.bf16.msra.mxu0 %v1635
    %1653 = vmatprep.subr.bf16.mxu0 0
    %1654 = vmatpush2.bf16.msra.mxu0 0
    %1655 = vmatprep.subr.bf16.mxu0 0
    %1656 = vmatpush2.bf16.msra.mxu0 0
    %1657 = vmatprep.subr.bf16.mxu0 0
    %1658 = vmatpush2.bf16.msra.mxu0 0
    %1659 = vmatprep.subr.bf16.mxu0 0
    %1660 = vmatpush2.bf16.msra.mxu0 0
    %1661 = vmatprep.subr.bf16.mxu0 0
    %1662 = vmatpush2.bf16.msra.mxu0 0
    %1663 = vmatprep.subr.bf16.mxu0 0
    %1664 = vmatpush2.bf16.msra.mxu0 0
    %1665 = vmatprep.subr.bf16.mxu0 0
    %1666 = vmatpush2.bf16.msra.mxu0 0
    %1667 = vmatprep.subr.bf16.mxu0 0
    %1668 = vmatpush2.bf16.msra.mxu0 0
    %1669 = vmatprep.mubr.bf16.mxu0 0
    %1670 = vmatmul.mubr.bf16.gmra.mxu0 %v1632
    %v1671 = vpop.f32.mrf.mxu0
    %v1672 = vadd.f32 0.0, %v1671
    %v1673 = vpop.f32.mrf.mxu0
    %v1674 = vpop.f32.mrf.mxu0
    %v1675 = vpop.f32.mrf.mxu0
    %1676 = vdwg.mxu0
    %v1678 = vsel %vm344, %v1444, 0
    %v1681 = vsel %vm831, %v1538, 0
    %1683 = vmatprep.subr.bf16.mxu0 0
    %1684 = vmatpush1.bf16.msra.mxu0 0
    %1685 = vmatprep.subr.bf16.mxu0 0
    %1686 = vmatpush1.bf16.msra.mxu0 0
    %1687 = vmatprep.subr.bf16.mxu0 0
    %1688 = vmatpush1.bf16.msra.mxu0 0
    %1689 = vmatprep.subr.bf16.mxu0 0
    %1690 = vmatpush1.bf16.msra.mxu0 0
    %1691 = vmatprep.subr.bf16.mxu0 0
    %1692 = vmatpush1.bf16.msra.mxu0 0
    %1693 = vmatprep.subr.bf16.mxu0 0
    %1694 = vmatpush1.bf16.msra.mxu0 0
    %1695 = vmatprep.subr.bf16.mxu0 0
    %1696 = vmatpush1.bf16.msra.mxu0 0
    %1697 = vmatprep.subr.bf16.mxu0 0
    %1698 = vmatpush1.bf16.msra.mxu0 %v1681
    %1699 = vmatprep.subr.bf16.mxu0 0
    %1700 = vmatpush2.bf16.msra.mxu0 0
    %1701 = vmatprep.subr.bf16.mxu0 0
    %1702 = vmatpush2.bf16.msra.mxu0 0
    %1703 = vmatprep.subr.bf16.mxu0 0
    %1704 = vmatpush2.bf16.msra.mxu0 0
    %1705 = vmatprep.subr.bf16.mxu0 0
    %1706 = vmatpush2.bf16.msra.mxu0 0
    %1707 = vmatprep.subr.bf16.mxu0 0
    %1708 = vmatpush2.bf16.msra.mxu0 0
    %1709 = vmatprep.subr.bf16.mxu0 0
    %1710 = vmatpush2.bf16.msra.mxu0 0
    %1711 = vmatprep.subr.bf16.mxu0 0
    %1712 = vmatpush2.bf16.msra.mxu0 0
    %1713 = vmatprep.subr.bf16.mxu0 0
    %1714 = vmatpush2.bf16.msra.mxu0 0
    %1715 = vmatprep.mubr.bf16.mxu0 0
    %1716 = vmatmul.mubr.bf16.gmra.mxu0 %v1678
    %v1717 = vpop.f32.mrf.mxu0
    %v1718 = vadd.f32 0.0, %v1717
    %v1719 = vpop.f32.mrf.mxu0
    %v1720 = vpop.f32.mrf.mxu0
    %v1721 = vpop.f32.mrf.mxu0
    %1722 = vdwg.mxu0
    %v1723 = vadd.f32 %v1054, %v1580
    %v1724 = vadd.f32 %v1100, %v1626
    %v1725 = vadd.f32 %v1146, %v1672
    %v1726 = vadd.f32 %v1192, %v1718
    %1727 = vrot.lane.b32.xlu0 %v147, 80
    %v1728 = vpop.permute.xlu0 %1727
    %1729 = vrot.lane.b32.xlu0 %v147, 16
    %v1730 = vpop.permute.xlu0 %1729
    %v1732 = vsel %vm153, %v1728, 0
    %v1735 = vsel %vm153, %v1730, 0
    %1737 = vmatprep.subr.bf16.mxu0 0
    %1738 = vmatpush1.bf16.xpose.msra.mxu0 0
    %1739 = vmatprep.subr.bf16.mxu0 0
    %1740 = vmatpush1.bf16.xpose.msra.mxu0 0
    %1741 = vmatprep.subr.bf16.mxu0 0
    %1742 = vmatpush1.bf16.xpose.msra.mxu0 0
    %1743 = vmatprep.subr.bf16.mxu0 0
    %1744 = vmatpush1.bf16.xpose.msra.mxu0 0
    %1745 = vmatprep.subr.bf16.mxu0 0
    %1746 = vmatpush1.bf16.xpose.msra.mxu0 0
    %1747 = vmatprep.subr.bf16.mxu0 0
    %1748 = vmatpush1.bf16.xpose.msra.mxu0 0
    %1749 = vmatprep.subr.bf16.mxu0 0
    %1750 = vmatpush1.bf16.xpose.msra.mxu0 0
    %1751 = vmatprep.subr.bf16.mxu0 0
    %1752 = vmatpush1.bf16.xpose.msra.mxu0 %v1735
    %1753 = vmatprep.subr.bf16.mxu0 0
    %1754 = vmatpush2.bf16.xpose.msra.mxu0 0
    %1755 = vmatprep.subr.bf16.mxu0 0
    %1756 = vmatpush2.bf16.xpose.msra.mxu0 0
    %1757 = vmatprep.subr.bf16.mxu0 0
    %1758 = vmatpush2.bf16.xpose.msra.mxu0 0
    %1759 = vmatprep.subr.bf16.mxu0 0
    %1760 = vmatpush2.bf16.xpose.msra.mxu0 0
    %1761 = vmatprep.subr.bf16.mxu0 0
    %1762 = vmatpush2.bf16.xpose.msra.mxu0 0
    %1763 = vmatprep.subr.bf16.mxu0 0
    %1764 = vmatpush2.bf16.xpose.msra.mxu0 0
    %1765 = vmatprep.subr.bf16.mxu0 0
    %1766 = vmatpush2.bf16.xpose.msra.mxu0 0
    %1767 = vmatprep.subr.bf16.mxu0 0
    %1768 = vmatpush2.bf16.xpose.msra.mxu0 0
    %1769 = vmatprep.mubr.bf16.mxu0 0
    %1770 = vmatmul.mubr.bf16.gmra.mxu0 %v1732
    %v1771 = vpop.f32.mrf.mxu0
    %v1772 = vadd.f32 0.0, %v1771
    %v1773 = vpop.f32.mrf.mxu0
    %v1774 = vpop.f32.mrf.mxu0
    %v1775 = vpop.f32.mrf.mxu0
    %1776 = vdwg.mxu0
    %1777 = vrot.lane.b32.xlu0 %v148, 80
    %v1778 = vpop.permute.xlu0 %1777
    %1779 = vrot.lane.b32.xlu0 %v148, 16
    %v1780 = vpop.permute.xlu0 %1779
    %v1782 = vsel %vm153, %v1778, 0
    %v1785 = vsel %vm153, %v1780, 0
    %1787 = vmatprep.subr.bf16.mxu0 0
    %1788 = vmatpush1.bf16.xpose.msra.mxu0 0
    %1789 = vmatprep.subr.bf16.mxu0 0
    %1790 = vmatpush1.bf16.xpose.msra.mxu0 0
    %1791 = vmatprep.subr.bf16.mxu0 0
    %1792 = vmatpush1.bf16.xpose.msra.mxu0 0
    %1793 = vmatprep.subr.bf16.mxu0 0
    %1794 = vmatpush1.bf16.xpose.msra.mxu0 0
    %1795 = vmatprep.subr.bf16.mxu0 0
    %1796 = vmatpush1.bf16.xpose.msra.mxu0 0
    %1797 = vmatprep.subr.bf16.mxu0 0
    %1798 = vmatpush1.bf16.xpose.msra.mxu0 0
    %1799 = vmatprep.subr.bf16.mxu0 0
    %1800 = vmatpush1.bf16.xpose.msra.mxu0 0
    %1801 = vmatprep.subr.bf16.mxu0 0
    %1802 = vmatpush1.bf16.xpose.msra.mxu0 %v1785
    %1803 = vmatprep.subr.bf16.mxu0 0
    %1804 = vmatpush2.bf16.xpose.msra.mxu0 0
    %1805 = vmatprep.subr.bf16.mxu0 0
    %1806 = vmatpush2.bf16.xpose.msra.mxu0 0
    %1807 = vmatprep.subr.bf16.mxu0 0
    %1808 = vmatpush2.bf16.xpose.msra.mxu0 0
    %1809 = vmatprep.subr.bf16.mxu0 0
    %1810 = vmatpush2.bf16.xpose.msra.mxu0 0
    %1811 = vmatprep.subr.bf16.mxu0 0
    %1812 = vmatpush2.bf16.xpose.msra.mxu0 0
    %1813 = vmatprep.subr.bf16.mxu0 0
    %1814 = vmatpush2.bf16.xpose.msra.mxu0 0
    %1815 = vmatprep.subr.bf16.mxu0 0
    %1816 = vmatpush2.bf16.xpose.msra.mxu0 0
    %1817 = vmatprep.subr.bf16.mxu0 0
    %1818 = vmatpush2.bf16.xpose.msra.mxu0 0
    %1819 = vmatprep.mubr.bf16.mxu0 0
    %1820 = vmatmul.mubr.bf16.gmra.mxu0 %v1782
    %v1821 = vpop.f32.mrf.mxu0
    %v1822 = vadd.f32 0.0, %v1821
    %v1823 = vpop.f32.mrf.mxu0
    %v1824 = vpop.f32.mrf.mxu0
    %v1825 = vpop.f32.mrf.mxu0
    %1826 = vdwg.mxu0
    %1827 = vrot.lane.b32.xlu0 %v149, 80
    %v1828 = vpop.permute.xlu0 %1827
    %1829 = vrot.lane.b32.xlu0 %v149, 16
    %v1830 = vpop.permute.xlu0 %1829
    %v1832 = vsel %vm153, %v1828, 0
    %v1835 = vsel %vm153, %v1830, 0
    %1837 = vmatprep.subr.bf16.mxu0 0
    %1838 = vmatpush1.bf16.xpose.msra.mxu0 0
    %1839 = vmatprep.subr.bf16.mxu0 0
    %1840 = vmatpush1.bf16.xpose.msra.mxu0 0
    %1841 = vmatprep.subr.bf16.mxu0 0
    %1842 = vmatpush1.bf16.xpose.msra.mxu0 0
    %1843 = vmatprep.subr.bf16.mxu0 0
    %1844 = vmatpush1.bf16.xpose.msra.mxu0 0
    %1845 = vmatprep.subr.bf16.mxu0 0
    %1846 = vmatpush1.bf16.xpose.msra.mxu0 0
    %1847 = vmatprep.subr.bf16.mxu0 0
    %1848 = vmatpush1.bf16.xpose.msra.mxu0 0
    %1849 = vmatprep.subr.bf16.mxu0 0
    %1850 = vmatpush1.bf16.xpose.msra.mxu0 0
    %1851 = vmatprep.subr.bf16.mxu0 0
    %1852 = vmatpush1.bf16.xpose.msra.mxu0 %v1835
    %1853 = vmatprep.subr.bf16.mxu0 0
    %1854 = vmatpush2.bf16.xpose.msra.mxu0 0
    %1855 = vmatprep.subr.bf16.mxu0 0
    %1856 = vmatpush2.bf16.xpose.msra.mxu0 0
    %1857 = vmatprep.subr.bf16.mxu0 0
    %1858 = vmatpush2.bf16.xpose.msra.mxu0 0
    %1859 = vmatprep.subr.bf16.mxu0 0
    %1860 = vmatpush2.bf16.xpose.msra.mxu0 0
    %1861 = vmatprep.subr.bf16.mxu0 0
    %1862 = vmatpush2.bf16.xpose.msra.mxu0 0
    %1863 = vmatprep.subr.bf16.mxu0 0
    %1864 = vmatpush2.bf16.xpose.msra.mxu0 0
    %1865 = vmatprep.subr.bf16.mxu0 0
    %1866 = vmatpush2.bf16.xpose.msra.mxu0 0
    %1867 = vmatprep.subr.bf16.mxu0 0
    %1868 = vmatpush2.bf16.xpose.msra.mxu0 0
    %1869 = vmatprep.mubr.bf16.mxu0 0
    %1870 = vmatmul.mubr.bf16.gmra.mxu0 %v1832
    %v1871 = vpop.f32.mrf.mxu0
    %v1872 = vadd.f32 0.0, %v1871
    %v1873 = vpop.f32.mrf.mxu0
    %v1874 = vpop.f32.mrf.mxu0
    %v1875 = vpop.f32.mrf.mxu0
    %1876 = vdwg.mxu0
    %1877 = vrot.lane.b32.xlu0 %v150, 80
    %v1878 = vpop.permute.xlu0 %1877
    %1879 = vrot.lane.b32.xlu0 %v150, 16
    %v1880 = vpop.permute.xlu0 %1879
    %v1882 = vsel %vm153, %v1878, 0
    %v1885 = vsel %vm153, %v1880, 0
    %1887 = vmatprep.subr.bf16.mxu0 0
    %1888 = vmatpush1.bf16.xpose.msra.mxu0 0
    %1889 = vmatprep.subr.bf16.mxu0 0
    %1890 = vmatpush1.bf16.xpose.msra.mxu0 0
    %1891 = vmatprep.subr.bf16.mxu0 0
    %1892 = vmatpush1.bf16.xpose.msra.mxu0 0
    %1893 = vmatprep.subr.bf16.mxu0 0
    %1894 = vmatpush1.bf16.xpose.msra.mxu0 0
    %1895 = vmatprep.subr.bf16.mxu0 0
    %1896 = vmatpush1.bf16.xpose.msra.mxu0 0
    %1897 = vmatprep.subr.bf16.mxu0 0
    %1898 = vmatpush1.bf16.xpose.msra.mxu0 0
    %1899 = vmatprep.subr.bf16.mxu0 0
    %1900 = vmatpush1.bf16.xpose.msra.mxu0 0
    %1901 = vmatprep.subr.bf16.mxu0 0
    %1902 = vmatpush1.bf16.xpose.msra.mxu0 %v1885
    %1903 = vmatprep.subr.bf16.mxu0 0
    %1904 = vmatpush2.bf16.xpose.msra.mxu0 0
    %1905 = vmatprep.subr.bf16.mxu0 0
    %1906 = vmatpush2.bf16.xpose.msra.mxu0 0
    %1907 = vmatprep.subr.bf16.mxu0 0
    %1908 = vmatpush2.bf16.xpose.msra.mxu0 0
    %1909 = vmatprep.subr.bf16.mxu0 0
    %1910 = vmatpush2.bf16.xpose.msra.mxu0 0
    %1911 = vmatprep.subr.bf16.mxu0 0
    %1912 = vmatpush2.bf16.xpose.msra.mxu0 0
    %1913 = vmatprep.subr.bf16.mxu0 0
    %1914 = vmatpush2.bf16.xpose.msra.mxu0 0
    %1915 = vmatprep.subr.bf16.mxu0 0
    %1916 = vmatpush2.bf16.xpose.msra.mxu0 0
    %1917 = vmatprep.subr.bf16.mxu0 0
    %1918 = vmatpush2.bf16.xpose.msra.mxu0 0
    %1919 = vmatprep.mubr.bf16.mxu0 0
    %1920 = vmatmul.mubr.bf16.gmra.mxu0 %v1882
    %v1921 = vpop.f32.mrf.mxu0
    %v1922 = vadd.f32 0.0, %v1921
    %v1923 = vpop.f32.mrf.mxu0
    %v1924 = vpop.f32.mrf.mxu0
    %v1925 = vpop.f32.mrf.mxu0
    %1926 = vdwg.mxu0
    %v1927 = vsel %vm344, %v1772, -inf
    %1928 = vmax.xlane.f32.xlu0 %v1927
    %v1929 = vpop.xlane.xlu0 %1928
    %v1930 = vsel %vm344, %v1822, -inf
    %1931 = vmax.xlane.f32.xlu0 %v1930
    %v1932 = vpop.xlane.xlu0 %1931
    %v1933 = vsel %vm344, %v1872, -inf
    %1934 = vmax.xlane.f32.xlu0 %v1933
    %v1935 = vpop.xlane.xlu0 %1934
    %v1936 = vsel %vm344, %v1922, -inf
    %1937 = vmax.xlane.f32.xlu0 %v1936
    %v1938 = vpop.xlane.xlu0 %1937
    %v1939 = vsub.f32 %v1772, %v1929
    %v1940 = vsub.f32 %v1822, %v1932
    %v1941 = vsub.f32 %v1872, %v1935
    %v1942 = vsub.f32 %v1922, %v1938
    %v1943 = vmul.f32 %v1939, 1.442695
    %v1944 = vpow.pop %v1943
    %v1945 = vmul.f32 %v1940, 1.442695
    %v1946 = vpow.pop %v1945
    %v1947 = vmul.f32 %v1941, 1.442695
    %v1948 = vpow.pop %v1947
    %v1949 = vmul.f32 %v1942, 1.442695
    %v1950 = vpow.pop %v1949
    %v1951 = vsel %vm344, %v1944, 0.0
    %1952 = vadd.xlane.f32.xlu0 %v1951
    %v1953 = vpop.xlane.xlu0 %1952
    %v1954 = vsel %vm344, %v1946, 0.0
    %1955 = vadd.xlane.f32.xlu0 %v1954
    %v1956 = vpop.xlane.xlu0 %1955
    %v1957 = vsel %vm344, %v1948, 0.0
    %1958 = vadd.xlane.f32.xlu0 %v1957
    %v1959 = vpop.xlane.xlu0 %1958
    %v1960 = vsel %vm344, %v1950, 0.0
    %1961 = vadd.xlane.f32.xlu0 %v1960
    %v1962 = vpop.xlane.xlu0 %1961
    %v1963 = vrcp.pop %v1953
    %v1964 = vrcp.pop %v1956
    %v1965 = vrcp.pop %v1959
    %v1966 = vrcp.pop %v1962
    %v1967 = vmul.f32 %v1944, %v1963
    %v1968 = vmul.f32 %v1946, %v1964
    %v1969 = vmul.f32 %v1948, %v1965
    %v1970 = vmul.f32 %v1950, %v1966
    %v1971 = vpack.c.bf16 %v1967, %v1967
    %v1972 = vpack.c.bf16 %v1968, %v1968
    %v1973 = vpack.c.bf16 %v1969, %v1969
    %v1974 = vpack.c.bf16 %v1970, %v1970
    %s1975 = scalar_lea.vmem %s3, 96
    %v1976 = vld [vmem:[%s1975] sm:$0xf]
    %v1977 = vld [vmem:[%s1975 + $0x4] sm:$0xf]
    %v1978 = vld [vmem:[%s1975 + $0x8] sm:$0xf]
    %v1979 = vld [vmem:[%s1975 + $0xc] sm:$0xf]
    %v1980 = vld [vmem:[%s1975 + $0x10] sm:$0xf]
    %v1981 = vld [vmem:[%s1975 + $0x14] sm:$0xf]
    %v1982 = vld [vmem:[%s1975 + $0x18] sm:$0xf]
    %v1983 = vld [vmem:[%s1975 + $0x1c] sm:$0xf]
    %v1992 = vunpack.c.l.b16 %v1976
    %v1993 = vunpack.c.l.b16 %v1977
    %v1994 = vunpack.c.l.b16 %v1978
    %v1995 = vunpack.c.l.b16 %v1979
    %v1996 = vunpack.c.l.b16 %v1980
    %v1997 = vunpack.c.l.b16 %v1981
    %v1998 = vunpack.c.l.b16 %v1982
    %v1999 = vunpack.c.l.b16 %v1983
    %v2000 = vpack.c.b16 %v1993, %v1992
    %v2001 = vpack.c.b16 %v1995, %v1994
    %v2002 = vpack.c.b16 %v1997, %v1996
    %v2003 = vpack.c.b16 %v1999, %v1998
    %2008 = vmatprep.subr.bf16.mxu0 0
    %2009 = vmatpush1.bf16.msra.mxu0 0
    %2010 = vmatprep.subr.bf16.mxu0 0
    %2011 = vmatpush1.bf16.msra.mxu0 0
    %2012 = vmatprep.subr.bf16.mxu0 0
    %2013 = vmatpush1.bf16.msra.mxu0 0
    %2014 = vmatprep.subr.bf16.mxu0 0
    %2015 = vmatpush1.bf16.msra.mxu0 0
    %2016 = vmatprep.subr.bf16.mxu0 0
    %2017 = vmatpush1.bf16.msra.mxu0 %v2003
    %2018 = vmatprep.subr.bf16.mxu0 0
    %2019 = vmatpush1.bf16.msra.mxu0 %v2002
    %2020 = vmatprep.subr.bf16.mxu0 0
    %2021 = vmatpush1.bf16.msra.mxu0 %v2001
    %2022 = vmatprep.subr.bf16.mxu0 0
    %2023 = vmatpush1.bf16.msra.mxu0 %v2000
    %2024 = vmatprep.subr.bf16.mxu0 0
    %2025 = vmatpush2.bf16.msra.mxu0 0
    %2026 = vmatprep.subr.bf16.mxu0 0
    %2027 = vmatpush2.bf16.msra.mxu0 0
    %2028 = vmatprep.subr.bf16.mxu0 0
    %2029 = vmatpush2.bf16.msra.mxu0 0
    %2030 = vmatprep.subr.bf16.mxu0 0
    %2031 = vmatpush2.bf16.msra.mxu0 0
    %2032 = vmatprep.subr.bf16.mxu0 0
    %2033 = vmatpush2.bf16.msra.mxu0 0
    %2034 = vmatprep.subr.bf16.mxu0 0
    %2035 = vmatpush2.bf16.msra.mxu0 0
    %2036 = vmatprep.subr.bf16.mxu0 0
    %2037 = vmatpush2.bf16.msra.mxu0 0
    %2038 = vmatprep.subr.bf16.mxu0 0
    %2039 = vmatpush2.bf16.msra.mxu0 0
    %2040 = vmatprep.mubr.bf16.mxu0 0
    %2041 = vmatmul.mubr.bf16.gmra.mxu0 %v85
    %v2042 = vpop.f32.mrf.mxu0
    %v2043 = vadd.f32 0.0, %v2042
    %v2044 = vpop.f32.mrf.mxu0
    %v2045 = vpop.f32.mrf.mxu0
    %v2046 = vadd.f32 0.0, %v2045
    %v2047 = vpop.f32.mrf.mxu0
    %2048 = vmatprep.mubr.bf16.mxu0 0
    %2049 = vmatmul.mubr.bf16.gmra.mxu0 %v88
    %v2050 = vpop.f32.mrf.mxu0
    %v2051 = vadd.f32 0.0, %v2050
    %v2052 = vpop.f32.mrf.mxu0
    %v2053 = vpop.f32.mrf.mxu0
    %v2054 = vadd.f32 0.0, %v2053
    %v2055 = vpop.f32.mrf.mxu0
    %2056 = vdwg.mxu0
    %v2057 = vpack.c.bf16 %v2046, %v2043
    %v2058 = vpack.c.bf16 %v2054, %v2051
    %v2061 = vunpack.c.l.b16 %v2057
    %v2062 = vunpack.c.h.b16 %v2057
    %v2063 = vunpack.c.l.b16 %v2058
    %v2064 = vunpack.c.h.b16 %v2058
    %v2065 = vpack.c.b16 %v2061, %v2061
    %v2066 = vpack.c.b16 %v2062, %v2062
    %v2067 = vpack.c.b16 %v2063, %v2063
    %v2068 = vpack.c.b16 %v2064, %v2064
    %v2070 = vsel %vm344, %v1971, 0
    %v2073 = vsel %vm831, %v2065, 0
    %2075 = vmatprep.subr.bf16.mxu0 0
    %2076 = vmatpush1.bf16.msra.mxu0 0
    %2077 = vmatprep.subr.bf16.mxu0 0
    %2078 = vmatpush1.bf16.msra.mxu0 0
    %2079 = vmatprep.subr.bf16.mxu0 0
    %2080 = vmatpush1.bf16.msra.mxu0 0
    %2081 = vmatprep.subr.bf16.mxu0 0
    %2082 = vmatpush1.bf16.msra.mxu0 0
    %2083 = vmatprep.subr.bf16.mxu0 0
    %2084 = vmatpush1.bf16.msra.mxu0 0
    %2085 = vmatprep.subr.bf16.mxu0 0
    %2086 = vmatpush1.bf16.msra.mxu0 0
    %2087 = vmatprep.subr.bf16.mxu0 0
    %2088 = vmatpush1.bf16.msra.mxu0 0
    %2089 = vmatprep.subr.bf16.mxu0 0
    %2090 = vmatpush1.bf16.msra.mxu0 %v2073
    %2091 = vmatprep.subr.bf16.mxu0 0
    %2092 = vmatpush2.bf16.msra.mxu0 0
    %2093 = vmatprep.subr.bf16.mxu0 0
    %2094 = vmatpush2.bf16.msra.mxu0 0
    %2095 = vmatprep.subr.bf16.mxu0 0
    %2096 = vmatpush2.bf16.msra.mxu0 0
    %2097 = vmatprep.subr.bf16.mxu0 0
    %2098 = vmatpush2.bf16.msra.mxu0 0
    %2099 = vmatprep.subr.bf16.mxu0 0
    %2100 = vmatpush2.bf16.msra.mxu0 0
    %2101 = vmatprep.subr.bf16.mxu0 0
    %2102 = vmatpush2.bf16.msra.mxu0 0
    %2103 = vmatprep.subr.bf16.mxu0 0
    %2104 = vmatpush2.bf16.msra.mxu0 0
    %2105 = vmatprep.subr.bf16.mxu0 0
    %2106 = vmatpush2.bf16.msra.mxu0 0
    %2107 = vmatprep.mubr.bf16.mxu0 0
    %2108 = vmatmul.mubr.bf16.gmra.mxu0 %v2070
    %v2109 = vpop.f32.mrf.mxu0
    %v2110 = vadd.f32 0.0, %v2109
    %v2111 = vpop.f32.mrf.mxu0
    %v2112 = vpop.f32.mrf.mxu0
    %v2113 = vpop.f32.mrf.mxu0
    %2114 = vdwg.mxu0
    %v2116 = vsel %vm344, %v1972, 0
    %v2119 = vsel %vm831, %v2066, 0
    %2121 = vmatprep.subr.bf16.mxu0 0
    %2122 = vmatpush1.bf16.msra.mxu0 0
    %2123 = vmatprep.subr.bf16.mxu0 0
    %2124 = vmatpush1.bf16.msra.mxu0 0
    %2125 = vmatprep.subr.bf16.mxu0 0
    %2126 = vmatpush1.bf16.msra.mxu0 0
    %2127 = vmatprep.subr.bf16.mxu0 0
    %2128 = vmatpush1.bf16.msra.mxu0 0
    %2129 = vmatprep.subr.bf16.mxu0 0
    %2130 = vmatpush1.bf16.msra.mxu0 0
    %2131 = vmatprep.subr.bf16.mxu0 0
    %2132 = vmatpush1.bf16.msra.mxu0 0
    %2133 = vmatprep.subr.bf16.mxu0 0
    %2134 = vmatpush1.bf16.msra.mxu0 0
    %2135 = vmatprep.subr.bf16.mxu0 0
    %2136 = vmatpush1.bf16.msra.mxu0 %v2119
    %2137 = vmatprep.subr.bf16.mxu0 0
    %2138 = vmatpush2.bf16.msra.mxu0 0
    %2139 = vmatprep.subr.bf16.mxu0 0
    %2140 = vmatpush2.bf16.msra.mxu0 0
    %2141 = vmatprep.subr.bf16.mxu0 0
    %2142 = vmatpush2.bf16.msra.mxu0 0
    %2143 = vmatprep.subr.bf16.mxu0 0
    %2144 = vmatpush2.bf16.msra.mxu0 0
    %2145 = vmatprep.subr.bf16.mxu0 0
    %2146 = vmatpush2.bf16.msra.mxu0 0
    %2147 = vmatprep.subr.bf16.mxu0 0
    %2148 = vmatpush2.bf16.msra.mxu0 0
    %2149 = vmatprep.subr.bf16.mxu0 0
    %2150 = vmatpush2.bf16.msra.mxu0 0
    %2151 = vmatprep.subr.bf16.mxu0 0
    %2152 = vmatpush2.bf16.msra.mxu0 0
    %2153 = vmatprep.mubr.bf16.mxu0 0
    %2154 = vmatmul.mubr.bf16.gmra.mxu0 %v2116
    %v2155 = vpop.f32.mrf.mxu0
    %v2156 = vadd.f32 0.0, %v2155
    %v2157 = vpop.f32.mrf.mxu0
    %v2158 = vpop.f32.mrf.mxu0
    %v2159 = vpop.f32.mrf.mxu0
    %2160 = vdwg.mxu0
    %v2162 = vsel %vm344, %v1973, 0
    %v2165 = vsel %vm831, %v2067, 0
    %2167 = vmatprep.subr.bf16.mxu0 0
    %2168 = vmatpush1.bf16.msra.mxu0 0
    %2169 = vmatprep.subr.bf16.mxu0 0
    %2170 = vmatpush1.bf16.msra.mxu0 0
    %2171 = vmatprep.subr.bf16.mxu0 0
    %2172 = vmatpush1.bf16.msra.mxu0 0
    %2173 = vmatprep.subr.bf16.mxu0 0
    %2174 = vmatpush1.bf16.msra.mxu0 0
    %2175 = vmatprep.subr.bf16.mxu0 0
    %2176 = vmatpush1.bf16.msra.mxu0 0
    %2177 = vmatprep.subr.bf16.mxu0 0
    %2178 = vmatpush1.bf16.msra.mxu0 0
    %2179 = vmatprep.subr.bf16.mxu0 0
    %2180 = vmatpush1.bf16.msra.mxu0 0
    %2181 = vmatprep.subr.bf16.mxu0 0
    %2182 = vmatpush1.bf16.msra.mxu0 %v2165
    %2183 = vmatprep.subr.bf16.mxu0 0
    %2184 = vmatpush2.bf16.msra.mxu0 0
    %2185 = vmatprep.subr.bf16.mxu0 0
    %2186 = vmatpush2.bf16.msra.mxu0 0
    %2187 = vmatprep.subr.bf16.mxu0 0
    %2188 = vmatpush2.bf16.msra.mxu0 0
    %2189 = vmatprep.subr.bf16.mxu0 0
    %2190 = vmatpush2.bf16.msra.mxu0 0
    %2191 = vmatprep.subr.bf16.mxu0 0
    %2192 = vmatpush2.bf16.msra.mxu0 0
    %2193 = vmatprep.subr.bf16.mxu0 0
    %2194 = vmatpush2.bf16.msra.mxu0 0
    %2195 = vmatprep.subr.bf16.mxu0 0
    %2196 = vmatpush2.bf16.msra.mxu0 0
    %2197 = vmatprep.subr.bf16.mxu0 0
    %2198 = vmatpush2.bf16.msra.mxu0 0
    %2199 = vmatprep.mubr.bf16.mxu0 0
    %2200 = vmatmul.mubr.bf16.gmra.mxu0 %v2162
    %v2201 = vpop.f32.mrf.mxu0
    %v2202 = vadd.f32 0.0, %v2201
    %v2203 = vpop.f32.mrf.mxu0
    %v2204 = vpop.f32.mrf.mxu0
    %v2205 = vpop.f32.mrf.mxu0
    %2206 = vdwg.mxu0
    %v2208 = vsel %vm344, %v1974, 0
    %v2211 = vsel %vm831, %v2068, 0
    %2213 = vmatprep.subr.bf16.mxu0 0
    %2214 = vmatpush1.bf16.msra.mxu0 0
    %2215 = vmatprep.subr.bf16.mxu0 0
    %2216 = vmatpush1.bf16.msra.mxu0 0
    %2217 = vmatprep.subr.bf16.mxu0 0
    %2218 = vmatpush1.bf16.msra.mxu0 0
    %2219 = vmatprep.subr.bf16.mxu0 0
    %2220 = vmatpush1.bf16.msra.mxu0 0
    %2221 = vmatprep.subr.bf16.mxu0 0
    %2222 = vmatpush1.bf16.msra.mxu0 0
    %2223 = vmatprep.subr.bf16.mxu0 0
    %2224 = vmatpush1.bf16.msra.mxu0 0
    %2225 = vmatprep.subr.bf16.mxu0 0
    %2226 = vmatpush1.bf16.msra.mxu0 0
    %2227 = vmatprep.subr.bf16.mxu0 0
    %2228 = vmatpush1.bf16.msra.mxu0 %v2211
    %2229 = vmatprep.subr.bf16.mxu0 0
    %2230 = vmatpush2.bf16.msra.mxu0 0
    %2231 = vmatprep.subr.bf16.mxu0 0
    %2232 = vmatpush2.bf16.msra.mxu0 0
    %2233 = vmatprep.subr.bf16.mxu0 0
    %2234 = vmatpush2.bf16.msra.mxu0 0
    %2235 = vmatprep.subr.bf16.mxu0 0
    %2236 = vmatpush2.bf16.msra.mxu0 0
    %2237 = vmatprep.subr.bf16.mxu0 0
    %2238 = vmatpush2.bf16.msra.mxu0 0
    %2239 = vmatprep.subr.bf16.mxu0 0
    %2240 = vmatpush2.bf16.msra.mxu0 0
    %2241 = vmatprep.subr.bf16.mxu0 0
    %2242 = vmatpush2.bf16.msra.mxu0 0
    %2243 = vmatprep.subr.bf16.mxu0 0
    %2244 = vmatpush2.bf16.msra.mxu0 0
    %2245 = vmatprep.mubr.bf16.mxu0 0
    %2246 = vmatmul.mubr.bf16.gmra.mxu0 %v2208
    %v2247 = vpop.f32.mrf.mxu0
    %v2248 = vadd.f32 0.0, %v2247
    %v2249 = vpop.f32.mrf.mxu0
    %v2250 = vpop.f32.mrf.mxu0
    %v2251 = vpop.f32.mrf.mxu0
    %2252 = vdwg.mxu0
    %v2253 = vadd.f32 %v1723, %v2110
    %v2254 = vadd.f32 %v1724, %v2156
    %v2255 = vadd.f32 %v1725, %v2202
    %v2256 = vadd.f32 %v1726, %v2248
    %v2257 = vadd.f32 %v37, %v2253
    %v2258 = vadd.f32 %v38, %v2254
    %v2259 = vadd.f32 %v39, %v2255
    %v2260 = vadd.f32 %v40, %v2256
    %v2261 = vlaneseq
    %v2262 = vshrl.u32 %v2261, 7
    %v2263 = vsub.s32 0, %v2262
    %v2264 = vrot.slane %v41, %v2263
    %v2265 = vadd.f32 %v2257, %v2264
    %v2266 = vadd.f32 %v2258, %v2264
    %v2267 = vadd.f32 %v2259, %v2264
    %v2268 = vadd.f32 %v2260, %v2264
    %v2269 = vsel %vm83, %v2265, 0.0
    %2270 = vadd.xlane.f32.xlu0 %v2269
    %v2271 = vpop.xlane.xlu0 %2270
    %v2272 = vsel %vm83, %v2266, 0.0
    %2273 = vadd.xlane.f32.xlu0 %v2272
    %v2274 = vpop.xlane.xlu0 %2273
    %v2275 = vsel %vm83, %v2267, 0.0
    %2276 = vadd.xlane.f32.xlu0 %v2275
    %v2277 = vpop.xlane.xlu0 %2276
    %v2278 = vsel %vm83, %v2268, 0.0
    %2279 = vadd.xlane.f32.xlu0 %v2278
    %v2280 = vpop.xlane.xlu0 %2279
    %v2281 = vrcp.pop 64.0
    %v2282 = vmul.f32 %v2271, %v2281
    %v2283 = vmul.f32 %v2274, %v2281
    %v2284 = vmul.f32 %v2277, %v2281
    %v2285 = vmul.f32 %v2280, %v2281
    %v2286 = vsub.f32 %v2265, %v2282
    %v2287 = vsub.f32 %v2266, %v2283
    %v2288 = vsub.f32 %v2267, %v2284
    %v2289 = vsub.f32 %v2268, %v2285
    %v2290 = vmul.f32 %v2286, %v2286
    %v2291 = vmul.f32 %v2287, %v2287
    %v2292 = vmul.f32 %v2288, %v2288
    %v2293 = vmul.f32 %v2289, %v2289
    %v2294 = vsel %vm83, %v2290, 0.0
    %2295 = vadd.xlane.f32.xlu0 %v2294
    %v2296 = vpop.xlane.xlu0 %2295
    %v2297 = vsel %vm83, %v2291, 0.0
    %2298 = vadd.xlane.f32.xlu0 %v2297
    %v2299 = vpop.xlane.xlu0 %2298
    %v2300 = vsel %vm83, %v2292, 0.0
    %2301 = vadd.xlane.f32.xlu0 %v2300
    %v2302 = vpop.xlane.xlu0 %2301
    %v2303 = vsel %vm83, %v2293, 0.0
    %2304 = vadd.xlane.f32.xlu0 %v2303
    %v2305 = vpop.xlane.xlu0 %2304
    %v2306 = vmul.f32 %v2296, %v2281
    %v2307 = vmul.f32 %v2299, %v2281
    %v2308 = vmul.f32 %v2302, %v2281
    %v2309 = vmul.f32 %v2305, %v2281
    %v2310 = vadd.f32 %v2306, 1e-05
    %v2311 = vadd.f32 %v2307, 1e-05
    %v2312 = vadd.f32 %v2308, 1e-05
    %v2313 = vadd.f32 %v2309, 1e-05
    %v2314 = vrsqrt.pop %v2310
    %v2315 = vrsqrt.pop %v2311
    %v2316 = vrsqrt.pop %v2312
    %v2317 = vrsqrt.pop %v2313
    %v2318 = vmul.f32 %v2286, %v2314
    %v2319 = vmul.f32 %v2287, %v2315
    %v2320 = vmul.f32 %v2288, %v2316
    %v2321 = vmul.f32 %v2289, %v2317
    %v2322 = vlaneseq
    %v2323 = vshrl.u32 %v2322, 7
    %v2324 = vsub.s32 1, %v2323
    %v2325 = vrot.slane %v41, %v2324
    %v2326 = vmul.f32 %v2318, %v2325
    %v2327 = vmul.f32 %v2319, %v2325
    %v2328 = vmul.f32 %v2320, %v2325
    %v2329 = vmul.f32 %v2321, %v2325
    %v2330 = vlaneseq
    %v2331 = vshrl.u32 %v2330, 7
    %v2332 = vsub.s32 2, %v2331
    %v2333 = vrot.slane %v41, %v2332
    %v2334 = vadd.f32 %v2326, %v2333
    %v2335 = vadd.f32 %v2327, %v2333
    %v2336 = vadd.f32 %v2328, %v2333
    %v2337 = vadd.f32 %v2329, %v2333
    %v2338 = vpack.c.bf16 %v2335, %v2334
    %v2339 = vpack.c.bf16 %v2337, %v2336
    %v2340 = vld [vmem:[%s5] sm:$0xff]
    %v2341 = vld [vmem:[%s5 + $0x8] sm:$0xff]
    %v2342 = vld [vmem:[%s5 + $0x10] sm:$0xff]
    %v2343 = vld [vmem:[%s5 + $0x18] sm:$0xff]
    %v2344 = vld [vmem:[%s5 + $0x20] sm:$0xff]
    %v2345 = vld [vmem:[%s5 + $0x28] sm:$0xff]
    %v2346 = vld [vmem:[%s5 + $0x30] sm:$0xff]
    %v2347 = vld [vmem:[%s5 + $0x38] sm:$0xff]
    %v2348 = vld [vmem:[%s5 + $0x40] sm:$0xff]
    %v2349 = vld [vmem:[%s5 + $0x48] sm:$0xff]
    %v2350 = vld [vmem:[%s5 + $0x50] sm:$0xff]
    %v2351 = vld [vmem:[%s5 + $0x58] sm:$0xff]
    %v2352 = vld [vmem:[%s5 + $0x60] sm:$0xff]
    %v2353 = vld [vmem:[%s5 + $0x68] sm:$0xff]
    %v2354 = vld [vmem:[%s5 + $0x70] sm:$0xff]
    %v2355 = vld [vmem:[%s5 + $0x78] sm:$0xff]
    %v2356 = vld [vmem:[%s5 + $0x80] sm:$0xff]
    %v2357 = vld [vmem:[%s5 + $0x88] sm:$0xff]
    %v2358 = vld [vmem:[%s5 + $0x90] sm:$0xff]
    %v2359 = vld [vmem:[%s5 + $0x98] sm:$0xff]
    %v2360 = vld [vmem:[%s5 + $0xa0] sm:$0xff]
    %v2361 = vld [vmem:[%s5 + $0xa8] sm:$0xff]
    %v2362 = vld [vmem:[%s5 + $0xb0] sm:$0xff]
    %v2363 = vld [vmem:[%s5 + $0xb8] sm:$0xff]
    %v2364 = vld [vmem:[%s5 + $0xc0] sm:$0xff]
    %v2365 = vld [vmem:[%s5 + $0xc8] sm:$0xff]
    %v2366 = vld [vmem:[%s5 + $0xd0] sm:$0xff]
    %v2367 = vld [vmem:[%s5 + $0xd8] sm:$0xff]
    %v2368 = vld [vmem:[%s5 + $0xe0] sm:$0xff]
    %v2369 = vld [vmem:[%s5 + $0xe8] sm:$0xff]
    %v2370 = vld [vmem:[%s5 + $0xf0] sm:$0xff]
    %v2371 = vld [vmem:[%s5 + $0xf8] sm:$0xff]
    %v2372 = vld [vmem:[%s5 + $0x100] sm:$0xff]
    %v2373 = vld [vmem:[%s5 + $0x108] sm:$0xff]
    %v2374 = vld [vmem:[%s5 + $0x110] sm:$0xff]
    %v2375 = vld [vmem:[%s5 + $0x118] sm:$0xff]
    %v2376 = vld [vmem:[%s5 + $0x120] sm:$0xff]
    %v2377 = vld [vmem:[%s5 + $0x128] sm:$0xff]
    %v2378 = vld [vmem:[%s5 + $0x130] sm:$0xff]
    %v2379 = vld [vmem:[%s5 + $0x138] sm:$0xff]
    %v2380 = vld [vmem:[%s5 + $0x140] sm:$0xff]
    %v2381 = vld [vmem:[%s5 + $0x148] sm:$0xff]
    %v2382 = vld [vmem:[%s5 + $0x150] sm:$0xff]
    %v2383 = vld [vmem:[%s5 + $0x158] sm:$0xff]
    %v2384 = vld [vmem:[%s5 + $0x160] sm:$0xff]
    %v2385 = vld [vmem:[%s5 + $0x168] sm:$0xff]
    %v2386 = vld [vmem:[%s5 + $0x170] sm:$0xff]
    %v2387 = vld [vmem:[%s5 + $0x178] sm:$0xff]
    %v2388 = vld [vmem:[%s5 + $0x180] sm:$0xff]
    %v2389 = vld [vmem:[%s5 + $0x188] sm:$0xff]
    %v2390 = vld [vmem:[%s5 + $0x190] sm:$0xff]
    %v2391 = vld [vmem:[%s5 + $0x198] sm:$0xff]
    %v2392 = vld [vmem:[%s5 + $0x1a0] sm:$0xff]
    %v2393 = vld [vmem:[%s5 + $0x1a8] sm:$0xff]
    %v2394 = vld [vmem:[%s5 + $0x1b0] sm:$0xff]
    %v2395 = vld [vmem:[%s5 + $0x1b8] sm:$0xff]
    %v2396 = vld [vmem:[%s5 + $0x1c0] sm:$0xff]
    %v2397 = vld [vmem:[%s5 + $0x1c8] sm:$0xff]
    %v2398 = vld [vmem:[%s5 + $0x1d0] sm:$0xff]
    %v2399 = vld [vmem:[%s5 + $0x1d8] sm:$0xff]
    %v2400 = vld [vmem:[%s5 + $0x1e0] sm:$0xff]
    %v2401 = vld [vmem:[%s5 + $0x1e8] sm:$0xff]
    %v2402 = vld [vmem:[%s5 + $0x1f0] sm:$0xff]
    %v2403 = vld [vmem:[%s5 + $0x1f8] sm:$0xff]
    %v2404 = vld [vmem:[%s6] sm:$0xff]
    %v2405 = vld [vmem:[%s6 + $0x8] sm:$0xff]
    %v2408 = vlaneseq
    %v2409 = vshrl.u32 %v2408, 7
    %v2410 = vsub.s32 0, %v2409
    %v2411 = vrot.slane %v2404, %v2410
    %v2412 = vlaneseq
    %v2413 = vshrl.u32 %v2412, 7
    %v2414 = vsub.s32 1, %v2413
    %v2415 = vrot.slane %v2404, %v2414
    %v2416 = vlaneseq
    %v2417 = vshrl.u32 %v2416, 7
    %v2418 = vsub.s32 2, %v2417
    %v2419 = vrot.slane %v2404, %v2418
    %v2420 = vlaneseq
    %v2421 = vshrl.u32 %v2420, 7
    %v2422 = vsub.s32 3, %v2421
    %v2423 = vrot.slane %v2404, %v2422
    %v2424 = vlaneseq
    %v2425 = vshrl.u32 %v2424, 7
    %v2426 = vsub.s32 4, %v2425
    %v2427 = vrot.slane %v2404, %v2426
    %v2428 = vlaneseq
    %v2429 = vshrl.u32 %v2428, 7
    %v2430 = vsub.s32 5, %v2429
    %v2431 = vrot.slane %v2404, %v2430
    %v2432 = vlaneseq
    %v2433 = vshrl.u32 %v2432, 7
    %v2434 = vsub.s32 6, %v2433
    %v2435 = vrot.slane %v2404, %v2434
    %v2436 = vlaneseq
    %v2437 = vshrl.u32 %v2436, 7
    %v2438 = vsub.s32 7, %v2437
    %v2439 = vrot.slane %v2404, %v2438
    %v2440 = vlaneseq
    %v2441 = vshrl.u32 %v2440, 7
    %v2442 = vsub.s32 0, %v2441
    %v2443 = vrot.slane %v2405, %v2442
    %v2444 = vlaneseq
    %v2445 = vshrl.u32 %v2444, 7
    %v2446 = vsub.s32 1, %v2445
    %v2447 = vrot.slane %v2405, %v2446
    %v2448 = vlaneseq
    %v2449 = vshrl.u32 %v2448, 7
    %v2450 = vsub.s32 2, %v2449
    %v2451 = vrot.slane %v2405, %v2450
    %v2452 = vlaneseq
    %v2453 = vshrl.u32 %v2452, 7
    %v2454 = vsub.s32 3, %v2453
    %v2455 = vrot.slane %v2405, %v2454
    %v2456 = vlaneseq
    %v2457 = vshrl.u32 %v2456, 7
    %v2458 = vsub.s32 4, %v2457
    %v2459 = vrot.slane %v2405, %v2458
    %v2460 = vlaneseq
    %v2461 = vshrl.u32 %v2460, 7
    %v2462 = vsub.s32 5, %v2461
    %v2463 = vrot.slane %v2405, %v2462
    %v2464 = vlaneseq
    %v2465 = vshrl.u32 %v2464, 7
    %v2466 = vsub.s32 6, %v2465
    %v2467 = vrot.slane %v2405, %v2466
    %v2468 = vlaneseq
    %v2469 = vshrl.u32 %v2468, 7
    %v2470 = vsub.s32 7, %v2469
    %v2471 = vrot.slane %v2405, %v2470
    %v2552 = vunpack.c.l.b16 %v2340
    %v2553 = vunpack.c.h.b16 %v2340
    %v2554 = vunpack.c.l.b16 %v2341
    %v2555 = vunpack.c.h.b16 %v2341
    %v2556 = vunpack.c.l.b16 %v2342
    %v2557 = vunpack.c.h.b16 %v2342
    %v2558 = vunpack.c.l.b16 %v2343
    %v2559 = vunpack.c.h.b16 %v2343
    %v2560 = vunpack.c.l.b16 %v2344
    %v2561 = vunpack.c.h.b16 %v2344
    %v2562 = vunpack.c.l.b16 %v2345
    %v2563 = vunpack.c.h.b16 %v2345
    %v2564 = vunpack.c.l.b16 %v2346
    %v2565 = vunpack.c.h.b16 %v2346
    %v2566 = vunpack.c.l.b16 %v2347
    %v2567 = vunpack.c.h.b16 %v2347
    %v2568 = vunpack.c.l.b16 %v2348
    %v2569 = vunpack.c.h.b16 %v2348
    %v2570 = vunpack.c.l.b16 %v2349
    %v2571 = vunpack.c.h.b16 %v2349
    %v2572 = vunpack.c.l.b16 %v2350
    %v2573 = vunpack.c.h.b16 %v2350
    %v2574 = vunpack.c.l.b16 %v2351
    %v2575 = vunpack.c.h.b16 %v2351
    %v2576 = vunpack.c.l.b16 %v2352
    %v2577 = vunpack.c.h.b16 %v2352
    %v2578 = vunpack.c.l.b16 %v2353
    %v2579 = vunpack.c.h.b16 %v2353
    %v2580 = vunpack.c.l.b16 %v2354
    %v2581 = vunpack.c.h.b16 %v2354
    %v2582 = vunpack.c.l.b16 %v2355
    %v2583 = vunpack.c.h.b16 %v2355
    %v2584 = vunpack.c.l.b16 %v2356
    %v2585 = vunpack.c.h.b16 %v2356
    %v2586 = vunpack.c.l.b16 %v2357
    %v2587 = vunpack.c.h.b16 %v2357
    %v2588 = vunpack.c.l.b16 %v2358
    %v2589 = vunpack.c.h.b16 %v2358
    %v2590 = vunpack.c.l.b16 %v2359
    %v2591 = vunpack.c.h.b16 %v2359
    %v2592 = vunpack.c.l.b16 %v2360
    %v2593 = vunpack.c.h.b16 %v2360
    %v2594 = vunpack.c.l.b16 %v2361
    %v2595 = vunpack.c.h.b16 %v2361
    %v2596 = vunpack.c.l.b16 %v2362
    %v2597 = vunpack.c.h.b16 %v2362
    %v2598 = vunpack.c.l.b16 %v2363
    %v2599 = vunpack.c.h.b16 %v2363
    %v2600 = vunpack.c.l.b16 %v2364
    %v2601 = vunpack.c.h.b16 %v2364
    %v2602 = vunpack.c.l.b16 %v2365
    %v2603 = vunpack.c.h.b16 %v2365
    %v2604 = vunpack.c.l.b16 %v2366
    %v2605 = vunpack.c.h.b16 %v2366
    %v2606 = vunpack.c.l.b16 %v2367
    %v2607 = vunpack.c.h.b16 %v2367
    %v2608 = vunpack.c.l.b16 %v2368
    %v2609 = vunpack.c.h.b16 %v2368
    %v2610 = vunpack.c.l.b16 %v2369
    %v2611 = vunpack.c.h.b16 %v2369
    %v2612 = vunpack.c.l.b16 %v2370
    %v2613 = vunpack.c.h.b16 %v2370
    %v2614 = vunpack.c.l.b16 %v2371
    %v2615 = vunpack.c.h.b16 %v2371
    %v2616 = vunpack.c.l.b16 %v2372
    %v2617 = vunpack.c.h.b16 %v2372
    %v2618 = vunpack.c.l.b16 %v2373
    %v2619 = vunpack.c.h.b16 %v2373
    %v2620 = vunpack.c.l.b16 %v2374
    %v2621 = vunpack.c.h.b16 %v2374
    %v2622 = vunpack.c.l.b16 %v2375
    %v2623 = vunpack.c.h.b16 %v2375
    %v2624 = vunpack.c.l.b16 %v2376
    %v2625 = vunpack.c.h.b16 %v2376
    %v2626 = vunpack.c.l.b16 %v2377
    %v2627 = vunpack.c.h.b16 %v2377
    %v2628 = vunpack.c.l.b16 %v2378
    %v2629 = vunpack.c.h.b16 %v2378
    %v2630 = vunpack.c.l.b16 %v2379
    %v2631 = vunpack.c.h.b16 %v2379
    %v2632 = vunpack.c.l.b16 %v2380
    %v2633 = vunpack.c.h.b16 %v2380
    %v2634 = vunpack.c.l.b16 %v2381
    %v2635 = vunpack.c.h.b16 %v2381
    %v2636 = vunpack.c.l.b16 %v2382
    %v2637 = vunpack.c.h.b16 %v2382
    %v2638 = vunpack.c.l.b16 %v2383
    %v2639 = vunpack.c.h.b16 %v2383
    %v2640 = vunpack.c.l.b16 %v2384
    %v2641 = vunpack.c.h.b16 %v2384
    %v2642 = vunpack.c.l.b16 %v2385
    %v2643 = vunpack.c.h.b16 %v2385
    %v2644 = vunpack.c.l.b16 %v2386
    %v2645 = vunpack.c.h.b16 %v2386
    %v2646 = vunpack.c.l.b16 %v2387
    %v2647 = vunpack.c.h.b16 %v2387
    %v2648 = vunpack.c.l.b16 %v2388
    %v2649 = vunpack.c.h.b16 %v2388
    %v2650 = vunpack.c.l.b16 %v2389
    %v2651 = vunpack.c.h.b16 %v2389
    %v2652 = vunpack.c.l.b16 %v2390
    %v2653 = vunpack.c.h.b16 %v2390
    %v2654 = vunpack.c.l.b16 %v2391
    %v2655 = vunpack.c.h.b16 %v2391
    %v2656 = vunpack.c.l.b16 %v2392
    %v2657 = vunpack.c.h.b16 %v2392
    %v2658 = vunpack.c.l.b16 %v2393
    %v2659 = vunpack.c.h.b16 %v2393
    %v2660 = vunpack.c.l.b16 %v2394
    %v2661 = vunpack.c.h.b16 %v2394
    %v2662 = vunpack.c.l.b16 %v2395
    %v2663 = vunpack.c.h.b16 %v2395
    %v2664 = vunpack.c.l.b16 %v2396
    %v2665 = vunpack.c.h.b16 %v2396
    %v2666 = vunpack.c.l.b16 %v2397
    %v2667 = vunpack.c.h.b16 %v2397
    %v2668 = vunpack.c.l.b16 %v2398
    %v2669 = vunpack.c.h.b16 %v2398
    %v2670 = vunpack.c.l.b16 %v2399
    %v2671 = vunpack.c.h.b16 %v2399
    %v2672 = vunpack.c.l.b16 %v2400
    %v2673 = vunpack.c.h.b16 %v2400
    %v2674 = vunpack.c.l.b16 %v2401
    %v2675 = vunpack.c.h.b16 %v2401
    %v2676 = vunpack.c.l.b16 %v2402
    %v2677 = vunpack.c.h.b16 %v2402
    %v2678 = vunpack.c.l.b16 %v2403
    %v2679 = vunpack.c.h.b16 %v2403
    %v2680 = vpack.c.b16 %v2568, %v2552
    %v2681 = vpack.c.b16 %v2569, %v2553
    %v2682 = vpack.c.b16 %v2570, %v2554
    %v2683 = vpack.c.b16 %v2571, %v2555
    %v2684 = vpack.c.b16 %v2572, %v2556
    %v2685 = vpack.c.b16 %v2573, %v2557
    %v2686 = vpack.c.b16 %v2574, %v2558
    %v2687 = vpack.c.b16 %v2575, %v2559
    %v2688 = vpack.c.b16 %v2576, %v2560
    %v2689 = vpack.c.b16 %v2577, %v2561
    %v2690 = vpack.c.b16 %v2578, %v2562
    %v2691 = vpack.c.b16 %v2579, %v2563
    %v2692 = vpack.c.b16 %v2580, %v2564
    %v2693 = vpack.c.b16 %v2581, %v2565
    %v2694 = vpack.c.b16 %v2582, %v2566
    %v2695 = vpack.c.b16 %v2583, %v2567
    %v2696 = vpack.c.b16 %v2600, %v2584
    %v2697 = vpack.c.b16 %v2601, %v2585
    %v2698 = vpack.c.b16 %v2602, %v2586
    %v2699 = vpack.c.b16 %v2603, %v2587
    %v2700 = vpack.c.b16 %v2604, %v2588
    %v2701 = vpack.c.b16 %v2605, %v2589
    %v2702 = vpack.c.b16 %v2606, %v2590
    %v2703 = vpack.c.b16 %v2607, %v2591
    %v2704 = vpack.c.b16 %v2608, %v2592
    %v2705 = vpack.c.b16 %v2609, %v2593
    %v2706 = vpack.c.b16 %v2610, %v2594
    %v2707 = vpack.c.b16 %v2611, %v2595
    %v2708 = vpack.c.b16 %v2612, %v2596
    %v2709 = vpack.c.b16 %v2613, %v2597
    %v2710 = vpack.c.b16 %v2614, %v2598
    %v2711 = vpack.c.b16 %v2615, %v2599
    %v2712 = vpack.c.b16 %v2632, %v2616
    %v2713 = vpack.c.b16 %v2633, %v2617
    %v2714 = vpack.c.b16 %v2634, %v2618
    %v2715 = vpack.c.b16 %v2635, %v2619
    %v2716 = vpack.c.b16 %v2636, %v2620
    %v2717 = vpack.c.b16 %v2637, %v2621
    %v2718 = vpack.c.b16 %v2638, %v2622
    %v2719 = vpack.c.b16 %v2639, %v2623
    %v2720 = vpack.c.b16 %v2640, %v2624
    %v2721 = vpack.c.b16 %v2641, %v2625
    %v2722 = vpack.c.b16 %v2642, %v2626
    %v2723 = vpack.c.b16 %v2643, %v2627
    %v2724 = vpack.c.b16 %v2644, %v2628
    %v2725 = vpack.c.b16 %v2645, %v2629
    %v2726 = vpack.c.b16 %v2646, %v2630
    %v2727 = vpack.c.b16 %v2647, %v2631
    %v2728 = vpack.c.b16 %v2664, %v2648
    %v2729 = vpack.c.b16 %v2665, %v2649
    %v2730 = vpack.c.b16 %v2666, %v2650
    %v2731 = vpack.c.b16 %v2667, %v2651
    %v2732 = vpack.c.b16 %v2668, %v2652
    %v2733 = vpack.c.b16 %v2669, %v2653
    %v2734 = vpack.c.b16 %v2670, %v2654
    %v2735 = vpack.c.b16 %v2671, %v2655
    %v2736 = vpack.c.b16 %v2672, %v2656
    %v2737 = vpack.c.b16 %v2673, %v2657
    %v2738 = vpack.c.b16 %v2674, %v2658
    %v2739 = vpack.c.b16 %v2675, %v2659
    %v2740 = vpack.c.b16 %v2676, %v2660
    %v2741 = vpack.c.b16 %v2677, %v2661
    %v2742 = vpack.c.b16 %v2678, %v2662
    %v2743 = vpack.c.b16 %v2679, %v2663
    %v2809 = vsel %vm83, %v2338, 0
    %v2812 = vsel %vm83, %v2339, 0
    %2814 = vmatprep.subr.bf16.mxu0 0
    %2815 = vmatpush1.bf16.msra.mxu0 0
    %2816 = vmatprep.subr.bf16.mxu0 0
    %2817 = vmatpush1.bf16.msra.mxu0 0
    %2818 = vmatprep.subr.bf16.mxu0 0
    %2819 = vmatpush1.bf16.msra.mxu0 0
    %2820 = vmatprep.subr.bf16.mxu0 0
    %2821 = vmatpush1.bf16.msra.mxu0 0
    %2822 = vmatprep.subr.bf16.mxu0 %v2729
    %2823 = vmatpush1.bf16.msra.mxu0 %v2728
    %2824 = vmatprep.subr.bf16.mxu0 %v2713
    %2825 = vmatpush1.bf16.msra.mxu0 %v2712
    %2826 = vmatprep.subr.bf16.mxu0 %v2697
    %2827 = vmatpush1.bf16.msra.mxu0 %v2696
    %2828 = vmatprep.subr.bf16.mxu0 %v2681
    %2829 = vmatpush1.bf16.msra.mxu0 %v2680
    %2830 = vmatprep.subr.bf16.mxu0 0
    %2831 = vmatpush2.bf16.msra.mxu0 0
    %2832 = vmatprep.subr.bf16.mxu0 0
    %2833 = vmatpush2.bf16.msra.mxu0 0
    %2834 = vmatprep.subr.bf16.mxu0 0
    %2835 = vmatpush2.bf16.msra.mxu0 0
    %2836 = vmatprep.subr.bf16.mxu0 0
    %2837 = vmatpush2.bf16.msra.mxu0 0
    %2838 = vmatprep.subr.bf16.mxu0 0
    %2839 = vmatpush2.bf16.msra.mxu0 0
    %2840 = vmatprep.subr.bf16.mxu0 0
    %2841 = vmatpush2.bf16.msra.mxu0 0
    %2842 = vmatprep.subr.bf16.mxu0 0
    %2843 = vmatpush2.bf16.msra.mxu0 0
    %2844 = vmatprep.subr.bf16.mxu0 0
    %2845 = vmatpush2.bf16.msra.mxu0 0
    %2846 = vmatprep.mubr.bf16.mxu0 0
    %2847 = vmatmul.mubr.bf16.gmra.mxu0 %v2809
    %v2848 = vpop.f32.mrf.mxu0
    %v2849 = vadd.f32 %v2411, %v2848
    %v2850 = vpop.f32.mrf.mxu0
    %v2851 = vadd.f32 %v2415, %v2850
    %v2852 = vpop.f32.mrf.mxu0
    %v2853 = vadd.f32 %v2411, %v2852
    %v2854 = vpop.f32.mrf.mxu0
    %v2855 = vadd.f32 %v2415, %v2854
    %2856 = vmatprep.mubr.bf16.mxu0 0
    %2857 = vmatmul.mubr.bf16.gmra.mxu0 %v2812
    %v2858 = vpop.f32.mrf.mxu0
    %v2859 = vadd.f32 %v2411, %v2858
    %v2860 = vpop.f32.mrf.mxu0
    %v2861 = vadd.f32 %v2415, %v2860
    %v2862 = vpop.f32.mrf.mxu0
    %v2863 = vadd.f32 %v2411, %v2862
    %v2864 = vpop.f32.mrf.mxu0
    %v2865 = vadd.f32 %v2415, %v2864
    %2866 = vdwg.mxu0
    %2867 = vmatprep.subr.bf16.mxu0 0
    %2868 = vmatpush1.bf16.msra.mxu0 0
    %2869 = vmatprep.subr.bf16.mxu0 0
    %2870 = vmatpush1.bf16.msra.mxu0 0
    %2871 = vmatprep.subr.bf16.mxu0 0
    %2872 = vmatpush1.bf16.msra.mxu0 0
    %2873 = vmatprep.subr.bf16.mxu0 0
    %2874 = vmatpush1.bf16.msra.mxu0 0
    %2875 = vmatprep.subr.bf16.mxu0 %v2731
    %2876 = vmatpush1.bf16.msra.mxu0 %v2730
    %2877 = vmatprep.subr.bf16.mxu0 %v2715
    %2878 = vmatpush1.bf16.msra.mxu0 %v2714
    %2879 = vmatprep.subr.bf16.mxu0 %v2699
    %2880 = vmatpush1.bf16.msra.mxu0 %v2698
    %2881 = vmatprep.subr.bf16.mxu0 %v2683
    %2882 = vmatpush1.bf16.msra.mxu0 %v2682
    %2883 = vmatprep.subr.bf16.mxu0 0
    %2884 = vmatpush2.bf16.msra.mxu0 0
    %2885 = vmatprep.subr.bf16.mxu0 0
    %2886 = vmatpush2.bf16.msra.mxu0 0
    %2887 = vmatprep.subr.bf16.mxu0 0
    %2888 = vmatpush2.bf16.msra.mxu0 0
    %2889 = vmatprep.subr.bf16.mxu0 0
    %2890 = vmatpush2.bf16.msra.mxu0 0
    %2891 = vmatprep.subr.bf16.mxu0 0
    %2892 = vmatpush2.bf16.msra.mxu0 0
    %2893 = vmatprep.subr.bf16.mxu0 0
    %2894 = vmatpush2.bf16.msra.mxu0 0
    %2895 = vmatprep.subr.bf16.mxu0 0
    %2896 = vmatpush2.bf16.msra.mxu0 0
    %2897 = vmatprep.subr.bf16.mxu0 0
    %2898 = vmatpush2.bf16.msra.mxu0 0
    %2899 = vmatprep.mubr.bf16.mxu0 0
    %2900 = vmatmul.mubr.bf16.gmra.mxu0 %v2809
    %v2901 = vpop.f32.mrf.mxu0
    %v2902 = vadd.f32 %v2419, %v2901
    %v2903 = vpop.f32.mrf.mxu0
    %v2904 = vadd.f32 %v2423, %v2903
    %v2905 = vpop.f32.mrf.mxu0
    %v2906 = vadd.f32 %v2419, %v2905
    %v2907 = vpop.f32.mrf.mxu0
    %v2908 = vadd.f32 %v2423, %v2907
    %2909 = vmatprep.mubr.bf16.mxu0 0
    %2910 = vmatmul.mubr.bf16.gmra.mxu0 %v2812
    %v2911 = vpop.f32.mrf.mxu0
    %v2912 = vadd.f32 %v2419, %v2911
    %v2913 = vpop.f32.mrf.mxu0
    %v2914 = vadd.f32 %v2423, %v2913
    %v2915 = vpop.f32.mrf.mxu0
    %v2916 = vadd.f32 %v2419, %v2915
    %v2917 = vpop.f32.mrf.mxu0
    %v2918 = vadd.f32 %v2423, %v2917
    %2919 = vdwg.mxu0
    %2920 = vmatprep.subr.bf16.mxu0 0
    %2921 = vmatpush1.bf16.msra.mxu0 0
    %2922 = vmatprep.subr.bf16.mxu0 0
    %2923 = vmatpush1.bf16.msra.mxu0 0
    %2924 = vmatprep.subr.bf16.mxu0 0
    %2925 = vmatpush1.bf16.msra.mxu0 0
    %2926 = vmatprep.subr.bf16.mxu0 0
    %2927 = vmatpush1.bf16.msra.mxu0 0
    %2928 = vmatprep.subr.bf16.mxu0 %v2733
    %2929 = vmatpush1.bf16.msra.mxu0 %v2732
    %2930 = vmatprep.subr.bf16.mxu0 %v2717
    %2931 = vmatpush1.bf16.msra.mxu0 %v2716
    %2932 = vmatprep.subr.bf16.mxu0 %v2701
    %2933 = vmatpush1.bf16.msra.mxu0 %v2700
    %2934 = vmatprep.subr.bf16.mxu0 %v2685
    %2935 = vmatpush1.bf16.msra.mxu0 %v2684
    %2936 = vmatprep.subr.bf16.mxu0 0
    %2937 = vmatpush2.bf16.msra.mxu0 0
    %2938 = vmatprep.subr.bf16.mxu0 0
    %2939 = vmatpush2.bf16.msra.mxu0 0
    %2940 = vmatprep.subr.bf16.mxu0 0
    %2941 = vmatpush2.bf16.msra.mxu0 0
    %2942 = vmatprep.subr.bf16.mxu0 0
    %2943 = vmatpush2.bf16.msra.mxu0 0
    %2944 = vmatprep.subr.bf16.mxu0 0
    %2945 = vmatpush2.bf16.msra.mxu0 0
    %2946 = vmatprep.subr.bf16.mxu0 0
    %2947 = vmatpush2.bf16.msra.mxu0 0
    %2948 = vmatprep.subr.bf16.mxu0 0
    %2949 = vmatpush2.bf16.msra.mxu0 0
    %2950 = vmatprep.subr.bf16.mxu0 0
    %2951 = vmatpush2.bf16.msra.mxu0 0
    %2952 = vmatprep.mubr.bf16.mxu0 0
    %2953 = vmatmul.mubr.bf16.gmra.mxu0 %v2809
    %v2954 = vpop.f32.mrf.mxu0
    %v2955 = vadd.f32 %v2427, %v2954
    %v2956 = vpop.f32.mrf.mxu0
    %v2957 = vadd.f32 %v2431, %v2956
    %v2958 = vpop.f32.mrf.mxu0
    %v2959 = vadd.f32 %v2427, %v2958
    %v2960 = vpop.f32.mrf.mxu0
    %v2961 = vadd.f32 %v2431, %v2960
    %2962 = vmatprep.mubr.bf16.mxu0 0
    %2963 = vmatmul.mubr.bf16.gmra.mxu0 %v2812
    %v2964 = vpop.f32.mrf.mxu0
    %v2965 = vadd.f32 %v2427, %v2964
    %v2966 = vpop.f32.mrf.mxu0
    %v2967 = vadd.f32 %v2431, %v2966
    %v2968 = vpop.f32.mrf.mxu0
    %v2969 = vadd.f32 %v2427, %v2968
    %v2970 = vpop.f32.mrf.mxu0
    %v2971 = vadd.f32 %v2431, %v2970
    %2972 = vdwg.mxu0
    %2973 = vmatprep.subr.bf16.mxu0 0
    %2974 = vmatpush1.bf16.msra.mxu0 0
    %2975 = vmatprep.subr.bf16.mxu0 0
    %2976 = vmatpush1.bf16.msra.mxu0 0
    %2977 = vmatprep.subr.bf16.mxu0 0
    %2978 = vmatpush1.bf16.msra.mxu0 0
    %2979 = vmatprep.subr.bf16.mxu0 0
    %2980 = vmatpush1.bf16.msra.mxu0 0
    %2981 = vmatprep.subr.bf16.mxu0 %v2735
    %2982 = vmatpush1.bf16.msra.mxu0 %v2734
    %2983 = vmatprep.subr.bf16.mxu0 %v2719
    %2984 = vmatpush1.bf16.msra.mxu0 %v2718
    %2985 = vmatprep.subr.bf16.mxu0 %v2703
    %2986 = vmatpush1.bf16.msra.mxu0 %v2702
    %2987 = vmatprep.subr.bf16.mxu0 %v2687
    %2988 = vmatpush1.bf16.msra.mxu0 %v2686
    %2989 = vmatprep.subr.bf16.mxu0 0
    %2990 = vmatpush2.bf16.msra.mxu0 0
    %2991 = vmatprep.subr.bf16.mxu0 0
    %2992 = vmatpush2.bf16.msra.mxu0 0
    %2993 = vmatprep.subr.bf16.mxu0 0
    %2994 = vmatpush2.bf16.msra.mxu0 0
    %2995 = vmatprep.subr.bf16.mxu0 0
    %2996 = vmatpush2.bf16.msra.mxu0 0
    %2997 = vmatprep.subr.bf16.mxu0 0
    %2998 = vmatpush2.bf16.msra.mxu0 0
    %2999 = vmatprep.subr.bf16.mxu0 0
    %3000 = vmatpush2.bf16.msra.mxu0 0
    %3001 = vmatprep.subr.bf16.mxu0 0
    %3002 = vmatpush2.bf16.msra.mxu0 0
    %3003 = vmatprep.subr.bf16.mxu0 0
    %3004 = vmatpush2.bf16.msra.mxu0 0
    %3005 = vmatprep.mubr.bf16.mxu0 0
    %3006 = vmatmul.mubr.bf16.gmra.mxu0 %v2809
    %v3007 = vpop.f32.mrf.mxu0
    %v3008 = vadd.f32 %v2435, %v3007
    %v3009 = vpop.f32.mrf.mxu0
    %v3010 = vadd.f32 %v2439, %v3009
    %v3011 = vpop.f32.mrf.mxu0
    %v3012 = vadd.f32 %v2435, %v3011
    %v3013 = vpop.f32.mrf.mxu0
    %v3014 = vadd.f32 %v2439, %v3013
    %3015 = vmatprep.mubr.bf16.mxu0 0
    %3016 = vmatmul.mubr.bf16.gmra.mxu0 %v2812
    %v3017 = vpop.f32.mrf.mxu0
    %v3018 = vadd.f32 %v2435, %v3017
    %v3019 = vpop.f32.mrf.mxu0
    %v3020 = vadd.f32 %v2439, %v3019
    %v3021 = vpop.f32.mrf.mxu0
    %v3022 = vadd.f32 %v2435, %v3021
    %v3023 = vpop.f32.mrf.mxu0
    %v3024 = vadd.f32 %v2439, %v3023
    %3025 = vdwg.mxu0
    %3026 = vmatprep.subr.bf16.mxu0 0
    %3027 = vmatpush1.bf16.msra.mxu0 0
    %3028 = vmatprep.subr.bf16.mxu0 0
    %3029 = vmatpush1.bf16.msra.mxu0 0
    %3030 = vmatprep.subr.bf16.mxu0 0
    %3031 = vmatpush1.bf16.msra.mxu0 0
    %3032 = vmatprep.subr.bf16.mxu0 0
    %3033 = vmatpush1.bf16.msra.mxu0 0
    %3034 = vmatprep.subr.bf16.mxu0 %v2737
    %3035 = vmatpush1.bf16.msra.mxu0 %v2736
    %3036 = vmatprep.subr.bf16.mxu0 %v2721
    %3037 = vmatpush1.bf16.msra.mxu0 %v2720
    %3038 = vmatprep.subr.bf16.mxu0 %v2705
    %3039 = vmatpush1.bf16.msra.mxu0 %v2704
    %3040 = vmatprep.subr.bf16.mxu0 %v2689
    %3041 = vmatpush1.bf16.msra.mxu0 %v2688
    %3042 = vmatprep.subr.bf16.mxu0 0
    %3043 = vmatpush2.bf16.msra.mxu0 0
    %3044 = vmatprep.subr.bf16.mxu0 0
    %3045 = vmatpush2.bf16.msra.mxu0 0
    %3046 = vmatprep.subr.bf16.mxu0 0
    %3047 = vmatpush2.bf16.msra.mxu0 0
    %3048 = vmatprep.subr.bf16.mxu0 0
    %3049 = vmatpush2.bf16.msra.mxu0 0
    %3050 = vmatprep.subr.bf16.mxu0 0
    %3051 = vmatpush2.bf16.msra.mxu0 0
    %3052 = vmatprep.subr.bf16.mxu0 0
    %3053 = vmatpush2.bf16.msra.mxu0 0
    %3054 = vmatprep.subr.bf16.mxu0 0
    %3055 = vmatpush2.bf16.msra.mxu0 0
    %3056 = vmatprep.subr.bf16.mxu0 0
    %3057 = vmatpush2.bf16.msra.mxu0 0
    %3058 = vmatprep.mubr.bf16.mxu0 0
    %3059 = vmatmul.mubr.bf16.gmra.mxu0 %v2809
    %v3060 = vpop.f32.mrf.mxu0
    %v3061 = vadd.f32 %v2443, %v3060
    %v3062 = vpop.f32.mrf.mxu0
    %v3063 = vadd.f32 %v2447, %v3062
    %v3064 = vpop.f32.mrf.mxu0
    %v3065 = vadd.f32 %v2443, %v3064
    %v3066 = vpop.f32.mrf.mxu0
    %v3067 = vadd.f32 %v2447, %v3066
    %3068 = vmatprep.mubr.bf16.mxu0 0
    %3069 = vmatmul.mubr.bf16.gmra.mxu0 %v2812
    %v3070 = vpop.f32.mrf.mxu0
    %v3071 = vadd.f32 %v2443, %v3070
    %v3072 = vpop.f32.mrf.mxu0
    %v3073 = vadd.f32 %v2447, %v3072
    %v3074 = vpop.f32.mrf.mxu0
    %v3075 = vadd.f32 %v2443, %v3074
    %v3076 = vpop.f32.mrf.mxu0
    %v3077 = vadd.f32 %v2447, %v3076
    %3078 = vdwg.mxu0
    %3079 = vmatprep.subr.bf16.mxu0 0
    %3080 = vmatpush1.bf16.msra.mxu0 0
    %3081 = vmatprep.subr.bf16.mxu0 0
    %3082 = vmatpush1.bf16.msra.mxu0 0
    %3083 = vmatprep.subr.bf16.mxu0 0
    %3084 = vmatpush1.bf16.msra.mxu0 0
    %3085 = vmatprep.subr.bf16.mxu0 0
    %3086 = vmatpush1.bf16.msra.mxu0 0
    %3087 = vmatprep.subr.bf16.mxu0 %v2739
    %3088 = vmatpush1.bf16.msra.mxu0 %v2738
    %3089 = vmatprep.subr.bf16.mxu0 %v2723
    %3090 = vmatpush1.bf16.msra.mxu0 %v2722
    %3091 = vmatprep.subr.bf16.mxu0 %v2707
    %3092 = vmatpush1.bf16.msra.mxu0 %v2706
    %3093 = vmatprep.subr.bf16.mxu0 %v2691
    %3094 = vmatpush1.bf16.msra.mxu0 %v2690
    %3095 = vmatprep.subr.bf16.mxu0 0
    %3096 = vmatpush2.bf16.msra.mxu0 0
    %3097 = vmatprep.subr.bf16.mxu0 0
    %3098 = vmatpush2.bf16.msra.mxu0 0
    %3099 = vmatprep.subr.bf16.mxu0 0
    %3100 = vmatpush2.bf16.msra.mxu0 0
    %3101 = vmatprep.subr.bf16.mxu0 0
    %3102 = vmatpush2.bf16.msra.mxu0 0
    %3103 = vmatprep.subr.bf16.mxu0 0
    %3104 = vmatpush2.bf16.msra.mxu0 0
    %3105 = vmatprep.subr.bf16.mxu0 0
    %3106 = vmatpush2.bf16.msra.mxu0 0
    %3107 = vmatprep.subr.bf16.mxu0 0
    %3108 = vmatpush2.bf16.msra.mxu0 0
    %3109 = vmatprep.subr.bf16.mxu0 0
    %3110 = vmatpush2.bf16.msra.mxu0 0
    %3111 = vmatprep.mubr.bf16.mxu0 0
    %3112 = vmatmul.mubr.bf16.gmra.mxu0 %v2809
    %v3113 = vpop.f32.mrf.mxu0
    %v3114 = vadd.f32 %v2451, %v3113
    %v3115 = vpop.f32.mrf.mxu0
    %v3116 = vadd.f32 %v2455, %v3115
    %v3117 = vpop.f32.mrf.mxu0
    %v3118 = vadd.f32 %v2451, %v3117
    %v3119 = vpop.f32.mrf.mxu0
    %v3120 = vadd.f32 %v2455, %v3119
    %3121 = vmatprep.mubr.bf16.mxu0 0
    %3122 = vmatmul.mubr.bf16.gmra.mxu0 %v2812
    %v3123 = vpop.f32.mrf.mxu0
    %v3124 = vadd.f32 %v2451, %v3123
    %v3125 = vpop.f32.mrf.mxu0
    %v3126 = vadd.f32 %v2455, %v3125
    %v3127 = vpop.f32.mrf.mxu0
    %v3128 = vadd.f32 %v2451, %v3127
    %v3129 = vpop.f32.mrf.mxu0
    %v3130 = vadd.f32 %v2455, %v3129
    %3131 = vdwg.mxu0
    %3132 = vmatprep.subr.bf16.mxu0 0
    %3133 = vmatpush1.bf16.msra.mxu0 0
    %3134 = vmatprep.subr.bf16.mxu0 0
    %3135 = vmatpush1.bf16.msra.mxu0 0
    %3136 = vmatprep.subr.bf16.mxu0 0
    %3137 = vmatpush1.bf16.msra.mxu0 0
    %3138 = vmatprep.subr.bf16.mxu0 0
    %3139 = vmatpush1.bf16.msra.mxu0 0
    %3140 = vmatprep.subr.bf16.mxu0 %v2741
    %3141 = vmatpush1.bf16.msra.mxu0 %v2740
    %3142 = vmatprep.subr.bf16.mxu0 %v2725
    %3143 = vmatpush1.bf16.msra.mxu0 %v2724
    %3144 = vmatprep.subr.bf16.mxu0 %v2709
    %3145 = vmatpush1.bf16.msra.mxu0 %v2708
    %3146 = vmatprep.subr.bf16.mxu0 %v2693
    %3147 = vmatpush1.bf16.msra.mxu0 %v2692
    %3148 = vmatprep.subr.bf16.mxu0 0
    %3149 = vmatpush2.bf16.msra.mxu0 0
    %3150 = vmatprep.subr.bf16.mxu0 0
    %3151 = vmatpush2.bf16.msra.mxu0 0
    %3152 = vmatprep.subr.bf16.mxu0 0
    %3153 = vmatpush2.bf16.msra.mxu0 0
    %3154 = vmatprep.subr.bf16.mxu0 0
    %3155 = vmatpush2.bf16.msra.mxu0 0
    %3156 = vmatprep.subr.bf16.mxu0 0
    %3157 = vmatpush2.bf16.msra.mxu0 0
    %3158 = vmatprep.subr.bf16.mxu0 0
    %3159 = vmatpush2.bf16.msra.mxu0 0
    %3160 = vmatprep.subr.bf16.mxu0 0
    %3161 = vmatpush2.bf16.msra.mxu0 0
    %3162 = vmatprep.subr.bf16.mxu0 0
    %3163 = vmatpush2.bf16.msra.mxu0 0
    %3164 = vmatprep.mubr.bf16.mxu0 0
    %3165 = vmatmul.mubr.bf16.gmra.mxu0 %v2809
    %v3166 = vpop.f32.mrf.mxu0
    %v3167 = vadd.f32 %v2459, %v3166
    %v3168 = vpop.f32.mrf.mxu0
    %v3169 = vadd.f32 %v2463, %v3168
    %v3170 = vpop.f32.mrf.mxu0
    %v3171 = vadd.f32 %v2459, %v3170
    %v3172 = vpop.f32.mrf.mxu0
    %v3173 = vadd.f32 %v2463, %v3172
    %3174 = vmatprep.mubr.bf16.mxu0 0
    %3175 = vmatmul.mubr.bf16.gmra.mxu0 %v2812
    %v3176 = vpop.f32.mrf.mxu0
    %v3177 = vadd.f32 %v2459, %v3176
    %v3178 = vpop.f32.mrf.mxu0
    %v3179 = vadd.f32 %v2463, %v3178
    %v3180 = vpop.f32.mrf.mxu0
    %v3181 = vadd.f32 %v2459, %v3180
    %v3182 = vpop.f32.mrf.mxu0
    %v3183 = vadd.f32 %v2463, %v3182
    %3184 = vdwg.mxu0
    %3185 = vmatprep.subr.bf16.mxu0 0
    %3186 = vmatpush1.bf16.msra.mxu0 0
    %3187 = vmatprep.subr.bf16.mxu0 0
    %3188 = vmatpush1.bf16.msra.mxu0 0
    %3189 = vmatprep.subr.bf16.mxu0 0
    %3190 = vmatpush1.bf16.msra.mxu0 0
    %3191 = vmatprep.subr.bf16.mxu0 0
    %3192 = vmatpush1.bf16.msra.mxu0 0
    %3193 = vmatprep.subr.bf16.mxu0 %v2743
    %3194 = vmatpush1.bf16.msra.mxu0 %v2742
    %3195 = vmatprep.subr.bf16.mxu0 %v2727
    %3196 = vmatpush1.bf16.msra.mxu0 %v2726
    %3197 = vmatprep.subr.bf16.mxu0 %v2711
    %3198 = vmatpush1.bf16.msra.mxu0 %v2710
    %3199 = vmatprep.subr.bf16.mxu0 %v2695
    %3200 = vmatpush1.bf16.msra.mxu0 %v2694
    %3201 = vmatprep.subr.bf16.mxu0 0
    %3202 = vmatpush2.bf16.msra.mxu0 0
    %3203 = vmatprep.subr.bf16.mxu0 0
    %3204 = vmatpush2.bf16.msra.mxu0 0
    %3205 = vmatprep.subr.bf16.mxu0 0
    %3206 = vmatpush2.bf16.msra.mxu0 0
    %3207 = vmatprep.subr.bf16.mxu0 0
    %3208 = vmatpush2.bf16.msra.mxu0 0
    %3209 = vmatprep.subr.bf16.mxu0 0
    %3210 = vmatpush2.bf16.msra.mxu0 0
    %3211 = vmatprep.subr.bf16.mxu0 0
    %3212 = vmatpush2.bf16.msra.mxu0 0
    %3213 = vmatprep.subr.bf16.mxu0 0
    %3214 = vmatpush2.bf16.msra.mxu0 0
    %3215 = vmatprep.subr.bf16.mxu0 0
    %3216 = vmatpush2.bf16.msra.mxu0 0
    %3217 = vmatprep.mubr.bf16.mxu0 0
    %3218 = vmatmul.mubr.bf16.gmra.mxu0 %v2809
    %v3219 = vpop.f32.mrf.mxu0
    %v3220 = vadd.f32 %v2467, %v3219
    %v3221 = vpop.f32.mrf.mxu0
    %v3222 = vadd.f32 %v2471, %v3221
    %v3223 = vpop.f32.mrf.mxu0
    %v3224 = vadd.f32 %v2467, %v3223
    %v3225 = vpop.f32.mrf.mxu0
    %v3226 = vadd.f32 %v2471, %v3225
    %3227 = vmatprep.mubr.bf16.mxu0 0
    %3228 = vmatmul.mubr.bf16.gmra.mxu0 %v2812
    %v3229 = vpop.f32.mrf.mxu0
    %v3230 = vadd.f32 %v2467, %v3229
    %v3231 = vpop.f32.mrf.mxu0
    %v3232 = vadd.f32 %v2471, %v3231
    %v3233 = vpop.f32.mrf.mxu0
    %v3234 = vadd.f32 %v2467, %v3233
    %v3235 = vpop.f32.mrf.mxu0
    %v3236 = vadd.f32 %v2471, %v3235
    %3237 = vdwg.mxu0
    %v3238 = vmax.f32 %v2849, 0.0
    %v3239 = vmax.f32 %v2851, 0.0
    %v3240 = vmax.f32 %v2902, 0.0
    %v3241 = vmax.f32 %v2904, 0.0
    %v3242 = vmax.f32 %v2955, 0.0
    %v3243 = vmax.f32 %v2957, 0.0
    %v3244 = vmax.f32 %v3008, 0.0
    %v3245 = vmax.f32 %v3010, 0.0
    %v3246 = vmax.f32 %v3061, 0.0
    %v3247 = vmax.f32 %v3063, 0.0
    %v3248 = vmax.f32 %v3114, 0.0
    %v3249 = vmax.f32 %v3116, 0.0
    %v3250 = vmax.f32 %v3167, 0.0
    %v3251 = vmax.f32 %v3169, 0.0
    %v3252 = vmax.f32 %v3220, 0.0
    %v3253 = vmax.f32 %v3222, 0.0
    %v3254 = vmax.f32 %v2853, 0.0
    %v3255 = vmax.f32 %v2855, 0.0
    %v3256 = vmax.f32 %v2906, 0.0
    %v3257 = vmax.f32 %v2908, 0.0
    %v3258 = vmax.f32 %v2959, 0.0
    %v3259 = vmax.f32 %v2961, 0.0
    %v3260 = vmax.f32 %v3012, 0.0
    %v3261 = vmax.f32 %v3014, 0.0
    %v3262 = vmax.f32 %v3065, 0.0
    %v3263 = vmax.f32 %v3067, 0.0
    %v3264 = vmax.f32 %v3118, 0.0
    %v3265 = vmax.f32 %v3120, 0.0
    %v3266 = vmax.f32 %v3171, 0.0
    %v3267 = vmax.f32 %v3173, 0.0
    %v3268 = vmax.f32 %v3224, 0.0
    %v3269 = vmax.f32 %v3226, 0.0
    %v3270 = vmax.f32 %v2859, 0.0
    %v3271 = vmax.f32 %v2861, 0.0
    %v3272 = vmax.f32 %v2912, 0.0
    %v3273 = vmax.f32 %v2914, 0.0
    %v3274 = vmax.f32 %v2965, 0.0
    %v3275 = vmax.f32 %v2967, 0.0
    %v3276 = vmax.f32 %v3018, 0.0
    %v3277 = vmax.f32 %v3020, 0.0
    %v3278 = vmax.f32 %v3071, 0.0
    %v3279 = vmax.f32 %v3073, 0.0
    %v3280 = vmax.f32 %v3124, 0.0
    %v3281 = vmax.f32 %v3126, 0.0
    %v3282 = vmax.f32 %v3177, 0.0
    %v3283 = vmax.f32 %v3179, 0.0
    %v3284 = vmax.f32 %v3230, 0.0
    %v3285 = vmax.f32 %v3232, 0.0
    %v3286 = vmax.f32 %v2863, 0.0
    %v3287 = vmax.f32 %v2865, 0.0
    %v3288 = vmax.f32 %v2916, 0.0
    %v3289 = vmax.f32 %v2918, 0.0
    %v3290 = vmax.f32 %v2969, 0.0
    %v3291 = vmax.f32 %v2971, 0.0
    %v3292 = vmax.f32 %v3022, 0.0
    %v3293 = vmax.f32 %v3024, 0.0
    %v3294 = vmax.f32 %v3075, 0.0
    %v3295 = vmax.f32 %v3077, 0.0
    %v3296 = vmax.f32 %v3128, 0.0
    %v3297 = vmax.f32 %v3130, 0.0
    %v3298 = vmax.f32 %v3181, 0.0
    %v3299 = vmax.f32 %v3183, 0.0
    %v3300 = vmax.f32 %v3234, 0.0
    %v3301 = vmax.f32 %v3236, 0.0
    %v3302 = vpack.c.bf16 %v3254, %v3238
    %v3303 = vpack.c.bf16 %v3255, %v3239
    %v3304 = vpack.c.bf16 %v3256, %v3240
    %v3305 = vpack.c.bf16 %v3257, %v3241
    %v3306 = vpack.c.bf16 %v3258, %v3242
    %v3307 = vpack.c.bf16 %v3259, %v3243
    %v3308 = vpack.c.bf16 %v3260, %v3244
    %v3309 = vpack.c.bf16 %v3261, %v3245
    %v3310 = vpack.c.bf16 %v3262, %v3246
    %v3311 = vpack.c.bf16 %v3263, %v3247
    %v3312 = vpack.c.bf16 %v3264, %v3248
    %v3313 = vpack.c.bf16 %v3265, %v3249
    %v3314 = vpack.c.bf16 %v3266, %v3250
    %v3315 = vpack.c.bf16 %v3267, %v3251
    %v3316 = vpack.c.bf16 %v3268, %v3252
    %v3317 = vpack.c.bf16 %v3269, %v3253
    %v3318 = vpack.c.bf16 %v3286, %v3270
    %v3319 = vpack.c.bf16 %v3287, %v3271
    %v3320 = vpack.c.bf16 %v3288, %v3272
    %v3321 = vpack.c.bf16 %v3289, %v3273
    %v3322 = vpack.c.bf16 %v3290, %v3274
    %v3323 = vpack.c.bf16 %v3291, %v3275
    %v3324 = vpack.c.bf16 %v3292, %v3276
    %v3325 = vpack.c.bf16 %v3293, %v3277
    %v3326 = vpack.c.bf16 %v3294, %v3278
    %v3327 = vpack.c.bf16 %v3295, %v3279
    %v3328 = vpack.c.bf16 %v3296, %v3280
    %v3329 = vpack.c.bf16 %v3297, %v3281
    %v3330 = vpack.c.bf16 %v3298, %v3282
    %v3331 = vpack.c.bf16 %v3299, %v3283
    %v3332 = vpack.c.bf16 %v3300, %v3284
    %v3333 = vpack.c.bf16 %v3301, %v3285
    %v3334 = vld [vmem:[%s7] sm:$0xf]
    %v3335 = vld [vmem:[%s7 + $0x4] sm:$0xf]
    %v3336 = vld [vmem:[%s7 + $0x8] sm:$0xf]
    %v3337 = vld [vmem:[%s7 + $0xc] sm:$0xf]
    %v3338 = vld [vmem:[%s7 + $0x10] sm:$0xf]
    %v3339 = vld [vmem:[%s7 + $0x14] sm:$0xf]
    %v3340 = vld [vmem:[%s7 + $0x18] sm:$0xf]
    %v3341 = vld [vmem:[%s7 + $0x1c] sm:$0xf]
    %v3342 = vld [vmem:[%s7 + $0x20] sm:$0xf]
    %v3343 = vld [vmem:[%s7 + $0x24] sm:$0xf]
    %v3344 = vld [vmem:[%s7 + $0x28] sm:$0xf]
    %v3345 = vld [vmem:[%s7 + $0x2c] sm:$0xf]
    %v3346 = vld [vmem:[%s7 + $0x30] sm:$0xf]
    %v3347 = vld [vmem:[%s7 + $0x34] sm:$0xf]
    %v3348 = vld [vmem:[%s7 + $0x38] sm:$0xf]
    %v3349 = vld [vmem:[%s7 + $0x3c] sm:$0xf]
    %v3350 = vld [vmem:[%s7 + $0x40] sm:$0xf]
    %v3351 = vld [vmem:[%s7 + $0x44] sm:$0xf]
    %v3352 = vld [vmem:[%s7 + $0x48] sm:$0xf]
    %v3353 = vld [vmem:[%s7 + $0x4c] sm:$0xf]
    %v3354 = vld [vmem:[%s7 + $0x50] sm:$0xf]
    %v3355 = vld [vmem:[%s7 + $0x54] sm:$0xf]
    %v3356 = vld [vmem:[%s7 + $0x58] sm:$0xf]
    %v3357 = vld [vmem:[%s7 + $0x5c] sm:$0xf]
    %v3358 = vld [vmem:[%s7 + $0x60] sm:$0xf]
    %v3359 = vld [vmem:[%s7 + $0x64] sm:$0xf]
    %v3360 = vld [vmem:[%s7 + $0x68] sm:$0xf]
    %v3361 = vld [vmem:[%s7 + $0x6c] sm:$0xf]
    %v3362 = vld [vmem:[%s7 + $0x70] sm:$0xf]
    %v3363 = vld [vmem:[%s7 + $0x74] sm:$0xf]
    %v3364 = vld [vmem:[%s7 + $0x78] sm:$0xf]
    %v3365 = vld [vmem:[%s7 + $0x7c] sm:$0xf]
    %v3366 = vld [vmem:[%s7 + $0x80] sm:$0xf]
    %v3367 = vld [vmem:[%s7 + $0x84] sm:$0xf]
    %v3368 = vld [vmem:[%s7 + $0x88] sm:$0xf]
    %v3369 = vld [vmem:[%s7 + $0x8c] sm:$0xf]
    %v3370 = vld [vmem:[%s7 + $0x90] sm:$0xf]
    %v3371 = vld [vmem:[%s7 + $0x94] sm:$0xf]
    %v3372 = vld [vmem:[%s7 + $0x98] sm:$0xf]
    %v3373 = vld [vmem:[%s7 + $0x9c] sm:$0xf]
    %v3374 = vld [vmem:[%s7 + $0xa0] sm:$0xf]
    %v3375 = vld [vmem:[%s7 + $0xa4] sm:$0xf]
    %v3376 = vld [vmem:[%s7 + $0xa8] sm:$0xf]
    %v3377 = vld [vmem:[%s7 + $0xac] sm:$0xf]
    %v3378 = vld [vmem:[%s7 + $0xb0] sm:$0xf]
    %v3379 = vld [vmem:[%s7 + $0xb4] sm:$0xf]
    %v3380 = vld [vmem:[%s7 + $0xb8] sm:$0xf]
    %v3381 = vld [vmem:[%s7 + $0xbc] sm:$0xf]
    %v3382 = vld [vmem:[%s7 + $0xc0] sm:$0xf]
    %v3383 = vld [vmem:[%s7 + $0xc4] sm:$0xf]
    %v3384 = vld [vmem:[%s7 + $0xc8] sm:$0xf]
    %v3385 = vld [vmem:[%s7 + $0xcc] sm:$0xf]
    %v3386 = vld [vmem:[%s7 + $0xd0] sm:$0xf]
    %v3387 = vld [vmem:[%s7 + $0xd4] sm:$0xf]
    %v3388 = vld [vmem:[%s7 + $0xd8] sm:$0xf]
    %v3389 = vld [vmem:[%s7 + $0xdc] sm:$0xf]
    %v3390 = vld [vmem:[%s7 + $0xe0] sm:$0xf]
    %v3391 = vld [vmem:[%s7 + $0xe4] sm:$0xf]
    %v3392 = vld [vmem:[%s7 + $0xe8] sm:$0xf]
    %v3393 = vld [vmem:[%s7 + $0xec] sm:$0xf]
    %v3394 = vld [vmem:[%s7 + $0xf0] sm:$0xf]
    %v3395 = vld [vmem:[%s7 + $0xf4] sm:$0xf]
    %v3396 = vld [vmem:[%s7 + $0xf8] sm:$0xf]
    %v3397 = vld [vmem:[%s7 + $0xfc] sm:$0xf]
    %v3398 = vld [vmem:[%s7 + $0x100] sm:$0xf]
    %v3399 = vld [vmem:[%s7 + $0x104] sm:$0xf]
    %v3400 = vld [vmem:[%s7 + $0x108] sm:$0xf]
    %v3401 = vld [vmem:[%s7 + $0x10c] sm:$0xf]
    %v3402 = vld [vmem:[%s7 + $0x110] sm:$0xf]
    %v3403 = vld [vmem:[%s7 + $0x114] sm:$0xf]
    %v3404 = vld [vmem:[%s7 + $0x118] sm:$0xf]
    %v3405 = vld [vmem:[%s7 + $0x11c] sm:$0xf]
    %v3406 = vld [vmem:[%s7 + $0x120] sm:$0xf]
    %v3407 = vld [vmem:[%s7 + $0x124] sm:$0xf]
    %v3408 = vld [vmem:[%s7 + $0x128] sm:$0xf]
    %v3409 = vld [vmem:[%s7 + $0x12c] sm:$0xf]
    %v3410 = vld [vmem:[%s7 + $0x130] sm:$0xf]
    %v3411 = vld [vmem:[%s7 + $0x134] sm:$0xf]
    %v3412 = vld [vmem:[%s7 + $0x138] sm:$0xf]
    %v3413 = vld [vmem:[%s7 + $0x13c] sm:$0xf]
    %v3414 = vld [vmem:[%s7 + $0x140] sm:$0xf]
    %v3415 = vld [vmem:[%s7 + $0x144] sm:$0xf]
    %v3416 = vld [vmem:[%s7 + $0x148] sm:$0xf]
    %v3417 = vld [vmem:[%s7 + $0x14c] sm:$0xf]
    %v3418 = vld [vmem:[%s7 + $0x150] sm:$0xf]
    %v3419 = vld [vmem:[%s7 + $0x154] sm:$0xf]
    %v3420 = vld [vmem:[%s7 + $0x158] sm:$0xf]
    %v3421 = vld [vmem:[%s7 + $0x15c] sm:$0xf]
    %v3422 = vld [vmem:[%s7 + $0x160] sm:$0xf]
    %v3423 = vld [vmem:[%s7 + $0x164] sm:$0xf]
    %v3424 = vld [vmem:[%s7 + $0x168] sm:$0xf]
    %v3425 = vld [vmem:[%s7 + $0x16c] sm:$0xf]
    %v3426 = vld [vmem:[%s7 + $0x170] sm:$0xf]
    %v3427 = vld [vmem:[%s7 + $0x174] sm:$0xf]
    %v3428 = vld [vmem:[%s7 + $0x178] sm:$0xf]
    %v3429 = vld [vmem:[%s7 + $0x17c] sm:$0xf]
    %v3430 = vld [vmem:[%s7 + $0x180] sm:$0xf]
    %v3431 = vld [vmem:[%s7 + $0x184] sm:$0xf]
    %v3432 = vld [vmem:[%s7 + $0x188] sm:$0xf]
    %v3433 = vld [vmem:[%s7 + $0x18c] sm:$0xf]
    %v3434 = vld [vmem:[%s7 + $0x190] sm:$0xf]
    %v3435 = vld [vmem:[%s7 + $0x194] sm:$0xf]
    %v3436 = vld [vmem:[%s7 + $0x198] sm:$0xf]
    %v3437 = vld [vmem:[%s7 + $0x19c] sm:$0xf]
    %v3438 = vld [vmem:[%s7 + $0x1a0] sm:$0xf]
    %v3439 = vld [vmem:[%s7 + $0x1a4] sm:$0xf]
    %v3440 = vld [vmem:[%s7 + $0x1a8] sm:$0xf]
    %v3441 = vld [vmem:[%s7 + $0x1ac] sm:$0xf]
    %v3442 = vld [vmem:[%s7 + $0x1b0] sm:$0xf]
    %v3443 = vld [vmem:[%s7 + $0x1b4] sm:$0xf]
    %v3444 = vld [vmem:[%s7 + $0x1b8] sm:$0xf]
    %v3445 = vld [vmem:[%s7 + $0x1bc] sm:$0xf]
    %v3446 = vld [vmem:[%s7 + $0x1c0] sm:$0xf]
    %v3447 = vld [vmem:[%s7 + $0x1c4] sm:$0xf]
    %v3448 = vld [vmem:[%s7 + $0x1c8] sm:$0xf]
    %v3449 = vld [vmem:[%s7 + $0x1cc] sm:$0xf]
    %v3450 = vld [vmem:[%s7 + $0x1d0] sm:$0xf]
    %v3451 = vld [vmem:[%s7 + $0x1d4] sm:$0xf]
    %v3452 = vld [vmem:[%s7 + $0x1d8] sm:$0xf]
    %v3453 = vld [vmem:[%s7 + $0x1dc] sm:$0xf]
    %v3454 = vld [vmem:[%s7 + $0x1e0] sm:$0xf]
    %v3455 = vld [vmem:[%s7 + $0x1e4] sm:$0xf]
    %v3456 = vld [vmem:[%s7 + $0x1e8] sm:$0xf]
    %v3457 = vld [vmem:[%s7 + $0x1ec] sm:$0xf]
    %v3458 = vld [vmem:[%s7 + $0x1f0] sm:$0xf]
    %v3459 = vld [vmem:[%s7 + $0x1f4] sm:$0xf]
    %v3460 = vld [vmem:[%s7 + $0x1f8] sm:$0xf]
    %v3461 = vld [vmem:[%s7 + $0x1fc] sm:$0xf]
    %v3462 = vld [vmem:[%s7 + $0x200] sm:$0xf]
    %v3463 = vld [vmem:[%s7 + $0x204] sm:$0xf]
    %v3464 = vld [vmem:[%s7 + $0x208] sm:$0xf]
    %v3465 = vld [vmem:[%s7 + $0x20c] sm:$0xf]
    %v3466 = vld [vmem:[%s7 + $0x210] sm:$0xf]
    %v3467 = vld [vmem:[%s7 + $0x214] sm:$0xf]
    %v3468 = vld [vmem:[%s7 + $0x218] sm:$0xf]
    %v3469 = vld [vmem:[%s7 + $0x21c] sm:$0xf]
    %v3470 = vld [vmem:[%s7 + $0x220] sm:$0xf]
    %v3471 = vld [vmem:[%s7 + $0x224] sm:$0xf]
    %v3472 = vld [vmem:[%s7 + $0x228] sm:$0xf]
    %v3473 = vld [vmem:[%s7 + $0x22c] sm:$0xf]
    %v3474 = vld [vmem:[%s7 + $0x230] sm:$0xf]
    %v3475 = vld [vmem:[%s7 + $0x234] sm:$0xf]
    %v3476 = vld [vmem:[%s7 + $0x238] sm:$0xf]
    %v3477 = vld [vmem:[%s7 + $0x23c] sm:$0xf]
    %v3478 = vld [vmem:[%s7 + $0x240] sm:$0xf]
    %v3479 = vld [vmem:[%s7 + $0x244] sm:$0xf]
    %v3480 = vld [vmem:[%s7 + $0x248] sm:$0xf]
    %v3481 = vld [vmem:[%s7 + $0x24c] sm:$0xf]
    %v3482 = vld [vmem:[%s7 + $0x250] sm:$0xf]
    %v3483 = vld [vmem:[%s7 + $0x254] sm:$0xf]
    %v3484 = vld [vmem:[%s7 + $0x258] sm:$0xf]
    %v3485 = vld [vmem:[%s7 + $0x25c] sm:$0xf]
    %v3486 = vld [vmem:[%s7 + $0x260] sm:$0xf]
    %v3487 = vld [vmem:[%s7 + $0x264] sm:$0xf]
    %v3488 = vld [vmem:[%s7 + $0x268] sm:$0xf]
    %v3489 = vld [vmem:[%s7 + $0x26c] sm:$0xf]
    %v3490 = vld [vmem:[%s7 + $0x270] sm:$0xf]
    %v3491 = vld [vmem:[%s7 + $0x274] sm:$0xf]
    %v3492 = vld [vmem:[%s7 + $0x278] sm:$0xf]
    %v3493 = vld [vmem:[%s7 + $0x27c] sm:$0xf]
    %v3494 = vld [vmem:[%s7 + $0x280] sm:$0xf]
    %v3495 = vld [vmem:[%s7 + $0x284] sm:$0xf]
    %v3496 = vld [vmem:[%s7 + $0x288] sm:$0xf]
    %v3497 = vld [vmem:[%s7 + $0x28c] sm:$0xf]
    %v3498 = vld [vmem:[%s7 + $0x290] sm:$0xf]
    %v3499 = vld [vmem:[%s7 + $0x294] sm:$0xf]
    %v3500 = vld [vmem:[%s7 + $0x298] sm:$0xf]
    %v3501 = vld [vmem:[%s7 + $0x29c] sm:$0xf]
    %v3502 = vld [vmem:[%s7 + $0x2a0] sm:$0xf]
    %v3503 = vld [vmem:[%s7 + $0x2a4] sm:$0xf]
    %v3504 = vld [vmem:[%s7 + $0x2a8] sm:$0xf]
    %v3505 = vld [vmem:[%s7 + $0x2ac] sm:$0xf]
    %v3506 = vld [vmem:[%s7 + $0x2b0] sm:$0xf]
    %v3507 = vld [vmem:[%s7 + $0x2b4] sm:$0xf]
    %v3508 = vld [vmem:[%s7 + $0x2b8] sm:$0xf]
    %v3509 = vld [vmem:[%s7 + $0x2bc] sm:$0xf]
    %v3510 = vld [vmem:[%s7 + $0x2c0] sm:$0xf]
    %v3511 = vld [vmem:[%s7 + $0x2c4] sm:$0xf]
    %v3512 = vld [vmem:[%s7 + $0x2c8] sm:$0xf]
    %v3513 = vld [vmem:[%s7 + $0x2cc] sm:$0xf]
    %v3514 = vld [vmem:[%s7 + $0x2d0] sm:$0xf]
    %v3515 = vld [vmem:[%s7 + $0x2d4] sm:$0xf]
    %v3516 = vld [vmem:[%s7 + $0x2d8] sm:$0xf]
    %v3517 = vld [vmem:[%s7 + $0x2dc] sm:$0xf]
    %v3518 = vld [vmem:[%s7 + $0x2e0] sm:$0xf]
    %v3519 = vld [vmem:[%s7 + $0x2e4] sm:$0xf]
    %v3520 = vld [vmem:[%s7 + $0x2e8] sm:$0xf]
    %v3521 = vld [vmem:[%s7 + $0x2ec] sm:$0xf]
    %v3522 = vld [vmem:[%s7 + $0x2f0] sm:$0xf]
    %v3523 = vld [vmem:[%s7 + $0x2f4] sm:$0xf]
    %v3524 = vld [vmem:[%s7 + $0x2f8] sm:$0xf]
    %v3525 = vld [vmem:[%s7 + $0x2fc] sm:$0xf]
    %v3526 = vld [vmem:[%s7 + $0x300] sm:$0xf]
    %v3527 = vld [vmem:[%s7 + $0x304] sm:$0xf]
    %v3528 = vld [vmem:[%s7 + $0x308] sm:$0xf]
    %v3529 = vld [vmem:[%s7 + $0x30c] sm:$0xf]
    %v3530 = vld [vmem:[%s7 + $0x310] sm:$0xf]
    %v3531 = vld [vmem:[%s7 + $0x314] sm:$0xf]
    %v3532 = vld [vmem:[%s7 + $0x318] sm:$0xf]
    %v3533 = vld [vmem:[%s7 + $0x31c] sm:$0xf]
    %v3534 = vld [vmem:[%s7 + $0x320] sm:$0xf]
    %v3535 = vld [vmem:[%s7 + $0x324] sm:$0xf]
    %v3536 = vld [vmem:[%s7 + $0x328] sm:$0xf]
    %v3537 = vld [vmem:[%s7 + $0x32c] sm:$0xf]
    %v3538 = vld [vmem:[%s7 + $0x330] sm:$0xf]
    %v3539 = vld [vmem:[%s7 + $0x334] sm:$0xf]
    %v3540 = vld [vmem:[%s7 + $0x338] sm:$0xf]
    %v3541 = vld [vmem:[%s7 + $0x33c] sm:$0xf]
    %v3542 = vld [vmem:[%s7 + $0x340] sm:$0xf]
    %v3543 = vld [vmem:[%s7 + $0x344] sm:$0xf]
    %v3544 = vld [vmem:[%s7 + $0x348] sm:$0xf]
    %v3545 = vld [vmem:[%s7 + $0x34c] sm:$0xf]
    %v3546 = vld [vmem:[%s7 + $0x350] sm:$0xf]
    %v3547 = vld [vmem:[%s7 + $0x354] sm:$0xf]
    %v3548 = vld [vmem:[%s7 + $0x358] sm:$0xf]
    %v3549 = vld [vmem:[%s7 + $0x35c] sm:$0xf]
    %v3550 = vld [vmem:[%s7 + $0x360] sm:$0xf]
    %v3551 = vld [vmem:[%s7 + $0x364] sm:$0xf]
    %v3552 = vld [vmem:[%s7 + $0x368] sm:$0xf]
    %v3553 = vld [vmem:[%s7 + $0x36c] sm:$0xf]
    %v3554 = vld [vmem:[%s7 + $0x370] sm:$0xf]
    %v3555 = vld [vmem:[%s7 + $0x374] sm:$0xf]
    %v3556 = vld [vmem:[%s7 + $0x378] sm:$0xf]
    %v3557 = vld [vmem:[%s7 + $0x37c] sm:$0xf]
    %v3558 = vld [vmem:[%s7 + $0x380] sm:$0xf]
    %v3559 = vld [vmem:[%s7 + $0x384] sm:$0xf]
    %v3560 = vld [vmem:[%s7 + $0x388] sm:$0xf]
    %v3561 = vld [vmem:[%s7 + $0x38c] sm:$0xf]
    %v3562 = vld [vmem:[%s7 + $0x390] sm:$0xf]
    %v3563 = vld [vmem:[%s7 + $0x394] sm:$0xf]
    %v3564 = vld [vmem:[%s7 + $0x398] sm:$0xf]
    %v3565 = vld [vmem:[%s7 + $0x39c] sm:$0xf]
    %v3566 = vld [vmem:[%s7 + $0x3a0] sm:$0xf]
    %v3567 = vld [vmem:[%s7 + $0x3a4] sm:$0xf]
    %v3568 = vld [vmem:[%s7 + $0x3a8] sm:$0xf]
    %v3569 = vld [vmem:[%s7 + $0x3ac] sm:$0xf]
    %v3570 = vld [vmem:[%s7 + $0x3b0] sm:$0xf]
    %v3571 = vld [vmem:[%s7 + $0x3b4] sm:$0xf]
    %v3572 = vld [vmem:[%s7 + $0x3b8] sm:$0xf]
    %v3573 = vld [vmem:[%s7 + $0x3bc] sm:$0xf]
    %v3574 = vld [vmem:[%s7 + $0x3c0] sm:$0xf]
    %v3575 = vld [vmem:[%s7 + $0x3c4] sm:$0xf]
    %v3576 = vld [vmem:[%s7 + $0x3c8] sm:$0xf]
    %v3577 = vld [vmem:[%s7 + $0x3cc] sm:$0xf]
    %v3578 = vld [vmem:[%s7 + $0x3d0] sm:$0xf]
    %v3579 = vld [vmem:[%s7 + $0x3d4] sm:$0xf]
    %v3580 = vld [vmem:[%s7 + $0x3d8] sm:$0xf]
    %v3581 = vld [vmem:[%s7 + $0x3dc] sm:$0xf]
    %v3582 = vld [vmem:[%s7 + $0x3e0] sm:$0xf]
    %v3583 = vld [vmem:[%s7 + $0x3e4] sm:$0xf]
    %v3584 = vld [vmem:[%s7 + $0x3e8] sm:$0xf]
    %v3585 = vld [vmem:[%s7 + $0x3ec] sm:$0xf]
    %v3586 = vld [vmem:[%s7 + $0x3f0] sm:$0xf]
    %v3587 = vld [vmem:[%s7 + $0x3f4] sm:$0xf]
    %v3588 = vld [vmem:[%s7 + $0x3f8] sm:$0xf]
    %v3589 = vld [vmem:[%s7 + $0x3fc] sm:$0xf]
    %v3590 = vlaneseq
    %v3591 = vshrl.u32 %v3590, 7
    %v3592 = vsub.s32 5, %v3591
    %v3593 = vrot.slane %v41, %v3592
    %v3850 = vunpack.c.l.b16 %v3334
    %v3851 = vunpack.c.l.b16 %v3335
    %v3852 = vunpack.c.l.b16 %v3336
    %v3853 = vunpack.c.l.b16 %v3337
    %v3854 = vunpack.c.l.b16 %v3338
    %v3855 = vunpack.c.l.b16 %v3339
    %v3856 = vunpack.c.l.b16 %v3340
    %v3857 = vunpack.c.l.b16 %v3341
    %v3858 = vunpack.c.l.b16 %v3342
    %v3859 = vunpack.c.l.b16 %v3343
    %v3860 = vunpack.c.l.b16 %v3344
    %v3861 = vunpack.c.l.b16 %v3345
    %v3862 = vunpack.c.l.b16 %v3346
    %v3863 = vunpack.c.l.b16 %v3347
    %v3864 = vunpack.c.l.b16 %v3348
    %v3865 = vunpack.c.l.b16 %v3349
    %v3866 = vunpack.c.l.b16 %v3350
    %v3867 = vunpack.c.l.b16 %v3351
    %v3868 = vunpack.c.l.b16 %v3352
    %v3869 = vunpack.c.l.b16 %v3353
    %v3870 = vunpack.c.l.b16 %v3354
    %v3871 = vunpack.c.l.b16 %v3355
    %v3872 = vunpack.c.l.b16 %v3356
    %v3873 = vunpack.c.l.b16 %v3357
    %v3874 = vunpack.c.l.b16 %v3358
    %v3875 = vunpack.c.l.b16 %v3359
    %v3876 = vunpack.c.l.b16 %v3360
    %v3877 = vunpack.c.l.b16 %v3361
    %v3878 = vunpack.c.l.b16 %v3362
    %v3879 = vunpack.c.l.b16 %v3363
    %v3880 = vunpack.c.l.b16 %v3364
    %v3881 = vunpack.c.l.b16 %v3365
    %v3882 = vunpack.c.l.b16 %v3366
    %v3883 = vunpack.c.l.b16 %v3367
    %v3884 = vunpack.c.l.b16 %v3368
    %v3885 = vunpack.c.l.b16 %v3369
    %v3886 = vunpack.c.l.b16 %v3370
    %v3887 = vunpack.c.l.b16 %v3371
    %v3888 = vunpack.c.l.b16 %v3372
    %v3889 = vunpack.c.l.b16 %v3373
    %v3890 = vunpack.c.l.b16 %v3374
    %v3891 = vunpack.c.l.b16 %v3375
    %v3892 = vunpack.c.l.b16 %v3376
    %v3893 = vunpack.c.l.b16 %v3377
    %v3894 = vunpack.c.l.b16 %v3378
    %v3895 = vunpack.c.l.b16 %v3379
    %v3896 = vunpack.c.l.b16 %v3380
    %v3897 = vunpack.c.l.b16 %v3381
    %v3898 = vunpack.c.l.b16 %v3382
    %v3899 = vunpack.c.l.b16 %v3383
    %v3900 = vunpack.c.l.b16 %v3384
    %v3901 = vunpack.c.l.b16 %v3385
    %v3902 = vunpack.c.l.b16 %v3386
    %v3903 = vunpack.c.l.b16 %v3387
    %v3904 = vunpack.c.l.b16 %v3388
    %v3905 = vunpack.c.l.b16 %v3389
    %v3906 = vunpack.c.l.b16 %v3390
    %v3907 = vunpack.c.l.b16 %v3391
    %v3908 = vunpack.c.l.b16 %v3392
    %v3909 = vunpack.c.l.b16 %v3393
    %v3910 = vunpack.c.l.b16 %v3394
    %v3911 = vunpack.c.l.b16 %v3395
    %v3912 = vunpack.c.l.b16 %v3396
    %v3913 = vunpack.c.l.b16 %v3397
    %v3914 = vunpack.c.l.b16 %v3398
    %v3915 = vunpack.c.l.b16 %v3399
    %v3916 = vunpack.c.l.b16 %v3400
    %v3917 = vunpack.c.l.b16 %v3401
    %v3918 = vunpack.c.l.b16 %v3402
    %v3919 = vunpack.c.l.b16 %v3403
    %v3920 = vunpack.c.l.b16 %v3404
    %v3921 = vunpack.c.l.b16 %v3405
    %v3922 = vunpack.c.l.b16 %v3406
    %v3923 = vunpack.c.l.b16 %v3407
    %v3924 = vunpack.c.l.b16 %v3408
    %v3925 = vunpack.c.l.b16 %v3409
    %v3926 = vunpack.c.l.b16 %v3410
    %v3927 = vunpack.c.l.b16 %v3411
    %v3928 = vunpack.c.l.b16 %v3412
    %v3929 = vunpack.c.l.b16 %v3413
    %v3930 = vunpack.c.l.b16 %v3414
    %v3931 = vunpack.c.l.b16 %v3415
    %v3932 = vunpack.c.l.b16 %v3416
    %v3933 = vunpack.c.l.b16 %v3417
    %v3934 = vunpack.c.l.b16 %v3418
    %v3935 = vunpack.c.l.b16 %v3419
    %v3936 = vunpack.c.l.b16 %v3420
    %v3937 = vunpack.c.l.b16 %v3421
    %v3938 = vunpack.c.l.b16 %v3422
    %v3939 = vunpack.c.l.b16 %v3423
    %v3940 = vunpack.c.l.b16 %v3424
    %v3941 = vunpack.c.l.b16 %v3425
    %v3942 = vunpack.c.l.b16 %v3426
    %v3943 = vunpack.c.l.b16 %v3427
    %v3944 = vunpack.c.l.b16 %v3428
    %v3945 = vunpack.c.l.b16 %v3429
    %v3946 = vunpack.c.l.b16 %v3430
    %v3947 = vunpack.c.l.b16 %v3431
    %v3948 = vunpack.c.l.b16 %v3432
    %v3949 = vunpack.c.l.b16 %v3433
    %v3950 = vunpack.c.l.b16 %v3434
    %v3951 = vunpack.c.l.b16 %v3435
    %v3952 = vunpack.c.l.b16 %v3436
    %v3953 = vunpack.c.l.b16 %v3437
    %v3954 = vunpack.c.l.b16 %v3438
    %v3955 = vunpack.c.l.b16 %v3439
    %v3956 = vunpack.c.l.b16 %v3440
    %v3957 = vunpack.c.l.b16 %v3441
    %v3958 = vunpack.c.l.b16 %v3442
    %v3959 = vunpack.c.l.b16 %v3443
    %v3960 = vunpack.c.l.b16 %v3444
    %v3961 = vunpack.c.l.b16 %v3445
    %v3962 = vunpack.c.l.b16 %v3446
    %v3963 = vunpack.c.l.b16 %v3447
    %v3964 = vunpack.c.l.b16 %v3448
    %v3965 = vunpack.c.l.b16 %v3449
    %v3966 = vunpack.c.l.b16 %v3450
    %v3967 = vunpack.c.l.b16 %v3451
    %v3968 = vunpack.c.l.b16 %v3452
    %v3969 = vunpack.c.l.b16 %v3453
    %v3970 = vunpack.c.l.b16 %v3454
    %v3971 = vunpack.c.l.b16 %v3455
    %v3972 = vunpack.c.l.b16 %v3456
    %v3973 = vunpack.c.l.b16 %v3457
    %v3974 = vunpack.c.l.b16 %v3458
    %v3975 = vunpack.c.l.b16 %v3459
    %v3976 = vunpack.c.l.b16 %v3460
    %v3977 = vunpack.c.l.b16 %v3461
    %v3978 = vunpack.c.l.b16 %v3462
    %v3979 = vunpack.c.l.b16 %v3463
    %v3980 = vunpack.c.l.b16 %v3464
    %v3981 = vunpack.c.l.b16 %v3465
    %v3982 = vunpack.c.l.b16 %v3466
    %v3983 = vunpack.c.l.b16 %v3467
    %v3984 = vunpack.c.l.b16 %v3468
    %v3985 = vunpack.c.l.b16 %v3469
    %v3986 = vunpack.c.l.b16 %v3470
    %v3987 = vunpack.c.l.b16 %v3471
    %v3988 = vunpack.c.l.b16 %v3472
    %v3989 = vunpack.c.l.b16 %v3473
    %v3990 = vunpack.c.l.b16 %v3474
    %v3991 = vunpack.c.l.b16 %v3475
    %v3992 = vunpack.c.l.b16 %v3476
    %v3993 = vunpack.c.l.b16 %v3477
    %v3994 = vunpack.c.l.b16 %v3478
    %v3995 = vunpack.c.l.b16 %v3479
    %v3996 = vunpack.c.l.b16 %v3480
    %v3997 = vunpack.c.l.b16 %v3481
    %v3998 = vunpack.c.l.b16 %v3482
    %v3999 = vunpack.c.l.b16 %v3483
    %v4000 = vunpack.c.l.b16 %v3484
    %v4001 = vunpack.c.l.b16 %v3485
    %v4002 = vunpack.c.l.b16 %v3486
    %v4003 = vunpack.c.l.b16 %v3487
    %v4004 = vunpack.c.l.b16 %v3488
    %v4005 = vunpack.c.l.b16 %v3489
    %v4006 = vunpack.c.l.b16 %v3490
    %v4007 = vunpack.c.l.b16 %v3491
    %v4008 = vunpack.c.l.b16 %v3492
    %v4009 = vunpack.c.l.b16 %v3493
    %v4010 = vunpack.c.l.b16 %v3494
    %v4011 = vunpack.c.l.b16 %v3495
    %v4012 = vunpack.c.l.b16 %v3496
    %v4013 = vunpack.c.l.b16 %v3497
    %v4014 = vunpack.c.l.b16 %v3498
    %v4015 = vunpack.c.l.b16 %v3499
    %v4016 = vunpack.c.l.b16 %v3500
    %v4017 = vunpack.c.l.b16 %v3501
    %v4018 = vunpack.c.l.b16 %v3502
    %v4019 = vunpack.c.l.b16 %v3503
    %v4020 = vunpack.c.l.b16 %v3504
    %v4021 = vunpack.c.l.b16 %v3505
    %v4022 = vunpack.c.l.b16 %v3506
    %v4023 = vunpack.c.l.b16 %v3507
    %v4024 = vunpack.c.l.b16 %v3508
    %v4025 = vunpack.c.l.b16 %v3509
    %v4026 = vunpack.c.l.b16 %v3510
    %v4027 = vunpack.c.l.b16 %v3511
    %v4028 = vunpack.c.l.b16 %v3512
    %v4029 = vunpack.c.l.b16 %v3513
    %v4030 = vunpack.c.l.b16 %v3514
    %v4031 = vunpack.c.l.b16 %v3515
    %v4032 = vunpack.c.l.b16 %v3516
    %v4033 = vunpack.c.l.b16 %v3517
    %v4034 = vunpack.c.l.b16 %v3518
    %v4035 = vunpack.c.l.b16 %v3519
    %v4036 = vunpack.c.l.b16 %v3520
    %v4037 = vunpack.c.l.b16 %v3521
    %v4038 = vunpack.c.l.b16 %v3522
    %v4039 = vunpack.c.l.b16 %v3523
    %v4040 = vunpack.c.l.b16 %v3524
    %v4041 = vunpack.c.l.b16 %v3525
    %v4042 = vunpack.c.l.b16 %v3526
    %v4043 = vunpack.c.l.b16 %v3527
    %v4044 = vunpack.c.l.b16 %v3528
    %v4045 = vunpack.c.l.b16 %v3529
    %v4046 = vunpack.c.l.b16 %v3530
    %v4047 = vunpack.c.l.b16 %v3531
    %v4048 = vunpack.c.l.b16 %v3532
    %v4049 = vunpack.c.l.b16 %v3533
    %v4050 = vunpack.c.l.b16 %v3534
    %v4051 = vunpack.c.l.b16 %v3535
    %v4052 = vunpack.c.l.b16 %v3536
    %v4053 = vunpack.c.l.b16 %v3537
    %v4054 = vunpack.c.l.b16 %v3538
    %v4055 = vunpack.c.l.b16 %v3539
    %v4056 = vunpack.c.l.b16 %v3540
    %v4057 = vunpack.c.l.b16 %v3541
    %v4058 = vunpack.c.l.b16 %v3542
    %v4059 = vunpack.c.l.b16 %v3543
    %v4060 = vunpack.c.l.b16 %v3544
    %v4061 = vunpack.c.l.b16 %v3545
    %v4062 = vunpack.c.l.b16 %v3546
    %v4063 = vunpack.c.l.b16 %v3547
    %v4064 = vunpack.c.l.b16 %v3548
    %v4065 = vunpack.c.l.b16 %v3549
    %v4066 = vunpack.c.l.b16 %v3550
    %v4067 = vunpack.c.l.b16 %v3551
    %v4068 = vunpack.c.l.b16 %v3552
    %v4069 = vunpack.c.l.b16 %v3553
    %v4070 = vunpack.c.l.b16 %v3554
    %v4071 = vunpack.c.l.b16 %v3555
    %v4072 = vunpack.c.l.b16 %v3556
    %v4073 = vunpack.c.l.b16 %v3557
    %v4074 = vunpack.c.l.b16 %v3558
    %v4075 = vunpack.c.l.b16 %v3559
    %v4076 = vunpack.c.l.b16 %v3560
    %v4077 = vunpack.c.l.b16 %v3561
    %v4078 = vunpack.c.l.b16 %v3562
    %v4079 = vunpack.c.l.b16 %v3563
    %v4080 = vunpack.c.l.b16 %v3564
    %v4081 = vunpack.c.l.b16 %v3565
    %v4082 = vunpack.c.l.b16 %v3566
    %v4083 = vunpack.c.l.b16 %v3567
    %v4084 = vunpack.c.l.b16 %v3568
    %v4085 = vunpack.c.l.b16 %v3569
    %v4086 = vunpack.c.l.b16 %v3570
    %v4087 = vunpack.c.l.b16 %v3571
    %v4088 = vunpack.c.l.b16 %v3572
    %v4089 = vunpack.c.l.b16 %v3573
    %v4090 = vunpack.c.l.b16 %v3574
    %v4091 = vunpack.c.l.b16 %v3575
    %v4092 = vunpack.c.l.b16 %v3576
    %v4093 = vunpack.c.l.b16 %v3577
    %v4094 = vunpack.c.l.b16 %v3578
    %v4095 = vunpack.c.l.b16 %v3579
    %v4096 = vunpack.c.l.b16 %v3580
    %v4097 = vunpack.c.l.b16 %v3581
    %v4098 = vunpack.c.l.b16 %v3582
    %v4099 = vunpack.c.l.b16 %v3583
    %v4100 = vunpack.c.l.b16 %v3584
    %v4101 = vunpack.c.l.b16 %v3585
    %v4102 = vunpack.c.l.b16 %v3586
    %v4103 = vunpack.c.l.b16 %v3587
    %v4104 = vunpack.c.l.b16 %v3588
    %v4105 = vunpack.c.l.b16 %v3589
    %v4106 = vpack.c.b16 %v3851, %v3850
    %v4107 = vpack.c.b16 %v3853, %v3852
    %v4108 = vpack.c.b16 %v3855, %v3854
    %v4109 = vpack.c.b16 %v3857, %v3856
    %v4110 = vpack.c.b16 %v3859, %v3858
    %v4111 = vpack.c.b16 %v3861, %v3860
    %v4112 = vpack.c.b16 %v3863, %v3862
    %v4113 = vpack.c.b16 %v3865, %v3864
    %v4114 = vpack.c.b16 %v3867, %v3866
    %v4115 = vpack.c.b16 %v3869, %v3868
    %v4116 = vpack.c.b16 %v3871, %v3870
    %v4117 = vpack.c.b16 %v3873, %v3872
    %v4118 = vpack.c.b16 %v3875, %v3874
    %v4119 = vpack.c.b16 %v3877, %v3876
    %v4120 = vpack.c.b16 %v3879, %v3878
    %v4121 = vpack.c.b16 %v3881, %v3880
    %v4122 = vpack.c.b16 %v3883, %v3882
    %v4123 = vpack.c.b16 %v3885, %v3884
    %v4124 = vpack.c.b16 %v3887, %v3886
    %v4125 = vpack.c.b16 %v3889, %v3888
    %v4126 = vpack.c.b16 %v3891, %v3890
    %v4127 = vpack.c.b16 %v3893, %v3892
    %v4128 = vpack.c.b16 %v3895, %v3894
    %v4129 = vpack.c.b16 %v3897, %v3896
    %v4130 = vpack.c.b16 %v3899, %v3898
    %v4131 = vpack.c.b16 %v3901, %v3900
    %v4132 = vpack.c.b16 %v3903, %v3902
    %v4133 = vpack.c.b16 %v3905, %v3904
    %v4134 = vpack.c.b16 %v3907, %v3906
    %v4135 = vpack.c.b16 %v3909, %v3908
    %v4136 = vpack.c.b16 %v3911, %v3910
    %v4137 = vpack.c.b16 %v3913, %v3912
    %v4138 = vpack.c.b16 %v3915, %v3914
    %v4139 = vpack.c.b16 %v3917, %v3916
    %v4140 = vpack.c.b16 %v3919, %v3918
    %v4141 = vpack.c.b16 %v3921, %v3920
    %v4142 = vpack.c.b16 %v3923, %v3922
    %v4143 = vpack.c.b16 %v3925, %v3924
    %v4144 = vpack.c.b16 %v3927, %v3926
    %v4145 = vpack.c.b16 %v3929, %v3928
    %v4146 = vpack.c.b16 %v3931, %v3930
    %v4147 = vpack.c.b16 %v3933, %v3932
    %v4148 = vpack.c.b16 %v3935, %v3934
    %v4149 = vpack.c.b16 %v3937, %v3936
    %v4150 = vpack.c.b16 %v3939, %v3938
    %v4151 = vpack.c.b16 %v3941, %v3940
    %v4152 = vpack.c.b16 %v3943, %v3942
    %v4153 = vpack.c.b16 %v3945, %v3944
    %v4154 = vpack.c.b16 %v3947, %v3946
    %v4155 = vpack.c.b16 %v3949, %v3948
    %v4156 = vpack.c.b16 %v3951, %v3950
    %v4157 = vpack.c.b16 %v3953, %v3952
    %v4158 = vpack.c.b16 %v3955, %v3954
    %v4159 = vpack.c.b16 %v3957, %v3956
    %v4160 = vpack.c.b16 %v3959, %v3958
    %v4161 = vpack.c.b16 %v3961, %v3960
    %v4162 = vpack.c.b16 %v3963, %v3962
    %v4163 = vpack.c.b16 %v3965, %v3964
    %v4164 = vpack.c.b16 %v3967, %v3966
    %v4165 = vpack.c.b16 %v3969, %v3968
    %v4166 = vpack.c.b16 %v3971, %v3970
    %v4167 = vpack.c.b16 %v3973, %v3972
    %v4168 = vpack.c.b16 %v3975, %v3974
    %v4169 = vpack.c.b16 %v3977, %v3976
    %v4170 = vpack.c.b16 %v3979, %v3978
    %v4171 = vpack.c.b16 %v3981, %v3980
    %v4172 = vpack.c.b16 %v3983, %v3982
    %v4173 = vpack.c.b16 %v3985, %v3984
    %v4174 = vpack.c.b16 %v3987, %v3986
    %v4175 = vpack.c.b16 %v3989, %v3988
    %v4176 = vpack.c.b16 %v3991, %v3990
    %v4177 = vpack.c.b16 %v3993, %v3992
    %v4178 = vpack.c.b16 %v3995, %v3994
    %v4179 = vpack.c.b16 %v3997, %v3996
    %v4180 = vpack.c.b16 %v3999, %v3998
    %v4181 = vpack.c.b16 %v4001, %v4000
    %v4182 = vpack.c.b16 %v4003, %v4002
    %v4183 = vpack.c.b16 %v4005, %v4004
    %v4184 = vpack.c.b16 %v4007, %v4006
    %v4185 = vpack.c.b16 %v4009, %v4008
    %v4186 = vpack.c.b16 %v4011, %v4010
    %v4187 = vpack.c.b16 %v4013, %v4012
    %v4188 = vpack.c.b16 %v4015, %v4014
    %v4189 = vpack.c.b16 %v4017, %v4016
    %v4190 = vpack.c.b16 %v4019, %v4018
    %v4191 = vpack.c.b16 %v4021, %v4020
    %v4192 = vpack.c.b16 %v4023, %v4022
    %v4193 = vpack.c.b16 %v4025, %v4024
    %v4194 = vpack.c.b16 %v4027, %v4026
    %v4195 = vpack.c.b16 %v4029, %v4028
    %v4196 = vpack.c.b16 %v4031, %v4030
    %v4197 = vpack.c.b16 %v4033, %v4032
    %v4198 = vpack.c.b16 %v4035, %v4034
    %v4199 = vpack.c.b16 %v4037, %v4036
    %v4200 = vpack.c.b16 %v4039, %v4038
    %v4201 = vpack.c.b16 %v4041, %v4040
    %v4202 = vpack.c.b16 %v4043, %v4042
    %v4203 = vpack.c.b16 %v4045, %v4044
    %v4204 = vpack.c.b16 %v4047, %v4046
    %v4205 = vpack.c.b16 %v4049, %v4048
    %v4206 = vpack.c.b16 %v4051, %v4050
    %v4207 = vpack.c.b16 %v4053, %v4052
    %v4208 = vpack.c.b16 %v4055, %v4054
    %v4209 = vpack.c.b16 %v4057, %v4056
    %v4210 = vpack.c.b16 %v4059, %v4058
    %v4211 = vpack.c.b16 %v4061, %v4060
    %v4212 = vpack.c.b16 %v4063, %v4062
    %v4213 = vpack.c.b16 %v4065, %v4064
    %v4214 = vpack.c.b16 %v4067, %v4066
    %v4215 = vpack.c.b16 %v4069, %v4068
    %v4216 = vpack.c.b16 %v4071, %v4070
    %v4217 = vpack.c.b16 %v4073, %v4072
    %v4218 = vpack.c.b16 %v4075, %v4074
    %v4219 = vpack.c.b16 %v4077, %v4076
    %v4220 = vpack.c.b16 %v4079, %v4078
    %v4221 = vpack.c.b16 %v4081, %v4080
    %v4222 = vpack.c.b16 %v4083, %v4082
    %v4223 = vpack.c.b16 %v4085, %v4084
    %v4224 = vpack.c.b16 %v4087, %v4086
    %v4225 = vpack.c.b16 %v4089, %v4088
    %v4226 = vpack.c.b16 %v4091, %v4090
    %v4227 = vpack.c.b16 %v4093, %v4092
    %v4228 = vpack.c.b16 %v4095, %v4094
    %v4229 = vpack.c.b16 %v4097, %v4096
    %v4230 = vpack.c.b16 %v4099, %v4098
    %v4231 = vpack.c.b16 %v4101, %v4100
    %v4232 = vpack.c.b16 %v4103, %v4102
    %v4233 = vpack.c.b16 %v4105, %v4104
    %4362 = vmatprep.subr.bf16.mxu0 0
    %4363 = vmatpush1.bf16.msra.mxu0 %v4113
    %4364 = vmatprep.subr.bf16.mxu0 0
    %4365 = vmatpush1.bf16.msra.mxu0 %v4112
    %4366 = vmatprep.subr.bf16.mxu0 0
    %4367 = vmatpush1.bf16.msra.mxu0 %v4111
    %4368 = vmatprep.subr.bf16.mxu0 0
    %4369 = vmatpush1.bf16.msra.mxu0 %v4110
    %4370 = vmatprep.subr.bf16.mxu0 0
    %4371 = vmatpush1.bf16.msra.mxu0 %v4109
    %4372 = vmatprep.subr.bf16.mxu0 0
    %4373 = vmatpush1.bf16.msra.mxu0 %v4108
    %4374 = vmatprep.subr.bf16.mxu0 0
    %4375 = vmatpush1.bf16.msra.mxu0 %v4107
    %4376 = vmatprep.subr.bf16.mxu0 0
    %4377 = vmatpush1.bf16.msra.mxu0 %v4106
    %4378 = vmatprep.subr.bf16.mxu0 0
    %4379 = vmatpush2.bf16.msra.mxu0 %v4121
    %4380 = vmatprep.subr.bf16.mxu0 0
    %4381 = vmatpush2.bf16.msra.mxu0 %v4120
    %4382 = vmatprep.subr.bf16.mxu0 0
    %4383 = vmatpush2.bf16.msra.mxu0 %v4119
    %4384 = vmatprep.subr.bf16.mxu0 0
    %4385 = vmatpush2.bf16.msra.mxu0 %v4118
    %4386 = vmatprep.subr.bf16.mxu0 0
    %4387 = vmatpush2.bf16.msra.mxu0 %v4117
    %4388 = vmatprep.subr.bf16.mxu0 0
    %4389 = vmatpush2.bf16.msra.mxu0 %v4116
    %4390 = vmatprep.subr.bf16.mxu0 0
    %4391 = vmatpush2.bf16.msra.mxu0 %v4115
    %4392 = vmatprep.subr.bf16.mxu0 0
    %4393 = vmatpush2.bf16.msra.mxu0 %v4114
    %4394 = vmatprep.mubr.bf16.mxu0 %v3303
    %4395 = vmatmul.mubr.bf16.gmra.mxu0 %v3302
    %v4396 = vpop.f32.mrf.mxu0
    %v4397 = vadd.f32 %v3593, %v4396
    %v4398 = vpop.f32.mrf.mxu0
    %v4399 = vpop.f32.mrf.mxu0
    %v4400 = vadd.f32 %v3593, %v4399
    %v4401 = vpop.f32.mrf.mxu0
    %4402 = vmatprep.mubr.bf16.mxu0 %v3319
    %4403 = vmatmul.mubr.bf16.gmra.mxu0 %v3318
    %v4404 = vpop.f32.mrf.mxu0
    %v4405 = vadd.f32 %v3593, %v4404
    %v4406 = vpop.f32.mrf.mxu0
    %v4407 = vpop.f32.mrf.mxu0
    %v4408 = vadd.f32 %v3593, %v4407
    %v4409 = vpop.f32.mrf.mxu0
    %4410 = vdwg.mxu0
    %4411 = vmatprep.subr.bf16.mxu0 0
    %4412 = vmatpush1.bf16.msra.mxu0 %v4129
    %4413 = vmatprep.subr.bf16.mxu0 0
    %4414 = vmatpush1.bf16.msra.mxu0 %v4128
    %4415 = vmatprep.subr.bf16.mxu0 0
    %4416 = vmatpush1.bf16.msra.mxu0 %v4127
    %4417 = vmatprep.subr.bf16.mxu0 0
    %4418 = vmatpush1.bf16.msra.mxu0 %v4126
    %4419 = vmatprep.subr.bf16.mxu0 0
    %4420 = vmatpush1.bf16.msra.mxu0 %v4125
    %4421 = vmatprep.subr.bf16.mxu0 0
    %4422 = vmatpush1.bf16.msra.mxu0 %v4124
    %4423 = vmatprep.subr.bf16.mxu0 0
    %4424 = vmatpush1.bf16.msra.mxu0 %v4123
    %4425 = vmatprep.subr.bf16.mxu0 0
    %4426 = vmatpush1.bf16.msra.mxu0 %v4122
    %4427 = vmatprep.subr.bf16.mxu0 0
    %4428 = vmatpush2.bf16.msra.mxu0 %v4137
    %4429 = vmatprep.subr.bf16.mxu0 0
    %4430 = vmatpush2.bf16.msra.mxu0 %v4136
    %4431 = vmatprep.subr.bf16.mxu0 0
    %4432 = vmatpush2.bf16.msra.mxu0 %v4135
    %4433 = vmatprep.subr.bf16.mxu0 0
    %4434 = vmatpush2.bf16.msra.mxu0 %v4134
    %4435 = vmatprep.subr.bf16.mxu0 0
    %4436 = vmatpush2.bf16.msra.mxu0 %v4133
    %4437 = vmatprep.subr.bf16.mxu0 0
    %4438 = vmatpush2.bf16.msra.mxu0 %v4132
    %4439 = vmatprep.subr.bf16.mxu0 0
    %4440 = vmatpush2.bf16.msra.mxu0 %v4131
    %4441 = vmatprep.subr.bf16.mxu0 0
    %4442 = vmatpush2.bf16.msra.mxu0 %v4130
    %4443 = vmatprep.mubr.bf16.mxu0 %v3305
    %4444 = vmatmul.mubr.bf16.gmra.mxu0 %v3304
    %v4445 = vpop.f32.mrf.mxu0
    %v4446 = vadd.f32 %v4397, %v4445
    %v4447 = vpop.f32.mrf.mxu0
    %v4448 = vpop.f32.mrf.mxu0
    %v4449 = vadd.f32 %v4400, %v4448
    %v4450 = vpop.f32.mrf.mxu0
    %4451 = vmatprep.mubr.bf16.mxu0 %v3321
    %4452 = vmatmul.mubr.bf16.gmra.mxu0 %v3320
    %v4453 = vpop.f32.mrf.mxu0
    %v4454 = vadd.f32 %v4405, %v4453
    %v4455 = vpop.f32.mrf.mxu0
    %v4456 = vpop.f32.mrf.mxu0
    %v4457 = vadd.f32 %v4408, %v4456
    %v4458 = vpop.f32.mrf.mxu0
    %4459 = vdwg.mxu0
    %4460 = vmatprep.subr.bf16.mxu0 0
    %4461 = vmatpush1.bf16.msra.mxu0 %v4145
    %4462 = vmatprep.subr.bf16.mxu0 0
    %4463 = vmatpush1.bf16.msra.mxu0 %v4144
    %4464 = vmatprep.subr.bf16.mxu0 0
    %4465 = vmatpush1.bf16.msra.mxu0 %v4143
    %4466 = vmatprep.subr.bf16.mxu0 0
    %4467 = vmatpush1.bf16.msra.mxu0 %v4142
    %4468 = vmatprep.subr.bf16.mxu0 0
    %4469 = vmatpush1.bf16.msra.mxu0 %v4141
    %4470 = vmatprep.subr.bf16.mxu0 0
    %4471 = vmatpush1.bf16.msra.mxu0 %v4140
    %4472 = vmatprep.subr.bf16.mxu0 0
    %4473 = vmatpush1.bf16.msra.mxu0 %v4139
    %4474 = vmatprep.subr.bf16.mxu0 0
    %4475 = vmatpush1.bf16.msra.mxu0 %v4138
    %4476 = vmatprep.subr.bf16.mxu0 0
    %4477 = vmatpush2.bf16.msra.mxu0 %v4153
    %4478 = vmatprep.subr.bf16.mxu0 0
    %4479 = vmatpush2.bf16.msra.mxu0 %v4152
    %4480 = vmatprep.subr.bf16.mxu0 0
    %4481 = vmatpush2.bf16.msra.mxu0 %v4151
    %4482 = vmatprep.subr.bf16.mxu0 0
    %4483 = vmatpush2.bf16.msra.mxu0 %v4150
    %4484 = vmatprep.subr.bf16.mxu0 0
    %4485 = vmatpush2.bf16.msra.mxu0 %v4149
    %4486 = vmatprep.subr.bf16.mxu0 0
    %4487 = vmatpush2.bf16.msra.mxu0 %v4148
    %4488 = vmatprep.subr.bf16.mxu0 0
    %4489 = vmatpush2.bf16.msra.mxu0 %v4147
    %4490 = vmatprep.subr.bf16.mxu0 0
    %4491 = vmatpush2.bf16.msra.mxu0 %v4146
    %4492 = vmatprep.mubr.bf16.mxu0 %v3307
    %4493 = vmatmul.mubr.bf16.gmra.mxu0 %v3306
    %v4494 = vpop.f32.mrf.mxu0
    %v4495 = vadd.f32 %v4446, %v4494
    %v4496 = vpop.f32.mrf.mxu0
    %v4497 = vpop.f32.mrf.mxu0
    %v4498 = vadd.f32 %v4449, %v4497
    %v4499 = vpop.f32.mrf.mxu0
    %4500 = vmatprep.mubr.bf16.mxu0 %v3323
    %4501 = vmatmul.mubr.bf16.gmra.mxu0 %v3322
    %v4502 = vpop.f32.mrf.mxu0
    %v4503 = vadd.f32 %v4454, %v4502
    %v4504 = vpop.f32.mrf.mxu0
    %v4505 = vpop.f32.mrf.mxu0
    %v4506 = vadd.f32 %v4457, %v4505
    %v4507 = vpop.f32.mrf.mxu0
    %4508 = vdwg.mxu0
    %4509 = vmatprep.subr.bf16.mxu0 0
    %4510 = vmatpush1.bf16.msra.mxu0 %v4161
    %4511 = vmatprep.subr.bf16.mxu0 0
    %4512 = vmatpush1.bf16.msra.mxu0 %v4160
    %4513 = vmatprep.subr.bf16.mxu0 0
    %4514 = vmatpush1.bf16.msra.mxu0 %v4159
    %4515 = vmatprep.subr.bf16.mxu0 0
    %4516 = vmatpush1.bf16.msra.mxu0 %v4158
    %4517 = vmatprep.subr.bf16.mxu0 0
    %4518 = vmatpush1.bf16.msra.mxu0 %v4157
    %4519 = vmatprep.subr.bf16.mxu0 0
    %4520 = vmatpush1.bf16.msra.mxu0 %v4156
    %4521 = vmatprep.subr.bf16.mxu0 0
    %4522 = vmatpush1.bf16.msra.mxu0 %v4155
    %4523 = vmatprep.subr.bf16.mxu0 0
    %4524 = vmatpush1.bf16.msra.mxu0 %v4154
    %4525 = vmatprep.subr.bf16.mxu0 0
    %4526 = vmatpush2.bf16.msra.mxu0 %v4169
    %4527 = vmatprep.subr.bf16.mxu0 0
    %4528 = vmatpush2.bf16.msra.mxu0 %v4168
    %4529 = vmatprep.subr.bf16.mxu0 0
    %4530 = vmatpush2.bf16.msra.mxu0 %v4167
    %4531 = vmatprep.subr.bf16.mxu0 0
    %4532 = vmatpush2.bf16.msra.mxu0 %v4166
    %4533 = vmatprep.subr.bf16.mxu0 0
    %4534 = vmatpush2.bf16.msra.mxu0 %v4165
    %4535 = vmatprep.subr.bf16.mxu0 0
    %4536 = vmatpush2.bf16.msra.mxu0 %v4164
    %4537 = vmatprep.subr.bf16.mxu0 0
    %4538 = vmatpush2.bf16.msra.mxu0 %v4163
    %4539 = vmatprep.subr.bf16.mxu0 0
    %4540 = vmatpush2.bf16.msra.mxu0 %v4162
    %4541 = vmatprep.mubr.bf16.mxu0 %v3309
    %4542 = vmatmul.mubr.bf16.gmra.mxu0 %v3308
    %v4543 = vpop.f32.mrf.mxu0
    %v4544 = vadd.f32 %v4495, %v4543
    %v4545 = vpop.f32.mrf.mxu0
    %v4546 = vpop.f32.mrf.mxu0
    %v4547 = vadd.f32 %v4498, %v4546
    %v4548 = vpop.f32.mrf.mxu0
    %4549 = vmatprep.mubr.bf16.mxu0 %v3325
    %4550 = vmatmul.mubr.bf16.gmra.mxu0 %v3324
    %v4551 = vpop.f32.mrf.mxu0
    %v4552 = vadd.f32 %v4503, %v4551
    %v4553 = vpop.f32.mrf.mxu0
    %v4554 = vpop.f32.mrf.mxu0
    %v4555 = vadd.f32 %v4506, %v4554
    %v4556 = vpop.f32.mrf.mxu0
    %4557 = vdwg.mxu0
    %4558 = vmatprep.subr.bf16.mxu0 0
    %4559 = vmatpush1.bf16.msra.mxu0 %v4177
    %4560 = vmatprep.subr.bf16.mxu0 0
    %4561 = vmatpush1.bf16.msra.mxu0 %v4176
    %4562 = vmatprep.subr.bf16.mxu0 0
    %4563 = vmatpush1.bf16.msra.mxu0 %v4175
    %4564 = vmatprep.subr.bf16.mxu0 0
    %4565 = vmatpush1.bf16.msra.mxu0 %v4174
    %4566 = vmatprep.subr.bf16.mxu0 0
    %4567 = vmatpush1.bf16.msra.mxu0 %v4173
    %4568 = vmatprep.subr.bf16.mxu0 0
    %4569 = vmatpush1.bf16.msra.mxu0 %v4172
    %4570 = vmatprep.subr.bf16.mxu0 0
    %4571 = vmatpush1.bf16.msra.mxu0 %v4171
    %4572 = vmatprep.subr.bf16.mxu0 0
    %4573 = vmatpush1.bf16.msra.mxu0 %v4170
    %4574 = vmatprep.subr.bf16.mxu0 0
    %4575 = vmatpush2.bf16.msra.mxu0 %v4185
    %4576 = vmatprep.subr.bf16.mxu0 0
    %4577 = vmatpush2.bf16.msra.mxu0 %v4184
    %4578 = vmatprep.subr.bf16.mxu0 0
    %4579 = vmatpush2.bf16.msra.mxu0 %v4183
    %4580 = vmatprep.subr.bf16.mxu0 0
    %4581 = vmatpush2.bf16.msra.mxu0 %v4182
    %4582 = vmatprep.subr.bf16.mxu0 0
    %4583 = vmatpush2.bf16.msra.mxu0 %v4181
    %4584 = vmatprep.subr.bf16.mxu0 0
    %4585 = vmatpush2.bf16.msra.mxu0 %v4180
    %4586 = vmatprep.subr.bf16.mxu0 0
    %4587 = vmatpush2.bf16.msra.mxu0 %v4179
    %4588 = vmatprep.subr.bf16.mxu0 0
    %4589 = vmatpush2.bf16.msra.mxu0 %v4178
    %4590 = vmatprep.mubr.bf16.mxu0 %v3311
    %4591 = vmatmul.mubr.bf16.gmra.mxu0 %v3310
    %v4592 = vpop.f32.mrf.mxu0
    %v4593 = vadd.f32 %v4544, %v4592
    %v4594 = vpop.f32.mrf.mxu0
    %v4595 = vpop.f32.mrf.mxu0
    %v4596 = vadd.f32 %v4547, %v4595
    %v4597 = vpop.f32.mrf.mxu0
    %4598 = vmatprep.mubr.bf16.mxu0 %v3327
    %4599 = vmatmul.mubr.bf16.gmra.mxu0 %v3326
    %v4600 = vpop.f32.mrf.mxu0
    %v4601 = vadd.f32 %v4552, %v4600
    %v4602 = vpop.f32.mrf.mxu0
    %v4603 = vpop.f32.mrf.mxu0
    %v4604 = vadd.f32 %v4555, %v4603
    %v4605 = vpop.f32.mrf.mxu0
    %4606 = vdwg.mxu0
    %4607 = vmatprep.subr.bf16.mxu0 0
    %4608 = vmatpush1.bf16.msra.mxu0 %v4193
    %4609 = vmatprep.subr.bf16.mxu0 0
    %4610 = vmatpush1.bf16.msra.mxu0 %v4192
    %4611 = vmatprep.subr.bf16.mxu0 0
    %4612 = vmatpush1.bf16.msra.mxu0 %v4191
    %4613 = vmatprep.subr.bf16.mxu0 0
    %4614 = vmatpush1.bf16.msra.mxu0 %v4190
    %4615 = vmatprep.subr.bf16.mxu0 0
    %4616 = vmatpush1.bf16.msra.mxu0 %v4189
    %4617 = vmatprep.subr.bf16.mxu0 0
    %4618 = vmatpush1.bf16.msra.mxu0 %v4188
    %4619 = vmatprep.subr.bf16.mxu0 0
    %4620 = vmatpush1.bf16.msra.mxu0 %v4187
    %4621 = vmatprep.subr.bf16.mxu0 0
    %4622 = vmatpush1.bf16.msra.mxu0 %v4186
    %4623 = vmatprep.subr.bf16.mxu0 0
    %4624 = vmatpush2.bf16.msra.mxu0 %v4201
    %4625 = vmatprep.subr.bf16.mxu0 0
    %4626 = vmatpush2.bf16.msra.mxu0 %v4200
    %4627 = vmatprep.subr.bf16.mxu0 0
    %4628 = vmatpush2.bf16.msra.mxu0 %v4199
    %4629 = vmatprep.subr.bf16.mxu0 0
    %4630 = vmatpush2.bf16.msra.mxu0 %v4198
    %4631 = vmatprep.subr.bf16.mxu0 0
    %4632 = vmatpush2.bf16.msra.mxu0 %v4197
    %4633 = vmatprep.subr.bf16.mxu0 0
    %4634 = vmatpush2.bf16.msra.mxu0 %v4196
    %4635 = vmatprep.subr.bf16.mxu0 0
    %4636 = vmatpush2.bf16.msra.mxu0 %v4195
    %4637 = vmatprep.subr.bf16.mxu0 0
    %4638 = vmatpush2.bf16.msra.mxu0 %v4194
    %4639 = vmatprep.mubr.bf16.mxu0 %v3313
    %4640 = vmatmul.mubr.bf16.gmra.mxu0 %v3312
    %v4641 = vpop.f32.mrf.mxu0
    %v4642 = vadd.f32 %v4593, %v4641
    %v4643 = vpop.f32.mrf.mxu0
    %v4644 = vpop.f32.mrf.mxu0
    %v4645 = vadd.f32 %v4596, %v4644
    %v4646 = vpop.f32.mrf.mxu0
    %4647 = vmatprep.mubr.bf16.mxu0 %v3329
    %4648 = vmatmul.mubr.bf16.gmra.mxu0 %v3328
    %v4649 = vpop.f32.mrf.mxu0
    %v4650 = vadd.f32 %v4601, %v4649
    %v4651 = vpop.f32.mrf.mxu0
    %v4652 = vpop.f32.mrf.mxu0
    %v4653 = vadd.f32 %v4604, %v4652
    %v4654 = vpop.f32.mrf.mxu0
    %4655 = vdwg.mxu0
    %4656 = vmatprep.subr.bf16.mxu0 0
    %4657 = vmatpush1.bf16.msra.mxu0 %v4209
    %4658 = vmatprep.subr.bf16.mxu0 0
    %4659 = vmatpush1.bf16.msra.mxu0 %v4208
    %4660 = vmatprep.subr.bf16.mxu0 0
    %4661 = vmatpush1.bf16.msra.mxu0 %v4207
    %4662 = vmatprep.subr.bf16.mxu0 0
    %4663 = vmatpush1.bf16.msra.mxu0 %v4206
    %4664 = vmatprep.subr.bf16.mxu0 0
    %4665 = vmatpush1.bf16.msra.mxu0 %v4205
    %4666 = vmatprep.subr.bf16.mxu0 0
    %4667 = vmatpush1.bf16.msra.mxu0 %v4204
    %4668 = vmatprep.subr.bf16.mxu0 0
    %4669 = vmatpush1.bf16.msra.mxu0 %v4203
    %4670 = vmatprep.subr.bf16.mxu0 0
    %4671 = vmatpush1.bf16.msra.mxu0 %v4202
    %4672 = vmatprep.subr.bf16.mxu0 0
    %4673 = vmatpush2.bf16.msra.mxu0 %v4217
    %4674 = vmatprep.subr.bf16.mxu0 0
    %4675 = vmatpush2.bf16.msra.mxu0 %v4216
    %4676 = vmatprep.subr.bf16.mxu0 0
    %4677 = vmatpush2.bf16.msra.mxu0 %v4215
    %4678 = vmatprep.subr.bf16.mxu0 0
    %4679 = vmatpush2.bf16.msra.mxu0 %v4214
    %4680 = vmatprep.subr.bf16.mxu0 0
    %4681 = vmatpush2.bf16.msra.mxu0 %v4213
    %4682 = vmatprep.subr.bf16.mxu0 0
    %4683 = vmatpush2.bf16.msra.mxu0 %v4212
    %4684 = vmatprep.subr.bf16.mxu0 0
    %4685 = vmatpush2.bf16.msra.mxu0 %v4211
    %4686 = vmatprep.subr.bf16.mxu0 0
    %4687 = vmatpush2.bf16.msra.mxu0 %v4210
    %4688 = vmatprep.mubr.bf16.mxu0 %v3315
    %4689 = vmatmul.mubr.bf16.gmra.mxu0 %v3314
    %v4690 = vpop.f32.mrf.mxu0
    %v4691 = vadd.f32 %v4642, %v4690
    %v4692 = vpop.f32.mrf.mxu0
    %v4693 = vpop.f32.mrf.mxu0
    %v4694 = vadd.f32 %v4645, %v4693
    %v4695 = vpop.f32.mrf.mxu0
    %4696 = vmatprep.mubr.bf16.mxu0 %v3331
    %4697 = vmatmul.mubr.bf16.gmra.mxu0 %v3330
    %v4698 = vpop.f32.mrf.mxu0
    %v4699 = vadd.f32 %v4650, %v4698
    %v4700 = vpop.f32.mrf.mxu0
    %v4701 = vpop.f32.mrf.mxu0
    %v4702 = vadd.f32 %v4653, %v4701
    %v4703 = vpop.f32.mrf.mxu0
    %4704 = vdwg.mxu0
    %4705 = vmatprep.subr.bf16.mxu0 0
    %4706 = vmatpush1.bf16.msra.mxu0 %v4225
    %4707 = vmatprep.subr.bf16.mxu0 0
    %4708 = vmatpush1.bf16.msra.mxu0 %v4224
    %4709 = vmatprep.subr.bf16.mxu0 0
    %4710 = vmatpush1.bf16.msra.mxu0 %v4223
    %4711 = vmatprep.subr.bf16.mxu0 0
    %4712 = vmatpush1.bf16.msra.mxu0 %v4222
    %4713 = vmatprep.subr.bf16.mxu0 0
    %4714 = vmatpush1.bf16.msra.mxu0 %v4221
    %4715 = vmatprep.subr.bf16.mxu0 0
    %4716 = vmatpush1.bf16.msra.mxu0 %v4220
    %4717 = vmatprep.subr.bf16.mxu0 0
    %4718 = vmatpush1.bf16.msra.mxu0 %v4219
    %4719 = vmatprep.subr.bf16.mxu0 0
    %4720 = vmatpush1.bf16.msra.mxu0 %v4218
    %4721 = vmatprep.subr.bf16.mxu0 0
    %4722 = vmatpush2.bf16.msra.mxu0 %v4233
    %4723 = vmatprep.subr.bf16.mxu0 0
    %4724 = vmatpush2.bf16.msra.mxu0 %v4232
    %4725 = vmatprep.subr.bf16.mxu0 0
    %4726 = vmatpush2.bf16.msra.mxu0 %v4231
    %4727 = vmatprep.subr.bf16.mxu0 0
    %4728 = vmatpush2.bf16.msra.mxu0 %v4230
    %4729 = vmatprep.subr.bf16.mxu0 0
    %4730 = vmatpush2.bf16.msra.mxu0 %v4229
    %4731 = vmatprep.subr.bf16.mxu0 0
    %4732 = vmatpush2.bf16.msra.mxu0 %v4228
    %4733 = vmatprep.subr.bf16.mxu0 0
    %4734 = vmatpush2.bf16.msra.mxu0 %v4227
    %4735 = vmatprep.subr.bf16.mxu0 0
    %4736 = vmatpush2.bf16.msra.mxu0 %v4226
    %4737 = vmatprep.mubr.bf16.mxu0 %v3317
    %4738 = vmatmul.mubr.bf16.gmra.mxu0 %v3316
    %v4739 = vpop.f32.mrf.mxu0
    %v4740 = vadd.f32 %v4691, %v4739
    %v4741 = vpop.f32.mrf.mxu0
    %v4742 = vpop.f32.mrf.mxu0
    %v4743 = vadd.f32 %v4694, %v4742
    %v4744 = vpop.f32.mrf.mxu0
    %4745 = vmatprep.mubr.bf16.mxu0 %v3333
    %4746 = vmatmul.mubr.bf16.gmra.mxu0 %v3332
    %v4747 = vpop.f32.mrf.mxu0
    %v4748 = vadd.f32 %v4699, %v4747
    %v4749 = vpop.f32.mrf.mxu0
    %v4750 = vpop.f32.mrf.mxu0
    %v4751 = vadd.f32 %v4702, %v4750
    %v4752 = vpop.f32.mrf.mxu0
    %4753 = vdwg.mxu0
    %v4754 = vadd.f32 %v2334, %v4740
    %v4755 = vadd.f32 %v2335, %v4743
    %v4756 = vadd.f32 %v2336, %v4748
    %v4757 = vadd.f32 %v2337, %v4751
    %v4758 = vsel %vm83, %v4754, 0.0
    %4759 = vadd.xlane.f32.xlu0 %v4758
    %v4760 = vpop.xlane.xlu0 %4759
    %v4761 = vsel %vm83, %v4755, 0.0
    %4762 = vadd.xlane.f32.xlu0 %v4761
    %v4763 = vpop.xlane.xlu0 %4762
    %v4764 = vsel %vm83, %v4756, 0.0
    %4765 = vadd.xlane.f32.xlu0 %v4764
    %v4766 = vpop.xlane.xlu0 %4765
    %v4767 = vsel %vm83, %v4757, 0.0
    %4768 = vadd.xlane.f32.xlu0 %v4767
    %v4769 = vpop.xlane.xlu0 %4768
    %v4770 = vmul.f32 %v4760, %v2281
    %v4771 = vmul.f32 %v4763, %v2281
    %v4772 = vmul.f32 %v4766, %v2281
    %v4773 = vmul.f32 %v4769, %v2281
    %v4774 = vsub.f32 %v4754, %v4770
    %v4775 = vsub.f32 %v4755, %v4771
    %v4776 = vsub.f32 %v4756, %v4772
    %v4777 = vsub.f32 %v4757, %v4773
    %v4778 = vmul.f32 %v4774, %v4774
    %v4779 = vmul.f32 %v4775, %v4775
    %v4780 = vmul.f32 %v4776, %v4776
    %v4781 = vmul.f32 %v4777, %v4777
    %v4782 = vsel %vm83, %v4778, 0.0
    %4783 = vadd.xlane.f32.xlu0 %v4782
    %v4784 = vpop.xlane.xlu0 %4783
    %v4785 = vsel %vm83, %v4779, 0.0
    %4786 = vadd.xlane.f32.xlu0 %v4785
    %v4787 = vpop.xlane.xlu0 %4786
    %v4788 = vsel %vm83, %v4780, 0.0
    %4789 = vadd.xlane.f32.xlu0 %v4788
    %v4790 = vpop.xlane.xlu0 %4789
    %v4791 = vsel %vm83, %v4781, 0.0
    %4792 = vadd.xlane.f32.xlu0 %v4791
    %v4793 = vpop.xlane.xlu0 %4792
    %v4794 = vmul.f32 %v4784, %v2281
    %v4795 = vmul.f32 %v4787, %v2281
    %v4796 = vmul.f32 %v4790, %v2281
    %v4797 = vmul.f32 %v4793, %v2281
    %v4798 = vadd.f32 %v4794, 1e-05
    %v4799 = vadd.f32 %v4795, 1e-05
    %v4800 = vadd.f32 %v4796, 1e-05
    %v4801 = vadd.f32 %v4797, 1e-05
    %v4802 = vrsqrt.pop %v4798
    %v4803 = vrsqrt.pop %v4799
    %v4804 = vrsqrt.pop %v4800
    %v4805 = vrsqrt.pop %v4801
    %v4806 = vmul.f32 %v4774, %v4802
    %v4807 = vmul.f32 %v4775, %v4803
    %v4808 = vmul.f32 %v4776, %v4804
    %v4809 = vmul.f32 %v4777, %v4805
    %v4810 = vlaneseq
    %v4811 = vshrl.u32 %v4810, 7
    %v4812 = vsub.s32 3, %v4811
    %v4813 = vrot.slane %v41, %v4812
    %v4814 = vmul.f32 %v4806, %v4813
    %v4815 = vmul.f32 %v4807, %v4813
    %v4816 = vmul.f32 %v4808, %v4813
    %v4817 = vmul.f32 %v4809, %v4813
    %v4818 = vlaneseq
    %v4819 = vshrl.u32 %v4818, 7
    %v4820 = vsub.s32 4, %v4819
    %v4821 = vrot.slane %v41, %v4820
    %v4822 = vadd.f32 %v4814, %v4821
    %v4823 = vadd.f32 %v4815, %v4821
    %v4824 = vadd.f32 %v4816, %v4821
    %v4825 = vadd.f32 %v4817, %v4821
    %s4826 = scalar_lea.vmem %s4, 8
    %v4827 = vld [vmem:[%s4826] sm:$0x3f]
    %v4828 = vpack.c.bf16 %v4823, %v4822
    %v4829 = vpack.c.bf16 %v4825, %v4824
    %s4830 = scalar_lea.vmem %s1, 32
    %v4831 = vld [vmem:[%s4830] sm:$0xf]
    %v4832 = vld [vmem:[%s4830 + $0x4] sm:$0xf]
    %v4833 = vld [vmem:[%s4830 + $0x8] sm:$0xf]
    %v4834 = vld [vmem:[%s4830 + $0xc] sm:$0xf]
    %v4835 = vld [vmem:[%s4830 + $0x10] sm:$0xf]
    %v4836 = vld [vmem:[%s4830 + $0x14] sm:$0xf]
    %v4837 = vld [vmem:[%s4830 + $0x18] sm:$0xf]
    %v4838 = vld [vmem:[%s4830 + $0x1c] sm:$0xf]
    %s4839 = scalar_lea.vmem %s2, 1
    %v4840 = vld [vmem:[%s4839] sm:$0x1]
    %v4842 = vlaneseq
    %v4843 = vshrl.u32 %v4842, 7
    %v4844 = vsub.s32 0, %v4843
    %v4845 = vrot.slane %v4840, %v4844
    %v4855 = vunpack.c.l.b16 %v4831
    %v4856 = vunpack.c.l.b16 %v4832
    %v4857 = vunpack.c.l.b16 %v4833
    %v4858 = vunpack.c.l.b16 %v4834
    %v4859 = vunpack.c.l.b16 %v4835
    %v4860 = vunpack.c.l.b16 %v4836
    %v4861 = vunpack.c.l.b16 %v4837
    %v4862 = vunpack.c.l.b16 %v4838
    %v4863 = vpack.c.b16 %v4856, %v4855
    %v4864 = vpack.c.b16 %v4858, %v4857
    %v4865 = vpack.c.b16 %v4860, %v4859
    %v4866 = vpack.c.b16 %v4862, %v4861
    %v4872 = vsel %vm83, %v4828, 0
    %v4875 = vsel %vm83, %v4829, 0
    %4877 = vmatprep.subr.bf16.mxu0 0
    %4878 = vmatpush1.bf16.msra.mxu0 0
    %4879 = vmatprep.subr.bf16.mxu0 0
    %4880 = vmatpush1.bf16.msra.mxu0 0
    %4881 = vmatprep.subr.bf16.mxu0 0
    %4882 = vmatpush1.bf16.msra.mxu0 0
    %4883 = vmatprep.subr.bf16.mxu0 0
    %4884 = vmatpush1.bf16.msra.mxu0 0
    %4885 = vmatprep.subr.bf16.mxu0 0
    %4886 = vmatpush1.bf16.msra.mxu0 %v4866
    %4887 = vmatprep.subr.bf16.mxu0 0
    %4888 = vmatpush1.bf16.msra.mxu0 %v4865
    %4889 = vmatprep.subr.bf16.mxu0 0
    %4890 = vmatpush1.bf16.msra.mxu0 %v4864
    %4891 = vmatprep.subr.bf16.mxu0 0
    %4892 = vmatpush1.bf16.msra.mxu0 %v4863
    %4893 = vmatprep.subr.bf16.mxu0 0
    %4894 = vmatpush2.bf16.msra.mxu0 0
    %4895 = vmatprep.subr.bf16.mxu0 0
    %4896 = vmatpush2.bf16.msra.mxu0 0
    %4897 = vmatprep.subr.bf16.mxu0 0
    %4898 = vmatpush2.bf16.msra.mxu0 0
    %4899 = vmatprep.subr.bf16.mxu0 0
    %4900 = vmatpush2.bf16.msra.mxu0 0
    %4901 = vmatprep.subr.bf16.mxu0 0
    %4902 = vmatpush2.bf16.msra.mxu0 0
    %4903 = vmatprep.subr.bf16.mxu0 0
    %4904 = vmatpush2.bf16.msra.mxu0 0
    %4905 = vmatprep.subr.bf16.mxu0 0
    %4906 = vmatpush2.bf16.msra.mxu0 0
    %4907 = vmatprep.subr.bf16.mxu0 0
    %4908 = vmatpush2.bf16.msra.mxu0 0
    %4909 = vmatprep.mubr.bf16.mxu0 0
    %4910 = vmatmul.mubr.bf16.gmra.mxu0 %v4872
    %v4911 = vpop.f32.mrf.mxu0
    %v4912 = vadd.f32 %v4845, %v4911
    %v4913 = vpop.f32.mrf.mxu0
    %v4914 = vpop.f32.mrf.mxu0
    %v4915 = vadd.f32 %v4845, %v4914
    %v4916 = vpop.f32.mrf.mxu0
    %4917 = vmatprep.mubr.bf16.mxu0 0
    %4918 = vmatmul.mubr.bf16.gmra.mxu0 %v4875
    %v4919 = vpop.f32.mrf.mxu0
    %v4920 = vadd.f32 %v4845, %v4919
    %v4921 = vpop.f32.mrf.mxu0
    %v4922 = vpop.f32.mrf.mxu0
    %v4923 = vadd.f32 %v4845, %v4922
    %v4924 = vpop.f32.mrf.mxu0
    %4925 = vdwg.mxu0
    %v4926 = vpack.c.bf16 %v4915, %v4912
    %v4927 = vpack.c.bf16 %v4923, %v4920
    %v4930 = vunpack.c.l.b16 %v4926
    %v4931 = vunpack.c.h.b16 %v4926
    %v4932 = vunpack.c.l.b16 %v4927
    %v4933 = vunpack.c.h.b16 %v4927
    %v4934 = vpack.c.b16 %v4930, %v4930
    %v4935 = vpack.c.b16 %v4931, %v4931
    %v4936 = vpack.c.b16 %v4932, %v4932
    %v4937 = vpack.c.b16 %v4933, %v4933
    %4938 = vrot.lane.b32.xlu0 %v4934, 64
    %v4939 = vpop.permute.xlu0 %4938
    %v4941 = vsel %vm153, %v4934, 0
    %v4944 = vsel %vm153, %v4939, 0
    %4946 = vmatprep.subr.bf16.mxu0 0
    %4947 = vmatpush1.bf16.xpose.msra.mxu0 0
    %4948 = vmatprep.subr.bf16.mxu0 0
    %4949 = vmatpush1.bf16.xpose.msra.mxu0 0
    %4950 = vmatprep.subr.bf16.mxu0 0
    %4951 = vmatpush1.bf16.xpose.msra.mxu0 0
    %4952 = vmatprep.subr.bf16.mxu0 0
    %4953 = vmatpush1.bf16.xpose.msra.mxu0 0
    %4954 = vmatprep.subr.bf16.mxu0 0
    %4955 = vmatpush1.bf16.xpose.msra.mxu0 0
    %4956 = vmatprep.subr.bf16.mxu0 0
    %4957 = vmatpush1.bf16.xpose.msra.mxu0 0
    %4958 = vmatprep.subr.bf16.mxu0 0
    %4959 = vmatpush1.bf16.xpose.msra.mxu0 0
    %4960 = vmatprep.subr.bf16.mxu0 0
    %4961 = vmatpush1.bf16.xpose.msra.mxu0 %v4944
    %4962 = vmatprep.subr.bf16.mxu0 0
    %4963 = vmatpush2.bf16.xpose.msra.mxu0 0
    %4964 = vmatprep.subr.bf16.mxu0 0
    %4965 = vmatpush2.bf16.xpose.msra.mxu0 0
    %4966 = vmatprep.subr.bf16.mxu0 0
    %4967 = vmatpush2.bf16.xpose.msra.mxu0 0
    %4968 = vmatprep.subr.bf16.mxu0 0
    %4969 = vmatpush2.bf16.xpose.msra.mxu0 0
    %4970 = vmatprep.subr.bf16.mxu0 0
    %4971 = vmatpush2.bf16.xpose.msra.mxu0 0
    %4972 = vmatprep.subr.bf16.mxu0 0
    %4973 = vmatpush2.bf16.xpose.msra.mxu0 0
    %4974 = vmatprep.subr.bf16.mxu0 0
    %4975 = vmatpush2.bf16.xpose.msra.mxu0 0
    %4976 = vmatprep.subr.bf16.mxu0 0
    %4977 = vmatpush2.bf16.xpose.msra.mxu0 0
    %4978 = vmatprep.mubr.bf16.mxu0 0
    %4979 = vmatmul.mubr.bf16.gmra.mxu0 %v4941
    %v4980 = vpop.f32.mrf.mxu0
    %v4981 = vadd.f32 0.0, %v4980
    %v4982 = vpop.f32.mrf.mxu0
    %v4983 = vpop.f32.mrf.mxu0
    %v4984 = vpop.f32.mrf.mxu0
    %4985 = vdwg.mxu0
    %4986 = vrot.lane.b32.xlu0 %v4935, 64
    %v4987 = vpop.permute.xlu0 %4986
    %v4989 = vsel %vm153, %v4935, 0
    %v4992 = vsel %vm153, %v4987, 0
    %4994 = vmatprep.subr.bf16.mxu0 0
    %4995 = vmatpush1.bf16.xpose.msra.mxu0 0
    %4996 = vmatprep.subr.bf16.mxu0 0
    %4997 = vmatpush1.bf16.xpose.msra.mxu0 0
    %4998 = vmatprep.subr.bf16.mxu0 0
    %4999 = vmatpush1.bf16.xpose.msra.mxu0 0
    %5000 = vmatprep.subr.bf16.mxu0 0
    %5001 = vmatpush1.bf16.xpose.msra.mxu0 0
    %5002 = vmatprep.subr.bf16.mxu0 0
    %5003 = vmatpush1.bf16.xpose.msra.mxu0 0
    %5004 = vmatprep.subr.bf16.mxu0 0
    %5005 = vmatpush1.bf16.xpose.msra.mxu0 0
    %5006 = vmatprep.subr.bf16.mxu0 0
    %5007 = vmatpush1.bf16.xpose.msra.mxu0 0
    %5008 = vmatprep.subr.bf16.mxu0 0
    %5009 = vmatpush1.bf16.xpose.msra.mxu0 %v4992
    %5010 = vmatprep.subr.bf16.mxu0 0
    %5011 = vmatpush2.bf16.xpose.msra.mxu0 0
    %5012 = vmatprep.subr.bf16.mxu0 0
    %5013 = vmatpush2.bf16.xpose.msra.mxu0 0
    %5014 = vmatprep.subr.bf16.mxu0 0
    %5015 = vmatpush2.bf16.xpose.msra.mxu0 0
    %5016 = vmatprep.subr.bf16.mxu0 0
    %5017 = vmatpush2.bf16.xpose.msra.mxu0 0
    %5018 = vmatprep.subr.bf16.mxu0 0
    %5019 = vmatpush2.bf16.xpose.msra.mxu0 0
    %5020 = vmatprep.subr.bf16.mxu0 0
    %5021 = vmatpush2.bf16.xpose.msra.mxu0 0
    %5022 = vmatprep.subr.bf16.mxu0 0
    %5023 = vmatpush2.bf16.xpose.msra.mxu0 0
    %5024 = vmatprep.subr.bf16.mxu0 0
    %5025 = vmatpush2.bf16.xpose.msra.mxu0 0
    %5026 = vmatprep.mubr.bf16.mxu0 0
    %5027 = vmatmul.mubr.bf16.gmra.mxu0 %v4989
    %v5028 = vpop.f32.mrf.mxu0
    %v5029 = vadd.f32 0.0, %v5028
    %v5030 = vpop.f32.mrf.mxu0
    %v5031 = vpop.f32.mrf.mxu0
    %v5032 = vpop.f32.mrf.mxu0
    %5033 = vdwg.mxu0
    %5034 = vrot.lane.b32.xlu0 %v4936, 64
    %v5035 = vpop.permute.xlu0 %5034
    %v5037 = vsel %vm153, %v4936, 0
    %v5040 = vsel %vm153, %v5035, 0
    %5042 = vmatprep.subr.bf16.mxu0 0
    %5043 = vmatpush1.bf16.xpose.msra.mxu0 0
    %5044 = vmatprep.subr.bf16.mxu0 0
    %5045 = vmatpush1.bf16.xpose.msra.mxu0 0
    %5046 = vmatprep.subr.bf16.mxu0 0
    %5047 = vmatpush1.bf16.xpose.msra.mxu0 0
    %5048 = vmatprep.subr.bf16.mxu0 0
    %5049 = vmatpush1.bf16.xpose.msra.mxu0 0
    %5050 = vmatprep.subr.bf16.mxu0 0
    %5051 = vmatpush1.bf16.xpose.msra.mxu0 0
    %5052 = vmatprep.subr.bf16.mxu0 0
    %5053 = vmatpush1.bf16.xpose.msra.mxu0 0
    %5054 = vmatprep.subr.bf16.mxu0 0
    %5055 = vmatpush1.bf16.xpose.msra.mxu0 0
    %5056 = vmatprep.subr.bf16.mxu0 0
    %5057 = vmatpush1.bf16.xpose.msra.mxu0 %v5040
    %5058 = vmatprep.subr.bf16.mxu0 0
    %5059 = vmatpush2.bf16.xpose.msra.mxu0 0
    %5060 = vmatprep.subr.bf16.mxu0 0
    %5061 = vmatpush2.bf16.xpose.msra.mxu0 0
    %5062 = vmatprep.subr.bf16.mxu0 0
    %5063 = vmatpush2.bf16.xpose.msra.mxu0 0
    %5064 = vmatprep.subr.bf16.mxu0 0
    %5065 = vmatpush2.bf16.xpose.msra.mxu0 0
    %5066 = vmatprep.subr.bf16.mxu0 0
    %5067 = vmatpush2.bf16.xpose.msra.mxu0 0
    %5068 = vmatprep.subr.bf16.mxu0 0
    %5069 = vmatpush2.bf16.xpose.msra.mxu0 0
    %5070 = vmatprep.subr.bf16.mxu0 0
    %5071 = vmatpush2.bf16.xpose.msra.mxu0 0
    %5072 = vmatprep.subr.bf16.mxu0 0
    %5073 = vmatpush2.bf16.xpose.msra.mxu0 0
    %5074 = vmatprep.mubr.bf16.mxu0 0
    %5075 = vmatmul.mubr.bf16.gmra.mxu0 %v5037
    %v5076 = vpop.f32.mrf.mxu0
    %v5077 = vadd.f32 0.0, %v5076
    %v5078 = vpop.f32.mrf.mxu0
    %v5079 = vpop.f32.mrf.mxu0
    %v5080 = vpop.f32.mrf.mxu0
    %5081 = vdwg.mxu0
    %5082 = vrot.lane.b32.xlu0 %v4937, 64
    %v5083 = vpop.permute.xlu0 %5082
    %v5085 = vsel %vm153, %v4937, 0
    %v5088 = vsel %vm153, %v5083, 0
    %5090 = vmatprep.subr.bf16.mxu0 0
    %5091 = vmatpush1.bf16.xpose.msra.mxu0 0
    %5092 = vmatprep.subr.bf16.mxu0 0
    %5093 = vmatpush1.bf16.xpose.msra.mxu0 0
    %5094 = vmatprep.subr.bf16.mxu0 0
    %5095 = vmatpush1.bf16.xpose.msra.mxu0 0
    %5096 = vmatprep.subr.bf16.mxu0 0
    %5097 = vmatpush1.bf16.xpose.msra.mxu0 0
    %5098 = vmatprep.subr.bf16.mxu0 0
    %5099 = vmatpush1.bf16.xpose.msra.mxu0 0
    %5100 = vmatprep.subr.bf16.mxu0 0
    %5101 = vmatpush1.bf16.xpose.msra.mxu0 0
    %5102 = vmatprep.subr.bf16.mxu0 0
    %5103 = vmatpush1.bf16.xpose.msra.mxu0 0
    %5104 = vmatprep.subr.bf16.mxu0 0
    %5105 = vmatpush1.bf16.xpose.msra.mxu0 %v5088
    %5106 = vmatprep.subr.bf16.mxu0 0
    %5107 = vmatpush2.bf16.xpose.msra.mxu0 0
    %5108 = vmatprep.subr.bf16.mxu0 0
    %5109 = vmatpush2.bf16.xpose.msra.mxu0 0
    %5110 = vmatprep.subr.bf16.mxu0 0
    %5111 = vmatpush2.bf16.xpose.msra.mxu0 0
    %5112 = vmatprep.subr.bf16.mxu0 0
    %5113 = vmatpush2.bf16.xpose.msra.mxu0 0
    %5114 = vmatprep.subr.bf16.mxu0 0
    %5115 = vmatpush2.bf16.xpose.msra.mxu0 0
    %5116 = vmatprep.subr.bf16.mxu0 0
    %5117 = vmatpush2.bf16.xpose.msra.mxu0 0
    %5118 = vmatprep.subr.bf16.mxu0 0
    %5119 = vmatpush2.bf16.xpose.msra.mxu0 0
    %5120 = vmatprep.subr.bf16.mxu0 0
    %5121 = vmatpush2.bf16.xpose.msra.mxu0 0
    %5122 = vmatprep.mubr.bf16.mxu0 0
    %5123 = vmatmul.mubr.bf16.gmra.mxu0 %v5085
    %v5124 = vpop.f32.mrf.mxu0
    %v5125 = vadd.f32 0.0, %v5124
    %v5126 = vpop.f32.mrf.mxu0
    %v5127 = vpop.f32.mrf.mxu0
    %v5128 = vpop.f32.mrf.mxu0
    %5129 = vdwg.mxu0
    %v5130 = vsel %vm344, %v4981, -inf
    %5131 = vmax.xlane.f32.xlu0 %v5130
    %v5132 = vpop.xlane.xlu0 %5131
    %v5133 = vsel %vm344, %v5029, -inf
    %5134 = vmax.xlane.f32.xlu0 %v5133
    %v5135 = vpop.xlane.xlu0 %5134
    %v5136 = vsel %vm344, %v5077, -inf
    %5137 = vmax.xlane.f32.xlu0 %v5136
    %v5138 = vpop.xlane.xlu0 %5137
    %v5139 = vsel %vm344, %v5125, -inf
    %5140 = vmax.xlane.f32.xlu0 %v5139
    %v5141 = vpop.xlane.xlu0 %5140
    %v5142 = vsub.f32 %v4981, %v5132
    %v5143 = vsub.f32 %v5029, %v5135
    %v5144 = vsub.f32 %v5077, %v5138
    %v5145 = vsub.f32 %v5125, %v5141
    %v5146 = vmul.f32 %v5142, 1.442695
    %v5147 = vpow.pop %v5146
    %v5148 = vmul.f32 %v5143, 1.442695
    %v5149 = vpow.pop %v5148
    %v5150 = vmul.f32 %v5144, 1.442695
    %v5151 = vpow.pop %v5150
    %v5152 = vmul.f32 %v5145, 1.442695
    %v5153 = vpow.pop %v5152
    %v5154 = vsel %vm344, %v5147, 0.0
    %5155 = vadd.xlane.f32.xlu0 %v5154
    %v5156 = vpop.xlane.xlu0 %5155
    %v5157 = vsel %vm344, %v5149, 0.0
    %5158 = vadd.xlane.f32.xlu0 %v5157
    %v5159 = vpop.xlane.xlu0 %5158
    %v5160 = vsel %vm344, %v5151, 0.0
    %5161 = vadd.xlane.f32.xlu0 %v5160
    %v5162 = vpop.xlane.xlu0 %5161
    %v5163 = vsel %vm344, %v5153, 0.0
    %5164 = vadd.xlane.f32.xlu0 %v5163
    %v5165 = vpop.xlane.xlu0 %5164
    %v5166 = vrcp.pop %v5156
    %v5167 = vrcp.pop %v5159
    %v5168 = vrcp.pop %v5162
    %v5169 = vrcp.pop %v5165
    %v5170 = vmul.f32 %v5147, %v5166
    %v5171 = vmul.f32 %v5149, %v5167
    %v5172 = vmul.f32 %v5151, %v5168
    %v5173 = vmul.f32 %v5153, %v5169
    %v5174 = vpack.c.bf16 %v5170, %v5170
    %v5175 = vpack.c.bf16 %v5171, %v5171
    %v5176 = vpack.c.bf16 %v5172, %v5172
    %v5177 = vpack.c.bf16 %v5173, %v5173
    %s5178 = scalar_lea.vmem %s3, 128
    %v5179 = vld [vmem:[%s5178] sm:$0xf]
    %v5180 = vld [vmem:[%s5178 + $0x4] sm:$0xf]
    %v5181 = vld [vmem:[%s5178 + $0x8] sm:$0xf]
    %v5182 = vld [vmem:[%s5178 + $0xc] sm:$0xf]
    %v5183 = vld [vmem:[%s5178 + $0x10] sm:$0xf]
    %v5184 = vld [vmem:[%s5178 + $0x14] sm:$0xf]
    %v5185 = vld [vmem:[%s5178 + $0x18] sm:$0xf]
    %v5186 = vld [vmem:[%s5178 + $0x1c] sm:$0xf]
    %v5195 = vunpack.c.l.b16 %v5179
    %v5196 = vunpack.c.l.b16 %v5180
    %v5197 = vunpack.c.l.b16 %v5181
    %v5198 = vunpack.c.l.b16 %v5182
    %v5199 = vunpack.c.l.b16 %v5183
    %v5200 = vunpack.c.l.b16 %v5184
    %v5201 = vunpack.c.l.b16 %v5185
    %v5202 = vunpack.c.l.b16 %v5186
    %v5203 = vpack.c.b16 %v5196, %v5195
    %v5204 = vpack.c.b16 %v5198, %v5197
    %v5205 = vpack.c.b16 %v5200, %v5199
    %v5206 = vpack.c.b16 %v5202, %v5201
    %5211 = vmatprep.subr.bf16.mxu0 0
    %5212 = vmatpush1.bf16.msra.mxu0 0
    %5213 = vmatprep.subr.bf16.mxu0 0
    %5214 = vmatpush1.bf16.msra.mxu0 0
    %5215 = vmatprep.subr.bf16.mxu0 0
    %5216 = vmatpush1.bf16.msra.mxu0 0
    %5217 = vmatprep.subr.bf16.mxu0 0
    %5218 = vmatpush1.bf16.msra.mxu0 0
    %5219 = vmatprep.subr.bf16.mxu0 0
    %5220 = vmatpush1.bf16.msra.mxu0 %v5206
    %5221 = vmatprep.subr.bf16.mxu0 0
    %5222 = vmatpush1.bf16.msra.mxu0 %v5205
    %5223 = vmatprep.subr.bf16.mxu0 0
    %5224 = vmatpush1.bf16.msra.mxu0 %v5204
    %5225 = vmatprep.subr.bf16.mxu0 0
    %5226 = vmatpush1.bf16.msra.mxu0 %v5203
    %5227 = vmatprep.subr.bf16.mxu0 0
    %5228 = vmatpush2.bf16.msra.mxu0 0
    %5229 = vmatprep.subr.bf16.mxu0 0
    %5230 = vmatpush2.bf16.msra.mxu0 0
    %5231 = vmatprep.subr.bf16.mxu0 0
    %5232 = vmatpush2.bf16.msra.mxu0 0
    %5233 = vmatprep.subr.bf16.mxu0 0
    %5234 = vmatpush2.bf16.msra.mxu0 0
    %5235 = vmatprep.subr.bf16.mxu0 0
    %5236 = vmatpush2.bf16.msra.mxu0 0
    %5237 = vmatprep.subr.bf16.mxu0 0
    %5238 = vmatpush2.bf16.msra.mxu0 0
    %5239 = vmatprep.subr.bf16.mxu0 0
    %5240 = vmatpush2.bf16.msra.mxu0 0
    %5241 = vmatprep.subr.bf16.mxu0 0
    %5242 = vmatpush2.bf16.msra.mxu0 0
    %5243 = vmatprep.mubr.bf16.mxu0 0
    %5244 = vmatmul.mubr.bf16.gmra.mxu0 %v4872
    %v5245 = vpop.f32.mrf.mxu0
    %v5246 = vadd.f32 0.0, %v5245
    %v5247 = vpop.f32.mrf.mxu0
    %v5248 = vpop.f32.mrf.mxu0
    %v5249 = vadd.f32 0.0, %v5248
    %v5250 = vpop.f32.mrf.mxu0
    %5251 = vmatprep.mubr.bf16.mxu0 0
    %5252 = vmatmul.mubr.bf16.gmra.mxu0 %v4875
    %v5253 = vpop.f32.mrf.mxu0
    %v5254 = vadd.f32 0.0, %v5253
    %v5255 = vpop.f32.mrf.mxu0
    %v5256 = vpop.f32.mrf.mxu0
    %v5257 = vadd.f32 0.0, %v5256
    %v5258 = vpop.f32.mrf.mxu0
    %5259 = vdwg.mxu0
    %v5260 = vpack.c.bf16 %v5249, %v5246
    %v5261 = vpack.c.bf16 %v5257, %v5254
    %v5264 = vunpack.c.l.b16 %v5260
    %v5265 = vunpack.c.h.b16 %v5260
    %v5266 = vunpack.c.l.b16 %v5261
    %v5267 = vunpack.c.h.b16 %v5261
    %v5268 = vpack.c.b16 %v5264, %v5264
    %v5269 = vpack.c.b16 %v5265, %v5265
    %v5270 = vpack.c.b16 %v5266, %v5266
    %v5271 = vpack.c.b16 %v5267, %v5267
    %5272 = vrot.lane.b32.xlu0 %v4934, 112
    %v5273 = vpop.permute.xlu0 %5272
    %5274 = vrot.lane.b32.xlu0 %v4934, 48
    %v5275 = vpop.permute.xlu0 %5274
    %v5277 = vsel %vm153, %v5273, 0
    %v5280 = vsel %vm153, %v5275, 0
    %5282 = vmatprep.subr.bf16.mxu0 0
    %5283 = vmatpush1.bf16.xpose.msra.mxu0 0
    %5284 = vmatprep.subr.bf16.mxu0 0
    %5285 = vmatpush1.bf16.xpose.msra.mxu0 0
    %5286 = vmatprep.subr.bf16.mxu0 0
    %5287 = vmatpush1.bf16.xpose.msra.mxu0 0
    %5288 = vmatprep.subr.bf16.mxu0 0
    %5289 = vmatpush1.bf16.xpose.msra.mxu0 0
    %5290 = vmatprep.subr.bf16.mxu0 0
    %5291 = vmatpush1.bf16.xpose.msra.mxu0 0
    %5292 = vmatprep.subr.bf16.mxu0 0
    %5293 = vmatpush1.bf16.xpose.msra.mxu0 0
    %5294 = vmatprep.subr.bf16.mxu0 0
    %5295 = vmatpush1.bf16.xpose.msra.mxu0 0
    %5296 = vmatprep.subr.bf16.mxu0 0
    %5297 = vmatpush1.bf16.xpose.msra.mxu0 %v5280
    %5298 = vmatprep.subr.bf16.mxu0 0
    %5299 = vmatpush2.bf16.xpose.msra.mxu0 0
    %5300 = vmatprep.subr.bf16.mxu0 0
    %5301 = vmatpush2.bf16.xpose.msra.mxu0 0
    %5302 = vmatprep.subr.bf16.mxu0 0
    %5303 = vmatpush2.bf16.xpose.msra.mxu0 0
    %5304 = vmatprep.subr.bf16.mxu0 0
    %5305 = vmatpush2.bf16.xpose.msra.mxu0 0
    %5306 = vmatprep.subr.bf16.mxu0 0
    %5307 = vmatpush2.bf16.xpose.msra.mxu0 0
    %5308 = vmatprep.subr.bf16.mxu0 0
    %5309 = vmatpush2.bf16.xpose.msra.mxu0 0
    %5310 = vmatprep.subr.bf16.mxu0 0
    %5311 = vmatpush2.bf16.xpose.msra.mxu0 0
    %5312 = vmatprep.subr.bf16.mxu0 0
    %5313 = vmatpush2.bf16.xpose.msra.mxu0 0
    %5314 = vmatprep.mubr.bf16.mxu0 0
    %5315 = vmatmul.mubr.bf16.gmra.mxu0 %v5277
    %v5316 = vpop.f32.mrf.mxu0
    %v5317 = vadd.f32 0.0, %v5316
    %v5318 = vpop.f32.mrf.mxu0
    %v5319 = vpop.f32.mrf.mxu0
    %v5320 = vpop.f32.mrf.mxu0
    %5321 = vdwg.mxu0
    %5322 = vrot.lane.b32.xlu0 %v4935, 112
    %v5323 = vpop.permute.xlu0 %5322
    %5324 = vrot.lane.b32.xlu0 %v4935, 48
    %v5325 = vpop.permute.xlu0 %5324
    %v5327 = vsel %vm153, %v5323, 0
    %v5330 = vsel %vm153, %v5325, 0
    %5332 = vmatprep.subr.bf16.mxu0 0
    %5333 = vmatpush1.bf16.xpose.msra.mxu0 0
    %5334 = vmatprep.subr.bf16.mxu0 0
    %5335 = vmatpush1.bf16.xpose.msra.mxu0 0
    %5336 = vmatprep.subr.bf16.mxu0 0
    %5337 = vmatpush1.bf16.xpose.msra.mxu0 0
    %5338 = vmatprep.subr.bf16.mxu0 0
    %5339 = vmatpush1.bf16.xpose.msra.mxu0 0
    %5340 = vmatprep.subr.bf16.mxu0 0
    %5341 = vmatpush1.bf16.xpose.msra.mxu0 0
    %5342 = vmatprep.subr.bf16.mxu0 0
    %5343 = vmatpush1.bf16.xpose.msra.mxu0 0
    %5344 = vmatprep.subr.bf16.mxu0 0
    %5345 = vmatpush1.bf16.xpose.msra.mxu0 0
    %5346 = vmatprep.subr.bf16.mxu0 0
    %5347 = vmatpush1.bf16.xpose.msra.mxu0 %v5330
    %5348 = vmatprep.subr.bf16.mxu0 0
    %5349 = vmatpush2.bf16.xpose.msra.mxu0 0
    %5350 = vmatprep.subr.bf16.mxu0 0
    %5351 = vmatpush2.bf16.xpose.msra.mxu0 0
    %5352 = vmatprep.subr.bf16.mxu0 0
    %5353 = vmatpush2.bf16.xpose.msra.mxu0 0
    %5354 = vmatprep.subr.bf16.mxu0 0
    %5355 = vmatpush2.bf16.xpose.msra.mxu0 0
    %5356 = vmatprep.subr.bf16.mxu0 0
    %5357 = vmatpush2.bf16.xpose.msra.mxu0 0
    %5358 = vmatprep.subr.bf16.mxu0 0
    %5359 = vmatpush2.bf16.xpose.msra.mxu0 0
    %5360 = vmatprep.subr.bf16.mxu0 0
    %5361 = vmatpush2.bf16.xpose.msra.mxu0 0
    %5362 = vmatprep.subr.bf16.mxu0 0
    %5363 = vmatpush2.bf16.xpose.msra.mxu0 0
    %5364 = vmatprep.mubr.bf16.mxu0 0
    %5365 = vmatmul.mubr.bf16.gmra.mxu0 %v5327
    %v5366 = vpop.f32.mrf.mxu0
    %v5367 = vadd.f32 0.0, %v5366
    %v5368 = vpop.f32.mrf.mxu0
    %v5369 = vpop.f32.mrf.mxu0
    %v5370 = vpop.f32.mrf.mxu0
    %5371 = vdwg.mxu0
    %5372 = vrot.lane.b32.xlu0 %v4936, 112
    %v5373 = vpop.permute.xlu0 %5372
    %5374 = vrot.lane.b32.xlu0 %v4936, 48
    %v5375 = vpop.permute.xlu0 %5374
    %v5377 = vsel %vm153, %v5373, 0
    %v5380 = vsel %vm153, %v5375, 0
    %5382 = vmatprep.subr.bf16.mxu0 0
    %5383 = vmatpush1.bf16.xpose.msra.mxu0 0
    %5384 = vmatprep.subr.bf16.mxu0 0
    %5385 = vmatpush1.bf16.xpose.msra.mxu0 0
    %5386 = vmatprep.subr.bf16.mxu0 0
    %5387 = vmatpush1.bf16.xpose.msra.mxu0 0
    %5388 = vmatprep.subr.bf16.mxu0 0
    %5389 = vmatpush1.bf16.xpose.msra.mxu0 0
    %5390 = vmatprep.subr.bf16.mxu0 0
    %5391 = vmatpush1.bf16.xpose.msra.mxu0 0
    %5392 = vmatprep.subr.bf16.mxu0 0
    %5393 = vmatpush1.bf16.xpose.msra.mxu0 0
    %5394 = vmatprep.subr.bf16.mxu0 0
    %5395 = vmatpush1.bf16.xpose.msra.mxu0 0
    %5396 = vmatprep.subr.bf16.mxu0 0
    %5397 = vmatpush1.bf16.xpose.msra.mxu0 %v5380
    %5398 = vmatprep.subr.bf16.mxu0 0
    %5399 = vmatpush2.bf16.xpose.msra.mxu0 0
    %5400 = vmatprep.subr.bf16.mxu0 0
    %5401 = vmatpush2.bf16.xpose.msra.mxu0 0
    %5402 = vmatprep.subr.bf16.mxu0 0
    %5403 = vmatpush2.bf16.xpose.msra.mxu0 0
    %5404 = vmatprep.subr.bf16.mxu0 0
    %5405 = vmatpush2.bf16.xpose.msra.mxu0 0
    %5406 = vmatprep.subr.bf16.mxu0 0
    %5407 = vmatpush2.bf16.xpose.msra.mxu0 0
    %5408 = vmatprep.subr.bf16.mxu0 0
    %5409 = vmatpush2.bf16.xpose.msra.mxu0 0
    %5410 = vmatprep.subr.bf16.mxu0 0
    %5411 = vmatpush2.bf16.xpose.msra.mxu0 0
    %5412 = vmatprep.subr.bf16.mxu0 0
    %5413 = vmatpush2.bf16.xpose.msra.mxu0 0
    %5414 = vmatprep.mubr.bf16.mxu0 0
    %5415 = vmatmul.mubr.bf16.gmra.mxu0 %v5377
    %v5416 = vpop.f32.mrf.mxu0
    %v5417 = vadd.f32 0.0, %v5416
    %v5418 = vpop.f32.mrf.mxu0
    %v5419 = vpop.f32.mrf.mxu0
    %v5420 = vpop.f32.mrf.mxu0
    %5421 = vdwg.mxu0
    %5422 = vrot.lane.b32.xlu0 %v4937, 112
    %v5423 = vpop.permute.xlu0 %5422
    %5424 = vrot.lane.b32.xlu0 %v4937, 48
    %v5425 = vpop.permute.xlu0 %5424
    %v5427 = vsel %vm153, %v5423, 0
    %v5430 = vsel %vm153, %v5425, 0
    %5432 = vmatprep.subr.bf16.mxu0 0
    %5433 = vmatpush1.bf16.xpose.msra.mxu0 0
    %5434 = vmatprep.subr.bf16.mxu0 0
    %5435 = vmatpush1.bf16.xpose.msra.mxu0 0
    %5436 = vmatprep.subr.bf16.mxu0 0
    %5437 = vmatpush1.bf16.xpose.msra.mxu0 0
    %5438 = vmatprep.subr.bf16.mxu0 0
    %5439 = vmatpush1.bf16.xpose.msra.mxu0 0
    %5440 = vmatprep.subr.bf16.mxu0 0
    %5441 = vmatpush1.bf16.xpose.msra.mxu0 0
    %5442 = vmatprep.subr.bf16.mxu0 0
    %5443 = vmatpush1.bf16.xpose.msra.mxu0 0
    %5444 = vmatprep.subr.bf16.mxu0 0
    %5445 = vmatpush1.bf16.xpose.msra.mxu0 0
    %5446 = vmatprep.subr.bf16.mxu0 0
    %5447 = vmatpush1.bf16.xpose.msra.mxu0 %v5430
    %5448 = vmatprep.subr.bf16.mxu0 0
    %5449 = vmatpush2.bf16.xpose.msra.mxu0 0
    %5450 = vmatprep.subr.bf16.mxu0 0
    %5451 = vmatpush2.bf16.xpose.msra.mxu0 0
    %5452 = vmatprep.subr.bf16.mxu0 0
    %5453 = vmatpush2.bf16.xpose.msra.mxu0 0
    %5454 = vmatprep.subr.bf16.mxu0 0
    %5455 = vmatpush2.bf16.xpose.msra.mxu0 0
    %5456 = vmatprep.subr.bf16.mxu0 0
    %5457 = vmatpush2.bf16.xpose.msra.mxu0 0
    %5458 = vmatprep.subr.bf16.mxu0 0
    %5459 = vmatpush2.bf16.xpose.msra.mxu0 0
    %5460 = vmatprep.subr.bf16.mxu0 0
    %5461 = vmatpush2.bf16.xpose.msra.mxu0 0
    %5462 = vmatprep.subr.bf16.mxu0 0
    %5463 = vmatpush2.bf16.xpose.msra.mxu0 0
    %5464 = vmatprep.mubr.bf16.mxu0 0
    %5465 = vmatmul.mubr.bf16.gmra.mxu0 %v5427
    %v5466 = vpop.f32.mrf.mxu0
    %v5467 = vadd.f32 0.0, %v5466
    %v5468 = vpop.f32.mrf.mxu0
    %v5469 = vpop.f32.mrf.mxu0
    %v5470 = vpop.f32.mrf.mxu0
    %5471 = vdwg.mxu0
    %v5472 = vsel %vm344, %v5317, -inf
    %5473 = vmax.xlane.f32.xlu0 %v5472
    %v5474 = vpop.xlane.xlu0 %5473
    %v5475 = vsel %vm344, %v5367, -inf
    %5476 = vmax.xlane.f32.xlu0 %v5475
    %v5477 = vpop.xlane.xlu0 %5476
    %v5478 = vsel %vm344, %v5417, -inf
    %5479 = vmax.xlane.f32.xlu0 %v5478
    %v5480 = vpop.xlane.xlu0 %5479
    %v5481 = vsel %vm344, %v5467, -inf
    %5482 = vmax.xlane.f32.xlu0 %v5481
    %v5483 = vpop.xlane.xlu0 %5482
    %v5484 = vsub.f32 %v5317, %v5474
    %v5485 = vsub.f32 %v5367, %v5477
    %v5486 = vsub.f32 %v5417, %v5480
    %v5487 = vsub.f32 %v5467, %v5483
    %v5488 = vmul.f32 %v5484, 1.442695
    %v5489 = vpow.pop %v5488
    %v5490 = vmul.f32 %v5485, 1.442695
    %v5491 = vpow.pop %v5490
    %v5492 = vmul.f32 %v5486, 1.442695
    %v5493 = vpow.pop %v5492
    %v5494 = vmul.f32 %v5487, 1.442695
    %v5495 = vpow.pop %v5494
    %v5496 = vsel %vm344, %v5489, 0.0
    %5497 = vadd.xlane.f32.xlu0 %v5496
    %v5498 = vpop.xlane.xlu0 %5497
    %v5499 = vsel %vm344, %v5491, 0.0
    %5500 = vadd.xlane.f32.xlu0 %v5499
    %v5501 = vpop.xlane.xlu0 %5500
    %v5502 = vsel %vm344, %v5493, 0.0
    %5503 = vadd.xlane.f32.xlu0 %v5502
    %v5504 = vpop.xlane.xlu0 %5503
    %v5505 = vsel %vm344, %v5495, 0.0
    %5506 = vadd.xlane.f32.xlu0 %v5505
    %v5507 = vpop.xlane.xlu0 %5506
    %v5508 = vrcp.pop %v5498
    %v5509 = vrcp.pop %v5501
    %v5510 = vrcp.pop %v5504
    %v5511 = vrcp.pop %v5507
    %v5512 = vmul.f32 %v5489, %v5508
    %v5513 = vmul.f32 %v5491, %v5509
    %v5514 = vmul.f32 %v5493, %v5510
    %v5515 = vmul.f32 %v5495, %v5511
    %v5516 = vpack.c.bf16 %v5512, %v5512
    %v5517 = vpack.c.bf16 %v5513, %v5513
    %v5518 = vpack.c.bf16 %v5514, %v5514
    %v5519 = vpack.c.bf16 %v5515, %v5515
    %s5520 = scalar_lea.vmem %s3, 160
    %v5521 = vld [vmem:[%s5520] sm:$0xf]
    %v5522 = vld [vmem:[%s5520 + $0x4] sm:$0xf]
    %v5523 = vld [vmem:[%s5520 + $0x8] sm:$0xf]
    %v5524 = vld [vmem:[%s5520 + $0xc] sm:$0xf]
    %v5525 = vld [vmem:[%s5520 + $0x10] sm:$0xf]
    %v5526 = vld [vmem:[%s5520 + $0x14] sm:$0xf]
    %v5527 = vld [vmem:[%s5520 + $0x18] sm:$0xf]
    %v5528 = vld [vmem:[%s5520 + $0x1c] sm:$0xf]
    %v5537 = vunpack.c.l.b16 %v5521
    %v5538 = vunpack.c.l.b16 %v5522
    %v5539 = vunpack.c.l.b16 %v5523
    %v5540 = vunpack.c.l.b16 %v5524
    %v5541 = vunpack.c.l.b16 %v5525
    %v5542 = vunpack.c.l.b16 %v5526
    %v5543 = vunpack.c.l.b16 %v5527
    %v5544 = vunpack.c.l.b16 %v5528
    %v5545 = vpack.c.b16 %v5538, %v5537
    %v5546 = vpack.c.b16 %v5540, %v5539
    %v5547 = vpack.c.b16 %v5542, %v5541
    %v5548 = vpack.c.b16 %v5544, %v5543
    %5553 = vmatprep.subr.bf16.mxu0 0
    %5554 = vmatpush1.bf16.msra.mxu0 0
    %5555 = vmatprep.subr.bf16.mxu0 0
    %5556 = vmatpush1.bf16.msra.mxu0 0
    %5557 = vmatprep.subr.bf16.mxu0 0
    %5558 = vmatpush1.bf16.msra.mxu0 0
    %5559 = vmatprep.subr.bf16.mxu0 0
    %5560 = vmatpush1.bf16.msra.mxu0 0
    %5561 = vmatprep.subr.bf16.mxu0 0
    %5562 = vmatpush1.bf16.msra.mxu0 %v5548
    %5563 = vmatprep.subr.bf16.mxu0 0
    %5564 = vmatpush1.bf16.msra.mxu0 %v5547
    %5565 = vmatprep.subr.bf16.mxu0 0
    %5566 = vmatpush1.bf16.msra.mxu0 %v5546
    %5567 = vmatprep.subr.bf16.mxu0 0
    %5568 = vmatpush1.bf16.msra.mxu0 %v5545
    %5569 = vmatprep.subr.bf16.mxu0 0
    %5570 = vmatpush2.bf16.msra.mxu0 0
    %5571 = vmatprep.subr.bf16.mxu0 0
    %5572 = vmatpush2.bf16.msra.mxu0 0
    %5573 = vmatprep.subr.bf16.mxu0 0
    %5574 = vmatpush2.bf16.msra.mxu0 0
    %5575 = vmatprep.subr.bf16.mxu0 0
    %5576 = vmatpush2.bf16.msra.mxu0 0
    %5577 = vmatprep.subr.bf16.mxu0 0
    %5578 = vmatpush2.bf16.msra.mxu0 0
    %5579 = vmatprep.subr.bf16.mxu0 0
    %5580 = vmatpush2.bf16.msra.mxu0 0
    %5581 = vmatprep.subr.bf16.mxu0 0
    %5582 = vmatpush2.bf16.msra.mxu0 0
    %5583 = vmatprep.subr.bf16.mxu0 0
    %5584 = vmatpush2.bf16.msra.mxu0 0
    %5585 = vmatprep.mubr.bf16.mxu0 0
    %5586 = vmatmul.mubr.bf16.gmra.mxu0 %v4872
    %v5587 = vpop.f32.mrf.mxu0
    %v5588 = vadd.f32 0.0, %v5587
    %v5589 = vpop.f32.mrf.mxu0
    %v5590 = vpop.f32.mrf.mxu0
    %v5591 = vadd.f32 0.0, %v5590
    %v5592 = vpop.f32.mrf.mxu0
    %5593 = vmatprep.mubr.bf16.mxu0 0
    %5594 = vmatmul.mubr.bf16.gmra.mxu0 %v4875
    %v5595 = vpop.f32.mrf.mxu0
    %v5596 = vadd.f32 0.0, %v5595
    %v5597 = vpop.f32.mrf.mxu0
    %v5598 = vpop.f32.mrf.mxu0
    %v5599 = vadd.f32 0.0, %v5598
    %v5600 = vpop.f32.mrf.mxu0
    %5601 = vdwg.mxu0
    %v5602 = vpack.c.bf16 %v5591, %v5588
    %v5603 = vpack.c.bf16 %v5599, %v5596
    %v5606 = vunpack.c.l.b16 %v5602
    %v5607 = vunpack.c.h.b16 %v5602
    %v5608 = vunpack.c.l.b16 %v5603
    %v5609 = vunpack.c.h.b16 %v5603
    %v5610 = vpack.c.b16 %v5606, %v5606
    %v5611 = vpack.c.b16 %v5607, %v5607
    %v5612 = vpack.c.b16 %v5608, %v5608
    %v5613 = vpack.c.b16 %v5609, %v5609
    %v5615 = vsel %vm344, %v5516, 0
    %v5618 = vsel %vm831, %v5610, 0
    %5620 = vmatprep.subr.bf16.mxu0 0
    %5621 = vmatpush1.bf16.msra.mxu0 0
    %5622 = vmatprep.subr.bf16.mxu0 0
    %5623 = vmatpush1.bf16.msra.mxu0 0
    %5624 = vmatprep.subr.bf16.mxu0 0
    %5625 = vmatpush1.bf16.msra.mxu0 0
    %5626 = vmatprep.subr.bf16.mxu0 0
    %5627 = vmatpush1.bf16.msra.mxu0 0
    %5628 = vmatprep.subr.bf16.mxu0 0
    %5629 = vmatpush1.bf16.msra.mxu0 0
    %5630 = vmatprep.subr.bf16.mxu0 0
    %5631 = vmatpush1.bf16.msra.mxu0 0
    %5632 = vmatprep.subr.bf16.mxu0 0
    %5633 = vmatpush1.bf16.msra.mxu0 0
    %5634 = vmatprep.subr.bf16.mxu0 0
    %5635 = vmatpush1.bf16.msra.mxu0 %v5618
    %5636 = vmatprep.subr.bf16.mxu0 0
    %5637 = vmatpush2.bf16.msra.mxu0 0
    %5638 = vmatprep.subr.bf16.mxu0 0
    %5639 = vmatpush2.bf16.msra.mxu0 0
    %5640 = vmatprep.subr.bf16.mxu0 0
    %5641 = vmatpush2.bf16.msra.mxu0 0
    %5642 = vmatprep.subr.bf16.mxu0 0
    %5643 = vmatpush2.bf16.msra.mxu0 0
    %5644 = vmatprep.subr.bf16.mxu0 0
    %5645 = vmatpush2.bf16.msra.mxu0 0
    %5646 = vmatprep.subr.bf16.mxu0 0
    %5647 = vmatpush2.bf16.msra.mxu0 0
    %5648 = vmatprep.subr.bf16.mxu0 0
    %5649 = vmatpush2.bf16.msra.mxu0 0
    %5650 = vmatprep.subr.bf16.mxu0 0
    %5651 = vmatpush2.bf16.msra.mxu0 0
    %5652 = vmatprep.mubr.bf16.mxu0 0
    %5653 = vmatmul.mubr.bf16.gmra.mxu0 %v5615
    %v5654 = vpop.f32.mrf.mxu0
    %v5655 = vadd.f32 0.0, %v5654
    %v5656 = vpop.f32.mrf.mxu0
    %v5657 = vpop.f32.mrf.mxu0
    %v5658 = vpop.f32.mrf.mxu0
    %5659 = vdwg.mxu0
    %v5661 = vsel %vm344, %v5517, 0
    %v5664 = vsel %vm831, %v5611, 0
    %5666 = vmatprep.subr.bf16.mxu0 0
    %5667 = vmatpush1.bf16.msra.mxu0 0
    %5668 = vmatprep.subr.bf16.mxu0 0
    %5669 = vmatpush1.bf16.msra.mxu0 0
    %5670 = vmatprep.subr.bf16.mxu0 0
    %5671 = vmatpush1.bf16.msra.mxu0 0
    %5672 = vmatprep.subr.bf16.mxu0 0
    %5673 = vmatpush1.bf16.msra.mxu0 0
    %5674 = vmatprep.subr.bf16.mxu0 0
    %5675 = vmatpush1.bf16.msra.mxu0 0
    %5676 = vmatprep.subr.bf16.mxu0 0
    %5677 = vmatpush1.bf16.msra.mxu0 0
    %5678 = vmatprep.subr.bf16.mxu0 0
    %5679 = vmatpush1.bf16.msra.mxu0 0
    %5680 = vmatprep.subr.bf16.mxu0 0
    %5681 = vmatpush1.bf16.msra.mxu0 %v5664
    %5682 = vmatprep.subr.bf16.mxu0 0
    %5683 = vmatpush2.bf16.msra.mxu0 0
    %5684 = vmatprep.subr.bf16.mxu0 0
    %5685 = vmatpush2.bf16.msra.mxu0 0
    %5686 = vmatprep.subr.bf16.mxu0 0
    %5687 = vmatpush2.bf16.msra.mxu0 0
    %5688 = vmatprep.subr.bf16.mxu0 0
    %5689 = vmatpush2.bf16.msra.mxu0 0
    %5690 = vmatprep.subr.bf16.mxu0 0
    %5691 = vmatpush2.bf16.msra.mxu0 0
    %5692 = vmatprep.subr.bf16.mxu0 0
    %5693 = vmatpush2.bf16.msra.mxu0 0
    %5694 = vmatprep.subr.bf16.mxu0 0
    %5695 = vmatpush2.bf16.msra.mxu0 0
    %5696 = vmatprep.subr.bf16.mxu0 0
    %5697 = vmatpush2.bf16.msra.mxu0 0
    %5698 = vmatprep.mubr.bf16.mxu0 0
    %5699 = vmatmul.mubr.bf16.gmra.mxu0 %v5661
    %v5700 = vpop.f32.mrf.mxu0
    %v5701 = vadd.f32 0.0, %v5700
    %v5702 = vpop.f32.mrf.mxu0
    %v5703 = vpop.f32.mrf.mxu0
    %v5704 = vpop.f32.mrf.mxu0
    %5705 = vdwg.mxu0
    %v5707 = vsel %vm344, %v5518, 0
    %v5710 = vsel %vm831, %v5612, 0
    %5712 = vmatprep.subr.bf16.mxu0 0
    %5713 = vmatpush1.bf16.msra.mxu0 0
    %5714 = vmatprep.subr.bf16.mxu0 0
    %5715 = vmatpush1.bf16.msra.mxu0 0
    %5716 = vmatprep.subr.bf16.mxu0 0
    %5717 = vmatpush1.bf16.msra.mxu0 0
    %5718 = vmatprep.subr.bf16.mxu0 0
    %5719 = vmatpush1.bf16.msra.mxu0 0
    %5720 = vmatprep.subr.bf16.mxu0 0
    %5721 = vmatpush1.bf16.msra.mxu0 0
    %5722 = vmatprep.subr.bf16.mxu0 0
    %5723 = vmatpush1.bf16.msra.mxu0 0
    %5724 = vmatprep.subr.bf16.mxu0 0
    %5725 = vmatpush1.bf16.msra.mxu0 0
    %5726 = vmatprep.subr.bf16.mxu0 0
    %5727 = vmatpush1.bf16.msra.mxu0 %v5710
    %5728 = vmatprep.subr.bf16.mxu0 0
    %5729 = vmatpush2.bf16.msra.mxu0 0
    %5730 = vmatprep.subr.bf16.mxu0 0
    %5731 = vmatpush2.bf16.msra.mxu0 0
    %5732 = vmatprep.subr.bf16.mxu0 0
    %5733 = vmatpush2.bf16.msra.mxu0 0
    %5734 = vmatprep.subr.bf16.mxu0 0
    %5735 = vmatpush2.bf16.msra.mxu0 0
    %5736 = vmatprep.subr.bf16.mxu0 0
    %5737 = vmatpush2.bf16.msra.mxu0 0
    %5738 = vmatprep.subr.bf16.mxu0 0
    %5739 = vmatpush2.bf16.msra.mxu0 0
    %5740 = vmatprep.subr.bf16.mxu0 0
    %5741 = vmatpush2.bf16.msra.mxu0 0
    %5742 = vmatprep.subr.bf16.mxu0 0
    %5743 = vmatpush2.bf16.msra.mxu0 0
    %5744 = vmatprep.mubr.bf16.mxu0 0
    %5745 = vmatmul.mubr.bf16.gmra.mxu0 %v5707
    %v5746 = vpop.f32.mrf.mxu0
    %v5747 = vadd.f32 0.0, %v5746
    %v5748 = vpop.f32.mrf.mxu0
    %v5749 = vpop.f32.mrf.mxu0
    %v5750 = vpop.f32.mrf.mxu0
    %5751 = vdwg.mxu0
    %v5753 = vsel %vm344, %v5519, 0
    %v5756 = vsel %vm831, %v5613, 0
    %5758 = vmatprep.subr.bf16.mxu0 0
    %5759 = vmatpush1.bf16.msra.mxu0 0
    %5760 = vmatprep.subr.bf16.mxu0 0
    %5761 = vmatpush1.bf16.msra.mxu0 0
    %5762 = vmatprep.subr.bf16.mxu0 0
    %5763 = vmatpush1.bf16.msra.mxu0 0
    %5764 = vmatprep.subr.bf16.mxu0 0
    %5765 = vmatpush1.bf16.msra.mxu0 0
    %5766 = vmatprep.subr.bf16.mxu0 0
    %5767 = vmatpush1.bf16.msra.mxu0 0
    %5768 = vmatprep.subr.bf16.mxu0 0
    %5769 = vmatpush1.bf16.msra.mxu0 0
    %5770 = vmatprep.subr.bf16.mxu0 0
    %5771 = vmatpush1.bf16.msra.mxu0 0
    %5772 = vmatprep.subr.bf16.mxu0 0
    %5773 = vmatpush1.bf16.msra.mxu0 %v5756
    %5774 = vmatprep.subr.bf16.mxu0 0
    %5775 = vmatpush2.bf16.msra.mxu0 0
    %5776 = vmatprep.subr.bf16.mxu0 0
    %5777 = vmatpush2.bf16.msra.mxu0 0
    %5778 = vmatprep.subr.bf16.mxu0 0
    %5779 = vmatpush2.bf16.msra.mxu0 0
    %5780 = vmatprep.subr.bf16.mxu0 0
    %5781 = vmatpush2.bf16.msra.mxu0 0
    %5782 = vmatprep.subr.bf16.mxu0 0
    %5783 = vmatpush2.bf16.msra.mxu0 0
    %5784 = vmatprep.subr.bf16.mxu0 0
    %5785 = vmatpush2.bf16.msra.mxu0 0
    %5786 = vmatprep.subr.bf16.mxu0 0
    %5787 = vmatpush2.bf16.msra.mxu0 0
    %5788 = vmatprep.subr.bf16.mxu0 0
    %5789 = vmatpush2.bf16.msra.mxu0 0
    %5790 = vmatprep.mubr.bf16.mxu0 0
    %5791 = vmatmul.mubr.bf16.gmra.mxu0 %v5753
    %v5792 = vpop.f32.mrf.mxu0
    %v5793 = vadd.f32 0.0, %v5792
    %v5794 = vpop.f32.mrf.mxu0
    %v5795 = vpop.f32.mrf.mxu0
    %v5796 = vpop.f32.mrf.mxu0
    %5797 = vdwg.mxu0
    %v5799 = vsel %vm344, %v5174, 0
    %v5802 = vsel %vm831, %v5268, 0
    %5804 = vmatprep.subr.bf16.mxu0 0
    %5805 = vmatpush1.bf16.msra.mxu0 0
    %5806 = vmatprep.subr.bf16.mxu0 0
    %5807 = vmatpush1.bf16.msra.mxu0 0
    %5808 = vmatprep.subr.bf16.mxu0 0
    %5809 = vmatpush1.bf16.msra.mxu0 0
    %5810 = vmatprep.subr.bf16.mxu0 0
    %5811 = vmatpush1.bf16.msra.mxu0 0
    %5812 = vmatprep.subr.bf16.mxu0 0
    %5813 = vmatpush1.bf16.msra.mxu0 0
    %5814 = vmatprep.subr.bf16.mxu0 0
    %5815 = vmatpush1.bf16.msra.mxu0 0
    %5816 = vmatprep.subr.bf16.mxu0 0
    %5817 = vmatpush1.bf16.msra.mxu0 0
    %5818 = vmatprep.subr.bf16.mxu0 0
    %5819 = vmatpush1.bf16.msra.mxu0 %v5802
    %5820 = vmatprep.subr.bf16.mxu0 0
    %5821 = vmatpush2.bf16.msra.mxu0 0
    %5822 = vmatprep.subr.bf16.mxu0 0
    %5823 = vmatpush2.bf16.msra.mxu0 0
    %5824 = vmatprep.subr.bf16.mxu0 0
    %5825 = vmatpush2.bf16.msra.mxu0 0
    %5826 = vmatprep.subr.bf16.mxu0 0
    %5827 = vmatpush2.bf16.msra.mxu0 0
    %5828 = vmatprep.subr.bf16.mxu0 0
    %5829 = vmatpush2.bf16.msra.mxu0 0
    %5830 = vmatprep.subr.bf16.mxu0 0
    %5831 = vmatpush2.bf16.msra.mxu0 0
    %5832 = vmatprep.subr.bf16.mxu0 0
    %5833 = vmatpush2.bf16.msra.mxu0 0
    %5834 = vmatprep.subr.bf16.mxu0 0
    %5835 = vmatpush2.bf16.msra.mxu0 0
    %5836 = vmatprep.mubr.bf16.mxu0 0
    %5837 = vmatmul.mubr.bf16.gmra.mxu0 %v5799
    %v5838 = vpop.f32.mrf.mxu0
    %v5839 = vadd.f32 %v5655, %v5838
    %v5840 = vpop.f32.mrf.mxu0
    %v5841 = vpop.f32.mrf.mxu0
    %v5842 = vpop.f32.mrf.mxu0
    %5843 = vdwg.mxu0
    %v5845 = vsel %vm344, %v5175, 0
    %v5848 = vsel %vm831, %v5269, 0
    %5850 = vmatprep.subr.bf16.mxu0 0
    %5851 = vmatpush1.bf16.msra.mxu0 0
    %5852 = vmatprep.subr.bf16.mxu0 0
    %5853 = vmatpush1.bf16.msra.mxu0 0
    %5854 = vmatprep.subr.bf16.mxu0 0
    %5855 = vmatpush1.bf16.msra.mxu0 0
    %5856 = vmatprep.subr.bf16.mxu0 0
    %5857 = vmatpush1.bf16.msra.mxu0 0
    %5858 = vmatprep.subr.bf16.mxu0 0
    %5859 = vmatpush1.bf16.msra.mxu0 0
    %5860 = vmatprep.subr.bf16.mxu0 0
    %5861 = vmatpush1.bf16.msra.mxu0 0
    %5862 = vmatprep.subr.bf16.mxu0 0
    %5863 = vmatpush1.bf16.msra.mxu0 0
    %5864 = vmatprep.subr.bf16.mxu0 0
    %5865 = vmatpush1.bf16.msra.mxu0 %v5848
    %5866 = vmatprep.subr.bf16.mxu0 0
    %5867 = vmatpush2.bf16.msra.mxu0 0
    %5868 = vmatprep.subr.bf16.mxu0 0
    %5869 = vmatpush2.bf16.msra.mxu0 0
    %5870 = vmatprep.subr.bf16.mxu0 0
    %5871 = vmatpush2.bf16.msra.mxu0 0
    %5872 = vmatprep.subr.bf16.mxu0 0
    %5873 = vmatpush2.bf16.msra.mxu0 0
    %5874 = vmatprep.subr.bf16.mxu0 0
    %5875 = vmatpush2.bf16.msra.mxu0 0
    %5876 = vmatprep.subr.bf16.mxu0 0
    %5877 = vmatpush2.bf16.msra.mxu0 0
    %5878 = vmatprep.subr.bf16.mxu0 0
    %5879 = vmatpush2.bf16.msra.mxu0 0
    %5880 = vmatprep.subr.bf16.mxu0 0
    %5881 = vmatpush2.bf16.msra.mxu0 0
    %5882 = vmatprep.mubr.bf16.mxu0 0
    %5883 = vmatmul.mubr.bf16.gmra.mxu0 %v5845
    %v5884 = vpop.f32.mrf.mxu0
    %v5885 = vadd.f32 %v5701, %v5884
    %v5886 = vpop.f32.mrf.mxu0
    %v5887 = vpop.f32.mrf.mxu0
    %v5888 = vpop.f32.mrf.mxu0
    %5889 = vdwg.mxu0
    %v5891 = vsel %vm344, %v5176, 0
    %v5894 = vsel %vm831, %v5270, 0
    %5896 = vmatprep.subr.bf16.mxu0 0
    %5897 = vmatpush1.bf16.msra.mxu0 0
    %5898 = vmatprep.subr.bf16.mxu0 0
    %5899 = vmatpush1.bf16.msra.mxu0 0
    %5900 = vmatprep.subr.bf16.mxu0 0
    %5901 = vmatpush1.bf16.msra.mxu0 0
    %5902 = vmatprep.subr.bf16.mxu0 0
    %5903 = vmatpush1.bf16.msra.mxu0 0
    %5904 = vmatprep.subr.bf16.mxu0 0
    %5905 = vmatpush1.bf16.msra.mxu0 0
    %5906 = vmatprep.subr.bf16.mxu0 0
    %5907 = vmatpush1.bf16.msra.mxu0 0
    %5908 = vmatprep.subr.bf16.mxu0 0
    %5909 = vmatpush1.bf16.msra.mxu0 0
    %5910 = vmatprep.subr.bf16.mxu0 0
    %5911 = vmatpush1.bf16.msra.mxu0 %v5894
    %5912 = vmatprep.subr.bf16.mxu0 0
    %5913 = vmatpush2.bf16.msra.mxu0 0
    %5914 = vmatprep.subr.bf16.mxu0 0
    %5915 = vmatpush2.bf16.msra.mxu0 0
    %5916 = vmatprep.subr.bf16.mxu0 0
    %5917 = vmatpush2.bf16.msra.mxu0 0
    %5918 = vmatprep.subr.bf16.mxu0 0
    %5919 = vmatpush2.bf16.msra.mxu0 0
    %5920 = vmatprep.subr.bf16.mxu0 0
    %5921 = vmatpush2.bf16.msra.mxu0 0
    %5922 = vmatprep.subr.bf16.mxu0 0
    %5923 = vmatpush2.bf16.msra.mxu0 0
    %5924 = vmatprep.subr.bf16.mxu0 0
    %5925 = vmatpush2.bf16.msra.mxu0 0
    %5926 = vmatprep.subr.bf16.mxu0 0
    %5927 = vmatpush2.bf16.msra.mxu0 0
    %5928 = vmatprep.mubr.bf16.mxu0 0
    %5929 = vmatmul.mubr.bf16.gmra.mxu0 %v5891
    %v5930 = vpop.f32.mrf.mxu0
    %v5931 = vadd.f32 %v5747, %v5930
    %v5932 = vpop.f32.mrf.mxu0
    %v5933 = vpop.f32.mrf.mxu0
    %v5934 = vpop.f32.mrf.mxu0
    %5935 = vdwg.mxu0
    %v5937 = vsel %vm344, %v5177, 0
    %v5940 = vsel %vm831, %v5271, 0
    %5942 = vmatprep.subr.bf16.mxu0 0
    %5943 = vmatpush1.bf16.msra.mxu0 0
    %5944 = vmatprep.subr.bf16.mxu0 0
    %5945 = vmatpush1.bf16.msra.mxu0 0
    %5946 = vmatprep.subr.bf16.mxu0 0
    %5947 = vmatpush1.bf16.msra.mxu0 0
    %5948 = vmatprep.subr.bf16.mxu0 0
    %5949 = vmatpush1.bf16.msra.mxu0 0
    %5950 = vmatprep.subr.bf16.mxu0 0
    %5951 = vmatpush1.bf16.msra.mxu0 0
    %5952 = vmatprep.subr.bf16.mxu0 0
    %5953 = vmatpush1.bf16.msra.mxu0 0
    %5954 = vmatprep.subr.bf16.mxu0 0
    %5955 = vmatpush1.bf16.msra.mxu0 0
    %5956 = vmatprep.subr.bf16.mxu0 0
    %5957 = vmatpush1.bf16.msra.mxu0 %v5940
    %5958 = vmatprep.subr.bf16.mxu0 0
    %5959 = vmatpush2.bf16.msra.mxu0 0
    %5960 = vmatprep.subr.bf16.mxu0 0
    %5961 = vmatpush2.bf16.msra.mxu0 0
    %5962 = vmatprep.subr.bf16.mxu0 0
    %5963 = vmatpush2.bf16.msra.mxu0 0
    %5964 = vmatprep.subr.bf16.mxu0 0
    %5965 = vmatpush2.bf16.msra.mxu0 0
    %5966 = vmatprep.subr.bf16.mxu0 0
    %5967 = vmatpush2.bf16.msra.mxu0 0
    %5968 = vmatprep.subr.bf16.mxu0 0
    %5969 = vmatpush2.bf16.msra.mxu0 0
    %5970 = vmatprep.subr.bf16.mxu0 0
    %5971 = vmatpush2.bf16.msra.mxu0 0
    %5972 = vmatprep.subr.bf16.mxu0 0
    %5973 = vmatpush2.bf16.msra.mxu0 0
    %5974 = vmatprep.mubr.bf16.mxu0 0
    %5975 = vmatmul.mubr.bf16.gmra.mxu0 %v5937
    %v5976 = vpop.f32.mrf.mxu0
    %v5977 = vadd.f32 %v5793, %v5976
    %v5978 = vpop.f32.mrf.mxu0
    %v5979 = vpop.f32.mrf.mxu0
    %v5980 = vpop.f32.mrf.mxu0
    %5981 = vdwg.mxu0
    %5982 = vrot.lane.b32.xlu0 %v4934, 96
    %v5983 = vpop.permute.xlu0 %5982
    %5984 = vrot.lane.b32.xlu0 %v4934, 32
    %v5985 = vpop.permute.xlu0 %5984
    %v5987 = vsel %vm153, %v5983, 0
    %v5990 = vsel %vm153, %v5985, 0
    %5992 = vmatprep.subr.bf16.mxu0 0
    %5993 = vmatpush1.bf16.xpose.msra.mxu0 0
    %5994 = vmatprep.subr.bf16.mxu0 0
    %5995 = vmatpush1.bf16.xpose.msra.mxu0 0
    %5996 = vmatprep.subr.bf16.mxu0 0
    %5997 = vmatpush1.bf16.xpose.msra.mxu0 0
    %5998 = vmatprep.subr.bf16.mxu0 0
    %5999 = vmatpush1.bf16.xpose.msra.mxu0 0
    %6000 = vmatprep.subr.bf16.mxu0 0
    %6001 = vmatpush1.bf16.xpose.msra.mxu0 0
    %6002 = vmatprep.subr.bf16.mxu0 0
    %6003 = vmatpush1.bf16.xpose.msra.mxu0 0
    %6004 = vmatprep.subr.bf16.mxu0 0
    %6005 = vmatpush1.bf16.xpose.msra.mxu0 0
    %6006 = vmatprep.subr.bf16.mxu0 0
    %6007 = vmatpush1.bf16.xpose.msra.mxu0 %v5990
    %6008 = vmatprep.subr.bf16.mxu0 0
    %6009 = vmatpush2.bf16.xpose.msra.mxu0 0
    %6010 = vmatprep.subr.bf16.mxu0 0
    %6011 = vmatpush2.bf16.xpose.msra.mxu0 0
    %6012 = vmatprep.subr.bf16.mxu0 0
    %6013 = vmatpush2.bf16.xpose.msra.mxu0 0
    %6014 = vmatprep.subr.bf16.mxu0 0
    %6015 = vmatpush2.bf16.xpose.msra.mxu0 0
    %6016 = vmatprep.subr.bf16.mxu0 0
    %6017 = vmatpush2.bf16.xpose.msra.mxu0 0
    %6018 = vmatprep.subr.bf16.mxu0 0
    %6019 = vmatpush2.bf16.xpose.msra.mxu0 0
    %6020 = vmatprep.subr.bf16.mxu0 0
    %6021 = vmatpush2.bf16.xpose.msra.mxu0 0
    %6022 = vmatprep.subr.bf16.mxu0 0
    %6023 = vmatpush2.bf16.xpose.msra.mxu0 0
    %6024 = vmatprep.mubr.bf16.mxu0 0
    %6025 = vmatmul.mubr.bf16.gmra.mxu0 %v5987
    %v6026 = vpop.f32.mrf.mxu0
    %v6027 = vadd.f32 0.0, %v6026
    %v6028 = vpop.f32.mrf.mxu0
    %v6029 = vpop.f32.mrf.mxu0
    %v6030 = vpop.f32.mrf.mxu0
    %6031 = vdwg.mxu0
    %6032 = vrot.lane.b32.xlu0 %v4935, 96
    %v6033 = vpop.permute.xlu0 %6032
    %6034 = vrot.lane.b32.xlu0 %v4935, 32
    %v6035 = vpop.permute.xlu0 %6034
    %v6037 = vsel %vm153, %v6033, 0
    %v6040 = vsel %vm153, %v6035, 0
    %6042 = vmatprep.subr.bf16.mxu0 0
    %6043 = vmatpush1.bf16.xpose.msra.mxu0 0
    %6044 = vmatprep.subr.bf16.mxu0 0
    %6045 = vmatpush1.bf16.xpose.msra.mxu0 0
    %6046 = vmatprep.subr.bf16.mxu0 0
    %6047 = vmatpush1.bf16.xpose.msra.mxu0 0
    %6048 = vmatprep.subr.bf16.mxu0 0
    %6049 = vmatpush1.bf16.xpose.msra.mxu0 0
    %6050 = vmatprep.subr.bf16.mxu0 0
    %6051 = vmatpush1.bf16.xpose.msra.mxu0 0
    %6052 = vmatprep.subr.bf16.mxu0 0
    %6053 = vmatpush1.bf16.xpose.msra.mxu0 0
    %6054 = vmatprep.subr.bf16.mxu0 0
    %6055 = vmatpush1.bf16.xpose.msra.mxu0 0
    %6056 = vmatprep.subr.bf16.mxu0 0
    %6057 = vmatpush1.bf16.xpose.msra.mxu0 %v6040
    %6058 = vmatprep.subr.bf16.mxu0 0
    %6059 = vmatpush2.bf16.xpose.msra.mxu0 0
    %6060 = vmatprep.subr.bf16.mxu0 0
    %6061 = vmatpush2.bf16.xpose.msra.mxu0 0
    %6062 = vmatprep.subr.bf16.mxu0 0
    %6063 = vmatpush2.bf16.xpose.msra.mxu0 0
    %6064 = vmatprep.subr.bf16.mxu0 0
    %6065 = vmatpush2.bf16.xpose.msra.mxu0 0
    %6066 = vmatprep.subr.bf16.mxu0 0
    %6067 = vmatpush2.bf16.xpose.msra.mxu0 0
    %6068 = vmatprep.subr.bf16.mxu0 0
    %6069 = vmatpush2.bf16.xpose.msra.mxu0 0
    %6070 = vmatprep.subr.bf16.mxu0 0
    %6071 = vmatpush2.bf16.xpose.msra.mxu0 0
    %6072 = vmatprep.subr.bf16.mxu0 0
    %6073 = vmatpush2.bf16.xpose.msra.mxu0 0
    %6074 = vmatprep.mubr.bf16.mxu0 0
    %6075 = vmatmul.mubr.bf16.gmra.mxu0 %v6037
    %v6076 = vpop.f32.mrf.mxu0
    %v6077 = vadd.f32 0.0, %v6076
    %v6078 = vpop.f32.mrf.mxu0
    %v6079 = vpop.f32.mrf.mxu0
    %v6080 = vpop.f32.mrf.mxu0
    %6081 = vdwg.mxu0
    %6082 = vrot.lane.b32.xlu0 %v4936, 96
    %v6083 = vpop.permute.xlu0 %6082
    %6084 = vrot.lane.b32.xlu0 %v4936, 32
    %v6085 = vpop.permute.xlu0 %6084
    %v6087 = vsel %vm153, %v6083, 0
    %v6090 = vsel %vm153, %v6085, 0
    %6092 = vmatprep.subr.bf16.mxu0 0
    %6093 = vmatpush1.bf16.xpose.msra.mxu0 0
    %6094 = vmatprep.subr.bf16.mxu0 0
    %6095 = vmatpush1.bf16.xpose.msra.mxu0 0
    %6096 = vmatprep.subr.bf16.mxu0 0
    %6097 = vmatpush1.bf16.xpose.msra.mxu0 0
    %6098 = vmatprep.subr.bf16.mxu0 0
    %6099 = vmatpush1.bf16.xpose.msra.mxu0 0
    %6100 = vmatprep.subr.bf16.mxu0 0
    %6101 = vmatpush1.bf16.xpose.msra.mxu0 0
    %6102 = vmatprep.subr.bf16.mxu0 0
    %6103 = vmatpush1.bf16.xpose.msra.mxu0 0
    %6104 = vmatprep.subr.bf16.mxu0 0
    %6105 = vmatpush1.bf16.xpose.msra.mxu0 0
    %6106 = vmatprep.subr.bf16.mxu0 0
    %6107 = vmatpush1.bf16.xpose.msra.mxu0 %v6090
    %6108 = vmatprep.subr.bf16.mxu0 0
    %6109 = vmatpush2.bf16.xpose.msra.mxu0 0
    %6110 = vmatprep.subr.bf16.mxu0 0
    %6111 = vmatpush2.bf16.xpose.msra.mxu0 0
    %6112 = vmatprep.subr.bf16.mxu0 0
    %6113 = vmatpush2.bf16.xpose.msra.mxu0 0
    %6114 = vmatprep.subr.bf16.mxu0 0
    %6115 = vmatpush2.bf16.xpose.msra.mxu0 0
    %6116 = vmatprep.subr.bf16.mxu0 0
    %6117 = vmatpush2.bf16.xpose.msra.mxu0 0
    %6118 = vmatprep.subr.bf16.mxu0 0
    %6119 = vmatpush2.bf16.xpose.msra.mxu0 0
    %6120 = vmatprep.subr.bf16.mxu0 0
    %6121 = vmatpush2.bf16.xpose.msra.mxu0 0
    %6122 = vmatprep.subr.bf16.mxu0 0
    %6123 = vmatpush2.bf16.xpose.msra.mxu0 0
    %6124 = vmatprep.mubr.bf16.mxu0 0
    %6125 = vmatmul.mubr.bf16.gmra.mxu0 %v6087
    %v6126 = vpop.f32.mrf.mxu0
    %v6127 = vadd.f32 0.0, %v6126
    %v6128 = vpop.f32.mrf.mxu0
    %v6129 = vpop.f32.mrf.mxu0
    %v6130 = vpop.f32.mrf.mxu0
    %6131 = vdwg.mxu0
    %6132 = vrot.lane.b32.xlu0 %v4937, 96
    %v6133 = vpop.permute.xlu0 %6132
    %6134 = vrot.lane.b32.xlu0 %v4937, 32
    %v6135 = vpop.permute.xlu0 %6134
    %v6137 = vsel %vm153, %v6133, 0
    %v6140 = vsel %vm153, %v6135, 0
    %6142 = vmatprep.subr.bf16.mxu0 0
    %6143 = vmatpush1.bf16.xpose.msra.mxu0 0
    %6144 = vmatprep.subr.bf16.mxu0 0
    %6145 = vmatpush1.bf16.xpose.msra.mxu0 0
    %6146 = vmatprep.subr.bf16.mxu0 0
    %6147 = vmatpush1.bf16.xpose.msra.mxu0 0
    %6148 = vmatprep.subr.bf16.mxu0 0
    %6149 = vmatpush1.bf16.xpose.msra.mxu0 0
    %6150 = vmatprep.subr.bf16.mxu0 0
    %6151 = vmatpush1.bf16.xpose.msra.mxu0 0
    %6152 = vmatprep.subr.bf16.mxu0 0
    %6153 = vmatpush1.bf16.xpose.msra.mxu0 0
    %6154 = vmatprep.subr.bf16.mxu0 0
    %6155 = vmatpush1.bf16.xpose.msra.mxu0 0
    %6156 = vmatprep.subr.bf16.mxu0 0
    %6157 = vmatpush1.bf16.xpose.msra.mxu0 %v6140
    %6158 = vmatprep.subr.bf16.mxu0 0
    %6159 = vmatpush2.bf16.xpose.msra.mxu0 0
    %6160 = vmatprep.subr.bf16.mxu0 0
    %6161 = vmatpush2.bf16.xpose.msra.mxu0 0
    %6162 = vmatprep.subr.bf16.mxu0 0
    %6163 = vmatpush2.bf16.xpose.msra.mxu0 0
    %6164 = vmatprep.subr.bf16.mxu0 0
    %6165 = vmatpush2.bf16.xpose.msra.mxu0 0
    %6166 = vmatprep.subr.bf16.mxu0 0
    %6167 = vmatpush2.bf16.xpose.msra.mxu0 0
    %6168 = vmatprep.subr.bf16.mxu0 0
    %6169 = vmatpush2.bf16.xpose.msra.mxu0 0
    %6170 = vmatprep.subr.bf16.mxu0 0
    %6171 = vmatpush2.bf16.xpose.msra.mxu0 0
    %6172 = vmatprep.subr.bf16.mxu0 0
    %6173 = vmatpush2.bf16.xpose.msra.mxu0 0
    %6174 = vmatprep.mubr.bf16.mxu0 0
    %6175 = vmatmul.mubr.bf16.gmra.mxu0 %v6137
    %v6176 = vpop.f32.mrf.mxu0
    %v6177 = vadd.f32 0.0, %v6176
    %v6178 = vpop.f32.mrf.mxu0
    %v6179 = vpop.f32.mrf.mxu0
    %v6180 = vpop.f32.mrf.mxu0
    %6181 = vdwg.mxu0
    %v6182 = vsel %vm344, %v6027, -inf
    %6183 = vmax.xlane.f32.xlu0 %v6182
    %v6184 = vpop.xlane.xlu0 %6183
    %v6185 = vsel %vm344, %v6077, -inf
    %6186 = vmax.xlane.f32.xlu0 %v6185
    %v6187 = vpop.xlane.xlu0 %6186
    %v6188 = vsel %vm344, %v6127, -inf
    %6189 = vmax.xlane.f32.xlu0 %v6188
    %v6190 = vpop.xlane.xlu0 %6189
    %v6191 = vsel %vm344, %v6177, -inf
    %6192 = vmax.xlane.f32.xlu0 %v6191
    %v6193 = vpop.xlane.xlu0 %6192
    %v6194 = vsub.f32 %v6027, %v6184
    %v6195 = vsub.f32 %v6077, %v6187
    %v6196 = vsub.f32 %v6127, %v6190
    %v6197 = vsub.f32 %v6177, %v6193
    %v6198 = vmul.f32 %v6194, 1.442695
    %v6199 = vpow.pop %v6198
    %v6200 = vmul.f32 %v6195, 1.442695
    %v6201 = vpow.pop %v6200
    %v6202 = vmul.f32 %v6196, 1.442695
    %v6203 = vpow.pop %v6202
    %v6204 = vmul.f32 %v6197, 1.442695
    %v6205 = vpow.pop %v6204
    %v6206 = vsel %vm344, %v6199, 0.0
    %6207 = vadd.xlane.f32.xlu0 %v6206
    %v6208 = vpop.xlane.xlu0 %6207
    %v6209 = vsel %vm344, %v6201, 0.0
    %6210 = vadd.xlane.f32.xlu0 %v6209
    %v6211 = vpop.xlane.xlu0 %6210
    %v6212 = vsel %vm344, %v6203, 0.0
    %6213 = vadd.xlane.f32.xlu0 %v6212
    %v6214 = vpop.xlane.xlu0 %6213
    %v6215 = vsel %vm344, %v6205, 0.0
    %6216 = vadd.xlane.f32.xlu0 %v6215
    %v6217 = vpop.xlane.xlu0 %6216
    %v6218 = vrcp.pop %v6208
    %v6219 = vrcp.pop %v6211
    %v6220 = vrcp.pop %v6214
    %v6221 = vrcp.pop %v6217
    %v6222 = vmul.f32 %v6199, %v6218
    %v6223 = vmul.f32 %v6201, %v6219
    %v6224 = vmul.f32 %v6203, %v6220
    %v6225 = vmul.f32 %v6205, %v6221
    %v6226 = vpack.c.bf16 %v6222, %v6222
    %v6227 = vpack.c.bf16 %v6223, %v6223
    %v6228 = vpack.c.bf16 %v6224, %v6224
    %v6229 = vpack.c.bf16 %v6225, %v6225
    %s6230 = scalar_lea.vmem %s3, 192
    %v6231 = vld [vmem:[%s6230] sm:$0xf]
    %v6232 = vld [vmem:[%s6230 + $0x4] sm:$0xf]
    %v6233 = vld [vmem:[%s6230 + $0x8] sm:$0xf]
    %v6234 = vld [vmem:[%s6230 + $0xc] sm:$0xf]
    %v6235 = vld [vmem:[%s6230 + $0x10] sm:$0xf]
    %v6236 = vld [vmem:[%s6230 + $0x14] sm:$0xf]
    %v6237 = vld [vmem:[%s6230 + $0x18] sm:$0xf]
    %v6238 = vld [vmem:[%s6230 + $0x1c] sm:$0xf]
    %v6247 = vunpack.c.l.b16 %v6231
    %v6248 = vunpack.c.l.b16 %v6232
    %v6249 = vunpack.c.l.b16 %v6233
    %v6250 = vunpack.c.l.b16 %v6234
    %v6251 = vunpack.c.l.b16 %v6235
    %v6252 = vunpack.c.l.b16 %v6236
    %v6253 = vunpack.c.l.b16 %v6237
    %v6254 = vunpack.c.l.b16 %v6238
    %v6255 = vpack.c.b16 %v6248, %v6247
    %v6256 = vpack.c.b16 %v6250, %v6249
    %v6257 = vpack.c.b16 %v6252, %v6251
    %v6258 = vpack.c.b16 %v6254, %v6253
    %6263 = vmatprep.subr.bf16.mxu0 0
    %6264 = vmatpush1.bf16.msra.mxu0 0
    %6265 = vmatprep.subr.bf16.mxu0 0
    %6266 = vmatpush1.bf16.msra.mxu0 0
    %6267 = vmatprep.subr.bf16.mxu0 0
    %6268 = vmatpush1.bf16.msra.mxu0 0
    %6269 = vmatprep.subr.bf16.mxu0 0
    %6270 = vmatpush1.bf16.msra.mxu0 0
    %6271 = vmatprep.subr.bf16.mxu0 0
    %6272 = vmatpush1.bf16.msra.mxu0 %v6258
    %6273 = vmatprep.subr.bf16.mxu0 0
    %6274 = vmatpush1.bf16.msra.mxu0 %v6257
    %6275 = vmatprep.subr.bf16.mxu0 0
    %6276 = vmatpush1.bf16.msra.mxu0 %v6256
    %6277 = vmatprep.subr.bf16.mxu0 0
    %6278 = vmatpush1.bf16.msra.mxu0 %v6255
    %6279 = vmatprep.subr.bf16.mxu0 0
    %6280 = vmatpush2.bf16.msra.mxu0 0
    %6281 = vmatprep.subr.bf16.mxu0 0
    %6282 = vmatpush2.bf16.msra.mxu0 0
    %6283 = vmatprep.subr.bf16.mxu0 0
    %6284 = vmatpush2.bf16.msra.mxu0 0
    %6285 = vmatprep.subr.bf16.mxu0 0
    %6286 = vmatpush2.bf16.msra.mxu0 0
    %6287 = vmatprep.subr.bf16.mxu0 0
    %6288 = vmatpush2.bf16.msra.mxu0 0
    %6289 = vmatprep.subr.bf16.mxu0 0
    %6290 = vmatpush2.bf16.msra.mxu0 0
    %6291 = vmatprep.subr.bf16.mxu0 0
    %6292 = vmatpush2.bf16.msra.mxu0 0
    %6293 = vmatprep.subr.bf16.mxu0 0
    %6294 = vmatpush2.bf16.msra.mxu0 0
    %6295 = vmatprep.mubr.bf16.mxu0 0
    %6296 = vmatmul.mubr.bf16.gmra.mxu0 %v4872
    %v6297 = vpop.f32.mrf.mxu0
    %v6298 = vadd.f32 0.0, %v6297
    %v6299 = vpop.f32.mrf.mxu0
    %v6300 = vpop.f32.mrf.mxu0
    %v6301 = vadd.f32 0.0, %v6300
    %v6302 = vpop.f32.mrf.mxu0
    %6303 = vmatprep.mubr.bf16.mxu0 0
    %6304 = vmatmul.mubr.bf16.gmra.mxu0 %v4875
    %v6305 = vpop.f32.mrf.mxu0
    %v6306 = vadd.f32 0.0, %v6305
    %v6307 = vpop.f32.mrf.mxu0
    %v6308 = vpop.f32.mrf.mxu0
    %v6309 = vadd.f32 0.0, %v6308
    %v6310 = vpop.f32.mrf.mxu0
    %6311 = vdwg.mxu0
    %v6312 = vpack.c.bf16 %v6301, %v6298
    %v6313 = vpack.c.bf16 %v6309, %v6306
    %v6316 = vunpack.c.l.b16 %v6312
    %v6317 = vunpack.c.h.b16 %v6312
    %v6318 = vunpack.c.l.b16 %v6313
    %v6319 = vunpack.c.h.b16 %v6313
    %v6320 = vpack.c.b16 %v6316, %v6316
    %v6321 = vpack.c.b16 %v6317, %v6317
    %v6322 = vpack.c.b16 %v6318, %v6318
    %v6323 = vpack.c.b16 %v6319, %v6319
    %v6325 = vsel %vm344, %v6226, 0
    %v6328 = vsel %vm831, %v6320, 0
    %6330 = vmatprep.subr.bf16.mxu0 0
    %6331 = vmatpush1.bf16.msra.mxu0 0
    %6332 = vmatprep.subr.bf16.mxu0 0
    %6333 = vmatpush1.bf16.msra.mxu0 0
    %6334 = vmatprep.subr.bf16.mxu0 0
    %6335 = vmatpush1.bf16.msra.mxu0 0
    %6336 = vmatprep.subr.bf16.mxu0 0
    %6337 = vmatpush1.bf16.msra.mxu0 0
    %6338 = vmatprep.subr.bf16.mxu0 0
    %6339 = vmatpush1.bf16.msra.mxu0 0
    %6340 = vmatprep.subr.bf16.mxu0 0
    %6341 = vmatpush1.bf16.msra.mxu0 0
    %6342 = vmatprep.subr.bf16.mxu0 0
    %6343 = vmatpush1.bf16.msra.mxu0 0
    %6344 = vmatprep.subr.bf16.mxu0 0
    %6345 = vmatpush1.bf16.msra.mxu0 %v6328
    %6346 = vmatprep.subr.bf16.mxu0 0
    %6347 = vmatpush2.bf16.msra.mxu0 0
    %6348 = vmatprep.subr.bf16.mxu0 0
    %6349 = vmatpush2.bf16.msra.mxu0 0
    %6350 = vmatprep.subr.bf16.mxu0 0
    %6351 = vmatpush2.bf16.msra.mxu0 0
    %6352 = vmatprep.subr.bf16.mxu0 0
    %6353 = vmatpush2.bf16.msra.mxu0 0
    %6354 = vmatprep.subr.bf16.mxu0 0
    %6355 = vmatpush2.bf16.msra.mxu0 0
    %6356 = vmatprep.subr.bf16.mxu0 0
    %6357 = vmatpush2.bf16.msra.mxu0 0
    %6358 = vmatprep.subr.bf16.mxu0 0
    %6359 = vmatpush2.bf16.msra.mxu0 0
    %6360 = vmatprep.subr.bf16.mxu0 0
    %6361 = vmatpush2.bf16.msra.mxu0 0
    %6362 = vmatprep.mubr.bf16.mxu0 0
    %6363 = vmatmul.mubr.bf16.gmra.mxu0 %v6325
    %v6364 = vpop.f32.mrf.mxu0
    %v6365 = vadd.f32 0.0, %v6364
    %v6366 = vpop.f32.mrf.mxu0
    %v6367 = vpop.f32.mrf.mxu0
    %v6368 = vpop.f32.mrf.mxu0
    %6369 = vdwg.mxu0
    %v6371 = vsel %vm344, %v6227, 0
    %v6374 = vsel %vm831, %v6321, 0
    %6376 = vmatprep.subr.bf16.mxu0 0
    %6377 = vmatpush1.bf16.msra.mxu0 0
    %6378 = vmatprep.subr.bf16.mxu0 0
    %6379 = vmatpush1.bf16.msra.mxu0 0
    %6380 = vmatprep.subr.bf16.mxu0 0
    %6381 = vmatpush1.bf16.msra.mxu0 0
    %6382 = vmatprep.subr.bf16.mxu0 0
    %6383 = vmatpush1.bf16.msra.mxu0 0
    %6384 = vmatprep.subr.bf16.mxu0 0
    %6385 = vmatpush1.bf16.msra.mxu0 0
    %6386 = vmatprep.subr.bf16.mxu0 0
    %6387 = vmatpush1.bf16.msra.mxu0 0
    %6388 = vmatprep.subr.bf16.mxu0 0
    %6389 = vmatpush1.bf16.msra.mxu0 0
    %6390 = vmatprep.subr.bf16.mxu0 0
    %6391 = vmatpush1.bf16.msra.mxu0 %v6374
    %6392 = vmatprep.subr.bf16.mxu0 0
    %6393 = vmatpush2.bf16.msra.mxu0 0
    %6394 = vmatprep.subr.bf16.mxu0 0
    %6395 = vmatpush2.bf16.msra.mxu0 0
    %6396 = vmatprep.subr.bf16.mxu0 0
    %6397 = vmatpush2.bf16.msra.mxu0 0
    %6398 = vmatprep.subr.bf16.mxu0 0
    %6399 = vmatpush2.bf16.msra.mxu0 0
    %6400 = vmatprep.subr.bf16.mxu0 0
    %6401 = vmatpush2.bf16.msra.mxu0 0
    %6402 = vmatprep.subr.bf16.mxu0 0
    %6403 = vmatpush2.bf16.msra.mxu0 0
    %6404 = vmatprep.subr.bf16.mxu0 0
    %6405 = vmatpush2.bf16.msra.mxu0 0
    %6406 = vmatprep.subr.bf16.mxu0 0
    %6407 = vmatpush2.bf16.msra.mxu0 0
    %6408 = vmatprep.mubr.bf16.mxu0 0
    %6409 = vmatmul.mubr.bf16.gmra.mxu0 %v6371
    %v6410 = vpop.f32.mrf.mxu0
    %v6411 = vadd.f32 0.0, %v6410
    %v6412 = vpop.f32.mrf.mxu0
    %v6413 = vpop.f32.mrf.mxu0
    %v6414 = vpop.f32.mrf.mxu0
    %6415 = vdwg.mxu0
    %v6417 = vsel %vm344, %v6228, 0
    %v6420 = vsel %vm831, %v6322, 0
    %6422 = vmatprep.subr.bf16.mxu0 0
    %6423 = vmatpush1.bf16.msra.mxu0 0
    %6424 = vmatprep.subr.bf16.mxu0 0
    %6425 = vmatpush1.bf16.msra.mxu0 0
    %6426 = vmatprep.subr.bf16.mxu0 0
    %6427 = vmatpush1.bf16.msra.mxu0 0
    %6428 = vmatprep.subr.bf16.mxu0 0
    %6429 = vmatpush1.bf16.msra.mxu0 0
    %6430 = vmatprep.subr.bf16.mxu0 0
    %6431 = vmatpush1.bf16.msra.mxu0 0
    %6432 = vmatprep.subr.bf16.mxu0 0
    %6433 = vmatpush1.bf16.msra.mxu0 0
    %6434 = vmatprep.subr.bf16.mxu0 0
    %6435 = vmatpush1.bf16.msra.mxu0 0
    %6436 = vmatprep.subr.bf16.mxu0 0
    %6437 = vmatpush1.bf16.msra.mxu0 %v6420
    %6438 = vmatprep.subr.bf16.mxu0 0
    %6439 = vmatpush2.bf16.msra.mxu0 0
    %6440 = vmatprep.subr.bf16.mxu0 0
    %6441 = vmatpush2.bf16.msra.mxu0 0
    %6442 = vmatprep.subr.bf16.mxu0 0
    %6443 = vmatpush2.bf16.msra.mxu0 0
    %6444 = vmatprep.subr.bf16.mxu0 0
    %6445 = vmatpush2.bf16.msra.mxu0 0
    %6446 = vmatprep.subr.bf16.mxu0 0
    %6447 = vmatpush2.bf16.msra.mxu0 0
    %6448 = vmatprep.subr.bf16.mxu0 0
    %6449 = vmatpush2.bf16.msra.mxu0 0
    %6450 = vmatprep.subr.bf16.mxu0 0
    %6451 = vmatpush2.bf16.msra.mxu0 0
    %6452 = vmatprep.subr.bf16.mxu0 0
    %6453 = vmatpush2.bf16.msra.mxu0 0
    %6454 = vmatprep.mubr.bf16.mxu0 0
    %6455 = vmatmul.mubr.bf16.gmra.mxu0 %v6417
    %v6456 = vpop.f32.mrf.mxu0
    %v6457 = vadd.f32 0.0, %v6456
    %v6458 = vpop.f32.mrf.mxu0
    %v6459 = vpop.f32.mrf.mxu0
    %v6460 = vpop.f32.mrf.mxu0
    %6461 = vdwg.mxu0
    %v6463 = vsel %vm344, %v6229, 0
    %v6466 = vsel %vm831, %v6323, 0
    %6468 = vmatprep.subr.bf16.mxu0 0
    %6469 = vmatpush1.bf16.msra.mxu0 0
    %6470 = vmatprep.subr.bf16.mxu0 0
    %6471 = vmatpush1.bf16.msra.mxu0 0
    %6472 = vmatprep.subr.bf16.mxu0 0
    %6473 = vmatpush1.bf16.msra.mxu0 0
    %6474 = vmatprep.subr.bf16.mxu0 0
    %6475 = vmatpush1.bf16.msra.mxu0 0
    %6476 = vmatprep.subr.bf16.mxu0 0
    %6477 = vmatpush1.bf16.msra.mxu0 0
    %6478 = vmatprep.subr.bf16.mxu0 0
    %6479 = vmatpush1.bf16.msra.mxu0 0
    %6480 = vmatprep.subr.bf16.mxu0 0
    %6481 = vmatpush1.bf16.msra.mxu0 0
    %6482 = vmatprep.subr.bf16.mxu0 0
    %6483 = vmatpush1.bf16.msra.mxu0 %v6466
    %6484 = vmatprep.subr.bf16.mxu0 0
    %6485 = vmatpush2.bf16.msra.mxu0 0
    %6486 = vmatprep.subr.bf16.mxu0 0
    %6487 = vmatpush2.bf16.msra.mxu0 0
    %6488 = vmatprep.subr.bf16.mxu0 0
    %6489 = vmatpush2.bf16.msra.mxu0 0
    %6490 = vmatprep.subr.bf16.mxu0 0
    %6491 = vmatpush2.bf16.msra.mxu0 0
    %6492 = vmatprep.subr.bf16.mxu0 0
    %6493 = vmatpush2.bf16.msra.mxu0 0
    %6494 = vmatprep.subr.bf16.mxu0 0
    %6495 = vmatpush2.bf16.msra.mxu0 0
    %6496 = vmatprep.subr.bf16.mxu0 0
    %6497 = vmatpush2.bf16.msra.mxu0 0
    %6498 = vmatprep.subr.bf16.mxu0 0
    %6499 = vmatpush2.bf16.msra.mxu0 0
    %6500 = vmatprep.mubr.bf16.mxu0 0
    %6501 = vmatmul.mubr.bf16.gmra.mxu0 %v6463
    %v6502 = vpop.f32.mrf.mxu0
    %v6503 = vadd.f32 0.0, %v6502
    %v6504 = vpop.f32.mrf.mxu0
    %v6505 = vpop.f32.mrf.mxu0
    %v6506 = vpop.f32.mrf.mxu0
    %6507 = vdwg.mxu0
    %v6508 = vadd.f32 %v5839, %v6365
    %v6509 = vadd.f32 %v5885, %v6411
    %v6510 = vadd.f32 %v5931, %v6457
    %v6511 = vadd.f32 %v5977, %v6503
    %6512 = vrot.lane.b32.xlu0 %v4934, 80
    %v6513 = vpop.permute.xlu0 %6512
    %6514 = vrot.lane.b32.xlu0 %v4934, 16
    %v6515 = vpop.permute.xlu0 %6514
    %v6517 = vsel %vm153, %v6513, 0
    %v6520 = vsel %vm153, %v6515, 0
    %6522 = vmatprep.subr.bf16.mxu0 0
    %6523 = vmatpush1.bf16.xpose.msra.mxu0 0
    %6524 = vmatprep.subr.bf16.mxu0 0
    %6525 = vmatpush1.bf16.xpose.msra.mxu0 0
    %6526 = vmatprep.subr.bf16.mxu0 0
    %6527 = vmatpush1.bf16.xpose.msra.mxu0 0
    %6528 = vmatprep.subr.bf16.mxu0 0
    %6529 = vmatpush1.bf16.xpose.msra.mxu0 0
    %6530 = vmatprep.subr.bf16.mxu0 0
    %6531 = vmatpush1.bf16.xpose.msra.mxu0 0
    %6532 = vmatprep.subr.bf16.mxu0 0
    %6533 = vmatpush1.bf16.xpose.msra.mxu0 0
    %6534 = vmatprep.subr.bf16.mxu0 0
    %6535 = vmatpush1.bf16.xpose.msra.mxu0 0
    %6536 = vmatprep.subr.bf16.mxu0 0
    %6537 = vmatpush1.bf16.xpose.msra.mxu0 %v6520
    %6538 = vmatprep.subr.bf16.mxu0 0
    %6539 = vmatpush2.bf16.xpose.msra.mxu0 0
    %6540 = vmatprep.subr.bf16.mxu0 0
    %6541 = vmatpush2.bf16.xpose.msra.mxu0 0
    %6542 = vmatprep.subr.bf16.mxu0 0
    %6543 = vmatpush2.bf16.xpose.msra.mxu0 0
    %6544 = vmatprep.subr.bf16.mxu0 0
    %6545 = vmatpush2.bf16.xpose.msra.mxu0 0
    %6546 = vmatprep.subr.bf16.mxu0 0
    %6547 = vmatpush2.bf16.xpose.msra.mxu0 0
    %6548 = vmatprep.subr.bf16.mxu0 0
    %6549 = vmatpush2.bf16.xpose.msra.mxu0 0
    %6550 = vmatprep.subr.bf16.mxu0 0
    %6551 = vmatpush2.bf16.xpose.msra.mxu0 0
    %6552 = vmatprep.subr.bf16.mxu0 0
    %6553 = vmatpush2.bf16.xpose.msra.mxu0 0
    %6554 = vmatprep.mubr.bf16.mxu0 0
    %6555 = vmatmul.mubr.bf16.gmra.mxu0 %v6517
    %v6556 = vpop.f32.mrf.mxu0
    %v6557 = vadd.f32 0.0, %v6556
    %v6558 = vpop.f32.mrf.mxu0
    %v6559 = vpop.f32.mrf.mxu0
    %v6560 = vpop.f32.mrf.mxu0
    %6561 = vdwg.mxu0
    %6562 = vrot.lane.b32.xlu0 %v4935, 80
    %v6563 = vpop.permute.xlu0 %6562
    %6564 = vrot.lane.b32.xlu0 %v4935, 16
    %v6565 = vpop.permute.xlu0 %6564
    %v6567 = vsel %vm153, %v6563, 0
    %v6570 = vsel %vm153, %v6565, 0
    %6572 = vmatprep.subr.bf16.mxu0 0
    %6573 = vmatpush1.bf16.xpose.msra.mxu0 0
    %6574 = vmatprep.subr.bf16.mxu0 0
    %6575 = vmatpush1.bf16.xpose.msra.mxu0 0
    %6576 = vmatprep.subr.bf16.mxu0 0
    %6577 = vmatpush1.bf16.xpose.msra.mxu0 0
    %6578 = vmatprep.subr.bf16.mxu0 0
    %6579 = vmatpush1.bf16.xpose.msra.mxu0 0
    %6580 = vmatprep.subr.bf16.mxu0 0
    %6581 = vmatpush1.bf16.xpose.msra.mxu0 0
    %6582 = vmatprep.subr.bf16.mxu0 0
    %6583 = vmatpush1.bf16.xpose.msra.mxu0 0
    %6584 = vmatprep.subr.bf16.mxu0 0
    %6585 = vmatpush1.bf16.xpose.msra.mxu0 0
    %6586 = vmatprep.subr.bf16.mxu0 0
    %6587 = vmatpush1.bf16.xpose.msra.mxu0 %v6570
    %6588 = vmatprep.subr.bf16.mxu0 0
    %6589 = vmatpush2.bf16.xpose.msra.mxu0 0
    %6590 = vmatprep.subr.bf16.mxu0 0
    %6591 = vmatpush2.bf16.xpose.msra.mxu0 0
    %6592 = vmatprep.subr.bf16.mxu0 0
    %6593 = vmatpush2.bf16.xpose.msra.mxu0 0
    %6594 = vmatprep.subr.bf16.mxu0 0
    %6595 = vmatpush2.bf16.xpose.msra.mxu0 0
    %6596 = vmatprep.subr.bf16.mxu0 0
    %6597 = vmatpush2.bf16.xpose.msra.mxu0 0
    %6598 = vmatprep.subr.bf16.mxu0 0
    %6599 = vmatpush2.bf16.xpose.msra.mxu0 0
    %6600 = vmatprep.subr.bf16.mxu0 0
    %6601 = vmatpush2.bf16.xpose.msra.mxu0 0
    %6602 = vmatprep.subr.bf16.mxu0 0
    %6603 = vmatpush2.bf16.xpose.msra.mxu0 0
    %6604 = vmatprep.mubr.bf16.mxu0 0
    %6605 = vmatmul.mubr.bf16.gmra.mxu0 %v6567
    %v6606 = vpop.f32.mrf.mxu0
    %v6607 = vadd.f32 0.0, %v6606
    %v6608 = vpop.f32.mrf.mxu0
    %v6609 = vpop.f32.mrf.mxu0
    %v6610 = vpop.f32.mrf.mxu0
    %6611 = vdwg.mxu0
    %6612 = vrot.lane.b32.xlu0 %v4936, 80
    %v6613 = vpop.permute.xlu0 %6612
    %6614 = vrot.lane.b32.xlu0 %v4936, 16
    %v6615 = vpop.permute.xlu0 %6614
    %v6617 = vsel %vm153, %v6613, 0
    %v6620 = vsel %vm153, %v6615, 0
    %6622 = vmatprep.subr.bf16.mxu0 0
    %6623 = vmatpush1.bf16.xpose.msra.mxu0 0
    %6624 = vmatprep.subr.bf16.mxu0 0
    %6625 = vmatpush1.bf16.xpose.msra.mxu0 0
    %6626 = vmatprep.subr.bf16.mxu0 0
    %6627 = vmatpush1.bf16.xpose.msra.mxu0 0
    %6628 = vmatprep.subr.bf16.mxu0 0
    %6629 = vmatpush1.bf16.xpose.msra.mxu0 0
    %6630 = vmatprep.subr.bf16.mxu0 0
    %6631 = vmatpush1.bf16.xpose.msra.mxu0 0
    %6632 = vmatprep.subr.bf16.mxu0 0
    %6633 = vmatpush1.bf16.xpose.msra.mxu0 0
    %6634 = vmatprep.subr.bf16.mxu0 0
    %6635 = vmatpush1.bf16.xpose.msra.mxu0 0
    %6636 = vmatprep.subr.bf16.mxu0 0
    %6637 = vmatpush1.bf16.xpose.msra.mxu0 %v6620
    %6638 = vmatprep.subr.bf16.mxu0 0
    %6639 = vmatpush2.bf16.xpose.msra.mxu0 0
    %6640 = vmatprep.subr.bf16.mxu0 0
    %6641 = vmatpush2.bf16.xpose.msra.mxu0 0
    %6642 = vmatprep.subr.bf16.mxu0 0
    %6643 = vmatpush2.bf16.xpose.msra.mxu0 0
    %6644 = vmatprep.subr.bf16.mxu0 0
    %6645 = vmatpush2.bf16.xpose.msra.mxu0 0
    %6646 = vmatprep.subr.bf16.mxu0 0
    %6647 = vmatpush2.bf16.xpose.msra.mxu0 0
    %6648 = vmatprep.subr.bf16.mxu0 0
    %6649 = vmatpush2.bf16.xpose.msra.mxu0 0
    %6650 = vmatprep.subr.bf16.mxu0 0
    %6651 = vmatpush2.bf16.xpose.msra.mxu0 0
    %6652 = vmatprep.subr.bf16.mxu0 0
    %6653 = vmatpush2.bf16.xpose.msra.mxu0 0
    %6654 = vmatprep.mubr.bf16.mxu0 0
    %6655 = vmatmul.mubr.bf16.gmra.mxu0 %v6617
    %v6656 = vpop.f32.mrf.mxu0
    %v6657 = vadd.f32 0.0, %v6656
    %v6658 = vpop.f32.mrf.mxu0
    %v6659 = vpop.f32.mrf.mxu0
    %v6660 = vpop.f32.mrf.mxu0
    %6661 = vdwg.mxu0
    %6662 = vrot.lane.b32.xlu0 %v4937, 80
    %v6663 = vpop.permute.xlu0 %6662
    %6664 = vrot.lane.b32.xlu0 %v4937, 16
    %v6665 = vpop.permute.xlu0 %6664
    %v6667 = vsel %vm153, %v6663, 0
    %v6670 = vsel %vm153, %v6665, 0
    %6672 = vmatprep.subr.bf16.mxu0 0
    %6673 = vmatpush1.bf16.xpose.msra.mxu0 0
    %6674 = vmatprep.subr.bf16.mxu0 0
    %6675 = vmatpush1.bf16.xpose.msra.mxu0 0
    %6676 = vmatprep.subr.bf16.mxu0 0
    %6677 = vmatpush1.bf16.xpose.msra.mxu0 0
    %6678 = vmatprep.subr.bf16.mxu0 0
    %6679 = vmatpush1.bf16.xpose.msra.mxu0 0
    %6680 = vmatprep.subr.bf16.mxu0 0
    %6681 = vmatpush1.bf16.xpose.msra.mxu0 0
    %6682 = vmatprep.subr.bf16.mxu0 0
    %6683 = vmatpush1.bf16.xpose.msra.mxu0 0
    %6684 = vmatprep.subr.bf16.mxu0 0
    %6685 = vmatpush1.bf16.xpose.msra.mxu0 0
    %6686 = vmatprep.subr.bf16.mxu0 0
    %6687 = vmatpush1.bf16.xpose.msra.mxu0 %v6670
    %6688 = vmatprep.subr.bf16.mxu0 0
    %6689 = vmatpush2.bf16.xpose.msra.mxu0 0
    %6690 = vmatprep.subr.bf16.mxu0 0
    %6691 = vmatpush2.bf16.xpose.msra.mxu0 0
    %6692 = vmatprep.subr.bf16.mxu0 0
    %6693 = vmatpush2.bf16.xpose.msra.mxu0 0
    %6694 = vmatprep.subr.bf16.mxu0 0
    %6695 = vmatpush2.bf16.xpose.msra.mxu0 0
    %6696 = vmatprep.subr.bf16.mxu0 0
    %6697 = vmatpush2.bf16.xpose.msra.mxu0 0
    %6698 = vmatprep.subr.bf16.mxu0 0
    %6699 = vmatpush2.bf16.xpose.msra.mxu0 0
    %6700 = vmatprep.subr.bf16.mxu0 0
    %6701 = vmatpush2.bf16.xpose.msra.mxu0 0
    %6702 = vmatprep.subr.bf16.mxu0 0
    %6703 = vmatpush2.bf16.xpose.msra.mxu0 0
    %6704 = vmatprep.mubr.bf16.mxu0 0
    %6705 = vmatmul.mubr.bf16.gmra.mxu0 %v6667
    %v6706 = vpop.f32.mrf.mxu0
    %v6707 = vadd.f32 0.0, %v6706
    %v6708 = vpop.f32.mrf.mxu0
    %v6709 = vpop.f32.mrf.mxu0
    %v6710 = vpop.f32.mrf.mxu0
    %6711 = vdwg.mxu0
    %v6712 = vsel %vm344, %v6557, -inf
    %6713 = vmax.xlane.f32.xlu0 %v6712
    %v6714 = vpop.xlane.xlu0 %6713
    %v6715 = vsel %vm344, %v6607, -inf
    %6716 = vmax.xlane.f32.xlu0 %v6715
    %v6717 = vpop.xlane.xlu0 %6716
    %v6718 = vsel %vm344, %v6657, -inf
    %6719 = vmax.xlane.f32.xlu0 %v6718
    %v6720 = vpop.xlane.xlu0 %6719
    %v6721 = vsel %vm344, %v6707, -inf
    %6722 = vmax.xlane.f32.xlu0 %v6721
    %v6723 = vpop.xlane.xlu0 %6722
    %v6724 = vsub.f32 %v6557, %v6714
    %v6725 = vsub.f32 %v6607, %v6717
    %v6726 = vsub.f32 %v6657, %v6720
    %v6727 = vsub.f32 %v6707, %v6723
    %v6728 = vmul.f32 %v6724, 1.442695
    %v6729 = vpow.pop %v6728
    %v6730 = vmul.f32 %v6725, 1.442695
    %v6731 = vpow.pop %v6730
    %v6732 = vmul.f32 %v6726, 1.442695
    %v6733 = vpow.pop %v6732
    %v6734 = vmul.f32 %v6727, 1.442695
    %v6735 = vpow.pop %v6734
    %v6736 = vsel %vm344, %v6729, 0.0
    %6737 = vadd.xlane.f32.xlu0 %v6736
    %v6738 = vpop.xlane.xlu0 %6737
    %v6739 = vsel %vm344, %v6731, 0.0
    %6740 = vadd.xlane.f32.xlu0 %v6739
    %v6741 = vpop.xlane.xlu0 %6740
    %v6742 = vsel %vm344, %v6733, 0.0
    %6743 = vadd.xlane.f32.xlu0 %v6742
    %v6744 = vpop.xlane.xlu0 %6743
    %v6745 = vsel %vm344, %v6735, 0.0
    %6746 = vadd.xlane.f32.xlu0 %v6745
    %v6747 = vpop.xlane.xlu0 %6746
    %v6748 = vrcp.pop %v6738
    %v6749 = vrcp.pop %v6741
    %v6750 = vrcp.pop %v6744
    %v6751 = vrcp.pop %v6747
    %v6752 = vmul.f32 %v6729, %v6748
    %v6753 = vmul.f32 %v6731, %v6749
    %v6754 = vmul.f32 %v6733, %v6750
    %v6755 = vmul.f32 %v6735, %v6751
    %v6756 = vpack.c.bf16 %v6752, %v6752
    %v6757 = vpack.c.bf16 %v6753, %v6753
    %v6758 = vpack.c.bf16 %v6754, %v6754
    %v6759 = vpack.c.bf16 %v6755, %v6755
    %s6760 = scalar_lea.vmem %s3, 224
    %v6761 = vld [vmem:[%s6760] sm:$0xf]
    %v6762 = vld [vmem:[%s6760 + $0x4] sm:$0xf]
    %v6763 = vld [vmem:[%s6760 + $0x8] sm:$0xf]
    %v6764 = vld [vmem:[%s6760 + $0xc] sm:$0xf]
    %v6765 = vld [vmem:[%s6760 + $0x10] sm:$0xf]
    %v6766 = vld [vmem:[%s6760 + $0x14] sm:$0xf]
    %v6767 = vld [vmem:[%s6760 + $0x18] sm:$0xf]
    %v6768 = vld [vmem:[%s6760 + $0x1c] sm:$0xf]
    %v6777 = vunpack.c.l.b16 %v6761
    %v6778 = vunpack.c.l.b16 %v6762
    %v6779 = vunpack.c.l.b16 %v6763
    %v6780 = vunpack.c.l.b16 %v6764
    %v6781 = vunpack.c.l.b16 %v6765
    %v6782 = vunpack.c.l.b16 %v6766
    %v6783 = vunpack.c.l.b16 %v6767
    %v6784 = vunpack.c.l.b16 %v6768
    %v6785 = vpack.c.b16 %v6778, %v6777
    %v6786 = vpack.c.b16 %v6780, %v6779
    %v6787 = vpack.c.b16 %v6782, %v6781
    %v6788 = vpack.c.b16 %v6784, %v6783
    %6793 = vmatprep.subr.bf16.mxu0 0
    %6794 = vmatpush1.bf16.msra.mxu0 0
    %6795 = vmatprep.subr.bf16.mxu0 0
    %6796 = vmatpush1.bf16.msra.mxu0 0
    %6797 = vmatprep.subr.bf16.mxu0 0
    %6798 = vmatpush1.bf16.msra.mxu0 0
    %6799 = vmatprep.subr.bf16.mxu0 0
    %6800 = vmatpush1.bf16.msra.mxu0 0
    %6801 = vmatprep.subr.bf16.mxu0 0
    %6802 = vmatpush1.bf16.msra.mxu0 %v6788
    %6803 = vmatprep.subr.bf16.mxu0 0
    %6804 = vmatpush1.bf16.msra.mxu0 %v6787
    %6805 = vmatprep.subr.bf16.mxu0 0
    %6806 = vmatpush1.bf16.msra.mxu0 %v6786
    %6807 = vmatprep.subr.bf16.mxu0 0
    %6808 = vmatpush1.bf16.msra.mxu0 %v6785
    %6809 = vmatprep.subr.bf16.mxu0 0
    %6810 = vmatpush2.bf16.msra.mxu0 0
    %6811 = vmatprep.subr.bf16.mxu0 0
    %6812 = vmatpush2.bf16.msra.mxu0 0
    %6813 = vmatprep.subr.bf16.mxu0 0
    %6814 = vmatpush2.bf16.msra.mxu0 0
    %6815 = vmatprep.subr.bf16.mxu0 0
    %6816 = vmatpush2.bf16.msra.mxu0 0
    %6817 = vmatprep.subr.bf16.mxu0 0
    %6818 = vmatpush2.bf16.msra.mxu0 0
    %6819 = vmatprep.subr.bf16.mxu0 0
    %6820 = vmatpush2.bf16.msra.mxu0 0
    %6821 = vmatprep.subr.bf16.mxu0 0
    %6822 = vmatpush2.bf16.msra.mxu0 0
    %6823 = vmatprep.subr.bf16.mxu0 0
    %6824 = vmatpush2.bf16.msra.mxu0 0
    %6825 = vmatprep.mubr.bf16.mxu0 0
    %6826 = vmatmul.mubr.bf16.gmra.mxu0 %v4872
    %v6827 = vpop.f32.mrf.mxu0
    %v6828 = vadd.f32 0.0, %v6827
    %v6829 = vpop.f32.mrf.mxu0
    %v6830 = vpop.f32.mrf.mxu0
    %v6831 = vadd.f32 0.0, %v6830
    %v6832 = vpop.f32.mrf.mxu0
    %6833 = vmatprep.mubr.bf16.mxu0 0
    %6834 = vmatmul.mubr.bf16.gmra.mxu0 %v4875
    %v6835 = vpop.f32.mrf.mxu0
    %v6836 = vadd.f32 0.0, %v6835
    %v6837 = vpop.f32.mrf.mxu0
    %v6838 = vpop.f32.mrf.mxu0
    %v6839 = vadd.f32 0.0, %v6838
    %v6840 = vpop.f32.mrf.mxu0
    %6841 = vdwg.mxu0
    %v6842 = vpack.c.bf16 %v6831, %v6828
    %v6843 = vpack.c.bf16 %v6839, %v6836
    %v6846 = vunpack.c.l.b16 %v6842
    %v6847 = vunpack.c.h.b16 %v6842
    %v6848 = vunpack.c.l.b16 %v6843
    %v6849 = vunpack.c.h.b16 %v6843
    %v6850 = vpack.c.b16 %v6846, %v6846
    %v6851 = vpack.c.b16 %v6847, %v6847
    %v6852 = vpack.c.b16 %v6848, %v6848
    %v6853 = vpack.c.b16 %v6849, %v6849
    %v6855 = vsel %vm344, %v6756, 0
    %v6858 = vsel %vm831, %v6850, 0
    %6860 = vmatprep.subr.bf16.mxu0 0
    %6861 = vmatpush1.bf16.msra.mxu0 0
    %6862 = vmatprep.subr.bf16.mxu0 0
    %6863 = vmatpush1.bf16.msra.mxu0 0
    %6864 = vmatprep.subr.bf16.mxu0 0
    %6865 = vmatpush1.bf16.msra.mxu0 0
    %6866 = vmatprep.subr.bf16.mxu0 0
    %6867 = vmatpush1.bf16.msra.mxu0 0
    %6868 = vmatprep.subr.bf16.mxu0 0
    %6869 = vmatpush1.bf16.msra.mxu0 0
    %6870 = vmatprep.subr.bf16.mxu0 0
    %6871 = vmatpush1.bf16.msra.mxu0 0
    %6872 = vmatprep.subr.bf16.mxu0 0
    %6873 = vmatpush1.bf16.msra.mxu0 0
    %6874 = vmatprep.subr.bf16.mxu0 0
    %6875 = vmatpush1.bf16.msra.mxu0 %v6858
    %6876 = vmatprep.subr.bf16.mxu0 0
    %6877 = vmatpush2.bf16.msra.mxu0 0
    %6878 = vmatprep.subr.bf16.mxu0 0
    %6879 = vmatpush2.bf16.msra.mxu0 0
    %6880 = vmatprep.subr.bf16.mxu0 0
    %6881 = vmatpush2.bf16.msra.mxu0 0
    %6882 = vmatprep.subr.bf16.mxu0 0
    %6883 = vmatpush2.bf16.msra.mxu0 0
    %6884 = vmatprep.subr.bf16.mxu0 0
    %6885 = vmatpush2.bf16.msra.mxu0 0
    %6886 = vmatprep.subr.bf16.mxu0 0
    %6887 = vmatpush2.bf16.msra.mxu0 0
    %6888 = vmatprep.subr.bf16.mxu0 0
    %6889 = vmatpush2.bf16.msra.mxu0 0
    %6890 = vmatprep.subr.bf16.mxu0 0
    %6891 = vmatpush2.bf16.msra.mxu0 0
    %6892 = vmatprep.mubr.bf16.mxu0 0
    %6893 = vmatmul.mubr.bf16.gmra.mxu0 %v6855
    %v6894 = vpop.f32.mrf.mxu0
    %v6895 = vadd.f32 0.0, %v6894
    %v6896 = vpop.f32.mrf.mxu0
    %v6897 = vpop.f32.mrf.mxu0
    %v6898 = vpop.f32.mrf.mxu0
    %6899 = vdwg.mxu0
    %v6901 = vsel %vm344, %v6757, 0
    %v6904 = vsel %vm831, %v6851, 0
    %6906 = vmatprep.subr.bf16.mxu0 0
    %6907 = vmatpush1.bf16.msra.mxu0 0
    %6908 = vmatprep.subr.bf16.mxu0 0
    %6909 = vmatpush1.bf16.msra.mxu0 0
    %6910 = vmatprep.subr.bf16.mxu0 0
    %6911 = vmatpush1.bf16.msra.mxu0 0
    %6912 = vmatprep.subr.bf16.mxu0 0
    %6913 = vmatpush1.bf16.msra.mxu0 0
    %6914 = vmatprep.subr.bf16.mxu0 0
    %6915 = vmatpush1.bf16.msra.mxu0 0
    %6916 = vmatprep.subr.bf16.mxu0 0
    %6917 = vmatpush1.bf16.msra.mxu0 0
    %6918 = vmatprep.subr.bf16.mxu0 0
    %6919 = vmatpush1.bf16.msra.mxu0 0
    %6920 = vmatprep.subr.bf16.mxu0 0
    %6921 = vmatpush1.bf16.msra.mxu0 %v6904
    %6922 = vmatprep.subr.bf16.mxu0 0
    %6923 = vmatpush2.bf16.msra.mxu0 0
    %6924 = vmatprep.subr.bf16.mxu0 0
    %6925 = vmatpush2.bf16.msra.mxu0 0
    %6926 = vmatprep.subr.bf16.mxu0 0
    %6927 = vmatpush2.bf16.msra.mxu0 0
    %6928 = vmatprep.subr.bf16.mxu0 0
    %6929 = vmatpush2.bf16.msra.mxu0 0
    %6930 = vmatprep.subr.bf16.mxu0 0
    %6931 = vmatpush2.bf16.msra.mxu0 0
    %6932 = vmatprep.subr.bf16.mxu0 0
    %6933 = vmatpush2.bf16.msra.mxu0 0
    %6934 = vmatprep.subr.bf16.mxu0 0
    %6935 = vmatpush2.bf16.msra.mxu0 0
    %6936 = vmatprep.subr.bf16.mxu0 0
    %6937 = vmatpush2.bf16.msra.mxu0 0
    %6938 = vmatprep.mubr.bf16.mxu0 0
    %6939 = vmatmul.mubr.bf16.gmra.mxu0 %v6901
    %v6940 = vpop.f32.mrf.mxu0
    %v6941 = vadd.f32 0.0, %v6940
    %v6942 = vpop.f32.mrf.mxu0
    %v6943 = vpop.f32.mrf.mxu0
    %v6944 = vpop.f32.mrf.mxu0
    %6945 = vdwg.mxu0
    %v6947 = vsel %vm344, %v6758, 0
    %v6950 = vsel %vm831, %v6852, 0
    %6952 = vmatprep.subr.bf16.mxu0 0
    %6953 = vmatpush1.bf16.msra.mxu0 0
    %6954 = vmatprep.subr.bf16.mxu0 0
    %6955 = vmatpush1.bf16.msra.mxu0 0
    %6956 = vmatprep.subr.bf16.mxu0 0
    %6957 = vmatpush1.bf16.msra.mxu0 0
    %6958 = vmatprep.subr.bf16.mxu0 0
    %6959 = vmatpush1.bf16.msra.mxu0 0
    %6960 = vmatprep.subr.bf16.mxu0 0
    %6961 = vmatpush1.bf16.msra.mxu0 0
    %6962 = vmatprep.subr.bf16.mxu0 0
    %6963 = vmatpush1.bf16.msra.mxu0 0
    %6964 = vmatprep.subr.bf16.mxu0 0
    %6965 = vmatpush1.bf16.msra.mxu0 0
    %6966 = vmatprep.subr.bf16.mxu0 0
    %6967 = vmatpush1.bf16.msra.mxu0 %v6950
    %6968 = vmatprep.subr.bf16.mxu0 0
    %6969 = vmatpush2.bf16.msra.mxu0 0
    %6970 = vmatprep.subr.bf16.mxu0 0
    %6971 = vmatpush2.bf16.msra.mxu0 0
    %6972 = vmatprep.subr.bf16.mxu0 0
    %6973 = vmatpush2.bf16.msra.mxu0 0
    %6974 = vmatprep.subr.bf16.mxu0 0
    %6975 = vmatpush2.bf16.msra.mxu0 0
    %6976 = vmatprep.subr.bf16.mxu0 0
    %6977 = vmatpush2.bf16.msra.mxu0 0
    %6978 = vmatprep.subr.bf16.mxu0 0
    %6979 = vmatpush2.bf16.msra.mxu0 0
    %6980 = vmatprep.subr.bf16.mxu0 0
    %6981 = vmatpush2.bf16.msra.mxu0 0
    %6982 = vmatprep.subr.bf16.mxu0 0
    %6983 = vmatpush2.bf16.msra.mxu0 0
    %6984 = vmatprep.mubr.bf16.mxu0 0
    %6985 = vmatmul.mubr.bf16.gmra.mxu0 %v6947
    %v6986 = vpop.f32.mrf.mxu0
    %v6987 = vadd.f32 0.0, %v6986
    %v6988 = vpop.f32.mrf.mxu0
    %v6989 = vpop.f32.mrf.mxu0
    %v6990 = vpop.f32.mrf.mxu0
    %6991 = vdwg.mxu0
    %v6993 = vsel %vm344, %v6759, 0
    %v6996 = vsel %vm831, %v6853, 0
    %6998 = vmatprep.subr.bf16.mxu0 0
    %6999 = vmatpush1.bf16.msra.mxu0 0
    %7000 = vmatprep.subr.bf16.mxu0 0
    %7001 = vmatpush1.bf16.msra.mxu0 0
    %7002 = vmatprep.subr.bf16.mxu0 0
    %7003 = vmatpush1.bf16.msra.mxu0 0
    %7004 = vmatprep.subr.bf16.mxu0 0
    %7005 = vmatpush1.bf16.msra.mxu0 0
    %7006 = vmatprep.subr.bf16.mxu0 0
    %7007 = vmatpush1.bf16.msra.mxu0 0
    %7008 = vmatprep.subr.bf16.mxu0 0
    %7009 = vmatpush1.bf16.msra.mxu0 0
    %7010 = vmatprep.subr.bf16.mxu0 0
    %7011 = vmatpush1.bf16.msra.mxu0 0
    %7012 = vmatprep.subr.bf16.mxu0 0
    %7013 = vmatpush1.bf16.msra.mxu0 %v6996
    %7014 = vmatprep.subr.bf16.mxu0 0
    %7015 = vmatpush2.bf16.msra.mxu0 0
    %7016 = vmatprep.subr.bf16.mxu0 0
    %7017 = vmatpush2.bf16.msra.mxu0 0
    %7018 = vmatprep.subr.bf16.mxu0 0
    %7019 = vmatpush2.bf16.msra.mxu0 0
    %7020 = vmatprep.subr.bf16.mxu0 0
    %7021 = vmatpush2.bf16.msra.mxu0 0
    %7022 = vmatprep.subr.bf16.mxu0 0
    %7023 = vmatpush2.bf16.msra.mxu0 0
    %7024 = vmatprep.subr.bf16.mxu0 0
    %7025 = vmatpush2.bf16.msra.mxu0 0
    %7026 = vmatprep.subr.bf16.mxu0 0
    %7027 = vmatpush2.bf16.msra.mxu0 0
    %7028 = vmatprep.subr.bf16.mxu0 0
    %7029 = vmatpush2.bf16.msra.mxu0 0
    %7030 = vmatprep.mubr.bf16.mxu0 0
    %7031 = vmatmul.mubr.bf16.gmra.mxu0 %v6993
    %v7032 = vpop.f32.mrf.mxu0
    %v7033 = vadd.f32 0.0, %v7032
    %v7034 = vpop.f32.mrf.mxu0
    %v7035 = vpop.f32.mrf.mxu0
    %v7036 = vpop.f32.mrf.mxu0
    %7037 = vdwg.mxu0
    %v7038 = vadd.f32 %v6508, %v6895
    %v7039 = vadd.f32 %v6509, %v6941
    %v7040 = vadd.f32 %v6510, %v6987
    %v7041 = vadd.f32 %v6511, %v7033
    %v7042 = vadd.f32 %v4822, %v7038
    %v7043 = vadd.f32 %v4823, %v7039
    %v7044 = vadd.f32 %v4824, %v7040
    %v7045 = vadd.f32 %v4825, %v7041
    %v7046 = vlaneseq
    %v7047 = vshrl.u32 %v7046, 7
    %v7048 = vsub.s32 0, %v7047
    %v7049 = vrot.slane %v4827, %v7048
    %v7050 = vadd.f32 %v7042, %v7049
    %v7051 = vadd.f32 %v7043, %v7049
    %v7052 = vadd.f32 %v7044, %v7049
    %v7053 = vadd.f32 %v7045, %v7049
    %v7058 = vrot.slane %v7051, 7
    %v7059 = vrot.slane %v7052, 6
    %vm7060 = vcmask 1041409
    %v7061 = vsel %vm7060, %v7059, %v7058
    %v7062 = vrot.slane %v7053, 5
    %vm7063 = vcmask 1042434
    %v7064 = vsel %vm7063, %v7062, %v7061
    %vm7067 = vcmask 523271
    %v7068 = vsel %vm7067, %v7050, 0.0
    %7069 = vadd.xlane.f32.xlu0 %v7068
    %v7070 = vpop.xlane.xlu0 %7069
    %vm7071 = vcmask 518144
    %v7072 = vsel %vm7071, %v7064, 0.0
    %7073 = vadd.xlane.f32.xlu0 %v7072
    %v7074 = vpop.xlane.xlu0 %7073
    %v7075 = vmul.f32 %v7070, %v2281
    %v7076 = vmul.f32 %v7074, %v2281
    %v7079 = vrot.slane %v7076, 1
    %v7080 = vrot.slane %v7076, 2
    %v7081 = vrot.slane %v7076, 3
    %v7086 = vsub.f32 %v7050, %v7075
    %v7087 = vsub.f32 %v7051, %v7079
    %v7088 = vsub.f32 %v7052, %v7080
    %v7089 = vsub.f32 %v7053, %v7081
    %v7090 = vmul.f32 %v7086, %v7086
    %v7091 = vmul.f32 %v7087, %v7087
    %v7092 = vmul.f32 %v7088, %v7088
    %v7093 = vmul.f32 %v7089, %v7089
    %v7098 = vrot.slane %v7091, 7
    %v7099 = vrot.slane %v7092, 6
    %v7100 = vsel %vm7060, %v7099, %v7098
    %v7101 = vrot.slane %v7093, 5
    %v7102 = vsel %vm7063, %v7101, %v7100
    %v7105 = vsel %vm7067, %v7090, 0.0
    %7106 = vadd.xlane.f32.xlu0 %v7105
    %v7107 = vpop.xlane.xlu0 %7106
    %v7108 = vsel %vm7071, %v7102, 0.0
    %7109 = vadd.xlane.f32.xlu0 %v7108
    %v7110 = vpop.xlane.xlu0 %7109
    %v7111 = vmul.f32 %v7107, %v2281
    %v7112 = vmul.f32 %v7110, %v2281
    %v7113 = vadd.f32 %v7111, 1e-05
    %v7114 = vadd.f32 %v7112, 1e-05
    %v7115 = vrsqrt.pop %v7113
    %v7116 = vrsqrt.pop %v7114
    %v7119 = vrot.slane %v7116, 1
    %v7120 = vrot.slane %v7116, 2
    %v7121 = vrot.slane %v7116, 3
    %v7126 = vmul.f32 %v7086, %v7115
    %v7127 = vmul.f32 %v7087, %v7119
    %v7128 = vmul.f32 %v7088, %v7120
    %v7129 = vmul.f32 %v7089, %v7121
    %v7130 = vlaneseq
    %v7131 = vshrl.u32 %v7130, 7
    %v7132 = vsub.s32 1, %v7131
    %v7133 = vrot.slane %v4827, %v7132
    %v7134 = vmul.f32 %v7126, %v7133
    %v7135 = vmul.f32 %v7127, %v7133
    %v7136 = vmul.f32 %v7128, %v7133
    %v7137 = vmul.f32 %v7129, %v7133
    %v7138 = vlaneseq
    %v7139 = vshrl.u32 %v7138, 7
    %v7140 = vsub.s32 2, %v7139
    %v7141 = vrot.slane %v4827, %v7140
    %v7142 = vadd.f32 %v7134, %v7141
    %v7143 = vadd.f32 %v7135, %v7141
    %v7144 = vadd.f32 %v7136, %v7141
    %v7145 = vadd.f32 %v7137, %v7141
    %v7146 = vpack.c.bf16 %v7142, %v7142
    %v7147 = vpack.c.bf16 %v7143, %v7143
    %v7148 = vpack.c.bf16 %v7144, %v7144
    %v7149 = vpack.c.bf16 %v7145, %v7145
    %s7150 = scalar_lea.vmem %s5, 512
    %v7151 = vld [vmem:[%s7150] sm:$0xff]
    %v7152 = vld [vmem:[%s7150 + $0x8] sm:$0xff]
    %v7153 = vld [vmem:[%s7150 + $0x10] sm:$0xff]
    %v7154 = vld [vmem:[%s7150 + $0x18] sm:$0xff]
    %v7155 = vld [vmem:[%s7150 + $0x20] sm:$0xff]
    %v7156 = vld [vmem:[%s7150 + $0x28] sm:$0xff]
    %v7157 = vld [vmem:[%s7150 + $0x30] sm:$0xff]
    %v7158 = vld [vmem:[%s7150 + $0x38] sm:$0xff]
    %v7159 = vld [vmem:[%s7150 + $0x40] sm:$0xff]
    %v7160 = vld [vmem:[%s7150 + $0x48] sm:$0xff]
    %v7161 = vld [vmem:[%s7150 + $0x50] sm:$0xff]
    %v7162 = vld [vmem:[%s7150 + $0x58] sm:$0xff]
    %v7163 = vld [vmem:[%s7150 + $0x60] sm:$0xff]
    %v7164 = vld [vmem:[%s7150 + $0x68] sm:$0xff]
    %v7165 = vld [vmem:[%s7150 + $0x70] sm:$0xff]
    %v7166 = vld [vmem:[%s7150 + $0x78] sm:$0xff]
    %v7167 = vld [vmem:[%s7150 + $0x80] sm:$0xff]
    %v7168 = vld [vmem:[%s7150 + $0x88] sm:$0xff]
    %v7169 = vld [vmem:[%s7150 + $0x90] sm:$0xff]
    %v7170 = vld [vmem:[%s7150 + $0x98] sm:$0xff]
    %v7171 = vld [vmem:[%s7150 + $0xa0] sm:$0xff]
    %v7172 = vld [vmem:[%s7150 + $0xa8] sm:$0xff]
    %v7173 = vld [vmem:[%s7150 + $0xb0] sm:$0xff]
    %v7174 = vld [vmem:[%s7150 + $0xb8] sm:$0xff]
    %v7175 = vld [vmem:[%s7150 + $0xc0] sm:$0xff]
    %v7176 = vld [vmem:[%s7150 + $0xc8] sm:$0xff]
    %v7177 = vld [vmem:[%s7150 + $0xd0] sm:$0xff]
    %v7178 = vld [vmem:[%s7150 + $0xd8] sm:$0xff]
    %v7179 = vld [vmem:[%s7150 + $0xe0] sm:$0xff]
    %v7180 = vld [vmem:[%s7150 + $0xe8] sm:$0xff]
    %v7181 = vld [vmem:[%s7150 + $0xf0] sm:$0xff]
    %v7182 = vld [vmem:[%s7150 + $0xf8] sm:$0xff]
    %v7183 = vld [vmem:[%s7150 + $0x100] sm:$0xff]
    %v7184 = vld [vmem:[%s7150 + $0x108] sm:$0xff]
    %v7185 = vld [vmem:[%s7150 + $0x110] sm:$0xff]
    %v7186 = vld [vmem:[%s7150 + $0x118] sm:$0xff]
    %v7187 = vld [vmem:[%s7150 + $0x120] sm:$0xff]
    %v7188 = vld [vmem:[%s7150 + $0x128] sm:$0xff]
    %v7189 = vld [vmem:[%s7150 + $0x130] sm:$0xff]
    %v7190 = vld [vmem:[%s7150 + $0x138] sm:$0xff]
    %v7191 = vld [vmem:[%s7150 + $0x140] sm:$0xff]
    %v7192 = vld [vmem:[%s7150 + $0x148] sm:$0xff]
    %v7193 = vld [vmem:[%s7150 + $0x150] sm:$0xff]
    %v7194 = vld [vmem:[%s7150 + $0x158] sm:$0xff]
    %v7195 = vld [vmem:[%s7150 + $0x160] sm:$0xff]
    %v7196 = vld [vmem:[%s7150 + $0x168] sm:$0xff]
    %v7197 = vld [vmem:[%s7150 + $0x170] sm:$0xff]
    %v7198 = vld [vmem:[%s7150 + $0x178] sm:$0xff]
    %v7199 = vld [vmem:[%s7150 + $0x180] sm:$0xff]
    %v7200 = vld [vmem:[%s7150 + $0x188] sm:$0xff]
    %v7201 = vld [vmem:[%s7150 + $0x190] sm:$0xff]
    %v7202 = vld [vmem:[%s7150 + $0x198] sm:$0xff]
    %v7203 = vld [vmem:[%s7150 + $0x1a0] sm:$0xff]
    %v7204 = vld [vmem:[%s7150 + $0x1a8] sm:$0xff]
    %v7205 = vld [vmem:[%s7150 + $0x1b0] sm:$0xff]
    %v7206 = vld [vmem:[%s7150 + $0x1b8] sm:$0xff]
    %v7207 = vld [vmem:[%s7150 + $0x1c0] sm:$0xff]
    %v7208 = vld [vmem:[%s7150 + $0x1c8] sm:$0xff]
    %v7209 = vld [vmem:[%s7150 + $0x1d0] sm:$0xff]
    %v7210 = vld [vmem:[%s7150 + $0x1d8] sm:$0xff]
    %v7211 = vld [vmem:[%s7150 + $0x1e0] sm:$0xff]
    %v7212 = vld [vmem:[%s7150 + $0x1e8] sm:$0xff]
    %v7213 = vld [vmem:[%s7150 + $0x1f0] sm:$0xff]
    %v7214 = vld [vmem:[%s7150 + $0x1f8] sm:$0xff]
    %s7215 = scalar_lea.vmem %s6, 16
    %v7216 = vld [vmem:[%s7215] sm:$0xff]
    %v7217 = vld [vmem:[%s7215 + $0x8] sm:$0xff]
    %v7220 = vlaneseq
    %v7221 = vshrl.u32 %v7220, 7
    %v7222 = vsub.s32 0, %v7221
    %v7223 = vrot.slane %v7216, %v7222
    %v7224 = vlaneseq
    %v7225 = vshrl.u32 %v7224, 7
    %v7226 = vsub.s32 1, %v7225
    %v7227 = vrot.slane %v7216, %v7226
    %v7228 = vlaneseq
    %v7229 = vshrl.u32 %v7228, 7
    %v7230 = vsub.s32 2, %v7229
    %v7231 = vrot.slane %v7216, %v7230
    %v7232 = vlaneseq
    %v7233 = vshrl.u32 %v7232, 7
    %v7234 = vsub.s32 3, %v7233
    %v7235 = vrot.slane %v7216, %v7234
    %v7236 = vlaneseq
    %v7237 = vshrl.u32 %v7236, 7
    %v7238 = vsub.s32 4, %v7237
    %v7239 = vrot.slane %v7216, %v7238
    %v7240 = vlaneseq
    %v7241 = vshrl.u32 %v7240, 7
    %v7242 = vsub.s32 5, %v7241
    %v7243 = vrot.slane %v7216, %v7242
    %v7244 = vlaneseq
    %v7245 = vshrl.u32 %v7244, 7
    %v7246 = vsub.s32 6, %v7245
    %v7247 = vrot.slane %v7216, %v7246
    %v7248 = vlaneseq
    %v7249 = vshrl.u32 %v7248, 7
    %v7250 = vsub.s32 7, %v7249
    %v7251 = vrot.slane %v7216, %v7250
    %v7252 = vlaneseq
    %v7253 = vshrl.u32 %v7252, 7
    %v7254 = vsub.s32 0, %v7253
    %v7255 = vrot.slane %v7217, %v7254
    %v7256 = vlaneseq
    %v7257 = vshrl.u32 %v7256, 7
    %v7258 = vsub.s32 1, %v7257
    %v7259 = vrot.slane %v7217, %v7258
    %v7260 = vlaneseq
    %v7261 = vshrl.u32 %v7260, 7
    %v7262 = vsub.s32 2, %v7261
    %v7263 = vrot.slane %v7217, %v7262
    %v7264 = vlaneseq
    %v7265 = vshrl.u32 %v7264, 7
    %v7266 = vsub.s32 3, %v7265
    %v7267 = vrot.slane %v7217, %v7266
    %v7268 = vlaneseq
    %v7269 = vshrl.u32 %v7268, 7
    %v7270 = vsub.s32 4, %v7269
    %v7271 = vrot.slane %v7217, %v7270
    %v7272 = vlaneseq
    %v7273 = vshrl.u32 %v7272, 7
    %v7274 = vsub.s32 5, %v7273
    %v7275 = vrot.slane %v7217, %v7274
    %v7276 = vlaneseq
    %v7277 = vshrl.u32 %v7276, 7
    %v7278 = vsub.s32 6, %v7277
    %v7279 = vrot.slane %v7217, %v7278
    %v7280 = vlaneseq
    %v7281 = vshrl.u32 %v7280, 7
    %v7282 = vsub.s32 7, %v7281
    %v7283 = vrot.slane %v7217, %v7282
    %v7304 = vunpack.c.l.b16 %v7146
    %v7305 = vunpack.c.l.b16 %v7147
    %v7306 = vunpack.c.l.b16 %v7148
    %v7307 = vunpack.c.l.b16 %v7149
    %v7308 = vrot.slane %v7304, 7
    %v7309 = vrot.slane %v7305, 6
    %v7310 = vsel %vm7060, %v7309, %v7308
    %v7311 = vrot.slane %v7306, 5
    %v7312 = vsel %vm7063, %v7311, %v7310
    %v7313 = vrot.slane %v7307, 4
    %vm7314 = vcmask 1043459
    %v7315 = vsel %vm7314, %v7313, %v7312
    %v7316 = vpack.c.b16 %v7315, %v7315
    %v7381 = vunpack.c.l.b16 %v7151
    %v7382 = vunpack.c.h.b16 %v7151
    %v7383 = vunpack.c.l.b16 %v7152
    %v7384 = vunpack.c.h.b16 %v7152
    %v7385 = vunpack.c.l.b16 %v7153
    %v7386 = vunpack.c.h.b16 %v7153
    %v7387 = vunpack.c.l.b16 %v7154
    %v7388 = vunpack.c.h.b16 %v7154
    %v7389 = vunpack.c.l.b16 %v7155
    %v7390 = vunpack.c.h.b16 %v7155
    %v7391 = vunpack.c.l.b16 %v7156
    %v7392 = vunpack.c.h.b16 %v7156
    %v7393 = vunpack.c.l.b16 %v7157
    %v7394 = vunpack.c.h.b16 %v7157
    %v7395 = vunpack.c.l.b16 %v7158
    %v7396 = vunpack.c.h.b16 %v7158
    %v7397 = vunpack.c.l.b16 %v7159
    %v7398 = vunpack.c.h.b16 %v7159
    %v7399 = vunpack.c.l.b16 %v7160
    %v7400 = vunpack.c.h.b16 %v7160
    %v7401 = vunpack.c.l.b16 %v7161
    %v7402 = vunpack.c.h.b16 %v7161
    %v7403 = vunpack.c.l.b16 %v7162
    %v7404 = vunpack.c.h.b16 %v7162
    %v7405 = vunpack.c.l.b16 %v7163
    %v7406 = vunpack.c.h.b16 %v7163
    %v7407 = vunpack.c.l.b16 %v7164
    %v7408 = vunpack.c.h.b16 %v7164
    %v7409 = vunpack.c.l.b16 %v7165
    %v7410 = vunpack.c.h.b16 %v7165
    %v7411 = vunpack.c.l.b16 %v7166
    %v7412 = vunpack.c.h.b16 %v7166
    %v7413 = vunpack.c.l.b16 %v7167
    %v7414 = vunpack.c.h.b16 %v7167
    %v7415 = vunpack.c.l.b16 %v7168
    %v7416 = vunpack.c.h.b16 %v7168
    %v7417 = vunpack.c.l.b16 %v7169
    %v7418 = vunpack.c.h.b16 %v7169
    %v7419 = vunpack.c.l.b16 %v7170
    %v7420 = vunpack.c.h.b16 %v7170
    %v7421 = vunpack.c.l.b16 %v7171
    %v7422 = vunpack.c.h.b16 %v7171
    %v7423 = vunpack.c.l.b16 %v7172
    %v7424 = vunpack.c.h.b16 %v7172
    %v7425 = vunpack.c.l.b16 %v7173
    %v7426 = vunpack.c.h.b16 %v7173
    %v7427 = vunpack.c.l.b16 %v7174
    %v7428 = vunpack.c.h.b16 %v7174
    %v7429 = vunpack.c.l.b16 %v7175
    %v7430 = vunpack.c.h.b16 %v7175
    %v7431 = vunpack.c.l.b16 %v7176
    %v7432 = vunpack.c.h.b16 %v7176
    %v7433 = vunpack.c.l.b16 %v7177
    %v7434 = vunpack.c.h.b16 %v7177
    %v7435 = vunpack.c.l.b16 %v7178
    %v7436 = vunpack.c.h.b16 %v7178
    %v7437 = vunpack.c.l.b16 %v7179
    %v7438 = vunpack.c.h.b16 %v7179
    %v7439 = vunpack.c.l.b16 %v7180
    %v7440 = vunpack.c.h.b16 %v7180
    %v7441 = vunpack.c.l.b16 %v7181
    %v7442 = vunpack.c.h.b16 %v7181
    %v7443 = vunpack.c.l.b16 %v7182
    %v7444 = vunpack.c.h.b16 %v7182
    %v7445 = vunpack.c.l.b16 %v7183
    %v7446 = vunpack.c.h.b16 %v7183
    %v7447 = vunpack.c.l.b16 %v7184
    %v7448 = vunpack.c.h.b16 %v7184
    %v7449 = vunpack.c.l.b16 %v7185
    %v7450 = vunpack.c.h.b16 %v7185
    %v7451 = vunpack.c.l.b16 %v7186
    %v7452 = vunpack.c.h.b16 %v7186
    %v7453 = vunpack.c.l.b16 %v7187
    %v7454 = vunpack.c.h.b16 %v7187
    %v7455 = vunpack.c.l.b16 %v7188
    %v7456 = vunpack.c.h.b16 %v7188
    %v7457 = vunpack.c.l.b16 %v7189
    %v7458 = vunpack.c.h.b16 %v7189
    %v7459 = vunpack.c.l.b16 %v7190
    %v7460 = vunpack.c.h.b16 %v7190
    %v7461 = vunpack.c.l.b16 %v7191
    %v7462 = vunpack.c.h.b16 %v7191
    %v7463 = vunpack.c.l.b16 %v7192
    %v7464 = vunpack.c.h.b16 %v7192
    %v7465 = vunpack.c.l.b16 %v7193
    %v7466 = vunpack.c.h.b16 %v7193
    %v7467 = vunpack.c.l.b16 %v7194
    %v7468 = vunpack.c.h.b16 %v7194
    %v7469 = vunpack.c.l.b16 %v7195
    %v7470 = vunpack.c.h.b16 %v7195
    %v7471 = vunpack.c.l.b16 %v7196
    %v7472 = vunpack.c.h.b16 %v7196
    %v7473 = vunpack.c.l.b16 %v7197
    %v7474 = vunpack.c.h.b16 %v7197
    %v7475 = vunpack.c.l.b16 %v7198
    %v7476 = vunpack.c.h.b16 %v7198
    %v7477 = vunpack.c.l.b16 %v7199
    %v7478 = vunpack.c.h.b16 %v7199
    %v7479 = vunpack.c.l.b16 %v7200
    %v7480 = vunpack.c.h.b16 %v7200
    %v7481 = vunpack.c.l.b16 %v7201
    %v7482 = vunpack.c.h.b16 %v7201
    %v7483 = vunpack.c.l.b16 %v7202
    %v7484 = vunpack.c.h.b16 %v7202
    %v7485 = vunpack.c.l.b16 %v7203
    %v7486 = vunpack.c.h.b16 %v7203
    %v7487 = vunpack.c.l.b16 %v7204
    %v7488 = vunpack.c.h.b16 %v7204
    %v7489 = vunpack.c.l.b16 %v7205
    %v7490 = vunpack.c.h.b16 %v7205
    %v7491 = vunpack.c.l.b16 %v7206
    %v7492 = vunpack.c.h.b16 %v7206
    %v7493 = vunpack.c.l.b16 %v7207
    %v7494 = vunpack.c.h.b16 %v7207
    %v7495 = vunpack.c.l.b16 %v7208
    %v7496 = vunpack.c.h.b16 %v7208
    %v7497 = vunpack.c.l.b16 %v7209
    %v7498 = vunpack.c.h.b16 %v7209
    %v7499 = vunpack.c.l.b16 %v7210
    %v7500 = vunpack.c.h.b16 %v7210
    %v7501 = vunpack.c.l.b16 %v7211
    %v7502 = vunpack.c.h.b16 %v7211
    %v7503 = vunpack.c.l.b16 %v7212
    %v7504 = vunpack.c.h.b16 %v7212
    %v7505 = vunpack.c.l.b16 %v7213
    %v7506 = vunpack.c.h.b16 %v7213
    %v7507 = vunpack.c.l.b16 %v7214
    %v7508 = vunpack.c.h.b16 %v7214
    %v7509 = vpack.c.b16 %v7397, %v7381
    %v7510 = vpack.c.b16 %v7398, %v7382
    %v7511 = vpack.c.b16 %v7399, %v7383
    %v7512 = vpack.c.b16 %v7400, %v7384
    %v7513 = vpack.c.b16 %v7401, %v7385
    %v7514 = vpack.c.b16 %v7402, %v7386
    %v7515 = vpack.c.b16 %v7403, %v7387
    %v7516 = vpack.c.b16 %v7404, %v7388
    %v7517 = vpack.c.b16 %v7405, %v7389
    %v7518 = vpack.c.b16 %v7406, %v7390
    %v7519 = vpack.c.b16 %v7407, %v7391
    %v7520 = vpack.c.b16 %v7408, %v7392
    %v7521 = vpack.c.b16 %v7409, %v7393
    %v7522 = vpack.c.b16 %v7410, %v7394
    %v7523 = vpack.c.b16 %v7411, %v7395
    %v7524 = vpack.c.b16 %v7412, %v7396
    %v7525 = vpack.c.b16 %v7429, %v7413
    %v7526 = vpack.c.b16 %v7430, %v7414
    %v7527 = vpack.c.b16 %v7431, %v7415
    %v7528 = vpack.c.b16 %v7432, %v7416
    %v7529 = vpack.c.b16 %v7433, %v7417
    %v7530 = vpack.c.b16 %v7434, %v7418
    %v7531 = vpack.c.b16 %v7435, %v7419
    %v7532 = vpack.c.b16 %v7436, %v7420
    %v7533 = vpack.c.b16 %v7437, %v7421
    %v7534 = vpack.c.b16 %v7438, %v7422
    %v7535 = vpack.c.b16 %v7439, %v7423
    %v7536 = vpack.c.b16 %v7440, %v7424
    %v7537 = vpack.c.b16 %v7441, %v7425
    %v7538 = vpack.c.b16 %v7442, %v7426
    %v7539 = vpack.c.b16 %v7443, %v7427
    %v7540 = vpack.c.b16 %v7444, %v7428
    %v7541 = vpack.c.b16 %v7461, %v7445
    %v7542 = vpack.c.b16 %v7462, %v7446
    %v7543 = vpack.c.b16 %v7463, %v7447
    %v7544 = vpack.c.b16 %v7464, %v7448
    %v7545 = vpack.c.b16 %v7465, %v7449
    %v7546 = vpack.c.b16 %v7466, %v7450
    %v7547 = vpack.c.b16 %v7467, %v7451
    %v7548 = vpack.c.b16 %v7468, %v7452
    %v7549 = vpack.c.b16 %v7469, %v7453
    %v7550 = vpack.c.b16 %v7470, %v7454
    %v7551 = vpack.c.b16 %v7471, %v7455
    %v7552 = vpack.c.b16 %v7472, %v7456
    %v7553 = vpack.c.b16 %v7473, %v7457
    %v7554 = vpack.c.b16 %v7474, %v7458
    %v7555 = vpack.c.b16 %v7475, %v7459
    %v7556 = vpack.c.b16 %v7476, %v7460
    %v7557 = vpack.c.b16 %v7493, %v7477
    %v7558 = vpack.c.b16 %v7494, %v7478
    %v7559 = vpack.c.b16 %v7495, %v7479
    %v7560 = vpack.c.b16 %v7496, %v7480
    %v7561 = vpack.c.b16 %v7497, %v7481
    %v7562 = vpack.c.b16 %v7498, %v7482
    %v7563 = vpack.c.b16 %v7499, %v7483
    %v7564 = vpack.c.b16 %v7500, %v7484
    %v7565 = vpack.c.b16 %v7501, %v7485
    %v7566 = vpack.c.b16 %v7502, %v7486
    %v7567 = vpack.c.b16 %v7503, %v7487
    %v7568 = vpack.c.b16 %v7504, %v7488
    %v7569 = vpack.c.b16 %v7505, %v7489
    %v7570 = vpack.c.b16 %v7506, %v7490
    %v7571 = vpack.c.b16 %v7507, %v7491
    %v7572 = vpack.c.b16 %v7508, %v7492
    %v7638 = vsel %vm83, %v7316, 0
    %7640 = vmatprep.subr.bf16.mxu0 0
    %7641 = vmatpush1.bf16.msra.mxu0 0
    %7642 = vmatprep.subr.bf16.mxu0 0
    %7643 = vmatpush1.bf16.msra.mxu0 0
    %7644 = vmatprep.subr.bf16.mxu0 0
    %7645 = vmatpush1.bf16.msra.mxu0 0
    %7646 = vmatprep.subr.bf16.mxu0 0
    %7647 = vmatpush1.bf16.msra.mxu0 0
    %7648 = vmatprep.subr.bf16.mxu0 %v7558
    %7649 = vmatpush1.bf16.msra.mxu0 %v7557
    %7650 = vmatprep.subr.bf16.mxu0 %v7542
    %7651 = vmatpush1.bf16.msra.mxu0 %v7541
    %7652 = vmatprep.subr.bf16.mxu0 %v7526
    %7653 = vmatpush1.bf16.msra.mxu0 %v7525
    %7654 = vmatprep.subr.bf16.mxu0 %v7510
    %7655 = vmatpush1.bf16.msra.mxu0 %v7509
    %7656 = vmatprep.subr.bf16.mxu0 0
    %7657 = vmatpush2.bf16.msra.mxu0 0
    %7658 = vmatprep.subr.bf16.mxu0 0
    %7659 = vmatpush2.bf16.msra.mxu0 0
    %7660 = vmatprep.subr.bf16.mxu0 0
    %7661 = vmatpush2.bf16.msra.mxu0 0
    %7662 = vmatprep.subr.bf16.mxu0 0
    %7663 = vmatpush2.bf16.msra.mxu0 0
    %7664 = vmatprep.subr.bf16.mxu0 0
    %7665 = vmatpush2.bf16.msra.mxu0 0
    %7666 = vmatprep.subr.bf16.mxu0 0
    %7667 = vmatpush2.bf16.msra.mxu0 0
    %7668 = vmatprep.subr.bf16.mxu0 0
    %7669 = vmatpush2.bf16.msra.mxu0 0
    %7670 = vmatprep.subr.bf16.mxu0 0
    %7671 = vmatpush2.bf16.msra.mxu0 0
    %7672 = vmatprep.mubr.bf16.mxu0 0
    %7673 = vmatmul.mubr.bf16.gmra.mxu0 %v7638
    %v7674 = vpop.f32.mrf.mxu0
    %v7675 = vadd.f32 %v7223, %v7674
    %v7676 = vpop.f32.mrf.mxu0
    %v7677 = vadd.f32 %v7227, %v7676
    %v7678 = vpop.f32.mrf.mxu0
    %v7679 = vpop.f32.mrf.mxu0
    %7680 = vdwg.mxu0
    %7681 = vmatprep.subr.bf16.mxu0 0
    %7682 = vmatpush1.bf16.msra.mxu0 0
    %7683 = vmatprep.subr.bf16.mxu0 0
    %7684 = vmatpush1.bf16.msra.mxu0 0
    %7685 = vmatprep.subr.bf16.mxu0 0
    %7686 = vmatpush1.bf16.msra.mxu0 0
    %7687 = vmatprep.subr.bf16.mxu0 0
    %7688 = vmatpush1.bf16.msra.mxu0 0
    %7689 = vmatprep.subr.bf16.mxu0 %v7560
    %7690 = vmatpush1.bf16.msra.mxu0 %v7559
    %7691 = vmatprep.subr.bf16.mxu0 %v7544
    %7692 = vmatpush1.bf16.msra.mxu0 %v7543
    %7693 = vmatprep.subr.bf16.mxu0 %v7528
    %7694 = vmatpush1.bf16.msra.mxu0 %v7527
    %7695 = vmatprep.subr.bf16.mxu0 %v7512
    %7696 = vmatpush1.bf16.msra.mxu0 %v7511
    %7697 = vmatprep.subr.bf16.mxu0 0
    %7698 = vmatpush2.bf16.msra.mxu0 0
    %7699 = vmatprep.subr.bf16.mxu0 0
    %7700 = vmatpush2.bf16.msra.mxu0 0
    %7701 = vmatprep.subr.bf16.mxu0 0
    %7702 = vmatpush2.bf16.msra.mxu0 0
    %7703 = vmatprep.subr.bf16.mxu0 0
    %7704 = vmatpush2.bf16.msra.mxu0 0
    %7705 = vmatprep.subr.bf16.mxu0 0
    %7706 = vmatpush2.bf16.msra.mxu0 0
    %7707 = vmatprep.subr.bf16.mxu0 0
    %7708 = vmatpush2.bf16.msra.mxu0 0
    %7709 = vmatprep.subr.bf16.mxu0 0
    %7710 = vmatpush2.bf16.msra.mxu0 0
    %7711 = vmatprep.subr.bf16.mxu0 0
    %7712 = vmatpush2.bf16.msra.mxu0 0
    %7713 = vmatprep.mubr.bf16.mxu0 0
    %7714 = vmatmul.mubr.bf16.gmra.mxu0 %v7638
    %v7715 = vpop.f32.mrf.mxu0
    %v7716 = vadd.f32 %v7231, %v7715
    %v7717 = vpop.f32.mrf.mxu0
    %v7718 = vadd.f32 %v7235, %v7717
    %v7719 = vpop.f32.mrf.mxu0
    %v7720 = vpop.f32.mrf.mxu0
    %7721 = vdwg.mxu0
    %7722 = vmatprep.subr.bf16.mxu0 0
    %7723 = vmatpush1.bf16.msra.mxu0 0
    %7724 = vmatprep.subr.bf16.mxu0 0
    %7725 = vmatpush1.bf16.msra.mxu0 0
    %7726 = vmatprep.subr.bf16.mxu0 0
    %7727 = vmatpush1.bf16.msra.mxu0 0
    %7728 = vmatprep.subr.bf16.mxu0 0
    %7729 = vmatpush1.bf16.msra.mxu0 0
    %7730 = vmatprep.subr.bf16.mxu0 %v7562
    %7731 = vmatpush1.bf16.msra.mxu0 %v7561
    %7732 = vmatprep.subr.bf16.mxu0 %v7546
    %7733 = vmatpush1.bf16.msra.mxu0 %v7545
    %7734 = vmatprep.subr.bf16.mxu0 %v7530
    %7735 = vmatpush1.bf16.msra.mxu0 %v7529
    %7736 = vmatprep.subr.bf16.mxu0 %v7514
    %7737 = vmatpush1.bf16.msra.mxu0 %v7513
    %7738 = vmatprep.subr.bf16.mxu0 0
    %7739 = vmatpush2.bf16.msra.mxu0 0
    %7740 = vmatprep.subr.bf16.mxu0 0
    %7741 = vmatpush2.bf16.msra.mxu0 0
    %7742 = vmatprep.subr.bf16.mxu0 0
    %7743 = vmatpush2.bf16.msra.mxu0 0
    %7744 = vmatprep.subr.bf16.mxu0 0
    %7745 = vmatpush2.bf16.msra.mxu0 0
    %7746 = vmatprep.subr.bf16.mxu0 0
    %7747 = vmatpush2.bf16.msra.mxu0 0
    %7748 = vmatprep.subr.bf16.mxu0 0
    %7749 = vmatpush2.bf16.msra.mxu0 0
    %7750 = vmatprep.subr.bf16.mxu0 0
    %7751 = vmatpush2.bf16.msra.mxu0 0
    %7752 = vmatprep.subr.bf16.mxu0 0
    %7753 = vmatpush2.bf16.msra.mxu0 0
    %7754 = vmatprep.mubr.bf16.mxu0 0
    %7755 = vmatmul.mubr.bf16.gmra.mxu0 %v7638
    %v7756 = vpop.f32.mrf.mxu0
    %v7757 = vadd.f32 %v7239, %v7756
    %v7758 = vpop.f32.mrf.mxu0
    %v7759 = vadd.f32 %v7243, %v7758
    %v7760 = vpop.f32.mrf.mxu0
    %v7761 = vpop.f32.mrf.mxu0
    %7762 = vdwg.mxu0
    %7763 = vmatprep.subr.bf16.mxu0 0
    %7764 = vmatpush1.bf16.msra.mxu0 0
    %7765 = vmatprep.subr.bf16.mxu0 0
    %7766 = vmatpush1.bf16.msra.mxu0 0
    %7767 = vmatprep.subr.bf16.mxu0 0
    %7768 = vmatpush1.bf16.msra.mxu0 0
    %7769 = vmatprep.subr.bf16.mxu0 0
    %7770 = vmatpush1.bf16.msra.mxu0 0
    %7771 = vmatprep.subr.bf16.mxu0 %v7564
    %7772 = vmatpush1.bf16.msra.mxu0 %v7563
    %7773 = vmatprep.subr.bf16.mxu0 %v7548
    %7774 = vmatpush1.bf16.msra.mxu0 %v7547
    %7775 = vmatprep.subr.bf16.mxu0 %v7532
    %7776 = vmatpush1.bf16.msra.mxu0 %v7531
    %7777 = vmatprep.subr.bf16.mxu0 %v7516
    %7778 = vmatpush1.bf16.msra.mxu0 %v7515
    %7779 = vmatprep.subr.bf16.mxu0 0
    %7780 = vmatpush2.bf16.msra.mxu0 0
    %7781 = vmatprep.subr.bf16.mxu0 0
    %7782 = vmatpush2.bf16.msra.mxu0 0
    %7783 = vmatprep.subr.bf16.mxu0 0
    %7784 = vmatpush2.bf16.msra.mxu0 0
    %7785 = vmatprep.subr.bf16.mxu0 0
    %7786 = vmatpush2.bf16.msra.mxu0 0
    %7787 = vmatprep.subr.bf16.mxu0 0
    %7788 = vmatpush2.bf16.msra.mxu0 0
    %7789 = vmatprep.subr.bf16.mxu0 0
    %7790 = vmatpush2.bf16.msra.mxu0 0
    %7791 = vmatprep.subr.bf16.mxu0 0
    %7792 = vmatpush2.bf16.msra.mxu0 0
    %7793 = vmatprep.subr.bf16.mxu0 0
    %7794 = vmatpush2.bf16.msra.mxu0 0
    %7795 = vmatprep.mubr.bf16.mxu0 0
    %7796 = vmatmul.mubr.bf16.gmra.mxu0 %v7638
    %v7797 = vpop.f32.mrf.mxu0
    %v7798 = vadd.f32 %v7247, %v7797
    %v7799 = vpop.f32.mrf.mxu0
    %v7800 = vadd.f32 %v7251, %v7799
    %v7801 = vpop.f32.mrf.mxu0
    %v7802 = vpop.f32.mrf.mxu0
    %7803 = vdwg.mxu0
    %7804 = vmatprep.subr.bf16.mxu0 0
    %7805 = vmatpush1.bf16.msra.mxu0 0
    %7806 = vmatprep.subr.bf16.mxu0 0
    %7807 = vmatpush1.bf16.msra.mxu0 0
    %7808 = vmatprep.subr.bf16.mxu0 0
    %7809 = vmatpush1.bf16.msra.mxu0 0
    %7810 = vmatprep.subr.bf16.mxu0 0
    %7811 = vmatpush1.bf16.msra.mxu0 0
    %7812 = vmatprep.subr.bf16.mxu0 %v7566
    %7813 = vmatpush1.bf16.msra.mxu0 %v7565
    %7814 = vmatprep.subr.bf16.mxu0 %v7550
    %7815 = vmatpush1.bf16.msra.mxu0 %v7549
    %7816 = vmatprep.subr.bf16.mxu0 %v7534
    %7817 = vmatpush1.bf16.msra.mxu0 %v7533
    %7818 = vmatprep.subr.bf16.mxu0 %v7518
    %7819 = vmatpush1.bf16.msra.mxu0 %v7517
    %7820 = vmatprep.subr.bf16.mxu0 0
    %7821 = vmatpush2.bf16.msra.mxu0 0
    %7822 = vmatprep.subr.bf16.mxu0 0
    %7823 = vmatpush2.bf16.msra.mxu0 0
    %7824 = vmatprep.subr.bf16.mxu0 0
    %7825 = vmatpush2.bf16.msra.mxu0 0
    %7826 = vmatprep.subr.bf16.mxu0 0
    %7827 = vmatpush2.bf16.msra.mxu0 0
    %7828 = vmatprep.subr.bf16.mxu0 0
    %7829 = vmatpush2.bf16.msra.mxu0 0
    %7830 = vmatprep.subr.bf16.mxu0 0
    %7831 = vmatpush2.bf16.msra.mxu0 0
    %7832 = vmatprep.subr.bf16.mxu0 0
    %7833 = vmatpush2.bf16.msra.mxu0 0
    %7834 = vmatprep.subr.bf16.mxu0 0
    %7835 = vmatpush2.bf16.msra.mxu0 0
    %7836 = vmatprep.mubr.bf16.mxu0 0
    %7837 = vmatmul.mubr.bf16.gmra.mxu0 %v7638
    %v7838 = vpop.f32.mrf.mxu0
    %v7839 = vadd.f32 %v7255, %v7838
    %v7840 = vpop.f32.mrf.mxu0
    %v7841 = vadd.f32 %v7259, %v7840
    %v7842 = vpop.f32.mrf.mxu0
    %v7843 = vpop.f32.mrf.mxu0
    %7844 = vdwg.mxu0
    %7845 = vmatprep.subr.bf16.mxu0 0
    %7846 = vmatpush1.bf16.msra.mxu0 0
    %7847 = vmatprep.subr.bf16.mxu0 0
    %7848 = vmatpush1.bf16.msra.mxu0 0
    %7849 = vmatprep.subr.bf16.mxu0 0
    %7850 = vmatpush1.bf16.msra.mxu0 0
    %7851 = vmatprep.subr.bf16.mxu0 0
    %7852 = vmatpush1.bf16.msra.mxu0 0
    %7853 = vmatprep.subr.bf16.mxu0 %v7568
    %7854 = vmatpush1.bf16.msra.mxu0 %v7567
    %7855 = vmatprep.subr.bf16.mxu0 %v7552
    %7856 = vmatpush1.bf16.msra.mxu0 %v7551
    %7857 = vmatprep.subr.bf16.mxu0 %v7536
    %7858 = vmatpush1.bf16.msra.mxu0 %v7535
    %7859 = vmatprep.subr.bf16.mxu0 %v7520
    %7860 = vmatpush1.bf16.msra.mxu0 %v7519
    %7861 = vmatprep.subr.bf16.mxu0 0
    %7862 = vmatpush2.bf16.msra.mxu0 0
    %7863 = vmatprep.subr.bf16.mxu0 0
    %7864 = vmatpush2.bf16.msra.mxu0 0
    %7865 = vmatprep.subr.bf16.mxu0 0
    %7866 = vmatpush2.bf16.msra.mxu0 0
    %7867 = vmatprep.subr.bf16.mxu0 0
    %7868 = vmatpush2.bf16.msra.mxu0 0
    %7869 = vmatprep.subr.bf16.mxu0 0
    %7870 = vmatpush2.bf16.msra.mxu0 0
    %7871 = vmatprep.subr.bf16.mxu0 0
    %7872 = vmatpush2.bf16.msra.mxu0 0
    %7873 = vmatprep.subr.bf16.mxu0 0
    %7874 = vmatpush2.bf16.msra.mxu0 0
    %7875 = vmatprep.subr.bf16.mxu0 0
    %7876 = vmatpush2.bf16.msra.mxu0 0
    %7877 = vmatprep.mubr.bf16.mxu0 0
    %7878 = vmatmul.mubr.bf16.gmra.mxu0 %v7638
    %v7879 = vpop.f32.mrf.mxu0
    %v7880 = vadd.f32 %v7263, %v7879
    %v7881 = vpop.f32.mrf.mxu0
    %v7882 = vadd.f32 %v7267, %v7881
    %v7883 = vpop.f32.mrf.mxu0
    %v7884 = vpop.f32.mrf.mxu0
    %7885 = vdwg.mxu0
    %7886 = vmatprep.subr.bf16.mxu0 0
    %7887 = vmatpush1.bf16.msra.mxu0 0
    %7888 = vmatprep.subr.bf16.mxu0 0
    %7889 = vmatpush1.bf16.msra.mxu0 0
    %7890 = vmatprep.subr.bf16.mxu0 0
    %7891 = vmatpush1.bf16.msra.mxu0 0
    %7892 = vmatprep.subr.bf16.mxu0 0
    %7893 = vmatpush1.bf16.msra.mxu0 0
    %7894 = vmatprep.subr.bf16.mxu0 %v7570
    %7895 = vmatpush1.bf16.msra.mxu0 %v7569
    %7896 = vmatprep.subr.bf16.mxu0 %v7554
    %7897 = vmatpush1.bf16.msra.mxu0 %v7553
    %7898 = vmatprep.subr.bf16.mxu0 %v7538
    %7899 = vmatpush1.bf16.msra.mxu0 %v7537
    %7900 = vmatprep.subr.bf16.mxu0 %v7522
    %7901 = vmatpush1.bf16.msra.mxu0 %v7521
    %7902 = vmatprep.subr.bf16.mxu0 0
    %7903 = vmatpush2.bf16.msra.mxu0 0
    %7904 = vmatprep.subr.bf16.mxu0 0
    %7905 = vmatpush2.bf16.msra.mxu0 0
    %7906 = vmatprep.subr.bf16.mxu0 0
    %7907 = vmatpush2.bf16.msra.mxu0 0
    %7908 = vmatprep.subr.bf16.mxu0 0
    %7909 = vmatpush2.bf16.msra.mxu0 0
    %7910 = vmatprep.subr.bf16.mxu0 0
    %7911 = vmatpush2.bf16.msra.mxu0 0
    %7912 = vmatprep.subr.bf16.mxu0 0
    %7913 = vmatpush2.bf16.msra.mxu0 0
    %7914 = vmatprep.subr.bf16.mxu0 0
    %7915 = vmatpush2.bf16.msra.mxu0 0
    %7916 = vmatprep.subr.bf16.mxu0 0
    %7917 = vmatpush2.bf16.msra.mxu0 0
    %7918 = vmatprep.mubr.bf16.mxu0 0
    %7919 = vmatmul.mubr.bf16.gmra.mxu0 %v7638
    %v7920 = vpop.f32.mrf.mxu0
    %v7921 = vadd.f32 %v7271, %v7920
    %v7922 = vpop.f32.mrf.mxu0
    %v7923 = vadd.f32 %v7275, %v7922
    %v7924 = vpop.f32.mrf.mxu0
    %v7925 = vpop.f32.mrf.mxu0
    %7926 = vdwg.mxu0
    %7927 = vmatprep.subr.bf16.mxu0 0
    %7928 = vmatpush1.bf16.msra.mxu0 0
    %7929 = vmatprep.subr.bf16.mxu0 0
    %7930 = vmatpush1.bf16.msra.mxu0 0
    %7931 = vmatprep.subr.bf16.mxu0 0
    %7932 = vmatpush1.bf16.msra.mxu0 0
    %7933 = vmatprep.subr.bf16.mxu0 0
    %7934 = vmatpush1.bf16.msra.mxu0 0
    %7935 = vmatprep.subr.bf16.mxu0 %v7572
    %7936 = vmatpush1.bf16.msra.mxu0 %v7571
    %7937 = vmatprep.subr.bf16.mxu0 %v7556
    %7938 = vmatpush1.bf16.msra.mxu0 %v7555
    %7939 = vmatprep.subr.bf16.mxu0 %v7540
    %7940 = vmatpush1.bf16.msra.mxu0 %v7539
    %7941 = vmatprep.subr.bf16.mxu0 %v7524
    %7942 = vmatpush1.bf16.msra.mxu0 %v7523
    %7943 = vmatprep.subr.bf16.mxu0 0
    %7944 = vmatpush2.bf16.msra.mxu0 0
    %7945 = vmatprep.subr.bf16.mxu0 0
    %7946 = vmatpush2.bf16.msra.mxu0 0
    %7947 = vmatprep.subr.bf16.mxu0 0
    %7948 = vmatpush2.bf16.msra.mxu0 0
    %7949 = vmatprep.subr.bf16.mxu0 0
    %7950 = vmatpush2.bf16.msra.mxu0 0
    %7951 = vmatprep.subr.bf16.mxu0 0
    %7952 = vmatpush2.bf16.msra.mxu0 0
    %7953 = vmatprep.subr.bf16.mxu0 0
    %7954 = vmatpush2.bf16.msra.mxu0 0
    %7955 = vmatprep.subr.bf16.mxu0 0
    %7956 = vmatpush2.bf16.msra.mxu0 0
    %7957 = vmatprep.subr.bf16.mxu0 0
    %7958 = vmatpush2.bf16.msra.mxu0 0
    %7959 = vmatprep.mubr.bf16.mxu0 0
    %7960 = vmatmul.mubr.bf16.gmra.mxu0 %v7638
    %v7961 = vpop.f32.mrf.mxu0
    %v7962 = vadd.f32 %v7279, %v7961
    %v7963 = vpop.f32.mrf.mxu0
    %v7964 = vadd.f32 %v7283, %v7963
    %v7965 = vpop.f32.mrf.mxu0
    %v7966 = vpop.f32.mrf.mxu0
    %7967 = vdwg.mxu0
    %v7968 = vmax.f32 %v7675, 0.0
    %v7969 = vmax.f32 %v7677, 0.0
    %v7970 = vmax.f32 %v7716, 0.0
    %v7971 = vmax.f32 %v7718, 0.0
    %v7972 = vmax.f32 %v7757, 0.0
    %v7973 = vmax.f32 %v7759, 0.0
    %v7974 = vmax.f32 %v7798, 0.0
    %v7975 = vmax.f32 %v7800, 0.0
    %v7976 = vmax.f32 %v7839, 0.0
    %v7977 = vmax.f32 %v7841, 0.0
    %v7978 = vmax.f32 %v7880, 0.0
    %v7979 = vmax.f32 %v7882, 0.0
    %v7980 = vmax.f32 %v7921, 0.0
    %v7981 = vmax.f32 %v7923, 0.0
    %v7982 = vmax.f32 %v7962, 0.0
    %v7983 = vmax.f32 %v7964, 0.0
    %v7984 = vpack.c.bf16 %v7968, %v7968
    %v7985 = vpack.c.bf16 %v7969, %v7969
    %v7986 = vpack.c.bf16 %v7970, %v7970
    %v7987 = vpack.c.bf16 %v7971, %v7971
    %v7988 = vpack.c.bf16 %v7972, %v7972
    %v7989 = vpack.c.bf16 %v7973, %v7973
    %v7990 = vpack.c.bf16 %v7974, %v7974
    %v7991 = vpack.c.bf16 %v7975, %v7975
    %v7992 = vpack.c.bf16 %v7976, %v7976
    %v7993 = vpack.c.bf16 %v7977, %v7977
    %v7994 = vpack.c.bf16 %v7978, %v7978
    %v7995 = vpack.c.bf16 %v7979, %v7979
    %v7996 = vpack.c.bf16 %v7980, %v7980
    %v7997 = vpack.c.bf16 %v7981, %v7981
    %v7998 = vpack.c.bf16 %v7982, %v7982
    %v7999 = vpack.c.bf16 %v7983, %v7983
    %s8000 = scalar_lea.vmem %s7, 1024
    %v8001 = vld [vmem:[%s8000] sm:$0xf]
    %v8002 = vld [vmem:[%s8000 + $0x4] sm:$0xf]
    %v8003 = vld [vmem:[%s8000 + $0x8] sm:$0xf]
    %v8004 = vld [vmem:[%s8000 + $0xc] sm:$0xf]
    %v8005 = vld [vmem:[%s8000 + $0x10] sm:$0xf]
    %v8006 = vld [vmem:[%s8000 + $0x14] sm:$0xf]
    %v8007 = vld [vmem:[%s8000 + $0x18] sm:$0xf]
    %v8008 = vld [vmem:[%s8000 + $0x1c] sm:$0xf]
    %v8009 = vld [vmem:[%s8000 + $0x20] sm:$0xf]
    %v8010 = vld [vmem:[%s8000 + $0x24] sm:$0xf]
    %v8011 = vld [vmem:[%s8000 + $0x28] sm:$0xf]
    %v8012 = vld [vmem:[%s8000 + $0x2c] sm:$0xf]
    %v8013 = vld [vmem:[%s8000 + $0x30] sm:$0xf]
    %v8014 = vld [vmem:[%s8000 + $0x34] sm:$0xf]
    %v8015 = vld [vmem:[%s8000 + $0x38] sm:$0xf]
    %v8016 = vld [vmem:[%s8000 + $0x3c] sm:$0xf]
    %v8017 = vld [vmem:[%s8000 + $0x40] sm:$0xf]
    %v8018 = vld [vmem:[%s8000 + $0x44] sm:$0xf]
    %v8019 = vld [vmem:[%s8000 + $0x48] sm:$0xf]
    %v8020 = vld [vmem:[%s8000 + $0x4c] sm:$0xf]
    %v8021 = vld [vmem:[%s8000 + $0x50] sm:$0xf]
    %v8022 = vld [vmem:[%s8000 + $0x54] sm:$0xf]
    %v8023 = vld [vmem:[%s8000 + $0x58] sm:$0xf]
    %v8024 = vld [vmem:[%s8000 + $0x5c] sm:$0xf]
    %v8025 = vld [vmem:[%s8000 + $0x60] sm:$0xf]
    %v8026 = vld [vmem:[%s8000 + $0x64] sm:$0xf]
    %v8027 = vld [vmem:[%s8000 + $0x68] sm:$0xf]
    %v8028 = vld [vmem:[%s8000 + $0x6c] sm:$0xf]
    %v8029 = vld [vmem:[%s8000 + $0x70] sm:$0xf]
    %v8030 = vld [vmem:[%s8000 + $0x74] sm:$0xf]
    %v8031 = vld [vmem:[%s8000 + $0x78] sm:$0xf]
    %v8032 = vld [vmem:[%s8000 + $0x7c] sm:$0xf]
    %v8033 = vld [vmem:[%s8000 + $0x80] sm:$0xf]
    %v8034 = vld [vmem:[%s8000 + $0x84] sm:$0xf]
    %v8035 = vld [vmem:[%s8000 + $0x88] sm:$0xf]
    %v8036 = vld [vmem:[%s8000 + $0x8c] sm:$0xf]
    %v8037 = vld [vmem:[%s8000 + $0x90] sm:$0xf]
    %v8038 = vld [vmem:[%s8000 + $0x94] sm:$0xf]
    %v8039 = vld [vmem:[%s8000 + $0x98] sm:$0xf]
    %v8040 = vld [vmem:[%s8000 + $0x9c] sm:$0xf]
    %v8041 = vld [vmem:[%s8000 + $0xa0] sm:$0xf]
    %v8042 = vld [vmem:[%s8000 + $0xa4] sm:$0xf]
    %v8043 = vld [vmem:[%s8000 + $0xa8] sm:$0xf]
    %v8044 = vld [vmem:[%s8000 + $0xac] sm:$0xf]
    %v8045 = vld [vmem:[%s8000 + $0xb0] sm:$0xf]
    %v8046 = vld [vmem:[%s8000 + $0xb4] sm:$0xf]
    %v8047 = vld [vmem:[%s8000 + $0xb8] sm:$0xf]
    %v8048 = vld [vmem:[%s8000 + $0xbc] sm:$0xf]
    %v8049 = vld [vmem:[%s8000 + $0xc0] sm:$0xf]
    %v8050 = vld [vmem:[%s8000 + $0xc4] sm:$0xf]
    %v8051 = vld [vmem:[%s8000 + $0xc8] sm:$0xf]
    %v8052 = vld [vmem:[%s8000 + $0xcc] sm:$0xf]
    %v8053 = vld [vmem:[%s8000 + $0xd0] sm:$0xf]
    %v8054 = vld [vmem:[%s8000 + $0xd4] sm:$0xf]
    %v8055 = vld [vmem:[%s8000 + $0xd8] sm:$0xf]
    %v8056 = vld [vmem:[%s8000 + $0xdc] sm:$0xf]
    %v8057 = vld [vmem:[%s8000 + $0xe0] sm:$0xf]
    %v8058 = vld [vmem:[%s8000 + $0xe4] sm:$0xf]
    %v8059 = vld [vmem:[%s8000 + $0xe8] sm:$0xf]
    %v8060 = vld [vmem:[%s8000 + $0xec] sm:$0xf]
    %v8061 = vld [vmem:[%s8000 + $0xf0] sm:$0xf]
    %v8062 = vld [vmem:[%s8000 + $0xf4] sm:$0xf]
    %v8063 = vld [vmem:[%s8000 + $0xf8] sm:$0xf]
    %v8064 = vld [vmem:[%s8000 + $0xfc] sm:$0xf]
    %v8065 = vld [vmem:[%s8000 + $0x100] sm:$0xf]
    %v8066 = vld [vmem:[%s8000 + $0x104] sm:$0xf]
    %v8067 = vld [vmem:[%s8000 + $0x108] sm:$0xf]
    %v8068 = vld [vmem:[%s8000 + $0x10c] sm:$0xf]
    %v8069 = vld [vmem:[%s8000 + $0x110] sm:$0xf]
    %v8070 = vld [vmem:[%s8000 + $0x114] sm:$0xf]
    %v8071 = vld [vmem:[%s8000 + $0x118] sm:$0xf]
    %v8072 = vld [vmem:[%s8000 + $0x11c] sm:$0xf]
    %v8073 = vld [vmem:[%s8000 + $0x120] sm:$0xf]
    %v8074 = vld [vmem:[%s8000 + $0x124] sm:$0xf]
    %v8075 = vld [vmem:[%s8000 + $0x128] sm:$0xf]
    %v8076 = vld [vmem:[%s8000 + $0x12c] sm:$0xf]
    %v8077 = vld [vmem:[%s8000 + $0x130] sm:$0xf]
    %v8078 = vld [vmem:[%s8000 + $0x134] sm:$0xf]
    %v8079 = vld [vmem:[%s8000 + $0x138] sm:$0xf]
    %v8080 = vld [vmem:[%s8000 + $0x13c] sm:$0xf]
    %v8081 = vld [vmem:[%s8000 + $0x140] sm:$0xf]
    %v8082 = vld [vmem:[%s8000 + $0x144] sm:$0xf]
    %v8083 = vld [vmem:[%s8000 + $0x148] sm:$0xf]
    %v8084 = vld [vmem:[%s8000 + $0x14c] sm:$0xf]
    %v8085 = vld [vmem:[%s8000 + $0x150] sm:$0xf]
    %v8086 = vld [vmem:[%s8000 + $0x154] sm:$0xf]
    %v8087 = vld [vmem:[%s8000 + $0x158] sm:$0xf]
    %v8088 = vld [vmem:[%s8000 + $0x15c] sm:$0xf]
    %v8089 = vld [vmem:[%s8000 + $0x160] sm:$0xf]
    %v8090 = vld [vmem:[%s8000 + $0x164] sm:$0xf]
    %v8091 = vld [vmem:[%s8000 + $0x168] sm:$0xf]
    %v8092 = vld [vmem:[%s8000 + $0x16c] sm:$0xf]
    %v8093 = vld [vmem:[%s8000 + $0x170] sm:$0xf]
    %v8094 = vld [vmem:[%s8000 + $0x174] sm:$0xf]
    %v8095 = vld [vmem:[%s8000 + $0x178] sm:$0xf]
    %v8096 = vld [vmem:[%s8000 + $0x17c] sm:$0xf]
    %v8097 = vld [vmem:[%s8000 + $0x180] sm:$0xf]
    %v8098 = vld [vmem:[%s8000 + $0x184] sm:$0xf]
    %v8099 = vld [vmem:[%s8000 + $0x188] sm:$0xf]
    %v8100 = vld [vmem:[%s8000 + $0x18c] sm:$0xf]
    %v8101 = vld [vmem:[%s8000 + $0x190] sm:$0xf]
    %v8102 = vld [vmem:[%s8000 + $0x194] sm:$0xf]
    %v8103 = vld [vmem:[%s8000 + $0x198] sm:$0xf]
    %v8104 = vld [vmem:[%s8000 + $0x19c] sm:$0xf]
    %v8105 = vld [vmem:[%s8000 + $0x1a0] sm:$0xf]
    %v8106 = vld [vmem:[%s8000 + $0x1a4] sm:$0xf]
    %v8107 = vld [vmem:[%s8000 + $0x1a8] sm:$0xf]
    %v8108 = vld [vmem:[%s8000 + $0x1ac] sm:$0xf]
    %v8109 = vld [vmem:[%s8000 + $0x1b0] sm:$0xf]
    %v8110 = vld [vmem:[%s8000 + $0x1b4] sm:$0xf]
    %v8111 = vld [vmem:[%s8000 + $0x1b8] sm:$0xf]
    %v8112 = vld [vmem:[%s8000 + $0x1bc] sm:$0xf]
    %v8113 = vld [vmem:[%s8000 + $0x1c0] sm:$0xf]
    %v8114 = vld [vmem:[%s8000 + $0x1c4] sm:$0xf]
    %v8115 = vld [vmem:[%s8000 + $0x1c8] sm:$0xf]
    %v8116 = vld [vmem:[%s8000 + $0x1cc] sm:$0xf]
    %v8117 = vld [vmem:[%s8000 + $0x1d0] sm:$0xf]
    %v8118 = vld [vmem:[%s8000 + $0x1d4] sm:$0xf]
    %v8119 = vld [vmem:[%s8000 + $0x1d8] sm:$0xf]
    %v8120 = vld [vmem:[%s8000 + $0x1dc] sm:$0xf]
    %v8121 = vld [vmem:[%s8000 + $0x1e0] sm:$0xf]
    %v8122 = vld [vmem:[%s8000 + $0x1e4] sm:$0xf]
    %v8123 = vld [vmem:[%s8000 + $0x1e8] sm:$0xf]
    %v8124 = vld [vmem:[%s8000 + $0x1ec] sm:$0xf]
    %v8125 = vld [vmem:[%s8000 + $0x1f0] sm:$0xf]
    %v8126 = vld [vmem:[%s8000 + $0x1f4] sm:$0xf]
    %v8127 = vld [vmem:[%s8000 + $0x1f8] sm:$0xf]
    %v8128 = vld [vmem:[%s8000 + $0x1fc] sm:$0xf]
    %v8129 = vld [vmem:[%s8000 + $0x200] sm:$0xf]
    %v8130 = vld [vmem:[%s8000 + $0x204] sm:$0xf]
    %v8131 = vld [vmem:[%s8000 + $0x208] sm:$0xf]
    %v8132 = vld [vmem:[%s8000 + $0x20c] sm:$0xf]
    %v8133 = vld [vmem:[%s8000 + $0x210] sm:$0xf]
    %v8134 = vld [vmem:[%s8000 + $0x214] sm:$0xf]
    %v8135 = vld [vmem:[%s8000 + $0x218] sm:$0xf]
    %v8136 = vld [vmem:[%s8000 + $0x21c] sm:$0xf]
    %v8137 = vld [vmem:[%s8000 + $0x220] sm:$0xf]
    %v8138 = vld [vmem:[%s8000 + $0x224] sm:$0xf]
    %v8139 = vld [vmem:[%s8000 + $0x228] sm:$0xf]
    %v8140 = vld [vmem:[%s8000 + $0x22c] sm:$0xf]
    %v8141 = vld [vmem:[%s8000 + $0x230] sm:$0xf]
    %v8142 = vld [vmem:[%s8000 + $0x234] sm:$0xf]
    %v8143 = vld [vmem:[%s8000 + $0x238] sm:$0xf]
    %v8144 = vld [vmem:[%s8000 + $0x23c] sm:$0xf]
    %v8145 = vld [vmem:[%s8000 + $0x240] sm:$0xf]
    %v8146 = vld [vmem:[%s8000 + $0x244] sm:$0xf]
    %v8147 = vld [vmem:[%s8000 + $0x248] sm:$0xf]
    %v8148 = vld [vmem:[%s8000 + $0x24c] sm:$0xf]
    %v8149 = vld [vmem:[%s8000 + $0x250] sm:$0xf]
    %v8150 = vld [vmem:[%s8000 + $0x254] sm:$0xf]
    %v8151 = vld [vmem:[%s8000 + $0x258] sm:$0xf]
    %v8152 = vld [vmem:[%s8000 + $0x25c] sm:$0xf]
    %v8153 = vld [vmem:[%s8000 + $0x260] sm:$0xf]
    %v8154 = vld [vmem:[%s8000 + $0x264] sm:$0xf]
    %v8155 = vld [vmem:[%s8000 + $0x268] sm:$0xf]
    %v8156 = vld [vmem:[%s8000 + $0x26c] sm:$0xf]
    %v8157 = vld [vmem:[%s8000 + $0x270] sm:$0xf]
    %v8158 = vld [vmem:[%s8000 + $0x274] sm:$0xf]
    %v8159 = vld [vmem:[%s8000 + $0x278] sm:$0xf]
    %v8160 = vld [vmem:[%s8000 + $0x27c] sm:$0xf]
    %v8161 = vld [vmem:[%s8000 + $0x280] sm:$0xf]
    %v8162 = vld [vmem:[%s8000 + $0x284] sm:$0xf]
    %v8163 = vld [vmem:[%s8000 + $0x288] sm:$0xf]
    %v8164 = vld [vmem:[%s8000 + $0x28c] sm:$0xf]
    %v8165 = vld [vmem:[%s8000 + $0x290] sm:$0xf]
    %v8166 = vld [vmem:[%s8000 + $0x294] sm:$0xf]
    %v8167 = vld [vmem:[%s8000 + $0x298] sm:$0xf]
    %v8168 = vld [vmem:[%s8000 + $0x29c] sm:$0xf]
    %v8169 = vld [vmem:[%s8000 + $0x2a0] sm:$0xf]
    %v8170 = vld [vmem:[%s8000 + $0x2a4] sm:$0xf]
    %v8171 = vld [vmem:[%s8000 + $0x2a8] sm:$0xf]
    %v8172 = vld [vmem:[%s8000 + $0x2ac] sm:$0xf]
    %v8173 = vld [vmem:[%s8000 + $0x2b0] sm:$0xf]
    %v8174 = vld [vmem:[%s8000 + $0x2b4] sm:$0xf]
    %v8175 = vld [vmem:[%s8000 + $0x2b8] sm:$0xf]
    %v8176 = vld [vmem:[%s8000 + $0x2bc] sm:$0xf]
    %v8177 = vld [vmem:[%s8000 + $0x2c0] sm:$0xf]
    %v8178 = vld [vmem:[%s8000 + $0x2c4] sm:$0xf]
    %v8179 = vld [vmem:[%s8000 + $0x2c8] sm:$0xf]
    %v8180 = vld [vmem:[%s8000 + $0x2cc] sm:$0xf]
    %v8181 = vld [vmem:[%s8000 + $0x2d0] sm:$0xf]
    %v8182 = vld [vmem:[%s8000 + $0x2d4] sm:$0xf]
    %v8183 = vld [vmem:[%s8000 + $0x2d8] sm:$0xf]
    %v8184 = vld [vmem:[%s8000 + $0x2dc] sm:$0xf]
    %v8185 = vld [vmem:[%s8000 + $0x2e0] sm:$0xf]
    %v8186 = vld [vmem:[%s8000 + $0x2e4] sm:$0xf]
    %v8187 = vld [vmem:[%s8000 + $0x2e8] sm:$0xf]
    %v8188 = vld [vmem:[%s8000 + $0x2ec] sm:$0xf]
    %v8189 = vld [vmem:[%s8000 + $0x2f0] sm:$0xf]
    %v8190 = vld [vmem:[%s8000 + $0x2f4] sm:$0xf]
    %v8191 = vld [vmem:[%s8000 + $0x2f8] sm:$0xf]
    %v8192 = vld [vmem:[%s8000 + $0x2fc] sm:$0xf]
    %v8193 = vld [vmem:[%s8000 + $0x300] sm:$0xf]
    %v8194 = vld [vmem:[%s8000 + $0x304] sm:$0xf]
    %v8195 = vld [vmem:[%s8000 + $0x308] sm:$0xf]
    %v8196 = vld [vmem:[%s8000 + $0x30c] sm:$0xf]
    %v8197 = vld [vmem:[%s8000 + $0x310] sm:$0xf]
    %v8198 = vld [vmem:[%s8000 + $0x314] sm:$0xf]
    %v8199 = vld [vmem:[%s8000 + $0x318] sm:$0xf]
    %v8200 = vld [vmem:[%s8000 + $0x31c] sm:$0xf]
    %v8201 = vld [vmem:[%s8000 + $0x320] sm:$0xf]
    %v8202 = vld [vmem:[%s8000 + $0x324] sm:$0xf]
    %v8203 = vld [vmem:[%s8000 + $0x328] sm:$0xf]
    %v8204 = vld [vmem:[%s8000 + $0x32c] sm:$0xf]
    %v8205 = vld [vmem:[%s8000 + $0x330] sm:$0xf]
    %v8206 = vld [vmem:[%s8000 + $0x334] sm:$0xf]
    %v8207 = vld [vmem:[%s8000 + $0x338] sm:$0xf]
    %v8208 = vld [vmem:[%s8000 + $0x33c] sm:$0xf]
    %v8209 = vld [vmem:[%s8000 + $0x340] sm:$0xf]
    %v8210 = vld [vmem:[%s8000 + $0x344] sm:$0xf]
    %v8211 = vld [vmem:[%s8000 + $0x348] sm:$0xf]
    %v8212 = vld [vmem:[%s8000 + $0x34c] sm:$0xf]
    %v8213 = vld [vmem:[%s8000 + $0x350] sm:$0xf]
    %v8214 = vld [vmem:[%s8000 + $0x354] sm:$0xf]
    %v8215 = vld [vmem:[%s8000 + $0x358] sm:$0xf]
    %v8216 = vld [vmem:[%s8000 + $0x35c] sm:$0xf]
    %v8217 = vld [vmem:[%s8000 + $0x360] sm:$0xf]
    %v8218 = vld [vmem:[%s8000 + $0x364] sm:$0xf]
    %v8219 = vld [vmem:[%s8000 + $0x368] sm:$0xf]
    %v8220 = vld [vmem:[%s8000 + $0x36c] sm:$0xf]
    %v8221 = vld [vmem:[%s8000 + $0x370] sm:$0xf]
    %v8222 = vld [vmem:[%s8000 + $0x374] sm:$0xf]
    %v8223 = vld [vmem:[%s8000 + $0x378] sm:$0xf]
    %v8224 = vld [vmem:[%s8000 + $0x37c] sm:$0xf]
    %v8225 = vld [vmem:[%s8000 + $0x380] sm:$0xf]
    %v8226 = vld [vmem:[%s8000 + $0x384] sm:$0xf]
    %v8227 = vld [vmem:[%s8000 + $0x388] sm:$0xf]
    %v8228 = vld [vmem:[%s8000 + $0x38c] sm:$0xf]
    %v8229 = vld [vmem:[%s8000 + $0x390] sm:$0xf]
    %v8230 = vld [vmem:[%s8000 + $0x394] sm:$0xf]
    %v8231 = vld [vmem:[%s8000 + $0x398] sm:$0xf]
    %v8232 = vld [vmem:[%s8000 + $0x39c] sm:$0xf]
    %v8233 = vld [vmem:[%s8000 + $0x3a0] sm:$0xf]
    %v8234 = vld [vmem:[%s8000 + $0x3a4] sm:$0xf]
    %v8235 = vld [vmem:[%s8000 + $0x3a8] sm:$0xf]
    %v8236 = vld [vmem:[%s8000 + $0x3ac] sm:$0xf]
    %v8237 = vld [vmem:[%s8000 + $0x3b0] sm:$0xf]
    %v8238 = vld [vmem:[%s8000 + $0x3b4] sm:$0xf]
    %v8239 = vld [vmem:[%s8000 + $0x3b8] sm:$0xf]
    %v8240 = vld [vmem:[%s8000 + $0x3bc] sm:$0xf]
    %v8241 = vld [vmem:[%s8000 + $0x3c0] sm:$0xf]
    %v8242 = vld [vmem:[%s8000 + $0x3c4] sm:$0xf]
    %v8243 = vld [vmem:[%s8000 + $0x3c8] sm:$0xf]
    %v8244 = vld [vmem:[%s8000 + $0x3cc] sm:$0xf]
    %v8245 = vld [vmem:[%s8000 + $0x3d0] sm:$0xf]
    %v8246 = vld [vmem:[%s8000 + $0x3d4] sm:$0xf]
    %v8247 = vld [vmem:[%s8000 + $0x3d8] sm:$0xf]
    %v8248 = vld [vmem:[%s8000 + $0x3dc] sm:$0xf]
    %v8249 = vld [vmem:[%s8000 + $0x3e0] sm:$0xf]
    %v8250 = vld [vmem:[%s8000 + $0x3e4] sm:$0xf]
    %v8251 = vld [vmem:[%s8000 + $0x3e8] sm:$0xf]
    %v8252 = vld [vmem:[%s8000 + $0x3ec] sm:$0xf]
    %v8253 = vld [vmem:[%s8000 + $0x3f0] sm:$0xf]
    %v8254 = vld [vmem:[%s8000 + $0x3f4] sm:$0xf]
    %v8255 = vld [vmem:[%s8000 + $0x3f8] sm:$0xf]
    %v8256 = vld [vmem:[%s8000 + $0x3fc] sm:$0xf]
    %v8257 = vlaneseq
    %v8258 = vshrl.u32 %v8257, 7
    %v8259 = vsub.s32 5, %v8258
    %v8260 = vrot.slane %v4827, %v8259
    %v8517 = vunpack.c.l.b16 %v8001
    %v8518 = vunpack.c.l.b16 %v8002
    %v8519 = vunpack.c.l.b16 %v8003
    %v8520 = vunpack.c.l.b16 %v8004
    %v8521 = vunpack.c.l.b16 %v8005
    %v8522 = vunpack.c.l.b16 %v8006
    %v8523 = vunpack.c.l.b16 %v8007
    %v8524 = vunpack.c.l.b16 %v8008
    %v8525 = vunpack.c.l.b16 %v8009
    %v8526 = vunpack.c.l.b16 %v8010
    %v8527 = vunpack.c.l.b16 %v8011
    %v8528 = vunpack.c.l.b16 %v8012
    %v8529 = vunpack.c.l.b16 %v8013
    %v8530 = vunpack.c.l.b16 %v8014
    %v8531 = vunpack.c.l.b16 %v8015
    %v8532 = vunpack.c.l.b16 %v8016
    %v8533 = vunpack.c.l.b16 %v8017
    %v8534 = vunpack.c.l.b16 %v8018
    %v8535 = vunpack.c.l.b16 %v8019
    %v8536 = vunpack.c.l.b16 %v8020
    %v8537 = vunpack.c.l.b16 %v8021
    %v8538 = vunpack.c.l.b16 %v8022
    %v8539 = vunpack.c.l.b16 %v8023
    %v8540 = vunpack.c.l.b16 %v8024
    %v8541 = vunpack.c.l.b16 %v8025
    %v8542 = vunpack.c.l.b16 %v8026
    %v8543 = vunpack.c.l.b16 %v8027
    %v8544 = vunpack.c.l.b16 %v8028
    %v8545 = vunpack.c.l.b16 %v8029
    %v8546 = vunpack.c.l.b16 %v8030
    %v8547 = vunpack.c.l.b16 %v8031
    %v8548 = vunpack.c.l.b16 %v8032
    %v8549 = vunpack.c.l.b16 %v8033
    %v8550 = vunpack.c.l.b16 %v8034
    %v8551 = vunpack.c.l.b16 %v8035
    %v8552 = vunpack.c.l.b16 %v8036
    %v8553 = vunpack.c.l.b16 %v8037
    %v8554 = vunpack.c.l.b16 %v8038
    %v8555 = vunpack.c.l.b16 %v8039
    %v8556 = vunpack.c.l.b16 %v8040
    %v8557 = vunpack.c.l.b16 %v8041
    %v8558 = vunpack.c.l.b16 %v8042
    %v8559 = vunpack.c.l.b16 %v8043
    %v8560 = vunpack.c.l.b16 %v8044
    %v8561 = vunpack.c.l.b16 %v8045
    %v8562 = vunpack.c.l.b16 %v8046
    %v8563 = vunpack.c.l.b16 %v8047
    %v8564 = vunpack.c.l.b16 %v8048
    %v8565 = vunpack.c.l.b16 %v8049
    %v8566 = vunpack.c.l.b16 %v8050
    %v8567 = vunpack.c.l.b16 %v8051
    %v8568 = vunpack.c.l.b16 %v8052
    %v8569 = vunpack.c.l.b16 %v8053
    %v8570 = vunpack.c.l.b16 %v8054
    %v8571 = vunpack.c.l.b16 %v8055
    %v8572 = vunpack.c.l.b16 %v8056
    %v8573 = vunpack.c.l.b16 %v8057
    %v8574 = vunpack.c.l.b16 %v8058
    %v8575 = vunpack.c.l.b16 %v8059
    %v8576 = vunpack.c.l.b16 %v8060
    %v8577 = vunpack.c.l.b16 %v8061
    %v8578 = vunpack.c.l.b16 %v8062
    %v8579 = vunpack.c.l.b16 %v8063
    %v8580 = vunpack.c.l.b16 %v8064
    %v8581 = vunpack.c.l.b16 %v8065
    %v8582 = vunpack.c.l.b16 %v8066
    %v8583 = vunpack.c.l.b16 %v8067
    %v8584 = vunpack.c.l.b16 %v8068
    %v8585 = vunpack.c.l.b16 %v8069
    %v8586 = vunpack.c.l.b16 %v8070
    %v8587 = vunpack.c.l.b16 %v8071
    %v8588 = vunpack.c.l.b16 %v8072
    %v8589 = vunpack.c.l.b16 %v8073
    %v8590 = vunpack.c.l.b16 %v8074
    %v8591 = vunpack.c.l.b16 %v8075
    %v8592 = vunpack.c.l.b16 %v8076
    %v8593 = vunpack.c.l.b16 %v8077
    %v8594 = vunpack.c.l.b16 %v8078
    %v8595 = vunpack.c.l.b16 %v8079
    %v8596 = vunpack.c.l.b16 %v8080
    %v8597 = vunpack.c.l.b16 %v8081
    %v8598 = vunpack.c.l.b16 %v8082
    %v8599 = vunpack.c.l.b16 %v8083
    %v8600 = vunpack.c.l.b16 %v8084
    %v8601 = vunpack.c.l.b16 %v8085
    %v8602 = vunpack.c.l.b16 %v8086
    %v8603 = vunpack.c.l.b16 %v8087
    %v8604 = vunpack.c.l.b16 %v8088
    %v8605 = vunpack.c.l.b16 %v8089
    %v8606 = vunpack.c.l.b16 %v8090
    %v8607 = vunpack.c.l.b16 %v8091
    %v8608 = vunpack.c.l.b16 %v8092
    %v8609 = vunpack.c.l.b16 %v8093
    %v8610 = vunpack.c.l.b16 %v8094
    %v8611 = vunpack.c.l.b16 %v8095
    %v8612 = vunpack.c.l.b16 %v8096
    %v8613 = vunpack.c.l.b16 %v8097
    %v8614 = vunpack.c.l.b16 %v8098
    %v8615 = vunpack.c.l.b16 %v8099
    %v8616 = vunpack.c.l.b16 %v8100
    %v8617 = vunpack.c.l.b16 %v8101
    %v8618 = vunpack.c.l.b16 %v8102
    %v8619 = vunpack.c.l.b16 %v8103
    %v8620 = vunpack.c.l.b16 %v8104
    %v8621 = vunpack.c.l.b16 %v8105
    %v8622 = vunpack.c.l.b16 %v8106
    %v8623 = vunpack.c.l.b16 %v8107
    %v8624 = vunpack.c.l.b16 %v8108
    %v8625 = vunpack.c.l.b16 %v8109
    %v8626 = vunpack.c.l.b16 %v8110
    %v8627 = vunpack.c.l.b16 %v8111
    %v8628 = vunpack.c.l.b16 %v8112
    %v8629 = vunpack.c.l.b16 %v8113
    %v8630 = vunpack.c.l.b16 %v8114
    %v8631 = vunpack.c.l.b16 %v8115
    %v8632 = vunpack.c.l.b16 %v8116
    %v8633 = vunpack.c.l.b16 %v8117
    %v8634 = vunpack.c.l.b16 %v8118
    %v8635 = vunpack.c.l.b16 %v8119
    %v8636 = vunpack.c.l.b16 %v8120
    %v8637 = vunpack.c.l.b16 %v8121
    %v8638 = vunpack.c.l.b16 %v8122
    %v8639 = vunpack.c.l.b16 %v8123
    %v8640 = vunpack.c.l.b16 %v8124
    %v8641 = vunpack.c.l.b16 %v8125
    %v8642 = vunpack.c.l.b16 %v8126
    %v8643 = vunpack.c.l.b16 %v8127
    %v8644 = vunpack.c.l.b16 %v8128
    %v8645 = vunpack.c.l.b16 %v8129
    %v8646 = vunpack.c.l.b16 %v8130
    %v8647 = vunpack.c.l.b16 %v8131
    %v8648 = vunpack.c.l.b16 %v8132
    %v8649 = vunpack.c.l.b16 %v8133
    %v8650 = vunpack.c.l.b16 %v8134
    %v8651 = vunpack.c.l.b16 %v8135
    %v8652 = vunpack.c.l.b16 %v8136
    %v8653 = vunpack.c.l.b16 %v8137
    %v8654 = vunpack.c.l.b16 %v8138
    %v8655 = vunpack.c.l.b16 %v8139
    %v8656 = vunpack.c.l.b16 %v8140
    %v8657 = vunpack.c.l.b16 %v8141
    %v8658 = vunpack.c.l.b16 %v8142
    %v8659 = vunpack.c.l.b16 %v8143
    %v8660 = vunpack.c.l.b16 %v8144
    %v8661 = vunpack.c.l.b16 %v8145
    %v8662 = vunpack.c.l.b16 %v8146
    %v8663 = vunpack.c.l.b16 %v8147
    %v8664 = vunpack.c.l.b16 %v8148
    %v8665 = vunpack.c.l.b16 %v8149
    %v8666 = vunpack.c.l.b16 %v8150
    %v8667 = vunpack.c.l.b16 %v8151
    %v8668 = vunpack.c.l.b16 %v8152
    %v8669 = vunpack.c.l.b16 %v8153
    %v8670 = vunpack.c.l.b16 %v8154
    %v8671 = vunpack.c.l.b16 %v8155
    %v8672 = vunpack.c.l.b16 %v8156
    %v8673 = vunpack.c.l.b16 %v8157
    %v8674 = vunpack.c.l.b16 %v8158
    %v8675 = vunpack.c.l.b16 %v8159
    %v8676 = vunpack.c.l.b16 %v8160
    %v8677 = vunpack.c.l.b16 %v8161
    %v8678 = vunpack.c.l.b16 %v8162
    %v8679 = vunpack.c.l.b16 %v8163
    %v8680 = vunpack.c.l.b16 %v8164
    %v8681 = vunpack.c.l.b16 %v8165
    %v8682 = vunpack.c.l.b16 %v8166
    %v8683 = vunpack.c.l.b16 %v8167
    %v8684 = vunpack.c.l.b16 %v8168
    %v8685 = vunpack.c.l.b16 %v8169
    %v8686 = vunpack.c.l.b16 %v8170
    %v8687 = vunpack.c.l.b16 %v8171
    %v8688 = vunpack.c.l.b16 %v8172
    %v8689 = vunpack.c.l.b16 %v8173
    %v8690 = vunpack.c.l.b16 %v8174
    %v8691 = vunpack.c.l.b16 %v8175
    %v8692 = vunpack.c.l.b16 %v8176
    %v8693 = vunpack.c.l.b16 %v8177
    %v8694 = vunpack.c.l.b16 %v8178
    %v8695 = vunpack.c.l.b16 %v8179
    %v8696 = vunpack.c.l.b16 %v8180
    %v8697 = vunpack.c.l.b16 %v8181
    %v8698 = vunpack.c.l.b16 %v8182
    %v8699 = vunpack.c.l.b16 %v8183
    %v8700 = vunpack.c.l.b16 %v8184
    %v8701 = vunpack.c.l.b16 %v8185
    %v8702 = vunpack.c.l.b16 %v8186
    %v8703 = vunpack.c.l.b16 %v8187
    %v8704 = vunpack.c.l.b16 %v8188
    %v8705 = vunpack.c.l.b16 %v8189
    %v8706 = vunpack.c.l.b16 %v8190
    %v8707 = vunpack.c.l.b16 %v8191
    %v8708 = vunpack.c.l.b16 %v8192
    %v8709 = vunpack.c.l.b16 %v8193
    %v8710 = vunpack.c.l.b16 %v8194
    %v8711 = vunpack.c.l.b16 %v8195
    %v8712 = vunpack.c.l.b16 %v8196
    %v8713 = vunpack.c.l.b16 %v8197
    %v8714 = vunpack.c.l.b16 %v8198
    %v8715 = vunpack.c.l.b16 %v8199
    %v8716 = vunpack.c.l.b16 %v8200
    %v8717 = vunpack.c.l.b16 %v8201
    %v8718 = vunpack.c.l.b16 %v8202
    %v8719 = vunpack.c.l.b16 %v8203
    %v8720 = vunpack.c.l.b16 %v8204
    %v8721 = vunpack.c.l.b16 %v8205
    %v8722 = vunpack.c.l.b16 %v8206
    %v8723 = vunpack.c.l.b16 %v8207
    %v8724 = vunpack.c.l.b16 %v8208
    %v8725 = vunpack.c.l.b16 %v8209
    %v8726 = vunpack.c.l.b16 %v8210
    %v8727 = vunpack.c.l.b16 %v8211
    %v8728 = vunpack.c.l.b16 %v8212
    %v8729 = vunpack.c.l.b16 %v8213
    %v8730 = vunpack.c.l.b16 %v8214
    %v8731 = vunpack.c.l.b16 %v8215
    %v8732 = vunpack.c.l.b16 %v8216
    %v8733 = vunpack.c.l.b16 %v8217
    %v8734 = vunpack.c.l.b16 %v8218
    %v8735 = vunpack.c.l.b16 %v8219
    %v8736 = vunpack.c.l.b16 %v8220
    %v8737 = vunpack.c.l.b16 %v8221
    %v8738 = vunpack.c.l.b16 %v8222
    %v8739 = vunpack.c.l.b16 %v8223
    %v8740 = vunpack.c.l.b16 %v8224
    %v8741 = vunpack.c.l.b16 %v8225
    %v8742 = vunpack.c.l.b16 %v8226
    %v8743 = vunpack.c.l.b16 %v8227
    %v8744 = vunpack.c.l.b16 %v8228
    %v8745 = vunpack.c.l.b16 %v8229
    %v8746 = vunpack.c.l.b16 %v8230
    %v8747 = vunpack.c.l.b16 %v8231
    %v8748 = vunpack.c.l.b16 %v8232
    %v8749 = vunpack.c.l.b16 %v8233
    %v8750 = vunpack.c.l.b16 %v8234
    %v8751 = vunpack.c.l.b16 %v8235
    %v8752 = vunpack.c.l.b16 %v8236
    %v8753 = vunpack.c.l.b16 %v8237
    %v8754 = vunpack.c.l.b16 %v8238
    %v8755 = vunpack.c.l.b16 %v8239
    %v8756 = vunpack.c.l.b16 %v8240
    %v8757 = vunpack.c.l.b16 %v8241
    %v8758 = vunpack.c.l.b16 %v8242
    %v8759 = vunpack.c.l.b16 %v8243
    %v8760 = vunpack.c.l.b16 %v8244
    %v8761 = vunpack.c.l.b16 %v8245
    %v8762 = vunpack.c.l.b16 %v8246
    %v8763 = vunpack.c.l.b16 %v8247
    %v8764 = vunpack.c.l.b16 %v8248
    %v8765 = vunpack.c.l.b16 %v8249
    %v8766 = vunpack.c.l.b16 %v8250
    %v8767 = vunpack.c.l.b16 %v8251
    %v8768 = vunpack.c.l.b16 %v8252
    %v8769 = vunpack.c.l.b16 %v8253
    %v8770 = vunpack.c.l.b16 %v8254
    %v8771 = vunpack.c.l.b16 %v8255
    %v8772 = vunpack.c.l.b16 %v8256
    %v8773 = vpack.c.b16 %v8518, %v8517
    %v8774 = vpack.c.b16 %v8520, %v8519
    %v8775 = vpack.c.b16 %v8522, %v8521
    %v8776 = vpack.c.b16 %v8524, %v8523
    %v8777 = vpack.c.b16 %v8526, %v8525
    %v8778 = vpack.c.b16 %v8528, %v8527
    %v8779 = vpack.c.b16 %v8530, %v8529
    %v8780 = vpack.c.b16 %v8532, %v8531
    %v8781 = vpack.c.b16 %v8534, %v8533
    %v8782 = vpack.c.b16 %v8536, %v8535
    %v8783 = vpack.c.b16 %v8538, %v8537
    %v8784 = vpack.c.b16 %v8540, %v8539
    %v8785 = vpack.c.b16 %v8542, %v8541
    %v8786 = vpack.c.b16 %v8544, %v8543
    %v8787 = vpack.c.b16 %v8546, %v8545
    %v8788 = vpack.c.b16 %v8548, %v8547
    %v8789 = vpack.c.b16 %v8550, %v8549
    %v8790 = vpack.c.b16 %v8552, %v8551
    %v8791 = vpack.c.b16 %v8554, %v8553
    %v8792 = vpack.c.b16 %v8556, %v8555
    %v8793 = vpack.c.b16 %v8558, %v8557
    %v8794 = vpack.c.b16 %v8560, %v8559
    %v8795 = vpack.c.b16 %v8562, %v8561
    %v8796 = vpack.c.b16 %v8564, %v8563
    %v8797 = vpack.c.b16 %v8566, %v8565
    %v8798 = vpack.c.b16 %v8568, %v8567
    %v8799 = vpack.c.b16 %v8570, %v8569
    %v8800 = vpack.c.b16 %v8572, %v8571
    %v8801 = vpack.c.b16 %v8574, %v8573
    %v8802 = vpack.c.b16 %v8576, %v8575
    %v8803 = vpack.c.b16 %v8578, %v8577
    %v8804 = vpack.c.b16 %v8580, %v8579
    %v8805 = vpack.c.b16 %v8582, %v8581
    %v8806 = vpack.c.b16 %v8584, %v8583
    %v8807 = vpack.c.b16 %v8586, %v8585
    %v8808 = vpack.c.b16 %v8588, %v8587
    %v8809 = vpack.c.b16 %v8590, %v8589
    %v8810 = vpack.c.b16 %v8592, %v8591
    %v8811 = vpack.c.b16 %v8594, %v8593
    %v8812 = vpack.c.b16 %v8596, %v8595
    %v8813 = vpack.c.b16 %v8598, %v8597
    %v8814 = vpack.c.b16 %v8600, %v8599
    %v8815 = vpack.c.b16 %v8602, %v8601
    %v8816 = vpack.c.b16 %v8604, %v8603
    %v8817 = vpack.c.b16 %v8606, %v8605
    %v8818 = vpack.c.b16 %v8608, %v8607
    %v8819 = vpack.c.b16 %v8610, %v8609
    %v8820 = vpack.c.b16 %v8612, %v8611
    %v8821 = vpack.c.b16 %v8614, %v8613
    %v8822 = vpack.c.b16 %v8616, %v8615
    %v8823 = vpack.c.b16 %v8618, %v8617
    %v8824 = vpack.c.b16 %v8620, %v8619
    %v8825 = vpack.c.b16 %v8622, %v8621
    %v8826 = vpack.c.b16 %v8624, %v8623
    %v8827 = vpack.c.b16 %v8626, %v8625
    %v8828 = vpack.c.b16 %v8628, %v8627
    %v8829 = vpack.c.b16 %v8630, %v8629
    %v8830 = vpack.c.b16 %v8632, %v8631
    %v8831 = vpack.c.b16 %v8634, %v8633
    %v8832 = vpack.c.b16 %v8636, %v8635
    %v8833 = vpack.c.b16 %v8638, %v8637
    %v8834 = vpack.c.b16 %v8640, %v8639
    %v8835 = vpack.c.b16 %v8642, %v8641
    %v8836 = vpack.c.b16 %v8644, %v8643
    %v8837 = vpack.c.b16 %v8646, %v8645
    %v8838 = vpack.c.b16 %v8648, %v8647
    %v8839 = vpack.c.b16 %v8650, %v8649
    %v8840 = vpack.c.b16 %v8652, %v8651
    %v8841 = vpack.c.b16 %v8654, %v8653
    %v8842 = vpack.c.b16 %v8656, %v8655
    %v8843 = vpack.c.b16 %v8658, %v8657
    %v8844 = vpack.c.b16 %v8660, %v8659
    %v8845 = vpack.c.b16 %v8662, %v8661
    %v8846 = vpack.c.b16 %v8664, %v8663
    %v8847 = vpack.c.b16 %v8666, %v8665
    %v8848 = vpack.c.b16 %v8668, %v8667
    %v8849 = vpack.c.b16 %v8670, %v8669
    %v8850 = vpack.c.b16 %v8672, %v8671
    %v8851 = vpack.c.b16 %v8674, %v8673
    %v8852 = vpack.c.b16 %v8676, %v8675
    %v8853 = vpack.c.b16 %v8678, %v8677
    %v8854 = vpack.c.b16 %v8680, %v8679
    %v8855 = vpack.c.b16 %v8682, %v8681
    %v8856 = vpack.c.b16 %v8684, %v8683
    %v8857 = vpack.c.b16 %v8686, %v8685
    %v8858 = vpack.c.b16 %v8688, %v8687
    %v8859 = vpack.c.b16 %v8690, %v8689
    %v8860 = vpack.c.b16 %v8692, %v8691
    %v8861 = vpack.c.b16 %v8694, %v8693
    %v8862 = vpack.c.b16 %v8696, %v8695
    %v8863 = vpack.c.b16 %v8698, %v8697
    %v8864 = vpack.c.b16 %v8700, %v8699
    %v8865 = vpack.c.b16 %v8702, %v8701
    %v8866 = vpack.c.b16 %v8704, %v8703
    %v8867 = vpack.c.b16 %v8706, %v8705
    %v8868 = vpack.c.b16 %v8708, %v8707
    %v8869 = vpack.c.b16 %v8710, %v8709
    %v8870 = vpack.c.b16 %v8712, %v8711
    %v8871 = vpack.c.b16 %v8714, %v8713
    %v8872 = vpack.c.b16 %v8716, %v8715
    %v8873 = vpack.c.b16 %v8718, %v8717
    %v8874 = vpack.c.b16 %v8720, %v8719
    %v8875 = vpack.c.b16 %v8722, %v8721
    %v8876 = vpack.c.b16 %v8724, %v8723
    %v8877 = vpack.c.b16 %v8726, %v8725
    %v8878 = vpack.c.b16 %v8728, %v8727
    %v8879 = vpack.c.b16 %v8730, %v8729
    %v8880 = vpack.c.b16 %v8732, %v8731
    %v8881 = vpack.c.b16 %v8734, %v8733
    %v8882 = vpack.c.b16 %v8736, %v8735
    %v8883 = vpack.c.b16 %v8738, %v8737
    %v8884 = vpack.c.b16 %v8740, %v8739
    %v8885 = vpack.c.b16 %v8742, %v8741
    %v8886 = vpack.c.b16 %v8744, %v8743
    %v8887 = vpack.c.b16 %v8746, %v8745
    %v8888 = vpack.c.b16 %v8748, %v8747
    %v8889 = vpack.c.b16 %v8750, %v8749
    %v8890 = vpack.c.b16 %v8752, %v8751
    %v8891 = vpack.c.b16 %v8754, %v8753
    %v8892 = vpack.c.b16 %v8756, %v8755
    %v8893 = vpack.c.b16 %v8758, %v8757
    %v8894 = vpack.c.b16 %v8760, %v8759
    %v8895 = vpack.c.b16 %v8762, %v8761
    %v8896 = vpack.c.b16 %v8764, %v8763
    %v8897 = vpack.c.b16 %v8766, %v8765
    %v8898 = vpack.c.b16 %v8768, %v8767
    %v8899 = vpack.c.b16 %v8770, %v8769
    %v8900 = vpack.c.b16 %v8772, %v8771
    %9029 = vmatprep.subr.bf16.mxu0 0
    %9030 = vmatpush1.bf16.msra.mxu0 %v8780
    %9031 = vmatprep.subr.bf16.mxu0 0
    %9032 = vmatpush1.bf16.msra.mxu0 %v8779
    %9033 = vmatprep.subr.bf16.mxu0 0
    %9034 = vmatpush1.bf16.msra.mxu0 %v8778
    %9035 = vmatprep.subr.bf16.mxu0 0
    %9036 = vmatpush1.bf16.msra.mxu0 %v8777
    %9037 = vmatprep.subr.bf16.mxu0 0
    %9038 = vmatpush1.bf16.msra.mxu0 %v8776
    %9039 = vmatprep.subr.bf16.mxu0 0
    %9040 = vmatpush1.bf16.msra.mxu0 %v8775
    %9041 = vmatprep.subr.bf16.mxu0 0
    %9042 = vmatpush1.bf16.msra.mxu0 %v8774
    %9043 = vmatprep.subr.bf16.mxu0 0
    %9044 = vmatpush1.bf16.msra.mxu0 %v8773
    %9045 = vmatprep.subr.bf16.mxu0 0
    %9046 = vmatpush2.bf16.msra.mxu0 %v8788
    %9047 = vmatprep.subr.bf16.mxu0 0
    %9048 = vmatpush2.bf16.msra.mxu0 %v8787
    %9049 = vmatprep.subr.bf16.mxu0 0
    %9050 = vmatpush2.bf16.msra.mxu0 %v8786
    %9051 = vmatprep.subr.bf16.mxu0 0
    %9052 = vmatpush2.bf16.msra.mxu0 %v8785
    %9053 = vmatprep.subr.bf16.mxu0 0
    %9054 = vmatpush2.bf16.msra.mxu0 %v8784
    %9055 = vmatprep.subr.bf16.mxu0 0
    %9056 = vmatpush2.bf16.msra.mxu0 %v8783
    %9057 = vmatprep.subr.bf16.mxu0 0
    %9058 = vmatpush2.bf16.msra.mxu0 %v8782
    %9059 = vmatprep.subr.bf16.mxu0 0
    %9060 = vmatpush2.bf16.msra.mxu0 %v8781
    %9061 = vmatprep.mubr.bf16.mxu0 %v7985
    %9062 = vmatmul.mubr.bf16.gmra.mxu0 %v7984
    %v9063 = vpop.f32.mrf.mxu0
    %v9064 = vadd.f32 %v8260, %v9063
    %v9065 = vpop.f32.mrf.mxu0
    %v9066 = vpop.f32.mrf.mxu0
    %v9067 = vpop.f32.mrf.mxu0
    %9068 = vdwg.mxu0
    %9069 = vmatprep.subr.bf16.mxu0 0
    %9070 = vmatpush1.bf16.msra.mxu0 %v8796
    %9071 = vmatprep.subr.bf16.mxu0 0
    %9072 = vmatpush1.bf16.msra.mxu0 %v8795
    %9073 = vmatprep.subr.bf16.mxu0 0
    %9074 = vmatpush1.bf16.msra.mxu0 %v8794
    %9075 = vmatprep.subr.bf16.mxu0 0
    %9076 = vmatpush1.bf16.msra.mxu0 %v8793
    %9077 = vmatprep.subr.bf16.mxu0 0
    %9078 = vmatpush1.bf16.msra.mxu0 %v8792
    %9079 = vmatprep.subr.bf16.mxu0 0
    %9080 = vmatpush1.bf16.msra.mxu0 %v8791
    %9081 = vmatprep.subr.bf16.mxu0 0
    %9082 = vmatpush1.bf16.msra.mxu0 %v8790
    %9083 = vmatprep.subr.bf16.mxu0 0
    %9084 = vmatpush1.bf16.msra.mxu0 %v8789
    %9085 = vmatprep.subr.bf16.mxu0 0
    %9086 = vmatpush2.bf16.msra.mxu0 %v8804
    %9087 = vmatprep.subr.bf16.mxu0 0
    %9088 = vmatpush2.bf16.msra.mxu0 %v8803
    %9089 = vmatprep.subr.bf16.mxu0 0
    %9090 = vmatpush2.bf16.msra.mxu0 %v8802
    %9091 = vmatprep.subr.bf16.mxu0 0
    %9092 = vmatpush2.bf16.msra.mxu0 %v8801
    %9093 = vmatprep.subr.bf16.mxu0 0
    %9094 = vmatpush2.bf16.msra.mxu0 %v8800
    %9095 = vmatprep.subr.bf16.mxu0 0
    %9096 = vmatpush2.bf16.msra.mxu0 %v8799
    %9097 = vmatprep.subr.bf16.mxu0 0
    %9098 = vmatpush2.bf16.msra.mxu0 %v8798
    %9099 = vmatprep.subr.bf16.mxu0 0
    %9100 = vmatpush2.bf16.msra.mxu0 %v8797
    %9101 = vmatprep.mubr.bf16.mxu0 %v7987
    %9102 = vmatmul.mubr.bf16.gmra.mxu0 %v7986
    %v9103 = vpop.f32.mrf.mxu0
    %v9104 = vadd.f32 %v9064, %v9103
    %v9105 = vpop.f32.mrf.mxu0
    %v9106 = vpop.f32.mrf.mxu0
    %v9107 = vpop.f32.mrf.mxu0
    %9108 = vdwg.mxu0
    %9109 = vmatprep.subr.bf16.mxu0 0
    %9110 = vmatpush1.bf16.msra.mxu0 %v8812
    %9111 = vmatprep.subr.bf16.mxu0 0
    %9112 = vmatpush1.bf16.msra.mxu0 %v8811
    %9113 = vmatprep.subr.bf16.mxu0 0
    %9114 = vmatpush1.bf16.msra.mxu0 %v8810
    %9115 = vmatprep.subr.bf16.mxu0 0
    %9116 = vmatpush1.bf16.msra.mxu0 %v8809
    %9117 = vmatprep.subr.bf16.mxu0 0
    %9118 = vmatpush1.bf16.msra.mxu0 %v8808
    %9119 = vmatprep.subr.bf16.mxu0 0
    %9120 = vmatpush1.bf16.msra.mxu0 %v8807
    %9121 = vmatprep.subr.bf16.mxu0 0
    %9122 = vmatpush1.bf16.msra.mxu0 %v8806
    %9123 = vmatprep.subr.bf16.mxu0 0
    %9124 = vmatpush1.bf16.msra.mxu0 %v8805
    %9125 = vmatprep.subr.bf16.mxu0 0
    %9126 = vmatpush2.bf16.msra.mxu0 %v8820
    %9127 = vmatprep.subr.bf16.mxu0 0
    %9128 = vmatpush2.bf16.msra.mxu0 %v8819
    %9129 = vmatprep.subr.bf16.mxu0 0
    %9130 = vmatpush2.bf16.msra.mxu0 %v8818
    %9131 = vmatprep.subr.bf16.mxu0 0
    %9132 = vmatpush2.bf16.msra.mxu0 %v8817
    %9133 = vmatprep.subr.bf16.mxu0 0
    %9134 = vmatpush2.bf16.msra.mxu0 %v8816
    %9135 = vmatprep.subr.bf16.mxu0 0
    %9136 = vmatpush2.bf16.msra.mxu0 %v8815
    %9137 = vmatprep.subr.bf16.mxu0 0
    %9138 = vmatpush2.bf16.msra.mxu0 %v8814
    %9139 = vmatprep.subr.bf16.mxu0 0
    %9140 = vmatpush2.bf16.msra.mxu0 %v8813
    %9141 = vmatprep.mubr.bf16.mxu0 %v7989
    %9142 = vmatmul.mubr.bf16.gmra.mxu0 %v7988
    %v9143 = vpop.f32.mrf.mxu0
    %v9144 = vadd.f32 %v9104, %v9143
    %v9145 = vpop.f32.mrf.mxu0
    %v9146 = vpop.f32.mrf.mxu0
    %v9147 = vpop.f32.mrf.mxu0
    %9148 = vdwg.mxu0
    %9149 = vmatprep.subr.bf16.mxu0 0
    %9150 = vmatpush1.bf16.msra.mxu0 %v8828
    %9151 = vmatprep.subr.bf16.mxu0 0
    %9152 = vmatpush1.bf16.msra.mxu0 %v8827
    %9153 = vmatprep.subr.bf16.mxu0 0
    %9154 = vmatpush1.bf16.msra.mxu0 %v8826
    %9155 = vmatprep.subr.bf16.mxu0 0
    %9156 = vmatpush1.bf16.msra.mxu0 %v8825
    %9157 = vmatprep.subr.bf16.mxu0 0
    %9158 = vmatpush1.bf16.msra.mxu0 %v8824
    %9159 = vmatprep.subr.bf16.mxu0 0
    %9160 = vmatpush1.bf16.msra.mxu0 %v8823
    %9161 = vmatprep.subr.bf16.mxu0 0
    %9162 = vmatpush1.bf16.msra.mxu0 %v8822
    %9163 = vmatprep.subr.bf16.mxu0 0
    %9164 = vmatpush1.bf16.msra.mxu0 %v8821
    %9165 = vmatprep.subr.bf16.mxu0 0
    %9166 = vmatpush2.bf16.msra.mxu0 %v8836
    %9167 = vmatprep.subr.bf16.mxu0 0
    %9168 = vmatpush2.bf16.msra.mxu0 %v8835
    %9169 = vmatprep.subr.bf16.mxu0 0
    %9170 = vmatpush2.bf16.msra.mxu0 %v8834
    %9171 = vmatprep.subr.bf16.mxu0 0
    %9172 = vmatpush2.bf16.msra.mxu0 %v8833
    %9173 = vmatprep.subr.bf16.mxu0 0
    %9174 = vmatpush2.bf16.msra.mxu0 %v8832
    %9175 = vmatprep.subr.bf16.mxu0 0
    %9176 = vmatpush2.bf16.msra.mxu0 %v8831
    %9177 = vmatprep.subr.bf16.mxu0 0
    %9178 = vmatpush2.bf16.msra.mxu0 %v8830
    %9179 = vmatprep.subr.bf16.mxu0 0
    %9180 = vmatpush2.bf16.msra.mxu0 %v8829
    %9181 = vmatprep.mubr.bf16.mxu0 %v7991
    %9182 = vmatmul.mubr.bf16.gmra.mxu0 %v7990
    %v9183 = vpop.f32.mrf.mxu0
    %v9184 = vadd.f32 %v9144, %v9183
    %v9185 = vpop.f32.mrf.mxu0
    %v9186 = vpop.f32.mrf.mxu0
    %v9187 = vpop.f32.mrf.mxu0
    %9188 = vdwg.mxu0
    %9189 = vmatprep.subr.bf16.mxu0 0
    %9190 = vmatpush1.bf16.msra.mxu0 %v8844
    %9191 = vmatprep.subr.bf16.mxu0 0
    %9192 = vmatpush1.bf16.msra.mxu0 %v8843
    %9193 = vmatprep.subr.bf16.mxu0 0
    %9194 = vmatpush1.bf16.msra.mxu0 %v8842
    %9195 = vmatprep.subr.bf16.mxu0 0
    %9196 = vmatpush1.bf16.msra.mxu0 %v8841
    %9197 = vmatprep.subr.bf16.mxu0 0
    %9198 = vmatpush1.bf16.msra.mxu0 %v8840
    %9199 = vmatprep.subr.bf16.mxu0 0
    %9200 = vmatpush1.bf16.msra.mxu0 %v8839
    %9201 = vmatprep.subr.bf16.mxu0 0
    %9202 = vmatpush1.bf16.msra.mxu0 %v8838
    %9203 = vmatprep.subr.bf16.mxu0 0
    %9204 = vmatpush1.bf16.msra.mxu0 %v8837
    %9205 = vmatprep.subr.bf16.mxu0 0
    %9206 = vmatpush2.bf16.msra.mxu0 %v8852
    %9207 = vmatprep.subr.bf16.mxu0 0
    %9208 = vmatpush2.bf16.msra.mxu0 %v8851
    %9209 = vmatprep.subr.bf16.mxu0 0
    %9210 = vmatpush2.bf16.msra.mxu0 %v8850
    %9211 = vmatprep.subr.bf16.mxu0 0
    %9212 = vmatpush2.bf16.msra.mxu0 %v8849
    %9213 = vmatprep.subr.bf16.mxu0 0
    %9214 = vmatpush2.bf16.msra.mxu0 %v8848
    %9215 = vmatprep.subr.bf16.mxu0 0
    %9216 = vmatpush2.bf16.msra.mxu0 %v8847
    %9217 = vmatprep.subr.bf16.mxu0 0
    %9218 = vmatpush2.bf16.msra.mxu0 %v8846
    %9219 = vmatprep.subr.bf16.mxu0 0
    %9220 = vmatpush2.bf16.msra.mxu0 %v8845
    %9221 = vmatprep.mubr.bf16.mxu0 %v7993
    %9222 = vmatmul.mubr.bf16.gmra.mxu0 %v7992
    %v9223 = vpop.f32.mrf.mxu0
    %v9224 = vadd.f32 %v9184, %v9223
    %v9225 = vpop.f32.mrf.mxu0
    %v9226 = vpop.f32.mrf.mxu0
    %v9227 = vpop.f32.mrf.mxu0
    %9228 = vdwg.mxu0
    %9229 = vmatprep.subr.bf16.mxu0 0
    %9230 = vmatpush1.bf16.msra.mxu0 %v8860
    %9231 = vmatprep.subr.bf16.mxu0 0
    %9232 = vmatpush1.bf16.msra.mxu0 %v8859
    %9233 = vmatprep.subr.bf16.mxu0 0
    %9234 = vmatpush1.bf16.msra.mxu0 %v8858
    %9235 = vmatprep.subr.bf16.mxu0 0
    %9236 = vmatpush1.bf16.msra.mxu0 %v8857
    %9237 = vmatprep.subr.bf16.mxu0 0
    %9238 = vmatpush1.bf16.msra.mxu0 %v8856
    %9239 = vmatprep.subr.bf16.mxu0 0
    %9240 = vmatpush1.bf16.msra.mxu0 %v8855
    %9241 = vmatprep.subr.bf16.mxu0 0
    %9242 = vmatpush1.bf16.msra.mxu0 %v8854
    %9243 = vmatprep.subr.bf16.mxu0 0
    %9244 = vmatpush1.bf16.msra.mxu0 %v8853
    %9245 = vmatprep.subr.bf16.mxu0 0
    %9246 = vmatpush2.bf16.msra.mxu0 %v8868
    %9247 = vmatprep.subr.bf16.mxu0 0
    %9248 = vmatpush2.bf16.msra.mxu0 %v8867
    %9249 = vmatprep.subr.bf16.mxu0 0
    %9250 = vmatpush2.bf16.msra.mxu0 %v8866
    %9251 = vmatprep.subr.bf16.mxu0 0
    %9252 = vmatpush2.bf16.msra.mxu0 %v8865
    %9253 = vmatprep.subr.bf16.mxu0 0
    %9254 = vmatpush2.bf16.msra.mxu0 %v8864
    %9255 = vmatprep.subr.bf16.mxu0 0
    %9256 = vmatpush2.bf16.msra.mxu0 %v8863
    %9257 = vmatprep.subr.bf16.mxu0 0
    %9258 = vmatpush2.bf16.msra.mxu0 %v8862
    %9259 = vmatprep.subr.bf16.mxu0 0
    %9260 = vmatpush2.bf16.msra.mxu0 %v8861
    %9261 = vmatprep.mubr.bf16.mxu0 %v7995
    %9262 = vmatmul.mubr.bf16.gmra.mxu0 %v7994
    %v9263 = vpop.f32.mrf.mxu0
    %v9264 = vadd.f32 %v9224, %v9263
    %v9265 = vpop.f32.mrf.mxu0
    %v9266 = vpop.f32.mrf.mxu0
    %v9267 = vpop.f32.mrf.mxu0
    %9268 = vdwg.mxu0
    %9269 = vmatprep.subr.bf16.mxu0 0
    %9270 = vmatpush1.bf16.msra.mxu0 %v8876
    %9271 = vmatprep.subr.bf16.mxu0 0
    %9272 = vmatpush1.bf16.msra.mxu0 %v8875
    %9273 = vmatprep.subr.bf16.mxu0 0
    %9274 = vmatpush1.bf16.msra.mxu0 %v8874
    %9275 = vmatprep.subr.bf16.mxu0 0
    %9276 = vmatpush1.bf16.msra.mxu0 %v8873
    %9277 = vmatprep.subr.bf16.mxu0 0
    %9278 = vmatpush1.bf16.msra.mxu0 %v8872
    %9279 = vmatprep.subr.bf16.mxu0 0
    %9280 = vmatpush1.bf16.msra.mxu0 %v8871
    %9281 = vmatprep.subr.bf16.mxu0 0
    %9282 = vmatpush1.bf16.msra.mxu0 %v8870
    %9283 = vmatprep.subr.bf16.mxu0 0
    %9284 = vmatpush1.bf16.msra.mxu0 %v8869
    %9285 = vmatprep.subr.bf16.mxu0 0
    %9286 = vmatpush2.bf16.msra.mxu0 %v8884
    %9287 = vmatprep.subr.bf16.mxu0 0
    %9288 = vmatpush2.bf16.msra.mxu0 %v8883
    %9289 = vmatprep.subr.bf16.mxu0 0
    %9290 = vmatpush2.bf16.msra.mxu0 %v8882
    %9291 = vmatprep.subr.bf16.mxu0 0
    %9292 = vmatpush2.bf16.msra.mxu0 %v8881
    %9293 = vmatprep.subr.bf16.mxu0 0
    %9294 = vmatpush2.bf16.msra.mxu0 %v8880
    %9295 = vmatprep.subr.bf16.mxu0 0
    %9296 = vmatpush2.bf16.msra.mxu0 %v8879
    %9297 = vmatprep.subr.bf16.mxu0 0
    %9298 = vmatpush2.bf16.msra.mxu0 %v8878
    %9299 = vmatprep.subr.bf16.mxu0 0
    %9300 = vmatpush2.bf16.msra.mxu0 %v8877
    %9301 = vmatprep.mubr.bf16.mxu0 %v7997
    %9302 = vmatmul.mubr.bf16.gmra.mxu0 %v7996
    %v9303 = vpop.f32.mrf.mxu0
    %v9304 = vadd.f32 %v9264, %v9303
    %v9305 = vpop.f32.mrf.mxu0
    %v9306 = vpop.f32.mrf.mxu0
    %v9307 = vpop.f32.mrf.mxu0
    %9308 = vdwg.mxu0
    %9309 = vmatprep.subr.bf16.mxu0 0
    %9310 = vmatpush1.bf16.msra.mxu0 %v8892
    %9311 = vmatprep.subr.bf16.mxu0 0
    %9312 = vmatpush1.bf16.msra.mxu0 %v8891
    %9313 = vmatprep.subr.bf16.mxu0 0
    %9314 = vmatpush1.bf16.msra.mxu0 %v8890
    %9315 = vmatprep.subr.bf16.mxu0 0
    %9316 = vmatpush1.bf16.msra.mxu0 %v8889
    %9317 = vmatprep.subr.bf16.mxu0 0
    %9318 = vmatpush1.bf16.msra.mxu0 %v8888
    %9319 = vmatprep.subr.bf16.mxu0 0
    %9320 = vmatpush1.bf16.msra.mxu0 %v8887
    %9321 = vmatprep.subr.bf16.mxu0 0
    %9322 = vmatpush1.bf16.msra.mxu0 %v8886
    %9323 = vmatprep.subr.bf16.mxu0 0
    %9324 = vmatpush1.bf16.msra.mxu0 %v8885
    %9325 = vmatprep.subr.bf16.mxu0 0
    %9326 = vmatpush2.bf16.msra.mxu0 %v8900
    %9327 = vmatprep.subr.bf16.mxu0 0
    %9328 = vmatpush2.bf16.msra.mxu0 %v8899
    %9329 = vmatprep.subr.bf16.mxu0 0
    %9330 = vmatpush2.bf16.msra.mxu0 %v8898
    %9331 = vmatprep.subr.bf16.mxu0 0
    %9332 = vmatpush2.bf16.msra.mxu0 %v8897
    %9333 = vmatprep.subr.bf16.mxu0 0
    %9334 = vmatpush2.bf16.msra.mxu0 %v8896
    %9335 = vmatprep.subr.bf16.mxu0 0
    %9336 = vmatpush2.bf16.msra.mxu0 %v8895
    %9337 = vmatprep.subr.bf16.mxu0 0
    %9338 = vmatpush2.bf16.msra.mxu0 %v8894
    %9339 = vmatprep.subr.bf16.mxu0 0
    %9340 = vmatpush2.bf16.msra.mxu0 %v8893
    %9341 = vmatprep.mubr.bf16.mxu0 %v7999
    %9342 = vmatmul.mubr.bf16.gmra.mxu0 %v7998
    %v9343 = vpop.f32.mrf.mxu0
    %v9344 = vadd.f32 %v9304, %v9343
    %v9345 = vpop.f32.mrf.mxu0
    %v9346 = vpop.f32.mrf.mxu0
    %v9347 = vpop.f32.mrf.mxu0
    %9348 = vdwg.mxu0
    %v9350 = vrot.slane %v9344, 1
    %v9351 = vrot.slane %v9344, 2
    %v9352 = vrot.slane %v9344, 3
    %v9353 = vrot.slane %v9344, 4
    %v9358 = vadd.f32 %v7142, %v9350
    %v9359 = vadd.f32 %v7143, %v9351
    %v9360 = vadd.f32 %v7144, %v9352
    %v9361 = vadd.f32 %v7145, %v9353
    %v9366 = vrot.slane %v9359, 7
    %v9367 = vrot.slane %v9360, 6
    %v9368 = vsel %vm7060, %v9367, %v9366
    %v9369 = vrot.slane %v9361, 5
    %v9370 = vsel %vm7063, %v9369, %v9368
    %v9373 = vsel %vm7067, %v9358, 0.0
    %9374 = vadd.xlane.f32.xlu0 %v9373
    %v9375 = vpop.xlane.xlu0 %9374
    %v9376 = vsel %vm7071, %v9370, 0.0
    %9377 = vadd.xlane.f32.xlu0 %v9376
    %v9378 = vpop.xlane.xlu0 %9377
    %v9379 = vmul.f32 %v9375, %v2281
    %v9380 = vmul.f32 %v9378, %v2281
    %v9383 = vrot.slane %v9380, 1
    %v9384 = vrot.slane %v9380, 2
    %v9385 = vrot.slane %v9380, 3
    %v9390 = vsub.f32 %v9358, %v9379
    %v9391 = vsub.f32 %v9359, %v9383
    %v9392 = vsub.f32 %v9360, %v9384
    %v9393 = vsub.f32 %v9361, %v9385
    %v9394 = vmul.f32 %v9390, %v9390
    %v9395 = vmul.f32 %v9391, %v9391
    %v9396 = vmul.f32 %v9392, %v9392
    %v9397 = vmul.f32 %v9393, %v9393
    %v9402 = vrot.slane %v9395, 7
    %v9403 = vrot.slane %v9396, 6
    %v9404 = vsel %vm7060, %v9403, %v9402
    %v9405 = vrot.slane %v9397, 5
    %v9406 = vsel %vm7063, %v9405, %v9404
    %v9409 = vsel %vm7067, %v9394, 0.0
    %9410 = vadd.xlane.f32.xlu0 %v9409
    %v9411 = vpop.xlane.xlu0 %9410
    %v9412 = vsel %vm7071, %v9406, 0.0
    %9413 = vadd.xlane.f32.xlu0 %v9412
    %v9414 = vpop.xlane.xlu0 %9413
    %v9415 = vmul.f32 %v9411, %v2281
    %v9416 = vmul.f32 %v9414, %v2281
    %v9417 = vadd.f32 %v9415, 1e-05
    %v9418 = vadd.f32 %v9416, 1e-05
    %v9419 = vrsqrt.pop %v9417
    %v9420 = vrsqrt.pop %v9418
    %v9423 = vrot.slane %v9420, 1
    %v9424 = vrot.slane %v9420, 2
    %v9425 = vrot.slane %v9420, 3
    %v9430 = vmul.f32 %v9390, %v9419
    %v9431 = vmul.f32 %v9391, %v9423
    %v9432 = vmul.f32 %v9392, %v9424
    %v9433 = vmul.f32 %v9393, %v9425
    %v9434 = vlaneseq
    %v9435 = vshrl.u32 %v9434, 7
    %v9436 = vsub.s32 3, %v9435
    %v9437 = vrot.slane %v4827, %v9436
    %v9438 = vmul.f32 %v9430, %v9437
    %v9439 = vmul.f32 %v9431, %v9437
    %v9440 = vmul.f32 %v9432, %v9437
    %v9441 = vmul.f32 %v9433, %v9437
    %v9442 = vlaneseq
    %v9443 = vshrl.u32 %v9442, 7
    %v9444 = vsub.s32 4, %v9443
    %v9445 = vrot.slane %v4827, %v9444
    %v9446 = vadd.f32 %v9438, %v9445
    %v9447 = vadd.f32 %v9439, %v9445
    %v9448 = vadd.f32 %v9440, %v9445
    %v9449 = vadd.f32 %v9441, %v9445
    %v9450 = vld [vmem:[%s8] sm:$0xff]
    %v9451 = vld [vmem:[%s8 + $0x8] sm:$0xff]
    %v9452 = vld [vmem:[%s8 + $0x10] sm:$0xff]
    %v9453 = vld [vmem:[%s8 + $0x18] sm:$0xff]
    %v9454 = vld [vmem:[%s8 + $0x20] sm:$0xff]
    %v9455 = vld [vmem:[%s8 + $0x28] sm:$0xff]
    %v9456 = vld [vmem:[%s8 + $0x30] sm:$0xff]
    %v9457 = vld [vmem:[%s8 + $0x38] sm:$0xff]
    %v9458 = vld [vmem:[%s9] sm:$0x1]
    %v9460 = vlaneseq
    %v9461 = vshrl.u32 %v9460, 7
    %v9462 = vsub.s32 0, %v9461
    %v9463 = vrot.slane %v9458, %v9462
    %v9469 = vrot.slane %v9446, 7
    %v9470 = vrot.slane %v9447, 6
    %v9471 = vsel %vm7060, %v9470, %v9469
    %v9472 = vrot.slane %v9448, 5
    %v9473 = vsel %vm7063, %v9472, %v9471
    %v9474 = vrot.slane %v9449, 4
    %v9475 = vsel %vm7314, %v9474, %v9473
    %v9476 = vsel %vm83, %v9475, 0
    %9478 = vmatprep.subr.mxu0 0.0
    %9479 = vmatpush1.msra.mxu0 0.0
    %9480 = vmatprep.subr.mxu0 0.0
    %9481 = vmatpush1.msra.mxu0 0.0
    %9482 = vmatprep.subr.mxu0 0.0
    %9483 = vmatpush1.msra.mxu0 0.0
    %9484 = vmatprep.subr.mxu0 0.0
    %9485 = vmatpush1.msra.mxu0 0.0
    %9486 = vmatprep.subr.mxu0 0.0
    %9487 = vmatpush1.msra.mxu0 0.0
    %9488 = vmatprep.subr.mxu0 0.0
    %9489 = vmatpush1.msra.mxu0 0.0
    %9490 = vmatprep.subr.mxu0 0.0
    %9491 = vmatpush1.msra.mxu0 0.0
    %9492 = vmatprep.subr.mxu0 0.0
    %9493 = vmatpush1.msra.mxu0 0.0
    %9494 = vmatprep.subr.mxu0 0.0
    %9495 = vmatpush1.msra.mxu0 %v9457
    %9496 = vmatprep.subr.mxu0 0.0
    %9497 = vmatpush1.msra.mxu0 %v9456
    %9498 = vmatprep.subr.mxu0 0.0
    %9499 = vmatpush1.msra.mxu0 %v9455
    %9500 = vmatprep.subr.mxu0 0.0
    %9501 = vmatpush1.msra.mxu0 %v9454
    %9502 = vmatprep.subr.mxu0 0.0
    %9503 = vmatpush1.msra.mxu0 %v9453
    %9504 = vmatprep.subr.mxu0 0.0
    %9505 = vmatpush1.msra.mxu0 %v9452
    %9506 = vmatprep.subr.mxu0 0.0
    %9507 = vmatpush1.msra.mxu0 %v9451
    %9508 = vmatprep.subr.mxu0 0.0
    %9509 = vmatpush1.msra.mxu0 %v9450
    %9510 = vmatprep.subr.mxu0 0.0
    %9511 = vmatpush2.msra.mxu0 0.0
    %9512 = vmatprep.subr.mxu0 0.0
    %9513 = vmatpush2.msra.mxu0 0.0
    %9514 = vmatprep.subr.mxu0 0.0
    %9515 = vmatpush2.msra.mxu0 0.0
    %9516 = vmatprep.subr.mxu0 0.0
    %9517 = vmatpush2.msra.mxu0 0.0
    %9518 = vmatprep.subr.mxu0 0.0
    %9519 = vmatpush2.msra.mxu0 0.0
    %9520 = vmatprep.subr.mxu0 0.0
    %9521 = vmatpush2.msra.mxu0 0.0
    %9522 = vmatprep.subr.mxu0 0.0
    %9523 = vmatpush2.msra.mxu0 0.0
    %9524 = vmatprep.subr.mxu0 0.0
    %9525 = vmatpush2.msra.mxu0 0.0
    %9526 = vmatprep.subr.mxu0 0.0
    %9527 = vmatpush2.msra.mxu0 0.0
    %9528 = vmatprep.subr.mxu0 0.0
    %9529 = vmatpush2.msra.mxu0 0.0
    %9530 = vmatprep.subr.mxu0 0.0
    %9531 = vmatpush2.msra.mxu0 0.0
    %9532 = vmatprep.subr.mxu0 0.0
    %9533 = vmatpush2.msra.mxu0 0.0
    %9534 = vmatprep.subr.mxu0 0.0
    %9535 = vmatpush2.msra.mxu0 0.0
    %9536 = vmatprep.subr.mxu0 0.0
    %9537 = vmatpush2.msra.mxu0 0.0
    %9538 = vmatprep.subr.mxu0 0.0
    %9539 = vmatpush2.msra.mxu0 0.0
    %9540 = vmatprep.subr.mxu0 0.0
    %9541 = vmatpush2.msra.mxu0 0.0
    %9542 = vmatprep.mubr.f32.mxu0 0.0
    %9543 = vmatmul.mubr.f32.gmra.mxu0 %v9476
    %v9544 = vpop.f32.mrf.mxu0
    %v9545 = vadd.f32 %v9463, %v9544
    %v9546 = vpop.f32.mrf.mxu0
    %9547 = vdwg.mxu0
    %9548 = vst [vmem:[#allocation2] sm:$0xf] %v9545
    // Predicated region
    $region42: #{tpu_custom_call.1} parent=1 // pred_check
      _
    $region43: #{tpu_custom_call.1} parent=1 // pred_check_branch
      %9550 = sbr.rel (0) target = $region45
    $region44: #{tpu_custom_call.1} parent=1 // pred_region
      %s9552 = ssub.s32 64, 64
      %9553 = vsyncadd [#allocation3], %s9552
      %s9555 = sshll.u32 [#allocation2], 4
      %s9556 = int_to_ptr.vmem [resolvable:$true] %s9555
      %9558 = dma.vmem_to_hbm [thread:$0]  %s9556, 64, %s10, [#allocation3]
    $region45: #{tpu_custom_call.1} parent=1 // pred_fallthru
      _
    // Predicated region
    $region46: #{tpu_custom_call.1} parent=1 // pred_check
      _
    $region47: #{tpu_custom_call.1} parent=1 // pred_check_branch
      %9560 = sbr.rel (0) target = $region49
    $region48: #{tpu_custom_call.1} parent=1 // pred_region
      %9561 = dma.done [#allocation3], 64
    $region49: #{tpu_custom_call.1} parent=1 // pred_fallthru
      _
    %9562 = vsyncpa [#allocation3], 1

</llo_original>
